<compile_context>
chip_gen: v7x
topology: tpu7x:2x2x1
jax: 0.10.0
libtpu: 0.0.40
codegen_flags: <defaults>
</compile_context>

<pallas_src>
import math
import functools

import jax
import jax.numpy as jnp
import numpy as np
from jax.experimental import pallas as pl
from jax.experimental.pallas import tpu as pltpu

# v7x-safe VMEM budget (64 MiB per TC); v5e/v6e have 128 MiB of headroom and could
# double the TK/TN tiles below.
_VMEM_LIMIT = 64 * 1024 * 1024


def _rup(x, m):
    return (x + m - 1) // m * m


# ---------------------------------------------------------------------------
# Kernel A: conv1 (3x3, stride 2) + folded bn1 + ReLU, output written directly
# in the zero-padded flattened layout consumed by kernel B.
# ---------------------------------------------------------------------------
def _conv1_kernel(xph_ref, w1_ref, s1_ref, b1_ref, mask_ref, o_ref, *,
                  ww, mw, lp, tn):
    # 9 tap matmuls; every window start is a multiple of 8 (the kw-shift is baked
    # into which phase plane is read).  f32 accumulation, init from the first tap.
    acc = jnp.dot(xph_ref[0, 0, 0:mw, :], w1_ref[0],
                  preferred_element_type=jnp.float32)
    for kh in range(3):
        for kw in range(3):
            if kh == 0 and kw == 0:
                continue
            plane = (kh % 2) * 3 + kw          # [A0,B0,C0,A1,B1,C1] (C = A shifted +1)
            off = (kh // 2) * ww               # multiple of 8
            acc = acc + jnp.dot(xph_ref[0, plane, off:off + mw, :],
                                w1_ref[kh * 3 + kw],
                                preferred_element_type=jnp.float32)
    # folded bn1 + ReLU; junk wide columns are zeroed so they double as the zero
    # padding of the next conv's flattened layout.
    y = jnp.maximum(acc * s1_ref[...] + b1_ref[...], 0.0) * mask_ref[...]
    zpad = jnp.zeros((ww + 8, tn), o_ref.dtype)
    o_ref[0, 0:ww + 8, :] = zpad                       # top padding rows
    o_ref[0, ww + 8:ww + 8 + mw, :] = y.astype(o_ref.dtype)
    o_ref[0, ww + 8 + mw:lp, :] = zpad                 # bottom padding rows


# ---------------------------------------------------------------------------
# Kernel B: conv2 applied twice (fused, VMEM intermediate) + bn2 + downsample
# residual + ReLU.  Grid k-axis = stage-1 Cout tile = stage-2 contraction tile.
# ---------------------------------------------------------------------------
def _block_kernel(xin_ref, w2a_ref, w2s_ref, wd_ref, xd_ref, s2_ref, b2_ref,
                  mask_ref, o_ref,
                  xsh_ref, mid_ref, imcol_ref, acc2_ref, res_ref, *,
                  ww, wo, ho, mw, mv, tk, lsh, lm):
    k = pl.program_id(1)

    @pl.when(k == 0)
    def _init():
        # 8-aligned shifted copies of the stage-1 input (built once per image):
        # all 9 stage-1 tap reads below then start at multiples of 8.
        for j in range(3):
            xsh_ref[j, :, :] = xin_ref[0, 7 + j:7 + j + lsh, :]
        # zero the padded intermediate once; only its data region is rewritten
        # each k step, so the padding stays zero.
        mid_ref[...] = jnp.zeros((lm, tk), mid_ref.dtype)

    # ---- stage 1: first conv2 application, output channels [k*TK, (k+1)*TK) ----
    o1 = jnp.dot(xsh_ref[0, 0:mw, :], w2a_ref[0],
                 preferred_element_type=jnp.float32)
    for kh in range(3):
        for kw in range(3):
            if kh == 0 and kw == 0:
                continue
            o1 = o1 + jnp.dot(xsh_ref[kw, kh * ww:kh * ww + mw, :],
                              w2a_ref[kh * 3 + kw],
                              preferred_element_type=jnp.float32)
    # mask junk columns (they are the zero padding of the intermediate layout)
    mid_ref[ww + 8:ww + 8 + mw, :] = (o1 * mask_ref[...]).astype(mid_ref.dtype)

    # ---- stage 2: gather the 9 tap windows into one im2col operand so the big
    #      cross-k accumulator is touched only once per step ----
    for kh in range(3):
        for kw in range(3):
            t = kh * 3 + kw
            off = kh * ww + 7 + kw
            imcol_ref[:, t * tk:(t + 1) * tk] = mid_ref[off:off + mw, :]
    partial = jnp.dot(imcol_ref[...], w2s_ref[0],
                      preferred_element_type=jnp.float32)

    @pl.when(k == 0)
    def _set():
        acc2_ref[...] = partial          # no zeros+add on the first step

    @pl.when(k != 0)
    def _acc():
        acc2_ref[...] += partial

    # ---- epilogue on the last contraction step: bn2 + residual + ReLU on the
    #      valid rows only, compact (Ho*Wo, planes) output ----
    @pl.when(k == pl.num_programs(1) - 1)
    def _epilogue():
        res_ref[...] = jnp.dot(xd_ref[0], wd_ref[...],
                               preferred_element_type=jnp.float32)
        scale = s2_ref[...]
        bias = b2_ref[...]
        for oh in range(ho):
            rows = (acc2_ref[oh * ww:oh * ww + wo, :] * scale + bias
                    + res_ref[oh * wo:(oh + 1) * wo, :])
            o_ref[0, oh * wo:(oh + 1) * wo, :] = (
                jnp.maximum(rows, 0.0).astype(o_ref.dtype))


# ---------------------------------------------------------------------------
# Kernel C: final nn.Linear, Dout-tiled, lane-dense f32 output.
# ---------------------------------------------------------------------------
def _fc_kernel(act_ref, fcw_ref, fcb_ref, o_ref):
    o_ref[0] = (jnp.dot(act_ref[0], fcw_ref[...],
                        preferred_element_type=jnp.float32)
                + fcb_ref[...]).astype(o_ref.dtype)


# ---------------------------------------------------------------------------
# Forward pass wrapper
# ---------------------------------------------------------------------------
def resnet_swin_forward(x_nchw, params):
    eps = 1e-5
    x = jnp.transpose(x_nchw, (0, 2, 3, 1)).astype(jnp.float32)   # NHWC
    B, H, W, cin = x.shape
    if H % 2 or W % 2:
        raise ValueError("even spatial dims required")  # TODO(synk): odd H/W
    planes = params["conv1_w"].shape[-1]
    out_dim = params["fc_w"].shape[-1]
    Ho, Wo = (H - 1) // 2 + 1, (W - 1) // 2 + 1         # stride-2, pad-1, k=3

    # lane-friendly channel padding (production 1024/2048/4096 are no-ops)
    cin_p = _rup(cin, 128)
    planes_p = _rup(planes, 128)
    dout_p = _rup(out_dim, 128)

    # layout constants: wide row width WW is a multiple of 8 so all kh tap offsets
    # (multiples of WW) are sublane aligned.
    ww = _rup(Wo + 2, 8)
    mw = Ho * ww                 # wide rows per conv (junk columns included)
    mv = Ho * Wo                 # valid output rows
    lp = mw + 2 * ww + 16        # padded flattened layout length
    lsh = mw + 2 * ww            # shifted-copy scratch length
    lph = mw + ww                # conv1 phase-plane flat length

    # tile sizes: TK=128 keeps kernel B under the 64 MiB v7x budget at the
    # production sizes (Cin=1024, planes=2048, Dout=4096); v5e/v6e (128 MiB) can
    # use 256.  TN/TD are MXU-friendly multiples of 128.
    tn = 256 if planes_p % 256 == 0 else 128
    tk = 128
    td = 512 if dout_p % 512 == 0 else (256 if dout_p % 256 == 0 else 128)
    nt, kt, dt = planes_p // tn, planes_p // tk, dout_p // td

    cdt = jnp.bfloat16

    # ---- fold eval-mode BatchNorm into scales / biases ----
    def bn_fold(bn):
        g, b, m, v = bn
        s = g / jnp.sqrt(v + eps)
        return s, b - m * s

    s1, b1 = bn_fold(params["bn1"])
    s2, b2 = bn_fold(params["bn2"])
    sd, bd = bn_fold(params["bn_ds"])

    w1 = jnp.pad(params["conv1_w"],
                 ((0, 0), (0, cin_p - cin), (0, planes_p - planes))).astype(cdt)
    w2 = jnp.pad(params["conv2_w"],
                 ((0, 0), (0, planes_p - planes), (0, planes_p - planes))).astype(cdt)
    wdf = jnp.pad(params["ds_w"] * sd,
                  ((0, cin_p - cin), (0, planes_p - planes))).astype(cdt)
    fcw = jnp.pad(params["fc_w"],
                  ((0, planes_p - planes), (0, dout_p - out_dim))).astype(cdt)
    fcb = jnp.pad(params["fc_b"], (0, dout_p - out_dim)).reshape(1, dout_p).astype(jnp.float32)
    s1p = jnp.pad(s1, (0, planes_p - planes)).reshape(1, planes_p).astype(jnp.float32)
    b1p = jnp.pad(b1, (0, planes_p - planes)).reshape(1, planes_p).astype(jnp.float32)
    s2p = jnp.pad(s2, (0, planes_p - planes)).reshape(1, planes_p).astype(jnp.float32)
    b2d = jnp.pad(b2 + bd, (0, planes_p - planes)).reshape(1, planes_p).astype(jnp.float32)
    # stage-2 conv2 weight, pre-permuted so each k-tile is one contiguous
    # (9*TK, planes) block matching the in-kernel im2col column order (tap-major).
    w2s = (w2.reshape(9, kt, tk, planes_p)
             .transpose(1, 0, 2, 3)
             .reshape(kt, 9 * tk, planes_p))

    # ---- network-input layout prep (single XLA pass on the small input) ----
    xb = jnp.pad(x, ((0, 0), (0, 0), (0, 0), (0, cin_p - cin))).astype(cdt)
    xp = jnp.pad(xb, ((0, 0), (1, 1), (1, 1), (0, 0)))

    def phase(pi, pj):
        p = xp[:, pi::2, pj::2, :]                                 # (B, Ho+1, Wo+1, C)
        p = jnp.pad(p, ((0, 0), (0, 0), (0, ww - (Wo + 1)), (0, 0)))
        return p.reshape(B, (Ho + 1) * ww, cin_p)                  # (B, lph, C)

    p00, p01 = phase(0, 0), phase(0, 1)
    p10, p11 = phase(1, 0), phase(1, 1)
    xph = jnp.stack([p00, p01, jnp.roll(p00, -1, axis=1),
                     p10, p11, jnp.roll(p10, -1, axis=1)], axis=1)  # (B, 6, lph, C)

    # residual input for the fused 1x1 stride-2 downsample (valid rows only)
    xd = xb[:, ::2, ::2, :].reshape(B, mv, cin_p)

    # valid-column mask over the wide rows (junk columns double as zero padding)
    colmask = jnp.asarray(((np.arange(mw) % ww) < Wo)
                          .astype(np.float32).reshape(mw, 1))

    # ---- kernel A: conv1 + bn1 + relu ----
    conv1 = pl.pallas_call(
        functools.partial(_conv1_kernel, ww=ww, mw=mw, lp=lp, tn=tn),
        out_shape=jax.ShapeDtypeStruct((B, lp, planes_p), cdt),
        grid_spec=pltpu.PrefetchScalarGridSpec(
            num_scalar_prefetch=0,
            grid=(B, nt),
            in_specs=[
                pl.BlockSpec((1, 6, lph, cin_p), lambda b, n: (b, 0, 0, 0)),
                pl.BlockSpec((9, cin_p, tn), lambda b, n: (0, 0, n)),
                pl.BlockSpec((1, tn), lambda b, n: (0, n)),
                pl.BlockSpec((1, tn), lambda b, n: (0, n)),
                pl.BlockSpec((mw, 1), lambda b, n: (0, 0)),
            ],
            out_specs=pl.BlockSpec((1, lp, tn), lambda b, n: (b, 0, n)),
        ),
        compiler_params=pltpu.CompilerParams(
            dimension_semantics=("parallel", "parallel"),
            vmem_limit_bytes=_VMEM_LIMIT),
    )(xph, w1, s1p, b1p, colmask)

    # ---- kernel B: conv2 -> conv2 + bn2 + residual + relu (fused) ----
    # TODO(synk): the batch axis is the only parallel axis here (k is a reduction);
    # add an M-row parallel axis for small B on v7x.
    block = pl.pallas_call(
        functools.partial(_block_kernel, ww=ww, wo=Wo, ho=Ho, mw=mw, mv=mv,
                          tk=tk, lsh=lsh, lm=lp),
        out_shape=jax.ShapeDtypeStruct((B, mv, planes_p), cdt),
        grid_spec=pltpu.PrefetchScalarGridSpec(
            num_scalar_prefetch=0,
            grid=(B, kt),
            in_specs=[
                pl.BlockSpec((1, lp, planes_p), lambda b, k: (b, 0, 0)),
                pl.BlockSpec((9, planes_p, tk), lambda b, k: (0, 0, k)),
                pl.BlockSpec((1, 9 * tk, planes_p), lambda b, k: (k, 0, 0)),
                pl.BlockSpec((cin_p, planes_p), lambda b, k: (0, 0)),
                pl.BlockSpec((1, mv, cin_p), lambda b, k: (b, 0, 0)),
                pl.BlockSpec((1, planes_p), lambda b, k: (0, 0)),
                pl.BlockSpec((1, planes_p), lambda b, k: (0, 0)),
                pl.BlockSpec((mw, 1), lambda b, k: (0, 0)),
            ],
            out_specs=pl.BlockSpec((1, mv, planes_p), lambda b, k: (b, 0, 0)),
            scratch_shapes=[
                pltpu.VMEM((3, lsh, planes_p), cdt),     # shifted stage-1 input
                pltpu.VMEM((lp, tk), cdt),               # padded conv2->conv2 intermediate
                pltpu.VMEM((mw, 9 * tk), cdt),           # stage-2 im2col operand
                pltpu.VMEM((mw, planes_p), jnp.float32), # cross-k accumulator
                pltpu.VMEM((mv, planes_p), jnp.float32), # downsample residual
            ],
        ),
        compiler_params=pltpu.CompilerParams(
            dimension_semantics=("parallel", "arbitrary"),
            vmem_limit_bytes=_VMEM_LIMIT),
    )(conv1, w2, w2s, wdf, xd, s2p, b2d, colmask)

    # ---- kernel C: fc ----
    out = pl.pallas_call(
        _fc_kernel,
        out_shape=jax.ShapeDtypeStruct((B, mv, dout_p), jnp.float32),
        grid_spec=pltpu.PrefetchScalarGridSpec(
            num_scalar_prefetch=0,
            grid=(B, dt),
            in_specs=[
                pl.BlockSpec((1, mv, planes_p), lambda b, d: (b, 0, 0)),
                pl.BlockSpec((planes_p, td), lambda b, d: (0, d)),
                pl.BlockSpec((1, td), lambda b, d: (0, d)),
            ],
            out_specs=pl.BlockSpec((1, mv, td), lambda b, d: (b, 0, d)),
        ),
        compiler_params=pltpu.CompilerParams(
            dimension_semantics=("parallel", "parallel"),
            vmem_limit_bytes=_VMEM_LIMIT),
    )(block, fcw, fcb)

    if dout_p != out_dim:
        out = out[:, :, :out_dim]
    return out


# ---------------------------------------------------------------------------
# Pure-JAX reference (f32, HIGHEST precision)
# ---------------------------------------------------------------------------
def ref_forward(x_nchw, params):
    x = jnp.transpose(x_nchw, (0, 2, 3, 1)).astype(jnp.float32)
    cin = x.shape[-1]
    planes = params["conv1_w"].shape[-1]
    prec = jax.lax.Precision.HIGHEST

    def conv(inp, w_taps, stride, pad):
        w = w_taps.reshape(3, 3, w_taps.shape[1], w_taps.shape[2])
        return jax.lax.conv_general_dilated(
            inp, w, (stride, stride), [(pad, pad), (pad, pad)],
            dimension_numbers=("NHWC", "HWIO", "NHWC"), precision=prec)

    def bn(inp, p, eps=1e-5):
        g, b, m, v = p
        return (inp - m) / jnp.sqrt(v + eps) * g + b

    out = jax.nn.relu(bn(conv(x, params["conv1_w"], 2, 1), params["bn1"]))
    out = conv(out, params["conv2_w"], 1, 1)
    out = conv(out, params["conv2_w"], 1, 1)          # dcn=None -> conv2 twice
    out = bn(out, params["bn2"])
    res = jax.lax.conv_general_dilated(
        x, params["ds_w"].reshape(1, 1, cin, planes), (2, 2),
        [(0, 0), (0, 0)], dimension_numbers=("NHWC", "HWIO", "NHWC"),
        precision=prec)
    res = bn(res, params["bn_ds"])
    out = jax.nn.relu(out + res)
    B, Ho, Wo, C = out.shape
    return (jnp.dot(out.reshape(B, Ho * Wo, C), params["fc_w"], precision=prec)
            + params["fc_b"])


# ---------------------------------------------------------------------------
# Deterministic parameter construction (mirrors the module's __init__).
# Channel sizes scaled down (1024/2048/4096 -> 32/64/128) for the demo.
# ---------------------------------------------------------------------------
def make_params(key, input_dim, planes, out_dim):
    ks = jax.random.split(key, 6)

    def conv_init(k, kh, kw, cin, cout):
        n = kh * kw * cout
        std = math.sqrt(2.0 / n)
        return jax.random.normal(k, (kh, kw, cin, cout), jnp.float32) * std

    conv1_w = conv_init(ks[0], 3, 3, input_dim, planes).reshape(9, input_dim, planes)
    conv2_w = conv_init(ks[1], 3, 3, planes, planes).reshape(9, planes, planes)
    ds_w = conv_init(ks[2], 1, 1, input_dim, planes).reshape(input_dim, planes)

    def bn_params(c):  # gamma=1, beta=0, running_mean=0, running_var=1
        return (jnp.ones((c,), jnp.float32), jnp.zeros((c,), jnp.float32),
                jnp.zeros((c,), jnp.float32), jnp.ones((c,), jnp.float32))

    bound = 1.0 / math.sqrt(planes)
    fc_w = jax.random.uniform(ks[3], (planes, out_dim), jnp.float32,
                              minval=-bound, maxval=bound)
    fc_b = jax.random.uniform(ks[4], (out_dim,), jnp.float32,
                              minval=-bound, maxval=bound)

    return dict(conv1_w=conv1_w, conv2_w=conv2_w, ds_w=ds_w,
                bn1=bn_params(planes), bn2=bn_params(planes),
                bn_ds=bn_params(planes), fc_w=fc_w, fc_b=fc_b)


if __name__ == "__main__":
    # Small shapes consistent with the module structure:
    # input_dim -> 32, planes -> 64, out_dim -> 128, B=2, H=W=16.
    B, C_IN, H, W = 2, 32, 16, 16
    PLANES, OUT_DIM = 64, 128

    key = jax.random.PRNGKey(0)
    k_x, k_p = jax.random.split(key)
    x = jax.random.normal(k_x, (B, C_IN, H, W), jnp.float32)   # NCHW input
    params = make_params(k_p, C_IN, PLANES, OUT_DIM)

    fwd = jax.jit(resnet_swin_forward)
    y = jax.block_until_ready(fwd(x, params))
    assert y.shape == (B, (H // 2) * (W // 2), OUT_DIM), y.shape

    # Sanity check against the f32 HIGHEST-precision reference
    # (kernel path uses bf16 MXU inputs -> loose tolerance).
    y_ref = jax.block_until_ready(ref_forward(x, params))
    np.testing.assert_allclose(np.asarray(y), np.asarray(y_ref),
                               rtol=5e-2, atol=5e-2)

    print("KERNEL_OK")
</pallas_src>

<mosaic_0001>
module attributes {stable_mosaic.version = 11 : i64} {
  func.func @_conv1_kernel(%arg0: i32, %arg1: i32, %arg2: memref<1x6x144x128xbf16, #tpu.memory_space<vmem>>, %arg3: memref<9x128x128xbf16, #tpu.memory_space<vmem>>, %arg4: memref<1x128xf32, #tpu.memory_space<vmem>>, %arg5: memref<1x128xf32, #tpu.memory_space<vmem>>, %arg6: memref<128x1xf32, #tpu.memory_space<vmem>>, %arg7: memref<1x176x128xbf16, #tpu.memory_space<vmem>>) attributes {dimension_semantics = [#tpu.dimension_semantics<parallel>, #tpu.dimension_semantics<parallel>], iteration_bounds = array<i64: 2, 1>, scalar_prefetch = 0 : i64, scratch_operands = 0 : i64, tpu.core_type = #tpu.core_type<tc>, window_params = [{transform_indices = @transform_0, window_bounds = array<i64: 1, 6, 144, 128>}, {transform_indices = @transform_1, window_bounds = array<i64: 9, 128, 128>}, {transform_indices = @transform_2, window_bounds = array<i64: 1, 128>}, {transform_indices = @transform_3, window_bounds = array<i64: 1, 128>}, {pipeline_mode = #tpu.pipeline_mode<synchronous>, transform_indices = @transform_4, window_bounds = array<i64: 128, 1>}, {transform_indices = @transform_5, window_bounds = array<i64: 1, 176, 128>}]} {
    %c0 = arith.constant 0 : index
    %c0_0 = arith.constant 0 : index
    %c0_1 = arith.constant 0 : index
    %c0_2 = arith.constant 0 : index
    %0 = vector.load %arg2[%c0, %c0_0, %c0_1, %c0_2] : memref<1x6x144x128xbf16, #tpu.memory_space<vmem>>, vector<1x1x128x128xbf16>
    %1 = vector.shape_cast %0 : vector<1x1x128x128xbf16> to vector<128x128xbf16>
    %c0_3 = arith.constant 0 : index
    %c0_4 = arith.constant 0 : index
    %c0_5 = arith.constant 0 : index
    %2 = vector.load %arg3[%c0_3, %c0_4, %c0_5] : memref<9x128x128xbf16, #tpu.memory_space<vmem>>, vector<1x128x128xbf16>
    %3 = vector.shape_cast %2 : vector<1x128x128xbf16> to vector<128x128xbf16>
    %cst = arith.constant dense<0.000000e+00> : vector<128x128xf32>
    %4 = tpu.matmul %1, %3, %cst {dimension_numbers = #tpu.dot_dimension_numbers<[1], [0], [0], [1], [0, 0, 1, 1], [], []>} : vector<128x128xbf16>, vector<128x128xbf16>, vector<128x128xf32> -> vector<128x128xf32>
    %c0_6 = arith.constant 0 : index
    %c1 = arith.constant 1 : index
    %c0_7 = arith.constant 0 : index
    %c0_8 = arith.constant 0 : index
    %5 = vector.load %arg2[%c0_6, %c1, %c0_7, %c0_8] : memref<1x6x144x128xbf16, #tpu.memory_space<vmem>>, vector<1x1x128x128xbf16>
    %6 = vector.shape_cast %5 : vector<1x1x128x128xbf16> to vector<128x128xbf16>
    %c1_9 = arith.constant 1 : index
    %c0_10 = arith.constant 0 : index
    %c0_11 = arith.constant 0 : index
    %7 = vector.load %arg3[%c1_9, %c0_10, %c0_11] : memref<9x128x128xbf16, #tpu.memory_space<vmem>>, vector<1x128x128xbf16>
    %8 = vector.shape_cast %7 : vector<1x128x128xbf16> to vector<128x128xbf16>
    %cst_12 = arith.constant dense<0.000000e+00> : vector<128x128xf32>
    %9 = tpu.matmul %6, %8, %cst_12 {dimension_numbers = #tpu.dot_dimension_numbers<[1], [0], [0], [1], [0, 0, 1, 1], [], []>} : vector<128x128xbf16>, vector<128x128xbf16>, vector<128x128xf32> -> vector<128x128xf32>
    %10 = arith.addf %4, %9 : vector<128x128xf32>
    %c0_13 = arith.constant 0 : index
    %c2 = arith.constant 2 : index
    %c0_14 = arith.constant 0 : index
    %c0_15 = arith.constant 0 : index
    %11 = vector.load %arg2[%c0_13, %c2, %c0_14, %c0_15] : memref<1x6x144x128xbf16, #tpu.memory_space<vmem>>, vector<1x1x128x128xbf16>
    %12 = vector.shape_cast %11 : vector<1x1x128x128xbf16> to vector<128x128xbf16>
    %c2_16 = arith.constant 2 : index
    %c0_17 = arith.constant 0 : index
    %c0_18 = arith.constant 0 : index
    %13 = vector.load %arg3[%c2_16, %c0_17, %c0_18] : memref<9x128x128xbf16, #tpu.memory_space<vmem>>, vector<1x128x128xbf16>
    %14 = vector.shape_cast %13 : vector<1x128x128xbf16> to vector<128x128xbf16>
    %cst_19 = arith.constant dense<0.000000e+00> : vector<128x128xf32>
    %15 = tpu.matmul %12, %14, %cst_19 {dimension_numbers = #tpu.dot_dimension_numbers<[1], [0], [0], [1], [0, 0, 1, 1], [], []>} : vector<128x128xbf16>, vector<128x128xbf16>, vector<128x128xf32> -> vector<128x128xf32>
    %16 = arith.addf %10, %15 : vector<128x128xf32>
    %c0_20 = arith.constant 0 : index
    %c3 = arith.constant 3 : index
    %c0_21 = arith.constant 0 : index
    %c0_22 = arith.constant 0 : index
    %17 = vector.load %arg2[%c0_20, %c3, %c0_21, %c0_22] : memref<1x6x144x128xbf16, #tpu.memory_space<vmem>>, vector<1x1x128x128xbf16>
    %18 = vector.shape_cast %17 : vector<1x1x128x128xbf16> to vector<128x128xbf16>
    %c3_23 = arith.constant 3 : index
    %c0_24 = arith.constant 0 : index
    %c0_25 = arith.constant 0 : index
    %19 = vector.load %arg3[%c3_23, %c0_24, %c0_25] : memref<9x128x128xbf16, #tpu.memory_space<vmem>>, vector<1x128x128xbf16>
    %20 = vector.shape_cast %19 : vector<1x128x128xbf16> to vector<128x128xbf16>
    %cst_26 = arith.constant dense<0.000000e+00> : vector<128x128xf32>
    %21 = tpu.matmul %18, %20, %cst_26 {dimension_numbers = #tpu.dot_dimension_numbers<[1], [0], [0], [1], [0, 0, 1, 1], [], []>} : vector<128x128xbf16>, vector<128x128xbf16>, vector<128x128xf32> -> vector<128x128xf32>
    %22 = arith.addf %16, %21 : vector<128x128xf32>
    %c0_27 = arith.constant 0 : index
    %c4 = arith.constant 4 : index
    %c0_28 = arith.constant 0 : index
    %c0_29 = arith.constant 0 : index
    %23 = vector.load %arg2[%c0_27, %c4, %c0_28, %c0_29] : memref<1x6x144x128xbf16, #tpu.memory_space<vmem>>, vector<1x1x128x128xbf16>
    %24 = vector.shape_cast %23 : vector<1x1x128x128xbf16> to vector<128x128xbf16>
    %c4_30 = arith.constant 4 : index
    %c0_31 = arith.constant 0 : index
    %c0_32 = arith.constant 0 : index
    %25 = vector.load %arg3[%c4_30, %c0_31, %c0_32] : memref<9x128x128xbf16, #tpu.memory_space<vmem>>, vector<1x128x128xbf16>
    %26 = vector.shape_cast %25 : vector<1x128x128xbf16> to vector<128x128xbf16>
    %cst_33 = arith.constant dense<0.000000e+00> : vector<128x128xf32>
    %27 = tpu.matmul %24, %26, %cst_33 {dimension_numbers = #tpu.dot_dimension_numbers<[1], [0], [0], [1], [0, 0, 1, 1], [], []>} : vector<128x128xbf16>, vector<128x128xbf16>, vector<128x128xf32> -> vector<128x128xf32>
    %28 = arith.addf %22, %27 : vector<128x128xf32>
    %c0_34 = arith.constant 0 : index
    %c5 = arith.constant 5 : index
    %c0_35 = arith.constant 0 : index
    %c0_36 = arith.constant 0 : index
    %29 = vector.load %arg2[%c0_34, %c5, %c0_35, %c0_36] : memref<1x6x144x128xbf16, #tpu.memory_space<vmem>>, vector<1x1x128x128xbf16>
    %30 = vector.shape_cast %29 : vector<1x1x128x128xbf16> to vector<128x128xbf16>
    %c5_37 = arith.constant 5 : index
    %c0_38 = arith.constant 0 : index
    %c0_39 = arith.constant 0 : index
    %31 = vector.load %arg3[%c5_37, %c0_38, %c0_39] : memref<9x128x128xbf16, #tpu.memory_space<vmem>>, vector<1x128x128xbf16>
    %32 = vector.shape_cast %31 : vector<1x128x128xbf16> to vector<128x128xbf16>
    %cst_40 = arith.constant dense<0.000000e+00> : vector<128x128xf32>
    %33 = tpu.matmul %30, %32, %cst_40 {dimension_numbers = #tpu.dot_dimension_numbers<[1], [0], [0], [1], [0, 0, 1, 1], [], []>} : vector<128x128xbf16>, vector<128x128xbf16>, vector<128x128xf32> -> vector<128x128xf32>
    %34 = arith.addf %28, %33 : vector<128x128xf32>
    %c0_41 = arith.constant 0 : index
    %c0_42 = arith.constant 0 : index
    %c16 = arith.constant 16 : index
    %c0_43 = arith.constant 0 : index
    %35 = vector.load %arg2[%c0_41, %c0_42, %c16, %c0_43] : memref<1x6x144x128xbf16, #tpu.memory_space<vmem>>, vector<1x1x128x128xbf16>
    %36 = vector.shape_cast %35 : vector<1x1x128x128xbf16> to vector<128x128xbf16>
    %c6 = arith.constant 6 : index
    %c0_44 = arith.constant 0 : index
    %c0_45 = arith.constant 0 : index
    %37 = vector.load %arg3[%c6, %c0_44, %c0_45] : memref<9x128x128xbf16, #tpu.memory_space<vmem>>, vector<1x128x128xbf16>
    %38 = vector.shape_cast %37 : vector<1x128x128xbf16> to vector<128x128xbf16>
    %cst_46 = arith.constant dense<0.000000e+00> : vector<128x128xf32>
    %39 = tpu.matmul %36, %38, %cst_46 {dimension_numbers = #tpu.dot_dimension_numbers<[1], [0], [0], [1], [0, 0, 1, 1], [], []>} : vector<128x128xbf16>, vector<128x128xbf16>, vector<128x128xf32> -> vector<128x128xf32>
    %40 = arith.addf %34, %39 : vector<128x128xf32>
    %c0_47 = arith.constant 0 : index
    %c1_48 = arith.constant 1 : index
    %c16_49 = arith.constant 16 : index
    %c0_50 = arith.constant 0 : index
    %41 = vector.load %arg2[%c0_47, %c1_48, %c16_49, %c0_50] : memref<1x6x144x128xbf16, #tpu.memory_space<vmem>>, vector<1x1x128x128xbf16>
    %42 = vector.shape_cast %41 : vector<1x1x128x128xbf16> to vector<128x128xbf16>
    %c7 = arith.constant 7 : index
    %c0_51 = arith.constant 0 : index
    %c0_52 = arith.constant 0 : index
    %43 = vector.load %arg3[%c7, %c0_51, %c0_52] : memref<9x128x128xbf16, #tpu.memory_space<vmem>>, vector<1x128x128xbf16>
    %44 = vector.shape_cast %43 : vector<1x128x128xbf16> to vector<128x128xbf16>
    %cst_53 = arith.constant dense<0.000000e+00> : vector<128x128xf32>
    %45 = tpu.matmul %42, %44, %cst_53 {dimension_numbers = #tpu.dot_dimension_numbers<[1], [0], [0], [1], [0, 0, 1, 1], [], []>} : vector<128x128xbf16>, vector<128x128xbf16>, vector<128x128xf32> -> vector<128x128xf32>
    %46 = arith.addf %40, %45 : vector<128x128xf32>
    %c0_54 = arith.constant 0 : index
    %c2_55 = arith.constant 2 : index
    %c16_56 = arith.constant 16 : index
    %c0_57 = arith.constant 0 : index
    %47 = vector.load %arg2[%c0_54, %c2_55, %c16_56, %c0_57] : memref<1x6x144x128xbf16, #tpu.memory_space<vmem>>, vector<1x1x128x128xbf16>
    %48 = vector.shape_cast %47 : vector<1x1x128x128xbf16> to vector<128x128xbf16>
    %c8 = arith.constant 8 : index
    %c0_58 = arith.constant 0 : index
    %c0_59 = arith.constant 0 : index
    %49 = vector.load %arg3[%c8, %c0_58, %c0_59] : memref<9x128x128xbf16, #tpu.memory_space<vmem>>, vector<1x128x128xbf16>
    %50 = vector.shape_cast %49 : vector<1x128x128xbf16> to vector<128x128xbf16>
    %cst_60 = arith.constant dense<0.000000e+00> : vector<128x128xf32>
    %51 = tpu.matmul %48, %50, %cst_60 {dimension_numbers = #tpu.dot_dimension_numbers<[1], [0], [0], [1], [0, 0, 1, 1], [], []>} : vector<128x128xbf16>, vector<128x128xbf16>, vector<128x128xf32> -> vector<128x128xf32>
    %52 = arith.addf %46, %51 : vector<128x128xf32>
    %c0_61 = arith.constant 0 : index
    %c0_62 = arith.constant 0 : index
    %53 = vector.load %arg4[%c0_61, %c0_62] : memref<1x128xf32, #tpu.memory_space<vmem>>, vector<1x128xf32>
    %54 = vector.broadcast %53 : vector<1x128xf32> to vector<128x128xf32>
    %55 = arith.mulf %52, %54 : vector<128x128xf32>
    %c0_63 = arith.constant 0 : index
    %c0_64 = arith.constant 0 : index
    %56 = vector.load %arg5[%c0_63, %c0_64] : memref<1x128xf32, #tpu.memory_space<vmem>>, vector<1x128xf32>
    %57 = vector.broadcast %56 : vector<1x128xf32> to vector<128x128xf32>
    %58 = arith.addf %55, %57 : vector<128x128xf32>
    %cst_65 = arith.constant 0.000000e+00 : f32
    %59 = vector.broadcast %cst_65 : f32 to vector<128x128xf32>
    %60 = arith.maximumf %58, %59 : vector<128x128xf32>
    %c0_66 = arith.constant 0 : index
    %c0_67 = arith.constant 0 : index
    %61 = vector.load %arg6[%c0_66, %c0_67] : memref<128x1xf32, #tpu.memory_space<vmem>>, vector<128x1xf32>
    %62 = vector.broadcast %61 : vector<128x1xf32> to vector<128x128xf32>
    %63 = arith.mulf %60, %62 : vector<128x128xf32>
    %cst_68 = arith.constant 0.000000e+00 : bf16
    %64 = vector.broadcast %cst_68 : bf16 to vector<24x128xbf16>
    %c0_69 = arith.constant 0 : index
    %c0_70 = arith.constant 0 : index
    %c0_71 = arith.constant 0 : index
    %65 = vector.load %arg7[%c0_69, %c0_70, %c0_71] : memref<1x176x128xbf16, #tpu.memory_space<vmem>>, vector<1x24x128xbf16>
    %66 = vector.shape_cast %65 : vector<1x24x128xbf16> to vector<24x128xbf16>
    %67 = vector.shape_cast %64 : vector<24x128xbf16> to vector<1x24x128xbf16>
    tpu.vector_store %arg7[%c0_69, %c0_70, %c0_71], %67 {strides = array<i32>} : memref<1x176x128xbf16, #tpu.memory_space<vmem>>, vector<1x24x128xbf16>,
    %68 = arith.truncf %63 : vector<128x128xf32> to vector<128x128xbf16>
    %c0_72 = arith.constant 0 : index
    %c24 = arith.constant 24 : index
    %c0_73 = arith.constant 0 : index
    %69 = vector.load %arg7[%c0_72, %c24, %c0_73] : memref<1x176x128xbf16, #tpu.memory_space<vmem>>, vector<1x128x128xbf16>
    %70 = vector.shape_cast %69 : vector<1x128x128xbf16> to vector<128x128xbf16>
    %71 = vector.shape_cast %68 : vector<128x128xbf16> to vector<1x128x128xbf16>
    tpu.vector_store %arg7[%c0_72, %c24, %c0_73], %71 {strides = array<i32>} : memref<1x176x128xbf16, #tpu.memory_space<vmem>>, vector<1x128x128xbf16>,
    %c0_74 = arith.constant 0 : index
    %c152 = arith.constant 152 : index
    %c0_75 = arith.constant 0 : index
    %72 = vector.load %arg7[%c0_74, %c152, %c0_75] : memref<1x176x128xbf16, #tpu.memory_space<vmem>>, vector<1x24x128xbf16>
    %73 = vector.shape_cast %72 : vector<1x24x128xbf16> to vector<24x128xbf16>
    %74 = vector.shape_cast %64 : vector<24x128xbf16> to vector<1x24x128xbf16>
    tpu.vector_store %arg7[%c0_74, %c152, %c0_75], %74 {strides = array<i32>} : memref<1x176x128xbf16, #tpu.memory_space<vmem>>, vector<1x24x128xbf16>,
    return
  }
  func.func @transform_0(%arg0: i32, %arg1: i32) -> (i32, i32, i32, i32) {
    %c0_i32 = arith.constant 0 : i32
    %c0_i32_0 = arith.constant 0 : i32
    %c0_i32_1 = arith.constant 0 : i32
    %c0_i32_2 = arith.constant 0 : i32
    return %arg0, %c0_i32, %c0_i32_0, %c0_i32_1 : i32, i32, i32, i32
  }
  func.func @transform_1(%arg0: i32, %arg1: i32) -> (i32, i32, i32) {
    %c0_i32 = arith.constant 0 : i32
    %c0_i32_0 = arith.constant 0 : i32
    %c0_i32_1 = arith.constant 0 : i32
    return %c0_i32, %c0_i32_0, %arg1 : i32, i32, i32
  }
  func.func @transform_2(%arg0: i32, %arg1: i32) -> (i32, i32) {
    %c0_i32 = arith.constant 0 : i32
    %c0_i32_0 = arith.constant 0 : i32
    return %c0_i32, %arg1 : i32, i32
  }
  func.func @transform_3(%arg0: i32, %arg1: i32) -> (i32, i32) {
    %c0_i32 = arith.constant 0 : i32
    %c0_i32_0 = arith.constant 0 : i32
    return %c0_i32, %arg1 : i32, i32
  }
  func.func @transform_4(%arg0: i32, %arg1: i32) -> (i32, i32) {
    %c0_i32 = arith.constant 0 : i32
    %c0_i32_0 = arith.constant 0 : i32
    %c0_i32_1 = arith.constant 0 : i32
    return %c0_i32, %c0_i32_0 : i32, i32
  }
  func.func @transform_5(%arg0: i32, %arg1: i32) -> (i32, i32, i32) {
    %c0_i32 = arith.constant 0 : i32
    %c0_i32_0 = arith.constant 0 : i32
    return %arg0, %c0_i32, %arg1 : i32, i32, i32
  }
}

module attributes {stable_mosaic.version = 11 : i64} {
  func.func @_fc_kernel(%arg0: i32, %arg1: i32, %arg2: memref<1x64x128xbf16, #tpu.memory_space<vmem>>, %arg3: memref<128x128xbf16, #tpu.memory_space<vmem>>, %arg4: memref<1x128xf32, #tpu.memory_space<vmem>>, %arg5: memref<1x64x128xf32, #tpu.memory_space<vmem>>) attributes {dimension_semantics = [#tpu.dimension_semantics<parallel>, #tpu.dimension_semantics<parallel>], iteration_bounds = array<i64: 2, 1>, scalar_prefetch = 0 : i64, scratch_operands = 0 : i64, tpu.core_type = #tpu.core_type<tc>, window_params = [{transform_indices = @transform_0, window_bounds = array<i64: 1, 64, 128>}, {transform_indices = @transform_1, window_bounds = array<i64: 128, 128>}, {transform_indices = @transform_2, window_bounds = array<i64: 1, 128>}, {transform_indices = @transform_3, window_bounds = array<i64: 1, 64, 128>}]} {
    %c0 = arith.constant 0 : index
    %c0_0 = arith.constant 0 : index
    %c0_1 = arith.constant 0 : index
    %0 = vector.load %arg2[%c0, %c0_0, %c0_1] : memref<1x64x128xbf16, #tpu.memory_space<vmem>>, vector<1x64x128xbf16>
    %1 = vector.shape_cast %0 : vector<1x64x128xbf16> to vector<64x128xbf16>
    %c0_2 = arith.constant 0 : index
    %c0_3 = arith.constant 0 : index
    %2 = vector.load %arg3[%c0_2, %c0_3] : memref<128x128xbf16, #tpu.memory_space<vmem>>, vector<128x128xbf16>
    %cst = arith.constant dense<0.000000e+00> : vector<64x128xf32>
    %3 = tpu.matmul %1, %2, %cst {dimension_numbers = #tpu.dot_dimension_numbers<[1], [0], [0], [1], [0, 0, 1, 1], [], []>} : vector<64x128xbf16>, vector<128x128xbf16>, vector<64x128xf32> -> vector<64x128xf32>
    %c0_4 = arith.constant 0 : index
    %c0_5 = arith.constant 0 : index
    %4 = vector.load %arg4[%c0_4, %c0_5] : memref<1x128xf32, #tpu.memory_space<vmem>>, vector<1x128xf32>
    %5 = vector.broadcast %4 : vector<1x128xf32> to vector<64x128xf32>
    %6 = arith.addf %3, %5 : vector<64x128xf32>
    %c0_6 = arith.constant 0 : index
    %c0_7 = arith.constant 0 : index
    %c0_8 = arith.constant 0 : index
    %7 = vector.load %arg5[%c0_6, %c0_7, %c0_8] : memref<1x64x128xf32, #tpu.memory_space<vmem>>, vector<1x64x128xf32>
    %8 = vector.shape_cast %7 : vector<1x64x128xf32> to vector<64x128xf32>
    %9 = vector.shape_cast %6 : vector<64x128xf32> to vector<1x64x128xf32>
    tpu.vector_store %arg5[%c0_6, %c0_7, %c0_8], %9 {strides = array<i32>} : memref<1x64x128xf32, #tpu.memory_space<vmem>>, vector<1x64x128xf32>,
    return
  }
  func.func @transform_0(%arg0: i32, %arg1: i32) -> (i32, i32, i32) {
    %c0_i32 = arith.constant 0 : i32
    %c0_i32_0 = arith.constant 0 : i32
    %c0_i32_1 = arith.constant 0 : i32
    return %arg0, %c0_i32, %c0_i32_0 : i32, i32, i32
  }
  func.func @transform_1(%arg0: i32, %arg1: i32) -> (i32, i32) {
    %c0_i32 = arith.constant 0 : i32
    %c0_i32_0 = arith.constant 0 : i32
    return %c0_i32, %arg1 : i32, i32
  }
  func.func @transform_2(%arg0: i32, %arg1: i32) -> (i32, i32) {
    %c0_i32 = arith.constant 0 : i32
    %c0_i32_0 = arith.constant 0 : i32
    return %c0_i32, %arg1 : i32, i32
  }
  func.func @transform_3(%arg0: i32, %arg1: i32) -> (i32, i32, i32) {
    %c0_i32 = arith.constant 0 : i32
    %c0_i32_0 = arith.constant 0 : i32
    return %arg0, %c0_i32, %arg1 : i32, i32, i32
  }
}

module attributes {stable_mosaic.version = 11 : i64} {
  func.func @_block_kernel(%arg0: i32, %arg1: i32, %arg2: memref<1x176x128xbf16, #tpu.memory_space<vmem>>, %arg3: memref<9x128x128xbf16, #tpu.memory_space<vmem>>, %arg4: memref<1x1152x128xbf16, #tpu.memory_space<vmem>>, %arg5: memref<128x128xbf16, #tpu.memory_space<vmem>>, %arg6: memref<1x64x128xbf16, #tpu.memory_space<vmem>>, %arg7: memref<1x128xf32, #tpu.memory_space<vmem>>, %arg8: memref<1x128xf32, #tpu.memory_space<vmem>>, %arg9: memref<128x1xf32, #tpu.memory_space<vmem>>, %arg10: memref<1x64x128xbf16, #tpu.memory_space<vmem>>, %arg11: memref<3x160x128xbf16, #tpu.memory_space<vmem>>, %arg12: memref<176x128xbf16, #tpu.memory_space<vmem>>, %arg13: memref<128x1152xbf16, #tpu.memory_space<vmem>>, %arg14: memref<128x128xf32, #tpu.memory_space<vmem>>, %arg15: memref<64x128xf32, #tpu.memory_space<vmem>>) attributes {dimension_semantics = [#tpu.dimension_semantics<parallel>, #tpu.dimension_semantics<arbitrary>], iteration_bounds = array<i64: 2, 1>, scalar_prefetch = 0 : i64, scratch_operands = 5 : i64, tpu.core_type = #tpu.core_type<tc>, window_params = [{transform_indices = @transform_0, window_bounds = array<i64: 1, 176, 128>}, {transform_indices = @transform_1, window_bounds = array<i64: 9, 128, 128>}, {transform_indices = @transform_2, window_bounds = array<i64: 1, 1152, 128>}, {pipeline_mode = #tpu.pipeline_mode<synchronous>, transform_indices = @transform_3, window_bounds = array<i64: 128, 128>}, {transform_indices = @transform_4, window_bounds = array<i64: 1, 64, 128>}, {pipeline_mode = #tpu.pipeline_mode<synchronous>, transform_indices = @transform_5, window_bounds = array<i64: 1, 128>}, {pipeline_mode = #tpu.pipeline_mode<synchronous>, transform_indices = @transform_6, window_bounds = array<i64: 1, 128>}, {pipeline_mode = #tpu.pipeline_mode<synchronous>, transform_indices = @transform_7, window_bounds = array<i64: 128, 1>}, {transform_indices = @transform_8, window_bounds = array<i64: 1, 64, 128>}]} {
    %c0_i32 = arith.constant 0 : i32
    %0 = arith.cmpi eq, %arg1, %c0_i32 : i32
    %1 = arith.extui %0 : i1 to i32
    %c0_i32_0 = arith.constant 0 : i32
    %2 = arith.cmpi ne, %1, %c0_i32_0 : i32
    scf.if %2 {
      %c0_89 = arith.constant 0 : index
      %c7_90 = arith.constant 7 : index
      %c0_91 = arith.constant 0 : index
      %92 = vector.load %arg2[%c0_89, %c7_90, %c0_91] : memref<1x176x128xbf16, #tpu.memory_space<vmem>>, vector<1x160x128xbf16>
      %93 = vector.shape_cast %92 : vector<1x160x128xbf16> to vector<160x128xbf16>
      %c0_92 = arith.constant 0 : index
      %c0_93 = arith.constant 0 : index
      %c0_94 = arith.constant 0 : index
      %94 = vector.load %arg11[%c0_92, %c0_93, %c0_94] : memref<3x160x128xbf16, #tpu.memory_space<vmem>>, vector<1x160x128xbf16>
      %95 = vector.shape_cast %94 : vector<1x160x128xbf16> to vector<160x128xbf16>
      %96 = vector.shape_cast %93 : vector<160x128xbf16> to vector<1x160x128xbf16>
      tpu.vector_store %arg11[%c0_92, %c0_93, %c0_94], %96 {strides = array<i32>} : memref<3x160x128xbf16, #tpu.memory_space<vmem>>, vector<1x160x128xbf16>,
      %c0_95 = arith.constant 0 : index
      %c8_96 = arith.constant 8 : index
      %c0_97 = arith.constant 0 : index
      %97 = vector.load %arg2[%c0_95, %c8_96, %c0_97] : memref<1x176x128xbf16, #tpu.memory_space<vmem>>, vector<1x160x128xbf16>
      %98 = vector.shape_cast %97 : vector<1x160x128xbf16> to vector<160x128xbf16>
      %c1_98 = arith.constant 1 : index
      %c0_99 = arith.constant 0 : index
      %c0_100 = arith.constant 0 : index
      %99 = vector.load %arg11[%c1_98, %c0_99, %c0_100] : memref<3x160x128xbf16, #tpu.memory_space<vmem>>, vector<1x160x128xbf16>
      %100 = vector.shape_cast %99 : vector<1x160x128xbf16> to vector<160x128xbf16>
      %101 = vector.shape_cast %98 : vector<160x128xbf16> to vector<1x160x128xbf16>
      tpu.vector_store %arg11[%c1_98, %c0_99, %c0_100], %101 {strides = array<i32>} : memref<3x160x128xbf16, #tpu.memory_space<vmem>>, vector<1x160x128xbf16>,
      %c0_101 = arith.constant 0 : index
      %c9_102 = arith.constant 9 : index
      %c0_103 = arith.constant 0 : index
      %102 = vector.load %arg2[%c0_101, %c9_102, %c0_103] : memref<1x176x128xbf16, #tpu.memory_space<vmem>>, vector<1x160x128xbf16>
      %103 = vector.shape_cast %102 : vector<1x160x128xbf16> to vector<160x128xbf16>
      %c2_104 = arith.constant 2 : index
      %c0_105 = arith.constant 0 : index
      %c0_106 = arith.constant 0 : index
      %104 = vector.load %arg11[%c2_104, %c0_105, %c0_106] : memref<3x160x128xbf16, #tpu.memory_space<vmem>>, vector<1x160x128xbf16>
      %105 = vector.shape_cast %104 : vector<1x160x128xbf16> to vector<160x128xbf16>
      %106 = vector.shape_cast %103 : vector<160x128xbf16> to vector<1x160x128xbf16>
      tpu.vector_store %arg11[%c2_104, %c0_105, %c0_106], %106 {strides = array<i32>} : memref<3x160x128xbf16, #tpu.memory_space<vmem>>, vector<1x160x128xbf16>,
      %cst_107 = arith.constant 0.000000e+00 : bf16
      %107 = vector.broadcast %cst_107 : bf16 to vector<176x128xbf16>
      %c0_108 = arith.constant 0 : index
      %c0_109 = arith.constant 0 : index
      %108 = vector.load %arg12[%c0_108, %c0_109] : memref<176x128xbf16, #tpu.memory_space<vmem>>, vector<176x128xbf16>
      tpu.vector_store %arg12[%c0_108, %c0_109], %107 {strides = array<i32>} : memref<176x128xbf16, #tpu.memory_space<vmem>>, vector<176x128xbf16>,
    } else {
    }
    %c0 = arith.constant 0 : index
    %c0_1 = arith.constant 0 : index
    %c0_2 = arith.constant 0 : index
    %3 = vector.load %arg11[%c0, %c0_1, %c0_2] : memref<3x160x128xbf16, #tpu.memory_space<vmem>>, vector<1x128x128xbf16>
    %4 = vector.shape_cast %3 : vector<1x128x128xbf16> to vector<128x128xbf16>
    %c0_3 = arith.constant 0 : index
    %c0_4 = arith.constant 0 : index
    %c0_5 = arith.constant 0 : index
    %5 = vector.load %arg3[%c0_3, %c0_4, %c0_5] : memref<9x128x128xbf16, #tpu.memory_space<vmem>>, vector<1x128x128xbf16>
    %6 = vector.shape_cast %5 : vector<1x128x128xbf16> to vector<128x128xbf16>
    %cst = arith.constant dense<0.000000e+00> : vector<128x128xf32>
    %7 = tpu.matmul %4, %6, %cst {dimension_numbers = #tpu.dot_dimension_numbers<[1], [0], [0], [1], [0, 0, 1, 1], [], []>} : vector<128x128xbf16>, vector<128x128xbf16>, vector<128x128xf32> -> vector<128x128xf32>
    %c1 = arith.constant 1 : index
    %c0_6 = arith.constant 0 : index
    %c0_7 = arith.constant 0 : index
    %8 = vector.load %arg11[%c1, %c0_6, %c0_7] : memref<3x160x128xbf16, #tpu.memory_space<vmem>>, vector<1x128x128xbf16>
    %9 = vector.shape_cast %8 : vector<1x128x128xbf16> to vector<128x128xbf16>
    %c1_8 = arith.constant 1 : index
    %c0_9 = arith.constant 0 : index
    %c0_10 = arith.constant 0 : index
    %10 = vector.load %arg3[%c1_8, %c0_9, %c0_10] : memref<9x128x128xbf16, #tpu.memory_space<vmem>>, vector<1x128x128xbf16>
    %11 = vector.shape_cast %10 : vector<1x128x128xbf16> to vector<128x128xbf16>
    %cst_11 = arith.constant dense<0.000000e+00> : vector<128x128xf32>
    %12 = tpu.matmul %9, %11, %cst_11 {dimension_numbers = #tpu.dot_dimension_numbers<[1], [0], [0], [1], [0, 0, 1, 1], [], []>} : vector<128x128xbf16>, vector<128x128xbf16>, vector<128x128xf32> -> vector<128x128xf32>
    %13 = arith.addf %7, %12 : vector<128x128xf32>
    %c2 = arith.constant 2 : index
    %c0_12 = arith.constant 0 : index
    %c0_13 = arith.constant 0 : index
    %14 = vector.load %arg11[%c2, %c0_12, %c0_13] : memref<3x160x128xbf16, #tpu.memory_space<vmem>>, vector<1x128x128xbf16>
    %15 = vector.shape_cast %14 : vector<1x128x128xbf16> to vector<128x128xbf16>
    %c2_14 = arith.constant 2 : index
    %c0_15 = arith.constant 0 : index
    %c0_16 = arith.constant 0 : index
    %16 = vector.load %arg3[%c2_14, %c0_15, %c0_16] : memref<9x128x128xbf16, #tpu.memory_space<vmem>>, vector<1x128x128xbf16>
    %17 = vector.shape_cast %16 : vector<1x128x128xbf16> to vector<128x128xbf16>
    %cst_17 = arith.constant dense<0.000000e+00> : vector<128x128xf32>
    %18 = tpu.matmul %15, %17, %cst_17 {dimension_numbers = #tpu.dot_dimension_numbers<[1], [0], [0], [1], [0, 0, 1, 1], [], []>} : vector<128x128xbf16>, vector<128x128xbf16>, vector<128x128xf32> -> vector<128x128xf32>
    %19 = arith.addf %13, %18 : vector<128x128xf32>
    %c0_18 = arith.constant 0 : index
    %c16 = arith.constant 16 : index
    %c0_19 = arith.constant 0 : index
    %20 = vector.load %arg11[%c0_18, %c16, %c0_19] : memref<3x160x128xbf16, #tpu.memory_space<vmem>>, vector<1x128x128xbf16>
    %21 = vector.shape_cast %20 : vector<1x128x128xbf16> to vector<128x128xbf16>
    %c3 = arith.constant 3 : index
    %c0_20 = arith.constant 0 : index
    %c0_21 = arith.constant 0 : index
    %22 = vector.load %arg3[%c3, %c0_20, %c0_21] : memref<9x128x128xbf16, #tpu.memory_space<vmem>>, vector<1x128x128xbf16>
    %23 = vector.shape_cast %22 : vector<1x128x128xbf16> to vector<128x128xbf16>
    %cst_22 = arith.constant dense<0.000000e+00> : vector<128x128xf32>
    %24 = tpu.matmul %21, %23, %cst_22 {dimension_numbers = #tpu.dot_dimension_numbers<[1], [0], [0], [1], [0, 0, 1, 1], [], []>} : vector<128x128xbf16>, vector<128x128xbf16>, vector<128x128xf32> -> vector<128x128xf32>
    %25 = arith.addf %19, %24 : vector<128x128xf32>
    %c1_23 = arith.constant 1 : index
    %c16_24 = arith.constant 16 : index
    %c0_25 = arith.constant 0 : index
    %26 = vector.load %arg11[%c1_23, %c16_24, %c0_25] : memref<3x160x128xbf16, #tpu.memory_space<vmem>>, vector<1x128x128xbf16>
    %27 = vector.shape_cast %26 : vector<1x128x128xbf16> to vector<128x128xbf16>
    %c4 = arith.constant 4 : index
    %c0_26 = arith.constant 0 : index
    %c0_27 = arith.constant 0 : index
    %28 = vector.load %arg3[%c4, %c0_26, %c0_27] : memref<9x128x128xbf16, #tpu.memory_space<vmem>>, vector<1x128x128xbf16>
    %29 = vector.shape_cast %28 : vector<1x128x128xbf16> to vector<128x128xbf16>
    %cst_28 = arith.constant dense<0.000000e+00> : vector<128x128xf32>
    %30 = tpu.matmul %27, %29, %cst_28 {dimension_numbers = #tpu.dot_dimension_numbers<[1], [0], [0], [1], [0, 0, 1, 1], [], []>} : vector<128x128xbf16>, vector<128x128xbf16>, vector<128x128xf32> -> vector<128x128xf32>
    %31 = arith.addf %25, %30 : vector<128x128xf32>
    %c2_29 = arith.constant 2 : index
    %c16_30 = arith.constant 16 : index
    %c0_31 = arith.constant 0 : index
    %32 = vector.load %arg11[%c2_29, %c16_30, %c0_31] : memref<3x160x128xbf16, #tpu.memory_space<vmem>>, vector<1x128x128xbf16>
    %33 = vector.shape_cast %32 : vector<1x128x128xbf16> to vector<128x128xbf16>
    %c5 = arith.constant 5 : index
    %c0_32 = arith.constant 0 : index
    %c0_33 = arith.constant 0 : index
    %34 = vector.load %arg3[%c5, %c0_32, %c0_33] : memref<9x128x128xbf16, #tpu.memory_space<vmem>>, vector<1x128x128xbf16>
    %35 = vector.shape_cast %34 : vector<1x128x128xbf16> to vector<128x128xbf16>
    %cst_34 = arith.constant dense<0.000000e+00> : vector<128x128xf32>
    %36 = tpu.matmul %33, %35, %cst_34 {dimension_numbers = #tpu.dot_dimension_numbers<[1], [0], [0], [1], [0, 0, 1, 1], [], []>} : vector<128x128xbf16>, vector<128x128xbf16>, vector<128x128xf32> -> vector<128x128xf32>
    %37 = arith.addf %31, %36 : vector<128x128xf32>
    %c0_35 = arith.constant 0 : index
    %c32 = arith.constant 32 : index
    %c0_36 = arith.constant 0 : index
    %38 = vector.load %arg11[%c0_35, %c32, %c0_36] : memref<3x160x128xbf16, #tpu.memory_space<vmem>>, vector<1x128x128xbf16>
    %39 = vector.shape_cast %38 : vector<1x128x128xbf16> to vector<128x128xbf16>
    %c6 = arith.constant 6 : index
    %c0_37 = arith.constant 0 : index
    %c0_38 = arith.constant 0 : index
    %40 = vector.load %arg3[%c6, %c0_37, %c0_38] : memref<9x128x128xbf16, #tpu.memory_space<vmem>>, vector<1x128x128xbf16>
    %41 = vector.shape_cast %40 : vector<1x128x128xbf16> to vector<128x128xbf16>
    %cst_39 = arith.constant dense<0.000000e+00> : vector<128x128xf32>
    %42 = tpu.matmul %39, %41, %cst_39 {dimension_numbers = #tpu.dot_dimension_numbers<[1], [0], [0], [1], [0, 0, 1, 1], [], []>} : vector<128x128xbf16>, vector<128x128xbf16>, vector<128x128xf32> -> vector<128x128xf32>
    %43 = arith.addf %37, %42 : vector<128x128xf32>
    %c1_40 = arith.constant 1 : index
    %c32_41 = arith.constant 32 : index
    %c0_42 = arith.constant 0 : index
    %44 = vector.load %arg11[%c1_40, %c32_41, %c0_42] : memref<3x160x128xbf16, #tpu.memory_space<vmem>>, vector<1x128x128xbf16>
    %45 = vector.shape_cast %44 : vector<1x128x128xbf16> to vector<128x128xbf16>
    %c7 = arith.constant 7 : index
    %c0_43 = arith.constant 0 : index
    %c0_44 = arith.constant 0 : index
    %46 = vector.load %arg3[%c7, %c0_43, %c0_44] : memref<9x128x128xbf16, #tpu.memory_space<vmem>>, vector<1x128x128xbf16>
    %47 = vector.shape_cast %46 : vector<1x128x128xbf16> to vector<128x128xbf16>
    %cst_45 = arith.constant dense<0.000000e+00> : vector<128x128xf32>
    %48 = tpu.matmul %45, %47, %cst_45 {dimension_numbers = #tpu.dot_dimension_numbers<[1], [0], [0], [1], [0, 0, 1, 1], [], []>} : vector<128x128xbf16>, vector<128x128xbf16>, vector<128x128xf32> -> vector<128x128xf32>
    %49 = arith.addf %43, %48 : vector<128x128xf32>
    %c2_46 = arith.constant 2 : index
    %c32_47 = arith.constant 32 : index
    %c0_48 = arith.constant 0 : index
    %50 = vector.load %arg11[%c2_46, %c32_47, %c0_48] : memref<3x160x128xbf16, #tpu.memory_space<vmem>>, vector<1x128x128xbf16>
    %51 = vector.shape_cast %50 : vector<1x128x128xbf16> to vector<128x128xbf16>
    %c8 = arith.constant 8 : index
    %c0_49 = arith.constant 0 : index
    %c0_50 = arith.constant 0 : index
    %52 = vector.load %arg3[%c8, %c0_49, %c0_50] : memref<9x128x128xbf16, #tpu.memory_space<vmem>>, vector<1x128x128xbf16>
    %53 = vector.shape_cast %52 : vector<1x128x128xbf16> to vector<128x128xbf16>
    %cst_51 = arith.constant dense<0.000000e+00> : vector<128x128xf32>
    %54 = tpu.matmul %51, %53, %cst_51 {dimension_numbers = #tpu.dot_dimension_numbers<[1], [0], [0], [1], [0, 0, 1, 1], [], []>} : vector<128x128xbf16>, vector<128x128xbf16>, vector<128x128xf32> -> vector<128x128xf32>
    %55 = arith.addf %49, %54 : vector<128x128xf32>
    %c0_52 = arith.constant 0 : index
    %c0_53 = arith.constant 0 : index
    %56 = vector.load %arg9[%c0_52, %c0_53] : memref<128x1xf32, #tpu.memory_space<vmem>>, vector<128x1xf32>
    %57 = vector.broadcast %56 : vector<128x1xf32> to vector<128x128xf32>
    %58 = arith.mulf %55, %57 : vector<128x128xf32>
    %59 = arith.truncf %58 : vector<128x128xf32> to vector<128x128xbf16>
    %c24 = arith.constant 24 : index
    %c0_54 = arith.constant 0 : index
    %60 = vector.load %arg12[%c24, %c0_54] : memref<176x128xbf16, #tpu.memory_space<vmem>>, vector<128x128xbf16>
    tpu.vector_store %arg12[%c24, %c0_54], %59 {strides = array<i32>} : memref<176x128xbf16, #tpu.memory_space<vmem>>, vector<128x128xbf16>,
    %c7_55 = arith.constant 7 : index
    %c0_56 = arith.constant 0 : index
    %61 = vector.load %arg12[%c7_55, %c0_56] : memref<176x128xbf16, #tpu.memory_space<vmem>>, vector<128x128xbf16>
    %c0_57 = arith.constant 0 : index
    %c0_58 = arith.constant 0 : index
    %62 = vector.load %arg13[%c0_57, %c0_58] : memref<128x1152xbf16, #tpu.memory_space<vmem>>, vector<128x128xbf16>
    tpu.vector_store %arg13[%c0_57, %c0_58], %61 {strides = array<i32>} : memref<128x1152xbf16, #tpu.memory_space<vmem>>, vector<128x128xbf16>,
    %c8_59 = arith.constant 8 : index
    %c0_60 = arith.constant 0 : index
    %63 = vector.load %arg12[%c8_59, %c0_60] : memref<176x128xbf16, #tpu.memory_space<vmem>>, vector<128x128xbf16>
    %c0_61 = arith.constant 0 : index
    %c128 = arith.constant 128 : index
    %64 = vector.load %arg13[%c0_61, %c128] : memref<128x1152xbf16, #tpu.memory_space<vmem>>, vector<128x128xbf16>
    tpu.vector_store %arg13[%c0_61, %c128], %63 {strides = array<i32>} : memref<128x1152xbf16, #tpu.memory_space<vmem>>, vector<128x128xbf16>,
    %c9 = arith.constant 9 : index
    %c0_62 = arith.constant 0 : index
    %65 = vector.load %arg12[%c9, %c0_62] : memref<176x128xbf16, #tpu.memory_space<vmem>>, vector<128x128xbf16>
    %c0_63 = arith.constant 0 : index
    %c256 = arith.constant 256 : index
    %66 = vector.load %arg13[%c0_63, %c256] : memref<128x1152xbf16, #tpu.memory_space<vmem>>, vector<128x128xbf16>
    tpu.vector_store %arg13[%c0_63, %c256], %65 {strides = array<i32>} : memref<128x1152xbf16, #tpu.memory_space<vmem>>, vector<128x128xbf16>,
    %c23 = arith.constant 23 : index
    %c0_64 = arith.constant 0 : index
    %67 = vector.load %arg12[%c23, %c0_64] : memref<176x128xbf16, #tpu.memory_space<vmem>>, vector<128x128xbf16>
    %c0_65 = arith.constant 0 : index
    %c384 = arith.constant 384 : index
    %68 = vector.load %arg13[%c0_65, %c384] : memref<128x1152xbf16, #tpu.memory_space<vmem>>, vector<128x128xbf16>
    tpu.vector_store %arg13[%c0_65, %c384], %67 {strides = array<i32>} : memref<128x1152xbf16, #tpu.memory_space<vmem>>, vector<128x128xbf16>,
    %c24_66 = arith.constant 24 : index
    %c0_67 = arith.constant 0 : index
    %69 = vector.load %arg12[%c24_66, %c0_67] : memref<176x128xbf16, #tpu.memory_space<vmem>>, vector<128x128xbf16>
    %c0_68 = arith.constant 0 : index
    %c512 = arith.constant 512 : index
    %70 = vector.load %arg13[%c0_68, %c512] : memref<128x1152xbf16, #tpu.memory_space<vmem>>, vector<128x128xbf16>
    tpu.vector_store %arg13[%c0_68, %c512], %69 {strides = array<i32>} : memref<128x1152xbf16, #tpu.memory_space<vmem>>, vector<128x128xbf16>,
    %c25 = arith.constant 25 : index
    %c0_69 = arith.constant 0 : index
    %71 = vector.load %arg12[%c25, %c0_69] : memref<176x128xbf16, #tpu.memory_space<vmem>>, vector<128x128xbf16>
    %c0_70 = arith.constant 0 : index
    %c640 = arith.constant 640 : index
    %72 = vector.load %arg13[%c0_70, %c640] : memref<128x1152xbf16, #tpu.memory_space<vmem>>, vector<128x128xbf16>
    tpu.vector_store %arg13[%c0_70, %c640], %71 {strides = array<i32>} : memref<128x1152xbf16, #tpu.memory_space<vmem>>, vector<128x128xbf16>,
    %c39 = arith.constant 39 : index
    %c0_71 = arith.constant 0 : index
    %73 = vector.load %arg12[%c39, %c0_71] : memref<176x128xbf16, #tpu.memory_space<vmem>>, vector<128x128xbf16>
    %c0_72 = arith.constant 0 : index
    %c768 = arith.constant 768 : index
    %74 = vector.load %arg13[%c0_72, %c768] : memref<128x1152xbf16, #tpu.memory_space<vmem>>, vector<128x128xbf16>
    tpu.vector_store %arg13[%c0_72, %c768], %73 {strides = array<i32>} : memref<128x1152xbf16, #tpu.memory_space<vmem>>, vector<128x128xbf16>,
    %c40 = arith.constant 40 : index
    %c0_73 = arith.constant 0 : index
    %75 = vector.load %arg12[%c40, %c0_73] : memref<176x128xbf16, #tpu.memory_space<vmem>>, vector<128x128xbf16>
    %c0_74 = arith.constant 0 : index
    %c896 = arith.constant 896 : index
    %76 = vector.load %arg13[%c0_74, %c896] : memref<128x1152xbf16, #tpu.memory_space<vmem>>, vector<128x128xbf16>
    tpu.vector_store %arg13[%c0_74, %c896], %75 {strides = array<i32>} : memref<128x1152xbf16, #tpu.memory_space<vmem>>, vector<128x128xbf16>,
    %c41 = arith.constant 41 : index
    %c0_75 = arith.constant 0 : index
    %77 = vector.load %arg12[%c41, %c0_75] : memref<176x128xbf16, #tpu.memory_space<vmem>>, vector<128x128xbf16>
    %c0_76 = arith.constant 0 : index
    %c1024 = arith.constant 1024 : index
    %78 = vector.load %arg13[%c0_76, %c1024] : memref<128x1152xbf16, #tpu.memory_space<vmem>>, vector<128x128xbf16>
    tpu.vector_store %arg13[%c0_76, %c1024], %77 {strides = array<i32>} : memref<128x1152xbf16, #tpu.memory_space<vmem>>, vector<128x128xbf16>,
    %c0_77 = arith.constant 0 : index
    %c0_78 = arith.constant 0 : index
    %79 = vector.load %arg13[%c0_77, %c0_78] : memref<128x1152xbf16, #tpu.memory_space<vmem>>, vector<128x1152xbf16>
    %c0_79 = arith.constant 0 : index
    %c0_80 = arith.constant 0 : index
    %c0_81 = arith.constant 0 : index
    %80 = vector.load %arg4[%c0_79, %c0_80, %c0_81] : memref<1x1152x128xbf16, #tpu.memory_space<vmem>>, vector<1x1152x128xbf16>
    %81 = vector.shape_cast %80 : vector<1x1152x128xbf16> to vector<1152x128xbf16>
    %cst_82 = arith.constant dense<0.000000e+00> : vector<128x128xf32>
    %82 = tpu.matmul %79, %81, %cst_82 {dimension_numbers = #tpu.dot_dimension_numbers<[1], [0], [0], [1], [0, 0, 1, 1], [], []>} : vector<128x1152xbf16>, vector<1152x128xbf16>, vector<128x128xf32> -> vector<128x128xf32>
    %c0_i32_83 = arith.constant 0 : i32
    %83 = arith.cmpi eq, %arg1, %c0_i32_83 : i32
    %84 = arith.extui %83 : i1 to i32
    %c0_i32_84 = arith.constant 0 : i32
    %85 = arith.cmpi ne, %84, %c0_i32_84 : i32
    scf.if %85 {
      %c0_89 = arith.constant 0 : index
      %c0_90 = arith.constant 0 : index
      %92 = vector.load %arg14[%c0_89, %c0_90] : memref<128x128xf32, #tpu.memory_space<vmem>>, vector<128x128xf32>
      tpu.vector_store %arg14[%c0_89, %c0_90], %82 {strides = array<i32>} : memref<128x128xf32, #tpu.memory_space<vmem>>, vector<128x128xf32>,
    } else {
    }
    %c0_i32_85 = arith.constant 0 : i32
    %86 = arith.cmpi ne, %arg1, %c0_i32_85 : i32
    %87 = arith.extui %86 : i1 to i32
    %c0_i32_86 = arith.constant 0 : i32
    %88 = arith.cmpi ne, %87, %c0_i32_86 : i32
    scf.if %88 {
      %c0_89 = arith.constant 0 : index
      %c0_90 = arith.constant 0 : index
      %92 = vector.load %arg14[%c0_89, %c0_90] : memref<128x128xf32, #tpu.memory_space<vmem>>, vector<128x128xf32>
      %93 = arith.addf %92, %82 : vector<128x128xf32>
      %c0_91 = arith.constant 0 : index
      %c0_92 = arith.constant 0 : index
      %94 = vector.load %arg14[%c0_91, %c0_92] : memref<128x128xf32, #tpu.memory_space<vmem>>, vector<128x128xf32>
      tpu.vector_store %arg14[%c0_91, %c0_92], %93 {strides = array<i32>} : memref<128x128xf32, #tpu.memory_space<vmem>>, vector<128x128xf32>,
    } else {
    }
    %c0_i32_87 = arith.constant 0 : i32
    %89 = arith.cmpi eq, %arg1, %c0_i32_87 : i32
    %90 = arith.extui %89 : i1 to i32
    %c0_i32_88 = arith.constant 0 : i32
    %91 = arith.cmpi ne, %90, %c0_i32_88 : i32
    scf.if %91 {
      %c0_89 = arith.constant 0 : index
      %c0_90 = arith.constant 0 : index
      %c0_91 = arith.constant 0 : index
      %92 = vector.load %arg6[%c0_89, %c0_90, %c0_91] : memref<1x64x128xbf16, #tpu.memory_space<vmem>>, vector<1x64x128xbf16>
      %93 = vector.shape_cast %92 : vector<1x64x128xbf16> to vector<64x128xbf16>
      %c0_92 = arith.constant 0 : index
      %c0_93 = arith.constant 0 : index
      %94 = vector.load %arg5[%c0_92, %c0_93] : memref<128x128xbf16, #tpu.memory_space<vmem>>, vector<128x128xbf16>
      %cst_94 = arith.constant dense<0.000000e+00> : vector<64x128xf32>
      %95 = tpu.matmul %93, %94, %cst_94 {dimension_numbers = #tpu.dot_dimension_numbers<[1], [0], [0], [1], [0, 0, 1, 1], [], []>} : vector<64x128xbf16>, vector<128x128xbf16>, vector<64x128xf32> -> vector<64x128xf32>
      %c0_95 = arith.constant 0 : index
      %c0_96 = arith.constant 0 : index
      %96 = vector.load %arg15[%c0_95, %c0_96] : memref<64x128xf32, #tpu.memory_space<vmem>>, vector<64x128xf32>
      tpu.vector_store %arg15[%c0_95, %c0_96], %95 {strides = array<i32>} : memref<64x128xf32, #tpu.memory_space<vmem>>, vector<64x128xf32>,
      %c0_97 = arith.constant 0 : index
      %c0_98 = arith.constant 0 : index
      %97 = vector.load %arg7[%c0_97, %c0_98] : memref<1x128xf32, #tpu.memory_space<vmem>>, vector<1x128xf32>
      %c0_99 = arith.constant 0 : index
      %c0_100 = arith.constant 0 : index
      %98 = vector.load %arg8[%c0_99, %c0_100] : memref<1x128xf32, #tpu.memory_space<vmem>>, vector<1x128xf32>
      %c0_101 = arith.constant 0 : index
      %c0_102 = arith.constant 0 : index
      %99 = vector.load %arg14[%c0_101, %c0_102] : memref<128x128xf32, #tpu.memory_space<vmem>>, vector<8x128xf32>
      %100 = vector.broadcast %97 : vector<1x128xf32> to vector<8x128xf32>
      %101 = arith.mulf %99, %100 : vector<8x128xf32>
      %102 = vector.broadcast %98 : vector<1x128xf32> to vector<8x128xf32>
      %103 = arith.addf %101, %102 : vector<8x128xf32>
      %c0_103 = arith.constant 0 : index
      %c0_104 = arith.constant 0 : index
      %104 = vector.load %arg15[%c0_103, %c0_104] : memref<64x128xf32, #tpu.memory_space<vmem>>, vector<8x128xf32>
      %105 = arith.addf %103, %104 : vector<8x128xf32>
      %cst_105 = arith.constant 0.000000e+00 : f32
      %106 = vector.broadcast %cst_105 : f32 to vector<8x128xf32>
      %107 = arith.maximumf %105, %106 : vector<8x128xf32>
      %108 = arith.truncf %107 : vector<8x128xf32> to vector<8x128xbf16>
      %c0_106 = arith.constant 0 : index
      %c0_107 = arith.constant 0 : index
      %c0_108 = arith.constant 0 : index
      %109 = vector.load %arg10[%c0_106, %c0_107, %c0_108] : memref<1x64x128xbf16, #tpu.memory_space<vmem>>, vector<1x8x128xbf16>
      %110 = vector.shape_cast %109 : vector<1x8x128xbf16> to vector<8x128xbf16>
      %111 = vector.shape_cast %108 : vector<8x128xbf16> to vector<1x8x128xbf16>
      tpu.vector_store %arg10[%c0_106, %c0_107, %c0_108], %111 {strides = array<i32>} : memref<1x64x128xbf16, #tpu.memory_space<vmem>>, vector<1x8x128xbf16>,
      %c16_109 = arith.constant 16 : index
      %c0_110 = arith.constant 0 : index
      %112 = vector.load %arg14[%c16_109, %c0_110] : memref<128x128xf32, #tpu.memory_space<vmem>>, vector<8x128xf32>
      %113 = vector.broadcast %97 : vector<1x128xf32> to vector<8x128xf32>
      %114 = arith.mulf %112, %113 : vector<8x128xf32>
      %115 = vector.broadcast %98 : vector<1x128xf32> to vector<8x128xf32>
      %116 = arith.addf %114, %115 : vector<8x128xf32>
      %c8_111 = arith.constant 8 : index
      %c0_112 = arith.constant 0 : index
      %117 = vector.load %arg15[%c8_111, %c0_112] : memref<64x128xf32, #tpu.memory_space<vmem>>, vector<8x128xf32>
      %118 = arith.addf %116, %117 : vector<8x128xf32>
      %cst_113 = arith.constant 0.000000e+00 : f32
      %119 = vector.broadcast %cst_113 : f32 to vector<8x128xf32>
      %120 = arith.maximumf %118, %119 : vector<8x128xf32>
      %121 = arith.truncf %120 : vector<8x128xf32> to vector<8x128xbf16>
      %c0_114 = arith.constant 0 : index
      %c8_115 = arith.constant 8 : index
      %c0_116 = arith.constant 0 : index
      %122 = vector.load %arg10[%c0_114, %c8_115, %c0_116] : memref<1x64x128xbf16, #tpu.memory_space<vmem>>, vector<1x8x128xbf16>
      %123 = vector.shape_cast %122 : vector<1x8x128xbf16> to vector<8x128xbf16>
      %124 = vector.shape_cast %121 : vector<8x128xbf16> to vector<1x8x128xbf16>
      tpu.vector_store %arg10[%c0_114, %c8_115, %c0_116], %124 {strides = array<i32>} : memref<1x64x128xbf16, #tpu.memory_space<vmem>>, vector<1x8x128xbf16>,
      %c32_117 = arith.constant 32 : index
      %c0_118 = arith.constant 0 : index
      %125 = vector.load %arg14[%c32_117, %c0_118] : memref<128x128xf32, #tpu.memory_space<vmem>>, vector<8x128xf32>
      %126 = vector.broadcast %97 : vector<1x128xf32> to vector<8x128xf32>
      %127 = arith.mulf %125, %126 : vector<8x128xf32>
      %128 = vector.broadcast %98 : vector<1x128xf32> to vector<8x128xf32>
      %129 = arith.addf %127, %128 : vector<8x128xf32>
      %c16_119 = arith.constant 16 : index
      %c0_120 = arith.constant 0 : index
      %130 = vector.load %arg15[%c16_119, %c0_120] : memref<64x128xf32, #tpu.memory_space<vmem>>, vector<8x128xf32>
      %131 = arith.addf %129, %130 : vector<8x128xf32>
      %cst_121 = arith.constant 0.000000e+00 : f32
      %132 = vector.broadcast %cst_121 : f32 to vector<8x128xf32>
      %133 = arith.maximumf %131, %132 : vector<8x128xf32>
      %134 = arith.truncf %133 : vector<8x128xf32> to vector<8x128xbf16>
      %c0_122 = arith.constant 0 : index
      %c16_123 = arith.constant 16 : index
      %c0_124 = arith.constant 0 : index
      %135 = vector.load %arg10[%c0_122, %c16_123, %c0_124] : memref<1x64x128xbf16, #tpu.memory_space<vmem>>, vector<1x8x128xbf16>
      %136 = vector.shape_cast %135 : vector<1x8x128xbf16> to vector<8x128xbf16>
      %137 = vector.shape_cast %134 : vector<8x128xbf16> to vector<1x8x128xbf16>
      tpu.vector_store %arg10[%c0_122, %c16_123, %c0_124], %137 {strides = array<i32>} : memref<1x64x128xbf16, #tpu.memory_space<vmem>>, vector<1x8x128xbf16>,
      %c48 = arith.constant 48 : index
      %c0_125 = arith.constant 0 : index
      %138 = vector.load %arg14[%c48, %c0_125] : memref<128x128xf32, #tpu.memory_space<vmem>>, vector<8x128xf32>
      %139 = vector.broadcast %97 : vector<1x128xf32> to vector<8x128xf32>
      %140 = arith.mulf %138, %139 : vector<8x128xf32>
      %141 = vector.broadcast %98 : vector<1x128xf32> to vector<8x128xf32>
      %142 = arith.addf %140, %141 : vector<8x128xf32>
      %c24_126 = arith.constant 24 : index
      %c0_127 = arith.constant 0 : index
      %143 = vector.load %arg15[%c24_126, %c0_127] : memref<64x128xf32, #tpu.memory_space<vmem>>, vector<8x128xf32>
      %144 = arith.addf %142, %143 : vector<8x128xf32>
      %cst_128 = arith.constant 0.000000e+00 : f32
      %145 = vector.broadcast %cst_128 : f32 to vector<8x128xf32>
      %146 = arith.maximumf %144, %145 : vector<8x128xf32>
      %147 = arith.truncf %146 : vector<8x128xf32> to vector<8x128xbf16>
      %c0_129 = arith.constant 0 : index
      %c24_130 = arith.constant 24 : index
      %c0_131 = arith.constant 0 : index
      %148 = vector.load %arg10[%c0_129, %c24_130, %c0_131] : memref<1x64x128xbf16, #tpu.memory_space<vmem>>, vector<1x8x128xbf16>
      %149 = vector.shape_cast %148 : vector<1x8x128xbf16> to vector<8x128xbf16>
      %150 = vector.shape_cast %147 : vector<8x128xbf16> to vector<1x8x128xbf16>
      tpu.vector_store %arg10[%c0_129, %c24_130, %c0_131], %150 {strides = array<i32>} : memref<1x64x128xbf16, #tpu.memory_space<vmem>>, vector<1x8x128xbf16>,
      %c64 = arith.constant 64 : index
      %c0_132 = arith.constant 0 : index
      %151 = vector.load %arg14[%c64, %c0_132] : memref<128x128xf32, #tpu.memory_space<vmem>>, vector<8x128xf32>
      %152 = vector.broadcast %97 : vector<1x128xf32> to vector<8x128xf32>
      %153 = arith.mulf %151, %152 : vector<8x128xf32>
      %154 = vector.broadcast %98 : vector<1x128xf32> to vector<8x128xf32>
      %155 = arith.addf %153, %154 : vector<8x128xf32>
      %c32_133 = arith.constant 32 : index
      %c0_134 = arith.constant 0 : index
      %156 = vector.load %arg15[%c32_133, %c0_134] : memref<64x128xf32, #tpu.memory_space<vmem>>, vector<8x128xf32>
      %157 = arith.addf %155, %156 : vector<8x128xf32>
      %cst_135 = arith.constant 0.000000e+00 : f32
      %158 = vector.broadcast %cst_135 : f32 to vector<8x128xf32>
      %159 = arith.maximumf %157, %158 : vector<8x128xf32>
      %160 = arith.truncf %159 : vector<8x128xf32> to vector<8x128xbf16>
      %c0_136 = arith.constant 0 : index
      %c32_137 = arith.constant 32 : index
      %c0_138 = arith.constant 0 : index
      %161 = vector.load %arg10[%c0_136, %c32_137, %c0_138] : memref<1x64x128xbf16, #tpu.memory_space<vmem>>, vector<1x8x128xbf16>
      %162 = vector.shape_cast %161 : vector<1x8x128xbf16> to vector<8x128xbf16>
      %163 = vector.shape_cast %160 : vector<8x128xbf16> to vector<1x8x128xbf16>
      tpu.vector_store %arg10[%c0_136, %c32_137, %c0_138], %163 {strides = array<i32>} : memref<1x64x128xbf16, #tpu.memory_space<vmem>>, vector<1x8x128xbf16>,
      %c80 = arith.constant 80 : index
      %c0_139 = arith.constant 0 : index
      %164 = vector.load %arg14[%c80, %c0_139] : memref<128x128xf32, #tpu.memory_space<vmem>>, vector<8x128xf32>
      %165 = vector.broadcast %97 : vector<1x128xf32> to vector<8x128xf32>
      %166 = arith.mulf %164, %165 : vector<8x128xf32>
      %167 = vector.broadcast %98 : vector<1x128xf32> to vector<8x128xf32>
      %168 = arith.addf %166, %167 : vector<8x128xf32>
      %c40_140 = arith.constant 40 : index
      %c0_141 = arith.constant 0 : index
      %169 = vector.load %arg15[%c40_140, %c0_141] : memref<64x128xf32, #tpu.memory_space<vmem>>, vector<8x128xf32>
      %170 = arith.addf %168, %169 : vector<8x128xf32>
      %cst_142 = arith.constant 0.000000e+00 : f32
      %171 = vector.broadcast %cst_142 : f32 to vector<8x128xf32>
      %172 = arith.maximumf %170, %171 : vector<8x128xf32>
      %173 = arith.truncf %172 : vector<8x128xf32> to vector<8x128xbf16>
      %c0_143 = arith.constant 0 : index
      %c40_144 = arith.constant 40 : index
      %c0_145 = arith.constant 0 : index
      %174 = vector.load %arg10[%c0_143, %c40_144, %c0_145] : memref<1x64x128xbf16, #tpu.memory_space<vmem>>, vector<1x8x128xbf16>
      %175 = vector.shape_cast %174 : vector<1x8x128xbf16> to vector<8x128xbf16>
      %176 = vector.shape_cast %173 : vector<8x128xbf16> to vector<1x8x128xbf16>
      tpu.vector_store %arg10[%c0_143, %c40_144, %c0_145], %176 {strides = array<i32>} : memref<1x64x128xbf16, #tpu.memory_space<vmem>>, vector<1x8x128xbf16>,
      %c96 = arith.constant 96 : index
      %c0_146 = arith.constant 0 : index
      %177 = vector.load %arg14[%c96, %c0_146] : memref<128x128xf32, #tpu.memory_space<vmem>>, vector<8x128xf32>
      %178 = vector.broadcast %97 : vector<1x128xf32> to vector<8x128xf32>
      %179 = arith.mulf %177, %178 : vector<8x128xf32>
      %180 = vector.broadcast %98 : vector<1x128xf32> to vector<8x128xf32>
      %181 = arith.addf %179, %180 : vector<8x128xf32>
      %c48_147 = arith.constant 48 : index
      %c0_148 = arith.constant 0 : index
      %182 = vector.load %arg15[%c48_147, %c0_148] : memref<64x128xf32, #tpu.memory_space<vmem>>, vector<8x128xf32>
      %183 = arith.addf %181, %182 : vector<8x128xf32>
      %cst_149 = arith.constant 0.000000e+00 : f32
      %184 = vector.broadcast %cst_149 : f32 to vector<8x128xf32>
      %185 = arith.maximumf %183, %184 : vector<8x128xf32>
      %186 = arith.truncf %185 : vector<8x128xf32> to vector<8x128xbf16>
      %c0_150 = arith.constant 0 : index
      %c48_151 = arith.constant 48 : index
      %c0_152 = arith.constant 0 : index
      %187 = vector.load %arg10[%c0_150, %c48_151, %c0_152] : memref<1x64x128xbf16, #tpu.memory_space<vmem>>, vector<1x8x128xbf16>
      %188 = vector.shape_cast %187 : vector<1x8x128xbf16> to vector<8x128xbf16>
      %189 = vector.shape_cast %186 : vector<8x128xbf16> to vector<1x8x128xbf16>
      tpu.vector_store %arg10[%c0_150, %c48_151, %c0_152], %189 {strides = array<i32>} : memref<1x64x128xbf16, #tpu.memory_space<vmem>>, vector<1x8x128xbf16>,
      %c112 = arith.constant 112 : index
      %c0_153 = arith.constant 0 : index
      %190 = vector.load %arg14[%c112, %c0_153] : memref<128x128xf32, #tpu.memory_space<vmem>>, vector<8x128xf32>
      %191 = vector.broadcast %97 : vector<1x128xf32> to vector<8x128xf32>
      %192 = arith.mulf %190, %191 : vector<8x128xf32>
      %193 = vector.broadcast %98 : vector<1x128xf32> to vector<8x128xf32>
      %194 = arith.addf %192, %193 : vector<8x128xf32>
      %c56 = arith.constant 56 : index
      %c0_154 = arith.constant 0 : index
      %195 = vector.load %arg15[%c56, %c0_154] : memref<64x128xf32, #tpu.memory_space<vmem>>, vector<8x128xf32>
      %196 = arith.addf %194, %195 : vector<8x128xf32>
      %cst_155 = arith.constant 0.000000e+00 : f32
      %197 = vector.broadcast %cst_155 : f32 to vector<8x128xf32>
      %198 = arith.maximumf %196, %197 : vector<8x128xf32>
      %199 = arith.truncf %198 : vector<8x128xf32> to vector<8x128xbf16>
      %c0_156 = arith.constant 0 : index
      %c56_157 = arith.constant 56 : index
      %c0_158 = arith.constant 0 : index
      %200 = vector.load %arg10[%c0_156, %c56_157, %c0_158] : memref<1x64x128xbf16, #tpu.memory_space<vmem>>, vector<1x8x128xbf16>
      %201 = vector.shape_cast %200 : vector<1x8x128xbf16> to vector<8x128xbf16>
      %202 = vector.shape_cast %199 : vector<8x128xbf16> to vector<1x8x128xbf16>
      tpu.vector_store %arg10[%c0_156, %c56_157, %c0_158], %202 {strides = array<i32>} : memref<1x64x128xbf16, #tpu.memory_space<vmem>>, vector<1x8x128xbf16>,
    } else {
    }
    return
  }
  func.func @transform_0(%arg0: i32, %arg1: i32) -> (i32, i32, i32) {
    %c0_i32 = arith.constant 0 : i32
    %c0_i32_0 = arith.constant 0 : i32
    %c0_i32_1 = arith.constant 0 : i32
    return %arg0, %c0_i32, %c0_i32_0 : i32, i32, i32
  }
  func.func @transform_1(%arg0: i32, %arg1: i32) -> (i32, i32, i32) {
    %c0_i32 = arith.constant 0 : i32
    %c0_i32_0 = arith.constant 0 : i32
    %c0_i32_1 = arith.constant 0 : i32
    return %c0_i32, %c0_i32_0, %arg1 : i32, i32, i32
  }
  func.func @transform_2(%arg0: i32, %arg1: i32) -> (i32, i32, i32) {
    %c0_i32 = arith.constant 0 : i32
    %c0_i32_0 = arith.constant 0 : i32
    %c0_i32_1 = arith.constant 0 : i32
    return %arg1, %c0_i32, %c0_i32_0 : i32, i32, i32
  }
  func.func @transform_3(%arg0: i32, %arg1: i32) -> (i32, i32) {
    %c0_i32 = arith.constant 0 : i32
    %c0_i32_0 = arith.constant 0 : i32
    %c0_i32_1 = arith.constant 0 : i32
    return %c0_i32, %c0_i32_0 : i32, i32
  }
  func.func @transform_4(%arg0: i32, %arg1: i32) -> (i32, i32, i32) {
    %c0_i32 = arith.constant 0 : i32
    %c0_i32_0 = arith.constant 0 : i32
    %c0_i32_1 = arith.constant 0 : i32
    return %arg0, %c0_i32, %c0_i32_0 : i32, i32, i32
  }
  func.func @transform_5(%arg0: i32, %arg1: i32) -> (i32, i32) {
    %c0_i32 = arith.constant 0 : i32
    %c0_i32_0 = arith.constant 0 : i32
    %c0_i32_1 = arith.constant 0 : i32
    return %c0_i32, %c0_i32_0 : i32, i32
  }
  func.func @transform_6(%arg0: i32, %arg1: i32) -> (i32, i32) {
    %c0_i32 = arith.constant 0 : i32
    %c0_i32_0 = arith.constant 0 : i32
    %c0_i32_1 = arith.constant 0 : i32
    return %c0_i32, %c0_i32_0 : i32, i32
  }
  func.func @transform_7(%arg0: i32, %arg1: i32) -> (i32, i32) {
    %c0_i32 = arith.constant 0 : i32
    %c0_i32_0 = arith.constant 0 : i32
    %c0_i32_1 = arith.constant 0 : i32
    return %c0_i32, %c0_i32_0 : i32, i32
  }
  func.func @transform_8(%arg0: i32, %arg1: i32) -> (i32, i32, i32) {
    %c0_i32 = arith.constant 0 : i32
    %c0_i32_0 = arith.constant 0 : i32
    %c0_i32_1 = arith.constant 0 : i32
    return %arg0, %c0_i32, %c0_i32_0 : i32, i32, i32
  }
}

</mosaic_0001>

<llo_original>
// kernel: resnet_swin_forward.5
$region0: #{resnet_swin_forward.5}
  #allocation0 [shape = 'u32[]', space=smem, size = 0x4, offset = 0x4, fixed_abs, tag = 'smem constant byte address 0x4 - core index']
  #allocation1 [shape = 'u32[144,128]{1,0:T(1,128)}', space=vmem, size = 0x12000, scoped, tag = 'internal scratch']
  %s0 = inlined_call_operand.hbm [shape: bf16[2,64,128], index: 0, kind: input, shape index: {}]
  %s1 = inlined_call_operand.hbm [shape: bf16[128,128], index: 1, kind: input, shape index: {}]
  %s2 = inlined_call_operand.hbm [shape: f32[1,128], index: 2, kind: input, shape index: {}]
  %s3 = inlined_call_operand.hbm [shape: f32[2,64,128], index: 3, kind: output, shape index: {}]
  %s4 = sld [smem:[#allocation0]]
  $region57: #{resnet_swin_forward.5} parent=0
    _
  %s6 = ssub.s32 1, %s4
  %s7 = scalar_select 0, %s6, %s4
  $region1: #{resnet_swin_forward.5} parent=0
    #allocation2 [shape = 'u8[32768]{0}', space=vmem, size = 0x8000, scoped, tag = 'input window, operand 0']
    #allocation3 [shape = 's32[2]{0}', space=sflag, size = 0x8, scoped, tag = 'scoped memory for resnet_swin_forward.5']
    #allocation4 [shape = 's32[2]{0}', space=sflag, size = 0x8, scoped, tag = 'scoped memory for resnet_swin_forward.5']
    #allocation5 [shape = 'u8[32768]{0}', space=vmem, size = 0x8000, scoped, tag = 'input window, operand 1, single buffered']
    #allocation6 [shape = 's32[1]{0}', space=sflag, size = 0x4, scoped, tag = 'scoped memory for resnet_swin_forward.5']
    #allocation7 [shape = 'u8[512]{0}', space=vmem, size = 0x400, scoped, tag = 'input window, operand 2, single buffered']
    #allocation8 [shape = 'u8[65536]{0}', space=vmem, size = 0x10000, scoped, tag = 'output window, operand 0']
    %8 = vsyncpa [#allocation3], 0
    %s9 = scalar_lea.sflag [#allocation3], 1
    %10 = vsyncpa %s9, 0
    %11 = vsyncpa [#allocation6], 0
    %12 = vsyncpa [#allocation4], 0
    %s13 = scalar_lea.sflag [#allocation4], 1
    %14 = vsyncpa %s13, 0
    loop: start=0, step=1, limit=4
    $region2: #{resnet_swin_forward.5} parent=1 // loop_pre_header
      _
    $region3: #{resnet_swin_forward.5} parent=1 // loop_header
      %s16 = sphi 0, %s20
      %p17 = scmp.ge.s32.totalorder %s16, 4
      %s23 = sphi 0, %s35
      %s24 = sphi 0, %s31
      %s25 = sphi 0, %s23
      %s26 = sphi 0, %s24
      %s27 = sphi 0, %s25
      %s28 = sphi 0, %s26
      %s38 = sphi 0, %s40
      %s41 = sphi 0, %s38
      %s42 = sphi 0, %s41
      %s58 = sphi 0, %s42
      %s64 = sphi 0, %s66
      %s67 = sphi 0, %s64
      %s68 = sphi 0, %s67
      %s84 = sphi 0, %s68
      %s90 = sphi 0, %s92
      %s93 = sphi 0, %s90
      %s94 = sphi 0, %s93
      %s110 = sphi 0, %s94
      %s118 = sphi 0, %s120
      %s121 = sphi 0, %s118
      %s122 = sphi 0, %s121
      %s138 = sphi 0, %s122
    $region4: #{resnet_swin_forward.5} parent=1 // loop_header_branch
      %19 = sbr.rel (%p17) target = $region8
    $region5: #{resnet_swin_forward.5} parent=1 // loop_body
      %s21 = ssub.s32 %s16, 1
      %s22 = ssub.s32 %s16, 2
      %s29 = sadd.s32 1, %s24
      %p30 = scmp.ge.s32.totalorder %s29, 1
      %s31 = scalar_select %p30, 0, %s29
      %s32 = sadd.s32 1, %s23
      %s33 = scalar_select %p30, %s32, %s23
      %p34 = scmp.ge.s32.totalorder %s33, 2
      %s35 = scalar_select %p34, 0, %s33
      %s36 = ssub.s32 %s23, %s35
      %p37 = scmp.eq.s32.totalorder %s36, 0
      %s39 = sadd.s32 %s38, 1
      %s40 = scalar_select %p37, %s38, %s39
      %p43 = pneg %p37
      %p44 = scmp.eq.s32.totalorder %s16, 1
      %p45 = por %p43, %p44
      %p46 = scmp.ne.s32.totalorder %s38, %s41
      %p47 = scmp.eq.s32.totalorder %s16, 0
      %p48 = por %p46, %p47
      %p49 = scmp.ne.s32.totalorder %s38, %s41
      %p50 = scmp.eq.s32.totalorder %s21, 1
      %p51 = por %p49, %p50
      %p52 = scmp.ne.s32.totalorder %s41, %s42
      %p53 = scmp.eq.s32.totalorder %s21, 0
      %p54 = por %p52, %p53
      %p55 = scmp.ne.s32.totalorder %s41, %s42
      %p56 = scmp.eq.s32.totalorder %s22, 1
      %p57 = por %p55, %p56
      %p59 = scmp.ne.s32.totalorder %s42, %s58
      %p60 = scmp.eq.s32.totalorder %s22, 0
      %p61 = por %p59, %p60
      %s62 = ssub.s32 %s24, %s31
      %p63 = scmp.eq.s32.totalorder %s62, 0
      %s65 = sadd.s32 %s64, 1
      %s66 = scalar_select %p63, %s64, %s65
      %p69 = pneg %p63
      %p70 = scmp.eq.s32.totalorder %s16, 1
      %p71 = por %p69, %p70
      %p72 = scmp.ne.s32.totalorder %s64, %s67
      %p73 = scmp.eq.s32.totalorder %s16, 0
      %p74 = por %p72, %p73
      %p75 = scmp.ne.s32.totalorder %s64, %s67
      %p76 = scmp.eq.s32.totalorder %s21, 1
      %p77 = por %p75, %p76
      %p78 = scmp.ne.s32.totalorder %s67, %s68
      %p79 = scmp.eq.s32.totalorder %s21, 0
      %p80 = por %p78, %p79
      %p81 = scmp.ne.s32.totalorder %s67, %s68
      %p82 = scmp.eq.s32.totalorder %s22, 1
      %p83 = por %p81, %p82
      %p85 = scmp.ne.s32.totalorder %s68, %s84
      %p86 = scmp.eq.s32.totalorder %s22, 0
      %p87 = por %p85, %p86
      %s88 = ssub.s32 %s24, %s31
      %p89 = scmp.eq.s32.totalorder %s88, 0
      %s91 = sadd.s32 %s90, 1
      %s92 = scalar_select %p89, %s90, %s91
      %p95 = pneg %p89
      %p96 = scmp.eq.s32.totalorder %s16, 1
      %p97 = por %p95, %p96
      %p98 = scmp.ne.s32.totalorder %s90, %s93
      %p99 = scmp.eq.s32.totalorder %s16, 0
      %p100 = por %p98, %p99
      %p101 = scmp.ne.s32.totalorder %s90, %s93
      %p102 = scmp.eq.s32.totalorder %s21, 1
      %p103 = por %p101, %p102
      %p104 = scmp.ne.s32.totalorder %s93, %s94
      %p105 = scmp.eq.s32.totalorder %s21, 0
      %p106 = por %p104, %p105
      %p107 = scmp.ne.s32.totalorder %s93, %s94
      %p108 = scmp.eq.s32.totalorder %s22, 1
      %p109 = por %p107, %p108
      %p111 = scmp.ne.s32.totalorder %s94, %s110
      %p112 = scmp.eq.s32.totalorder %s22, 0
      %p113 = por %p111, %p112
      %s114 = ssub.s32 %s23, %s35
      %s115 = ssub.s32 %s24, %s31
      %s116 = sor.u32 %s114, %s115
      %p117 = scmp.eq.s32.totalorder %s116, 0
      %s119 = sadd.s32 %s118, 1
      %s120 = scalar_select %p117, %s118, %s119
      %p123 = pneg %p117
      %p124 = scmp.eq.s32.totalorder %s16, 1
      %p125 = por %p123, %p124
      %p126 = scmp.ne.s32.totalorder %s118, %s121
      %p127 = scmp.eq.s32.totalorder %s16, 0
      %p128 = por %p126, %p127
      %p129 = scmp.ne.s32.totalorder %s118, %s121
      %p130 = scmp.eq.s32.totalorder %s21, 1
      %p131 = por %p129, %p130
      %p132 = scmp.ne.s32.totalorder %s121, %s122
      %p133 = scmp.eq.s32.totalorder %s21, 0
      %p134 = por %p132, %p133
      %p135 = scmp.ne.s32.totalorder %s121, %s122
      %p136 = scmp.eq.s32.totalorder %s22, 1
      %p137 = por %p135, %p136
      %p139 = scmp.ne.s32.totalorder %s122, %s138
      %p140 = scmp.eq.s32.totalorder %s22, 0
      %p141 = por %p139, %p140
      %p142 = scmp.le.s32.totalorder 1, %s16
      %p143 = scmp.lt.s32.totalorder %s16, 3
      %p144 = pnand %p142, %p143
      %p145 = pneg %p144
      // Predicated region
      $region9: #{resnet_swin_forward.5} parent=5 // pred_check
        _
      $region10: #{resnet_swin_forward.5} parent=5 // pred_check_branch
        %147 = sbr.rel (%p144) target = $region12
      $region11: #{resnet_swin_forward.5} parent=5 // pred_region
        %s148 = ssub.s32 %s16, 1
        // Predicated region
        $region13: #{resnet_swin_forward.5} parent=11 // pred_check
          %p149 = pneg %p80
        $region14: #{resnet_swin_forward.5} parent=11 // pred_check_branch
          %151 = sbr.rel (%p149) target = $region16
        $region15: #{resnet_swin_forward.5} parent=11 // pred_region
          %s153 = ssub.s32 1024, 1024
          %154 = vsyncadd [#allocation6], %s153
          %s155 = smul.addr %s26, 64
          %s156 = scalar_lea.hbm %s1, %s155
          %s157 = sshll.u32 [#allocation5], 4
          %s158 = int_to_ptr.vmem [resolvable:$true] %s157
          %163 = dma.hbm_to_vmem [thread:$0]  %s156, 1024, %s158, [#allocation6], 64, 64, 4
        $region16: #{resnet_swin_forward.5} parent=11 // pred_fallthru
          _
        // Predicated region
        $region17: #{resnet_swin_forward.5} parent=11 // pred_check
          %p164 = pneg %p106
        $region18: #{resnet_swin_forward.5} parent=11 // pred_check_branch
          %166 = sbr.rel (%p164) target = $region20
        $region19: #{resnet_swin_forward.5} parent=11 // pred_region
          %s168 = ssub.s32 16, 16
          %169 = vsyncadd [#allocation6], %s168
          %s170 = smul.addr %s26, 16
          %s171 = scalar_lea.hbm %s2, %s170
          %s173 = sshll.u32 [#allocation7], 4
          %s174 = int_to_ptr.vmem [resolvable:$true] %s173
          %176 = dma.hbm_to_vmem [thread:$0]  %s171, 16, %s174, [#allocation6]
        $region20: #{resnet_swin_forward.5} parent=11 // pred_fallthru
          _
      $region12: #{resnet_swin_forward.5} parent=5 // pred_fallthru
        _
      %p177 = scmp.lt.s32.totalorder %s16, 2
      // Predicated region
      $region21: #{resnet_swin_forward.5} parent=5 // pred_check
        %p178 = pneg %p177
      $region22: #{resnet_swin_forward.5} parent=5 // pred_check_branch
        %180 = sbr.rel (%p178) target = $region24
      $region23: #{resnet_swin_forward.5} parent=5 // pred_region
        // Predicated region
        $region25: #{resnet_swin_forward.5} parent=23 // pred_check
          %p181 = pneg %p48
        $region26: #{resnet_swin_forward.5} parent=23 // pred_check_branch
          %183 = sbr.rel (%p181) target = $region28
        $region27: #{resnet_swin_forward.5} parent=23 // pred_region
          %s184 = sand.u32 %s38, 1
          %s185 = scalar_lea.sflag [#allocation3], %s184
          %s186 = sand.u32 %s38, 1
          %s187 = smul.addr %s186, 32
          %s188 = scalar_lea.vmem [#allocation2], %s187
          %s190 = ssub.s32 512, 512
          %191 = vsyncadd %s185, %s190
          %s192 = smul.addr %s23, 8
          %s193 = smul.addr %s192, 64
          %s194 = scalar_lea.hbm %s0, %s193
          %s195 = sshll.u32 %s188, 4
          %s196 = int_to_ptr.vmem [resolvable:$true] %s195
          %201 = dma.hbm_to_vmem [thread:$0]  %s194, 512, %s196, %s185, 64, 64, 4
        $region28: #{resnet_swin_forward.5} parent=23 // pred_fallthru
          _
      $region24: #{resnet_swin_forward.5} parent=5 // pred_fallthru
        _
      %p202 = scmp.le.s32.totalorder 1, %s16
      %p203 = scmp.lt.s32.totalorder %s16, 3
      %p204 = pnand %p202, %p203
      %p205 = pneg %p204
      // Predicated region
      $region29: #{resnet_swin_forward.5} parent=5 // pred_check
        _
      $region30: #{resnet_swin_forward.5} parent=5 // pred_check_branch
        %207 = sbr.rel (%p204) target = $region32
      $region31: #{resnet_swin_forward.5} parent=5 // pred_region
        %s208 = ssub.s32 %s16, 1
        %s209 = sand.u32 %s41, 1
        %s210 = scalar_lea.sflag [#allocation3], %s209
        %s211 = sand.u32 %s41, 1
        %s212 = smul.addr %s211, 32
        %s213 = scalar_lea.vmem [#allocation2], %s212
        // Predicated region
        $region33: #{resnet_swin_forward.5} parent=31 // pred_check
          %p214 = pneg %p54
        $region34: #{resnet_swin_forward.5} parent=31 // pred_check_branch
          %216 = sbr.rel (%p214) target = $region36
        $region35: #{resnet_swin_forward.5} parent=31 // pred_region
          %217 = dma.done %s210, 512
        $region36: #{resnet_swin_forward.5} parent=31 // pred_fallthru
          _
        // Predicated region
        $region37: #{resnet_swin_forward.5} parent=31 // pred_check
          %p218 = pneg %p80
        $region38: #{resnet_swin_forward.5} parent=31 // pred_check_branch
          %220 = sbr.rel (%p218) target = $region40
        $region39: #{resnet_swin_forward.5} parent=31 // pred_region
          %221 = dma.done [#allocation6], 1024
        $region40: #{resnet_swin_forward.5} parent=31 // pred_fallthru
          _
        // Predicated region
        $region41: #{resnet_swin_forward.5} parent=31 // pred_check
          %p222 = pneg %p106
        $region42: #{resnet_swin_forward.5} parent=31 // pred_check_branch
          %224 = sbr.rel (%p222) target = $region44
        $region43: #{resnet_swin_forward.5} parent=31 // pred_region
          %225 = dma.done [#allocation6], 16
        $region44: #{resnet_swin_forward.5} parent=31 // pred_fallthru
          _
        %s226 = sand.u32 %s41, 1
        %s227 = scalar_lea.sflag [#allocation3], %s226
        %s228 = sand.u32 %s41, 1
        %s229 = smul.addr %s228, 32
        %s230 = scalar_lea.vmem [#allocation2], %s229
        %p231 = pneg %p54
        %p232 = pneg %p51
        %p233 = pneg %p80
        %p234 = pneg %p77
        %p235 = pneg %p106
        %p236 = pneg %p103
        %p237 = pneg %p134
        %p238 = pneg %p131
        %s239 = sand.u32 %s121, 1
        %s240 = scalar_lea.sflag [#allocation4], %s239
        %s241 = sand.u32 %s121, 1
        %s242 = smul.addr %s241, 64
        %s243 = scalar_lea.vmem [#allocation8], %s242
        %v245 = vld [vmem:[%s213] sm:$0xf]
        %v246 = vld [vmem:[%s213 + $0x4] sm:$0xf]
        %v247 = vld [vmem:[%s213 + $0x8] sm:$0xf]
        %v248 = vld [vmem:[%s213 + $0xc] sm:$0xf]
        %v249 = vld [vmem:[%s213 + $0x10] sm:$0xf]
        %v250 = vld [vmem:[%s213 + $0x14] sm:$0xf]
        %v251 = vld [vmem:[%s213 + $0x18] sm:$0xf]
        %v252 = vld [vmem:[%s213 + $0x1c] sm:$0xf]
        %v253 = vld [vmem:[#allocation5] sm:$0xf]
        %v254 = vld [vmem:[#allocation5 + $0x4] sm:$0xf]
        %v255 = vld [vmem:[#allocation5 + $0x8] sm:$0xf]
        %v256 = vld [vmem:[#allocation5 + $0xc] sm:$0xf]
        %v257 = vld [vmem:[#allocation5 + $0x10] sm:$0xf]
        %v258 = vld [vmem:[#allocation5 + $0x14] sm:$0xf]
        %v259 = vld [vmem:[#allocation5 + $0x18] sm:$0xf]
        %v260 = vld [vmem:[#allocation5 + $0x1c] sm:$0xf]
        %v261 = vld [vmem:[#allocation5 + $0x20] sm:$0xf]
        %v262 = vld [vmem:[#allocation5 + $0x24] sm:$0xf]
        %v263 = vld [vmem:[#allocation5 + $0x28] sm:$0xf]
        %v264 = vld [vmem:[#allocation5 + $0x2c] sm:$0xf]
        %v265 = vld [vmem:[#allocation5 + $0x30] sm:$0xf]
        %v266 = vld [vmem:[#allocation5 + $0x34] sm:$0xf]
        %v267 = vld [vmem:[#allocation5 + $0x38] sm:$0xf]
        %v268 = vld [vmem:[#allocation5 + $0x3c] sm:$0xf]
        %v269 = vld [vmem:[#allocation7] sm:$0x1]
        %v271 = vlaneseq
        %v272 = vshrl.u32 %v271, 7
        %v273 = vsub.s32 0, %v272
        %v274 = vrot.slane %v269, %v273
        %v284 = vunpack.c.l.b16 %v245
        %v285 = vunpack.c.l.b16 %v246
        %v286 = vunpack.c.l.b16 %v247
        %v287 = vunpack.c.l.b16 %v248
        %v288 = vunpack.c.l.b16 %v249
        %v289 = vunpack.c.l.b16 %v250
        %v290 = vunpack.c.l.b16 %v251
        %v291 = vunpack.c.l.b16 %v252
        %v292 = vpack.c.b16 %v285, %v284
        %v293 = vpack.c.b16 %v287, %v286
        %v294 = vpack.c.b16 %v289, %v288
        %v295 = vpack.c.b16 %v291, %v290
        %v316 = vunpack.c.l.b16 %v253
        %v317 = vunpack.c.l.b16 %v254
        %v318 = vunpack.c.l.b16 %v255
        %v319 = vunpack.c.l.b16 %v256
        %v320 = vunpack.c.l.b16 %v257
        %v321 = vunpack.c.l.b16 %v258
        %v322 = vunpack.c.l.b16 %v259
        %v323 = vunpack.c.l.b16 %v260
        %v324 = vunpack.c.l.b16 %v261
        %v325 = vunpack.c.l.b16 %v262
        %v326 = vunpack.c.l.b16 %v263
        %v327 = vunpack.c.l.b16 %v264
        %v328 = vunpack.c.l.b16 %v265
        %v329 = vunpack.c.l.b16 %v266
        %v330 = vunpack.c.l.b16 %v267
        %v331 = vunpack.c.l.b16 %v268
        %v332 = vpack.c.b16 %v317, %v316
        %v333 = vpack.c.b16 %v319, %v318
        %v334 = vpack.c.b16 %v321, %v320
        %v335 = vpack.c.b16 %v323, %v322
        %v336 = vpack.c.b16 %v325, %v324
        %v337 = vpack.c.b16 %v327, %v326
        %v338 = vpack.c.b16 %v329, %v328
        %v339 = vpack.c.b16 %v331, %v330
        %348 = vmatprep.subr.bf16.mxu0 0
        %349 = vmatpush1.bf16.msra.mxu0 %v332
        %350 = vmatprep.subr.bf16.mxu0 0
        %351 = vmatpush1.bf16.msra.mxu0 %v333
        %352 = vmatprep.subr.bf16.mxu0 0
        %353 = vmatpush1.bf16.msra.mxu0 %v334
        %354 = vmatprep.subr.bf16.mxu0 0
        %355 = vmatpush1.bf16.msra.mxu0 %v335
        %356 = vmatprep.subr.bf16.mxu0 0
        %357 = vmatpush1.bf16.msra.mxu0 %v336
        %358 = vmatprep.subr.bf16.mxu0 0
        %359 = vmatpush1.bf16.msra.mxu0 %v337
        %360 = vmatprep.subr.bf16.mxu0 0
        %361 = vmatpush1.bf16.msra.mxu0 %v338
        %362 = vmatprep.subr.bf16.mxu0 0
        %363 = vmatpush1.bf16.msra.mxu0 %v339
        %364 = vmatprep.subr.bf16.mxu0 0
        %365 = vmatpush1.bf16.msra.mxu0 0
        %366 = vmatprep.subr.bf16.mxu0 0
        %367 = vmatpush1.bf16.msra.mxu0 0
        %368 = vmatprep.subr.bf16.mxu0 0
        %369 = vmatpush1.bf16.msra.mxu0 0
        %370 = vmatprep.subr.bf16.mxu0 0
        %371 = vmatpush1.bf16.msra.mxu0 0
        %372 = vmatprep.subr.bf16.mxu0 0
        %373 = vmatpush1.bf16.msra.mxu0 0
        %374 = vmatprep.subr.bf16.mxu0 0
        %375 = vmatpush1.bf16.msra.mxu0 0
        %376 = vmatprep.subr.bf16.mxu0 0
        %377 = vmatpush1.bf16.msra.mxu0 0
        %378 = vmatprep.subr.bf16.mxu0 0
        %379 = vmatpush1.bf16.msra.mxu0 0
        %380 = vmatprep.mubr.bf16.mxu0 0
        %381 = vmatmul.mubr.bf16.gmra.mrb[0].mxu0 %v292
        %v382 = vpop.f32.mrb[0].mxu0
        %v383 = vadd.f32 %v274, %v382
        %v384 = vpop.f32.mrb[0].mxu0
        %v385 = vpop.f32.mrb[0].mxu0
        %v386 = vadd.f32 %v274, %v385
        %v387 = vpop.f32.mrb[0].mxu0
        %388 = vmatprep.mubr.bf16.mxu0 0
        %389 = vmatmul.mubr.bf16.gmra.mrb[0].mxu0 %v293
        %v390 = vpop.f32.mrb[0].mxu0
        %v391 = vadd.f32 %v274, %v390
        %v392 = vpop.f32.mrb[0].mxu0
        %v393 = vpop.f32.mrb[0].mxu0
        %v394 = vadd.f32 %v274, %v393
        %v395 = vpop.f32.mrb[0].mxu0
        %396 = vmatprep.mubr.bf16.mxu0 0
        %397 = vmatmul.mubr.bf16.gmra.mrb[0].mxu0 %v294
        %v398 = vpop.f32.mrb[0].mxu0
        %v399 = vadd.f32 %v274, %v398
        %v400 = vpop.f32.mrb[0].mxu0
        %v401 = vpop.f32.mrb[0].mxu0
        %v402 = vadd.f32 %v274, %v401
        %v403 = vpop.f32.mrb[0].mxu0
        %404 = vmatprep.mubr.bf16.mxu0 0
        %405 = vmatmul.mubr.bf16.gmra.mrb[0].mxu0 %v295
        %v406 = vpop.f32.mrb[0].mxu0
        %v407 = vadd.f32 %v274, %v406
        %v408 = vpop.f32.mrb[0].mxu0
        %v409 = vpop.f32.mrb[0].mxu0
        %v410 = vadd.f32 %v274, %v409
        %v411 = vpop.f32.mrb[0].mxu0
        %412 = vdwg.mxu0
        %413 = vst [vmem:[%s243] sm:$0xff] %v383
        %414 = vst [vmem:[%s243 + $0x8] sm:$0xff] %v386
        %415 = vst [vmem:[%s243 + $0x10] sm:$0xff] %v391
        %416 = vst [vmem:[%s243 + $0x18] sm:$0xff] %v394
        %417 = vst [vmem:[%s243 + $0x20] sm:$0xff] %v399
        %418 = vst [vmem:[%s243 + $0x28] sm:$0xff] %v402
        %419 = vst [vmem:[%s243 + $0x30] sm:$0xff] %v407
        %420 = vst [vmem:[%s243 + $0x38] sm:$0xff] %v410
        %s421 = sand.u32 %s121, 1
        %s422 = scalar_lea.sflag [#allocation4], %s421
        %s423 = sand.u32 %s121, 1
        %s424 = smul.addr %s423, 64
        %s425 = scalar_lea.vmem [#allocation8], %s424
        // Predicated region
        $region45: #{resnet_swin_forward.5} parent=31 // pred_check
          %p426 = pneg %p131
        $region46: #{resnet_swin_forward.5} parent=31 // pred_check_branch
          %428 = sbr.rel (%p426) target = $region48
        $region47: #{resnet_swin_forward.5} parent=31 // pred_region
          %s430 = ssub.s32 1024, 1024
          %431 = vsyncadd %s422, %s430
          %s432 = smul.addr %s25, 8
          %s433 = sadd.s32 %s26, %s432
          %s434 = smul.addr %s433, 128
          %s435 = scalar_lea.hbm %s3, %s434
          %s436 = sshll.u32 %s425, 4
          %s437 = int_to_ptr.vmem [resolvable:$true] %s436
          %442 = dma.vmem_to_hbm [thread:$0]  %s437, 1024, %s435, %s422, 128, 128, 8
        $region48: #{resnet_swin_forward.5} parent=31 // pred_fallthru
          _
      $region32: #{resnet_swin_forward.5} parent=5 // pred_fallthru
        _
      %p443 = scmp.le.s32.totalorder 2, %s16
      // Predicated region
      $region49: #{resnet_swin_forward.5} parent=5 // pred_check
        %p444 = pneg %p443
      $region50: #{resnet_swin_forward.5} parent=5 // pred_check_branch
        %446 = sbr.rel (%p444) target = $region52
      $region51: #{resnet_swin_forward.5} parent=5 // pred_region
        %s447 = ssub.s32 %s16, 2
        // Predicated region
        $region53: #{resnet_swin_forward.5} parent=51 // pred_check
          %p448 = pneg %p137
        $region54: #{resnet_swin_forward.5} parent=51 // pred_check_branch
          %450 = sbr.rel (%p448) target = $region56
        $region55: #{resnet_swin_forward.5} parent=51 // pred_region
          %s451 = sand.u32 %s122, 1
          %s452 = scalar_lea.sflag [#allocation4], %s451
          %s453 = sand.u32 %s122, 1
          %s454 = smul.addr %s453, 64
          %s455 = scalar_lea.vmem [#allocation8], %s454
          %456 = dma.done %s452, 1024
        $region56: #{resnet_swin_forward.5} parent=51 // pred_fallthru
          _
      $region52: #{resnet_swin_forward.5} parent=5 // pred_fallthru
        _
    $region6: #{resnet_swin_forward.5} parent=1 // loop_footer
      %s20 = sadd.s32 1, %s16
    $region7: #{resnet_swin_forward.5} parent=1 // loop_footer_branch
      %15 = sbr.rel target = $region3
    $region8: #{resnet_swin_forward.5} parent=1 // loop_exit
      _
    %457 = vsyncpa [#allocation3], 1
    %s458 = scalar_lea.sflag [#allocation3], 1
    %459 = vsyncpa %s458, 1
    %460 = vsyncpa [#allocation6], 1
    %461 = vsyncpa [#allocation4], 1
    %s462 = scalar_lea.sflag [#allocation4], 1
    %463 = vsyncpa %s462, 1

// kernel: resnet_swin_forward.3
$region0: #{resnet_swin_forward.3}
  #allocation0 [shape = 'u32[]', space=smem, size = 0x4, offset = 0x4, fixed_abs, tag = 'smem constant byte address 0x4 - core index']
  #allocation1 [shape = 'u32[144,128]{1,0:T(1,128)}', space=vmem, size = 0x12000, scoped, tag = 'internal scratch']
  %s0 = inlined_call_operand.hbm [shape: bf16[2,6,144,128], index: 0, kind: input, shape index: {}]
  %s1 = inlined_call_operand.hbm [shape: bf16[9,128,128], index: 1, kind: input, shape index: {}]
  %s2 = inlined_call_operand.hbm [shape: f32[1,128], index: 2, kind: input, shape index: {}]
  %s3 = inlined_call_operand.hbm [shape: f32[1,128], index: 3, kind: input, shape index: {}]
  %s4 = inlined_call_operand.hbm [shape: f32[128,1], index: 4, kind: input, shape index: {}]
  %s5 = inlined_call_operand.hbm [shape: bf16[2,176,128], index: 5, kind: output, shape index: {}]
  %s6 = sld [smem:[#allocation0]]
  $region73: #{resnet_swin_forward.3} parent=0
    _
  %s8 = ssub.s32 1, %s6
  %s9 = scalar_select 0, %s8, %s6
  $region1: #{resnet_swin_forward.3} parent=0
    #allocation2 [shape = 'u8[442368]{0}', space=vmem, size = 0x6c000, scoped, tag = 'input window, operand 0']
    #allocation3 [shape = 's32[2]{0}', space=sflag, size = 0x8, scoped, tag = 'scoped memory for resnet_swin_forward.3']
    #allocation4 [shape = 's32[2]{0}', space=sflag, size = 0x8, scoped, tag = 'scoped memory for resnet_swin_forward.3']
    #allocation5 [shape = 'u8[294912]{0}', space=vmem, size = 0x48000, scoped, tag = 'input window, operand 1, single buffered']
    #allocation6 [shape = 's32[1]{0}', space=sflag, size = 0x4, scoped, tag = 'scoped memory for resnet_swin_forward.3']
    #allocation7 [shape = 'u8[512]{0}', space=vmem, size = 0x400, scoped, tag = 'input window, operand 2, single buffered']
    #allocation8 [shape = 'u8[512]{0}', space=vmem, size = 0x400, scoped, tag = 'input window, operand 3, single buffered']
    #allocation9 [shape = 's32[1]{0}', space=sflag, size = 0x4, scoped, tag = 'scoped memory for resnet_swin_forward.3']
    #allocation10 [shape = 'u8[65536]{0}', space=vmem, size = 0x10000, scoped, tag = 'input window, operand 4, single buffered']
    #allocation11 [shape = 'u8[90112]{0}', space=vmem, size = 0x16000, scoped, tag = 'output window, operand 0']
    %10 = vsyncpa [#allocation3], 0
    %s11 = scalar_lea.sflag [#allocation3], 1
    %12 = vsyncpa %s11, 0
    %13 = vsyncpa [#allocation6], 0
    %14 = vsyncpa [#allocation9], 0
    %15 = vsyncpa [#allocation4], 0
    %s16 = scalar_lea.sflag [#allocation4], 1
    %17 = vsyncpa %s16, 0
    loop: start=0, step=1, limit=4
    $region2: #{resnet_swin_forward.3} parent=1 // loop_pre_header
      _
    $region3: #{resnet_swin_forward.3} parent=1 // loop_header
      %s19 = sphi 0, %s23
      %p20 = scmp.ge.s32.totalorder %s19, 4
      %s26 = sphi 0, %s38
      %s27 = sphi 0, %s34
      %s28 = sphi 0, %s26
      %s29 = sphi 0, %s27
      %s30 = sphi 0, %s28
      %s31 = sphi 0, %s29
      %s41 = sphi 0, %s43
      %s44 = sphi 0, %s41
      %s45 = sphi 0, %s44
      %s61 = sphi 0, %s45
      %s67 = sphi 0, %s69
      %s70 = sphi 0, %s67
      %s71 = sphi 0, %s70
      %s87 = sphi 0, %s71
      %s93 = sphi 0, %s95
      %s96 = sphi 0, %s93
      %s97 = sphi 0, %s96
      %s113 = sphi 0, %s97
      %s119 = sphi 0, %s121
      %s122 = sphi 0, %s119
      %s123 = sphi 0, %s122
      %s139 = sphi 0, %s123
      %s143 = sphi 0, %s143
      %s145 = sphi 0, %s143
      %s146 = sphi 0, %s145
      %s160 = sphi 0, %s146
      %s168 = sphi 0, %s170
      %s171 = sphi 0, %s168
      %s172 = sphi 0, %s171
      %s188 = sphi 0, %s172
    $region4: #{resnet_swin_forward.3} parent=1 // loop_header_branch
      %22 = sbr.rel (%p20) target = $region8
    $region5: #{resnet_swin_forward.3} parent=1 // loop_body
      %s24 = ssub.s32 %s19, 1
      %s25 = ssub.s32 %s19, 2
      %s32 = sadd.s32 1, %s27
      %p33 = scmp.ge.s32.totalorder %s32, 1
      %s34 = scalar_select %p33, 0, %s32
      %s35 = sadd.s32 1, %s26
      %s36 = scalar_select %p33, %s35, %s26
      %p37 = scmp.ge.s32.totalorder %s36, 2
      %s38 = scalar_select %p37, 0, %s36
      %s39 = ssub.s32 %s26, %s38
      %p40 = scmp.eq.s32.totalorder %s39, 0
      %s42 = sadd.s32 %s41, 1
      %s43 = scalar_select %p40, %s41, %s42
      %p46 = pneg %p40
      %p47 = scmp.eq.s32.totalorder %s19, 1
      %p48 = por %p46, %p47
      %p49 = scmp.ne.s32.totalorder %s41, %s44
      %p50 = scmp.eq.s32.totalorder %s19, 0
      %p51 = por %p49, %p50
      %p52 = scmp.ne.s32.totalorder %s41, %s44
      %p53 = scmp.eq.s32.totalorder %s24, 1
      %p54 = por %p52, %p53
      %p55 = scmp.ne.s32.totalorder %s44, %s45
      %p56 = scmp.eq.s32.totalorder %s24, 0
      %p57 = por %p55, %p56
      %p58 = scmp.ne.s32.totalorder %s44, %s45
      %p59 = scmp.eq.s32.totalorder %s25, 1
      %p60 = por %p58, %p59
      %p62 = scmp.ne.s32.totalorder %s45, %s61
      %p63 = scmp.eq.s32.totalorder %s25, 0
      %p64 = por %p62, %p63
      %s65 = ssub.s32 %s27, %s34
      %p66 = scmp.eq.s32.totalorder %s65, 0
      %s68 = sadd.s32 %s67, 1
      %s69 = scalar_select %p66, %s67, %s68
      %p72 = pneg %p66
      %p73 = scmp.eq.s32.totalorder %s19, 1
      %p74 = por %p72, %p73
      %p75 = scmp.ne.s32.totalorder %s67, %s70
      %p76 = scmp.eq.s32.totalorder %s19, 0
      %p77 = por %p75, %p76
      %p78 = scmp.ne.s32.totalorder %s67, %s70
      %p79 = scmp.eq.s32.totalorder %s24, 1
      %p80 = por %p78, %p79
      %p81 = scmp.ne.s32.totalorder %s70, %s71
      %p82 = scmp.eq.s32.totalorder %s24, 0
      %p83 = por %p81, %p82
      %p84 = scmp.ne.s32.totalorder %s70, %s71
      %p85 = scmp.eq.s32.totalorder %s25, 1
      %p86 = por %p84, %p85
      %p88 = scmp.ne.s32.totalorder %s71, %s87
      %p89 = scmp.eq.s32.totalorder %s25, 0
      %p90 = por %p88, %p89
      %s91 = ssub.s32 %s27, %s34
      %p92 = scmp.eq.s32.totalorder %s91, 0
      %s94 = sadd.s32 %s93, 1
      %s95 = scalar_select %p92, %s93, %s94
      %p98 = pneg %p92
      %p99 = scmp.eq.s32.totalorder %s19, 1
      %p100 = por %p98, %p99
      %p101 = scmp.ne.s32.totalorder %s93, %s96
      %p102 = scmp.eq.s32.totalorder %s19, 0
      %p103 = por %p101, %p102
      %p104 = scmp.ne.s32.totalorder %s93, %s96
      %p105 = scmp.eq.s32.totalorder %s24, 1
      %p106 = por %p104, %p105
      %p107 = scmp.ne.s32.totalorder %s96, %s97
      %p108 = scmp.eq.s32.totalorder %s24, 0
      %p109 = por %p107, %p108
      %p110 = scmp.ne.s32.totalorder %s96, %s97
      %p111 = scmp.eq.s32.totalorder %s25, 1
      %p112 = por %p110, %p111
      %p114 = scmp.ne.s32.totalorder %s97, %s113
      %p115 = scmp.eq.s32.totalorder %s25, 0
      %p116 = por %p114, %p115
      %s117 = ssub.s32 %s27, %s34
      %p118 = scmp.eq.s32.totalorder %s117, 0
      %s120 = sadd.s32 %s119, 1
      %s121 = scalar_select %p118, %s119, %s120
      %p124 = pneg %p118
      %p125 = scmp.eq.s32.totalorder %s19, 1
      %p126 = por %p124, %p125
      %p127 = scmp.ne.s32.totalorder %s119, %s122
      %p128 = scmp.eq.s32.totalorder %s19, 0
      %p129 = por %p127, %p128
      %p130 = scmp.ne.s32.totalorder %s119, %s122
      %p131 = scmp.eq.s32.totalorder %s24, 1
      %p132 = por %p130, %p131
      %p133 = scmp.ne.s32.totalorder %s122, %s123
      %p134 = scmp.eq.s32.totalorder %s24, 0
      %p135 = por %p133, %p134
      %p136 = scmp.ne.s32.totalorder %s122, %s123
      %p137 = scmp.eq.s32.totalorder %s25, 1
      %p138 = por %p136, %p137
      %p140 = scmp.ne.s32.totalorder %s123, %s139
      %p141 = scmp.eq.s32.totalorder %s25, 0
      %p142 = por %p140, %p141
      %s144 = sadd.s32 %s143, 1
      %p147 = scmp.eq.s32.totalorder %s19, 1
      %p148 = scmp.ne.s32.totalorder %s143, %s145
      %p149 = scmp.eq.s32.totalorder %s19, 0
      %p150 = por %p148, %p149
      %p151 = scmp.ne.s32.totalorder %s143, %s145
      %p152 = scmp.eq.s32.totalorder %s24, 1
      %p153 = por %p151, %p152
      %p154 = scmp.ne.s32.totalorder %s145, %s146
      %p155 = scmp.eq.s32.totalorder %s24, 0
      %p156 = por %p154, %p155
      %p157 = scmp.ne.s32.totalorder %s145, %s146
      %p158 = scmp.eq.s32.totalorder %s25, 1
      %p159 = por %p157, %p158
      %p161 = scmp.ne.s32.totalorder %s146, %s160
      %p162 = scmp.eq.s32.totalorder %s25, 0
      %p163 = por %p161, %p162
      %s164 = ssub.s32 %s26, %s38
      %s165 = ssub.s32 %s27, %s34
      %s166 = sor.u32 %s164, %s165
      %p167 = scmp.eq.s32.totalorder %s166, 0
      %s169 = sadd.s32 %s168, 1
      %s170 = scalar_select %p167, %s168, %s169
      %p173 = pneg %p167
      %p174 = scmp.eq.s32.totalorder %s19, 1
      %p175 = por %p173, %p174
      %p176 = scmp.ne.s32.totalorder %s168, %s171
      %p177 = scmp.eq.s32.totalorder %s19, 0
      %p178 = por %p176, %p177
      %p179 = scmp.ne.s32.totalorder %s168, %s171
      %p180 = scmp.eq.s32.totalorder %s24, 1
      %p181 = por %p179, %p180
      %p182 = scmp.ne.s32.totalorder %s171, %s172
      %p183 = scmp.eq.s32.totalorder %s24, 0
      %p184 = por %p182, %p183
      %p185 = scmp.ne.s32.totalorder %s171, %s172
      %p186 = scmp.eq.s32.totalorder %s25, 1
      %p187 = por %p185, %p186
      %p189 = scmp.ne.s32.totalorder %s172, %s188
      %p190 = scmp.eq.s32.totalorder %s25, 0
      %p191 = por %p189, %p190
      %p192 = scmp.le.s32.totalorder 1, %s19
      %p193 = scmp.lt.s32.totalorder %s19, 3
      %p194 = pnand %p192, %p193
      %p195 = pneg %p194
      // Predicated region
      $region9: #{resnet_swin_forward.3} parent=5 // pred_check
        _
      $region10: #{resnet_swin_forward.3} parent=5 // pred_check_branch
        %197 = sbr.rel (%p194) target = $region12
      $region11: #{resnet_swin_forward.3} parent=5 // pred_region
        %s198 = ssub.s32 %s19, 1
        // Predicated region
        $region13: #{resnet_swin_forward.3} parent=11 // pred_check
          %p199 = pneg %p83
        $region14: #{resnet_swin_forward.3} parent=11 // pred_check_branch
          %201 = sbr.rel (%p199) target = $region16
        $region15: #{resnet_swin_forward.3} parent=11 // pred_region
          %s203 = ssub.s32 9216, 9216
          %204 = vsyncadd [#allocation6], %s203
          %s205 = smul.addr %s29, 64
          %s206 = scalar_lea.hbm %s1, %s205
          %s207 = sshll.u32 [#allocation5], 4
          %s208 = int_to_ptr.vmem [resolvable:$true] %s207
          %213 = dma.hbm_to_vmem [thread:$0]  %s206, 9216, %s208, [#allocation6], 64, 64, 4
        $region16: #{resnet_swin_forward.3} parent=11 // pred_fallthru
          _
        // Predicated region
        $region17: #{resnet_swin_forward.3} parent=11 // pred_check
          %p214 = pneg %p109
        $region18: #{resnet_swin_forward.3} parent=11 // pred_check_branch
          %216 = sbr.rel (%p214) target = $region20
        $region19: #{resnet_swin_forward.3} parent=11 // pred_region
          %s218 = ssub.s32 16, 16
          %219 = vsyncadd [#allocation6], %s218
          %s220 = smul.addr %s29, 16
          %s221 = scalar_lea.hbm %s2, %s220
          %s223 = sshll.u32 [#allocation7], 4
          %s224 = int_to_ptr.vmem [resolvable:$true] %s223
          %226 = dma.hbm_to_vmem [thread:$0]  %s221, 16, %s224, [#allocation6]
        $region20: #{resnet_swin_forward.3} parent=11 // pred_fallthru
          _
        // Predicated region
        $region21: #{resnet_swin_forward.3} parent=11 // pred_check
          %p227 = pneg %p135
        $region22: #{resnet_swin_forward.3} parent=11 // pred_check_branch
          %229 = sbr.rel (%p227) target = $region24
        $region23: #{resnet_swin_forward.3} parent=11 // pred_region
          %s231 = ssub.s32 16, 16
          %232 = vsyncadd [#allocation9], %s231
          %s233 = smul.addr %s29, 16
          %s234 = scalar_lea.hbm %s3, %s233
          %s236 = sshll.u32 [#allocation8], 4
          %s237 = int_to_ptr.vmem [resolvable:$true] %s236
          %239 = dma.hbm_to_vmem [thread:$0]  %s234, 16, %s237, [#allocation9]
        $region24: #{resnet_swin_forward.3} parent=11 // pred_fallthru
          _
        // Predicated region
        $region25: #{resnet_swin_forward.3} parent=11 // pred_check
          %p240 = pneg %p156
        $region26: #{resnet_swin_forward.3} parent=11 // pred_check_branch
          %242 = sbr.rel (%p240) target = $region28
        $region27: #{resnet_swin_forward.3} parent=11 // pred_region
          %s244 = ssub.s32 2048, 2048
          %245 = vsyncadd [#allocation9], %s244
          %s246 = sshll.u32 [#allocation10], 4
          %s247 = int_to_ptr.vmem [resolvable:$true] %s246
          %252 = dma.hbm_to_vmem [thread:$0]  %s4, 2048, %s247, [#allocation9], 128, 128, 8
        $region28: #{resnet_swin_forward.3} parent=11 // pred_fallthru
          _
      $region12: #{resnet_swin_forward.3} parent=5 // pred_fallthru
        _
      %p253 = scmp.lt.s32.totalorder %s19, 2
      // Predicated region
      $region29: #{resnet_swin_forward.3} parent=5 // pred_check
        %p254 = pneg %p253
      $region30: #{resnet_swin_forward.3} parent=5 // pred_check_branch
        %256 = sbr.rel (%p254) target = $region32
      $region31: #{resnet_swin_forward.3} parent=5 // pred_region
        // Predicated region
        $region33: #{resnet_swin_forward.3} parent=31 // pred_check
          %p257 = pneg %p51
        $region34: #{resnet_swin_forward.3} parent=31 // pred_check_branch
          %259 = sbr.rel (%p257) target = $region36
        $region35: #{resnet_swin_forward.3} parent=31 // pred_region
          %s260 = sand.u32 %s41, 1
          %s261 = scalar_lea.sflag [#allocation3], %s260
          %s262 = sand.u32 %s41, 1
          %s263 = smul.addr %s262, 432
          %s264 = scalar_lea.vmem [#allocation2], %s263
          %s266 = ssub.s32 6912, 6912
          %267 = vsyncadd %s261, %s266
          %s268 = smul.addr %s26, 108
          %s269 = smul.addr %s268, 64
          %s270 = scalar_lea.hbm %s0, %s269
          %s271 = sshll.u32 %s264, 4
          %s272 = int_to_ptr.vmem [resolvable:$true] %s271
          %277 = dma.hbm_to_vmem [thread:$0]  %s270, 6912, %s272, %s261, 64, 64, 4
        $region36: #{resnet_swin_forward.3} parent=31 // pred_fallthru
          _
      $region32: #{resnet_swin_forward.3} parent=5 // pred_fallthru
        _
      %p278 = scmp.le.s32.totalorder 1, %s19
      %p279 = scmp.lt.s32.totalorder %s19, 3
      %p280 = pnand %p278, %p279
      %p281 = pneg %p280
      // Predicated region
      $region37: #{resnet_swin_forward.3} parent=5 // pred_check
        _
      $region38: #{resnet_swin_forward.3} parent=5 // pred_check_branch
        %283 = sbr.rel (%p280) target = $region40
      $region39: #{resnet_swin_forward.3} parent=5 // pred_region
        %s284 = ssub.s32 %s19, 1
        %s285 = sand.u32 %s44, 1
        %s286 = scalar_lea.sflag [#allocation3], %s285
        %s287 = sand.u32 %s44, 1
        %s288 = smul.addr %s287, 432
        %s289 = scalar_lea.vmem [#allocation2], %s288
        // Predicated region
        $region41: #{resnet_swin_forward.3} parent=39 // pred_check
          %p290 = pneg %p57
        $region42: #{resnet_swin_forward.3} parent=39 // pred_check_branch
          %292 = sbr.rel (%p290) target = $region44
        $region43: #{resnet_swin_forward.3} parent=39 // pred_region
          %293 = dma.done %s286, 6912
        $region44: #{resnet_swin_forward.3} parent=39 // pred_fallthru
          _
        // Predicated region
        $region45: #{resnet_swin_forward.3} parent=39 // pred_check
          %p294 = pneg %p83
        $region46: #{resnet_swin_forward.3} parent=39 // pred_check_branch
          %296 = sbr.rel (%p294) target = $region48
        $region47: #{resnet_swin_forward.3} parent=39 // pred_region
          %297 = dma.done [#allocation6], 9216
        $region48: #{resnet_swin_forward.3} parent=39 // pred_fallthru
          _
        // Predicated region
        $region49: #{resnet_swin_forward.3} parent=39 // pred_check
          %p298 = pneg %p109
        $region50: #{resnet_swin_forward.3} parent=39 // pred_check_branch
          %300 = sbr.rel (%p298) target = $region52
        $region51: #{resnet_swin_forward.3} parent=39 // pred_region
          %301 = dma.done [#allocation6], 16
        $region52: #{resnet_swin_forward.3} parent=39 // pred_fallthru
          _
        // Predicated region
        $region53: #{resnet_swin_forward.3} parent=39 // pred_check
          %p302 = pneg %p135
        $region54: #{resnet_swin_forward.3} parent=39 // pred_check_branch
          %304 = sbr.rel (%p302) target = $region56
        $region55: #{resnet_swin_forward.3} parent=39 // pred_region
          %305 = dma.done [#allocation9], 16
        $region56: #{resnet_swin_forward.3} parent=39 // pred_fallthru
          _
        // Predicated region
        $region57: #{resnet_swin_forward.3} parent=39 // pred_check
          %p306 = pneg %p156
        $region58: #{resnet_swin_forward.3} parent=39 // pred_check_branch
          %308 = sbr.rel (%p306) target = $region60
        $region59: #{resnet_swin_forward.3} parent=39 // pred_region
          %309 = dma.done [#allocation9], 2048
        $region60: #{resnet_swin_forward.3} parent=39 // pred_fallthru
          _
        %s310 = sand.u32 %s44, 1
        %s311 = scalar_lea.sflag [#allocation3], %s310
        %s312 = sand.u32 %s44, 1
        %s313 = smul.addr %s312, 432
        %s314 = scalar_lea.vmem [#allocation2], %s313
        %p315 = pneg %p57
        %p316 = pneg %p54
        %p317 = pneg %p83
        %p318 = pneg %p80
        %p319 = pneg %p109
        %p320 = pneg %p106
        %p321 = pneg %p135
        %p322 = pneg %p132
        %p323 = pneg %p156
        %p324 = pneg %p153
        %p325 = pneg %p184
        %p326 = pneg %p181
        %s327 = sand.u32 %s171, 1
        %s328 = scalar_lea.sflag [#allocation4], %s327
        %s329 = sand.u32 %s171, 1
        %s330 = smul.addr %s329, 88
        %s331 = scalar_lea.vmem [#allocation11], %s330
        %v333 = vld [vmem:[%s289] sm:$0xf]
        %v334 = vld [vmem:[%s289 + $0x4] sm:$0xf]
        %v335 = vld [vmem:[%s289 + $0x8] sm:$0xf]
        %v336 = vld [vmem:[%s289 + $0xc] sm:$0xf]
        %v337 = vld [vmem:[%s289 + $0x10] sm:$0xf]
        %v338 = vld [vmem:[%s289 + $0x14] sm:$0xf]
        %v339 = vld [vmem:[%s289 + $0x18] sm:$0xf]
        %v340 = vld [vmem:[%s289 + $0x1c] sm:$0xf]
        %v341 = vld [vmem:[%s289 + $0x20] sm:$0xf]
        %v342 = vld [vmem:[%s289 + $0x24] sm:$0xf]
        %v343 = vld [vmem:[%s289 + $0x28] sm:$0xf]
        %v344 = vld [vmem:[%s289 + $0x2c] sm:$0xf]
        %v345 = vld [vmem:[%s289 + $0x30] sm:$0xf]
        %v346 = vld [vmem:[%s289 + $0x34] sm:$0xf]
        %v347 = vld [vmem:[%s289 + $0x38] sm:$0xf]
        %v348 = vld [vmem:[%s289 + $0x3c] sm:$0xf]
        %v349 = vld [vmem:[#allocation5] sm:$0xf]
        %v350 = vld [vmem:[#allocation5 + $0x4] sm:$0xf]
        %v351 = vld [vmem:[#allocation5 + $0x8] sm:$0xf]
        %v352 = vld [vmem:[#allocation5 + $0xc] sm:$0xf]
        %v353 = vld [vmem:[#allocation5 + $0x10] sm:$0xf]
        %v354 = vld [vmem:[#allocation5 + $0x14] sm:$0xf]
        %v355 = vld [vmem:[#allocation5 + $0x18] sm:$0xf]
        %v356 = vld [vmem:[#allocation5 + $0x1c] sm:$0xf]
        %v357 = vld [vmem:[#allocation5 + $0x20] sm:$0xf]
        %v358 = vld [vmem:[#allocation5 + $0x24] sm:$0xf]
        %v359 = vld [vmem:[#allocation5 + $0x28] sm:$0xf]
        %v360 = vld [vmem:[#allocation5 + $0x2c] sm:$0xf]
        %v361 = vld [vmem:[#allocation5 + $0x30] sm:$0xf]
        %v362 = vld [vmem:[#allocation5 + $0x34] sm:$0xf]
        %v363 = vld [vmem:[#allocation5 + $0x38] sm:$0xf]
        %v364 = vld [vmem:[#allocation5 + $0x3c] sm:$0xf]
        %s365 = scalar_lea.vmem %s289, 72 [#allocation2]
        %v366 = vld [vmem:[%s365] sm:$0xf]
        %v367 = vld [vmem:[%s365 + $0x4] sm:$0xf]
        %v368 = vld [vmem:[%s365 + $0x8] sm:$0xf]
        %v369 = vld [vmem:[%s365 + $0xc] sm:$0xf]
        %v370 = vld [vmem:[%s365 + $0x10] sm:$0xf]
        %v371 = vld [vmem:[%s365 + $0x14] sm:$0xf]
        %v372 = vld [vmem:[%s365 + $0x18] sm:$0xf]
        %v373 = vld [vmem:[%s365 + $0x1c] sm:$0xf]
        %v374 = vld [vmem:[%s365 + $0x20] sm:$0xf]
        %v375 = vld [vmem:[%s365 + $0x24] sm:$0xf]
        %v376 = vld [vmem:[%s365 + $0x28] sm:$0xf]
        %v377 = vld [vmem:[%s365 + $0x2c] sm:$0xf]
        %v378 = vld [vmem:[%s365 + $0x30] sm:$0xf]
        %v379 = vld [vmem:[%s365 + $0x34] sm:$0xf]
        %v380 = vld [vmem:[%s365 + $0x38] sm:$0xf]
        %v381 = vld [vmem:[%s365 + $0x3c] sm:$0xf]
        %s382 = scalar_lea.vmem [#allocation5], 64
        %v383 = vld [vmem:[%s382] sm:$0xf]
        %v384 = vld [vmem:[%s382 + $0x4] sm:$0xf]
        %v385 = vld [vmem:[%s382 + $0x8] sm:$0xf]
        %v386 = vld [vmem:[%s382 + $0xc] sm:$0xf]
        %v387 = vld [vmem:[%s382 + $0x10] sm:$0xf]
        %v388 = vld [vmem:[%s382 + $0x14] sm:$0xf]
        %v389 = vld [vmem:[%s382 + $0x18] sm:$0xf]
        %v390 = vld [vmem:[%s382 + $0x1c] sm:$0xf]
        %v391 = vld [vmem:[%s382 + $0x20] sm:$0xf]
        %v392 = vld [vmem:[%s382 + $0x24] sm:$0xf]
        %v393 = vld [vmem:[%s382 + $0x28] sm:$0xf]
        %v394 = vld [vmem:[%s382 + $0x2c] sm:$0xf]
        %v395 = vld [vmem:[%s382 + $0x30] sm:$0xf]
        %v396 = vld [vmem:[%s382 + $0x34] sm:$0xf]
        %v397 = vld [vmem:[%s382 + $0x38] sm:$0xf]
        %v398 = vld [vmem:[%s382 + $0x3c] sm:$0xf]
        %v415 = vunpack.c.l.b16 %v366
        %v416 = vunpack.c.l.b16 %v367
        %v417 = vunpack.c.l.b16 %v368
        %v418 = vunpack.c.l.b16 %v369
        %v419 = vunpack.c.l.b16 %v370
        %v420 = vunpack.c.l.b16 %v371
        %v421 = vunpack.c.l.b16 %v372
        %v422 = vunpack.c.l.b16 %v373
        %v423 = vunpack.c.l.b16 %v374
        %v424 = vunpack.c.l.b16 %v375
        %v425 = vunpack.c.l.b16 %v376
        %v426 = vunpack.c.l.b16 %v377
        %v427 = vunpack.c.l.b16 %v378
        %v428 = vunpack.c.l.b16 %v379
        %v429 = vunpack.c.l.b16 %v380
        %v430 = vunpack.c.l.b16 %v381
        %v431 = vpack.c.b16 %v416, %v415
        %v432 = vpack.c.b16 %v418, %v417
        %v433 = vpack.c.b16 %v420, %v419
        %v434 = vpack.c.b16 %v422, %v421
        %v435 = vpack.c.b16 %v424, %v423
        %v436 = vpack.c.b16 %v426, %v425
        %v437 = vpack.c.b16 %v428, %v427
        %v438 = vpack.c.b16 %v430, %v429
        %v463 = vunpack.c.l.b16 %v383
        %v464 = vunpack.c.l.b16 %v384
        %v465 = vunpack.c.l.b16 %v385
        %v466 = vunpack.c.l.b16 %v386
        %v467 = vunpack.c.l.b16 %v387
        %v468 = vunpack.c.l.b16 %v388
        %v469 = vunpack.c.l.b16 %v389
        %v470 = vunpack.c.l.b16 %v390
        %v471 = vunpack.c.l.b16 %v391
        %v472 = vunpack.c.l.b16 %v392
        %v473 = vunpack.c.l.b16 %v393
        %v474 = vunpack.c.l.b16 %v394
        %v475 = vunpack.c.l.b16 %v395
        %v476 = vunpack.c.l.b16 %v396
        %v477 = vunpack.c.l.b16 %v397
        %v478 = vunpack.c.l.b16 %v398
        %v479 = vpack.c.b16 %v464, %v463
        %v480 = vpack.c.b16 %v466, %v465
        %v481 = vpack.c.b16 %v468, %v467
        %v482 = vpack.c.b16 %v470, %v469
        %v483 = vpack.c.b16 %v472, %v471
        %v484 = vpack.c.b16 %v474, %v473
        %v485 = vpack.c.b16 %v476, %v475
        %v486 = vpack.c.b16 %v478, %v477
        %495 = vmatprep.subr.bf16.mxu0 0
        %496 = vmatpush1.bf16.msra.mxu0 %v479
        %497 = vmatprep.subr.bf16.mxu0 0
        %498 = vmatpush1.bf16.msra.mxu0 %v480
        %499 = vmatprep.subr.bf16.mxu0 0
        %500 = vmatpush1.bf16.msra.mxu0 %v481
        %501 = vmatprep.subr.bf16.mxu0 0
        %502 = vmatpush1.bf16.msra.mxu0 %v482
        %503 = vmatprep.subr.bf16.mxu0 0
        %504 = vmatpush1.bf16.msra.mxu0 %v483
        %505 = vmatprep.subr.bf16.mxu0 0
        %506 = vmatpush1.bf16.msra.mxu0 %v484
        %507 = vmatprep.subr.bf16.mxu0 0
        %508 = vmatpush1.bf16.msra.mxu0 %v485
        %509 = vmatprep.subr.bf16.mxu0 0
        %510 = vmatpush1.bf16.msra.mxu0 %v486
        %511 = vmatprep.subr.bf16.mxu0 0
        %512 = vmatpush1.bf16.msra.mxu0 0
        %513 = vmatprep.subr.bf16.mxu0 0
        %514 = vmatpush1.bf16.msra.mxu0 0
        %515 = vmatprep.subr.bf16.mxu0 0
        %516 = vmatpush1.bf16.msra.mxu0 0
        %517 = vmatprep.subr.bf16.mxu0 0
        %518 = vmatpush1.bf16.msra.mxu0 0
        %519 = vmatprep.subr.bf16.mxu0 0
        %520 = vmatpush1.bf16.msra.mxu0 0
        %521 = vmatprep.subr.bf16.mxu0 0
        %522 = vmatpush1.bf16.msra.mxu0 0
        %523 = vmatprep.subr.bf16.mxu0 0
        %524 = vmatpush1.bf16.msra.mxu0 0
        %525 = vmatprep.subr.bf16.mxu0 0
        %526 = vmatpush1.bf16.msra.mxu0 0
        %527 = vmatprep.mubr.bf16.mxu0 0
        %528 = vmatmul.mubr.bf16.gmra.mrb[0].mxu0 %v431
        %v529 = vpop.f32.mrb[0].mxu0
        %v530 = vadd.f32 0.0, %v529
        %v531 = vpop.f32.mrb[0].mxu0
        %v532 = vpop.f32.mrb[0].mxu0
        %v533 = vadd.f32 0.0, %v532
        %v534 = vpop.f32.mrb[0].mxu0
        %535 = vmatprep.mubr.bf16.mxu0 0
        %536 = vmatmul.mubr.bf16.gmra.mrb[0].mxu0 %v432
        %v537 = vpop.f32.mrb[0].mxu0
        %v538 = vadd.f32 0.0, %v537
        %v539 = vpop.f32.mrb[0].mxu0
        %v540 = vpop.f32.mrb[0].mxu0
        %v541 = vadd.f32 0.0, %v540
        %v542 = vpop.f32.mrb[0].mxu0
        %543 = vmatprep.mubr.bf16.mxu0 0
        %544 = vmatmul.mubr.bf16.gmra.mrb[0].mxu0 %v433
        %v545 = vpop.f32.mrb[0].mxu0
        %v546 = vadd.f32 0.0, %v545
        %v547 = vpop.f32.mrb[0].mxu0
        %v548 = vpop.f32.mrb[0].mxu0
        %v549 = vadd.f32 0.0, %v548
        %v550 = vpop.f32.mrb[0].mxu0
        %551 = vmatprep.mubr.bf16.mxu0 0
        %552 = vmatmul.mubr.bf16.gmra.mrb[0].mxu0 %v434
        %v553 = vpop.f32.mrb[0].mxu0
        %v554 = vadd.f32 0.0, %v553
        %v555 = vpop.f32.mrb[0].mxu0
        %v556 = vpop.f32.mrb[0].mxu0
        %v557 = vadd.f32 0.0, %v556
        %v558 = vpop.f32.mrb[0].mxu0
        %559 = vmatprep.mubr.bf16.mxu0 0
        %560 = vmatmul.mubr.bf16.gmra.mrb[0].mxu0 %v435
        %v561 = vpop.f32.mrb[0].mxu0
        %v562 = vadd.f32 0.0, %v561
        %v563 = vpop.f32.mrb[0].mxu0
        %v564 = vpop.f32.mrb[0].mxu0
        %v565 = vadd.f32 0.0, %v564
        %v566 = vpop.f32.mrb[0].mxu0
        %567 = vmatprep.mubr.bf16.mxu0 0
        %568 = vmatmul.mubr.bf16.gmra.mrb[0].mxu0 %v436
        %v569 = vpop.f32.mrb[0].mxu0
        %v570 = vadd.f32 0.0, %v569
        %v571 = vpop.f32.mrb[0].mxu0
        %v572 = vpop.f32.mrb[0].mxu0
        %v573 = vadd.f32 0.0, %v572
        %v574 = vpop.f32.mrb[0].mxu0
        %575 = vmatprep.mubr.bf16.mxu0 0
        %576 = vmatmul.mubr.bf16.gmra.mrb[0].mxu0 %v437
        %v577 = vpop.f32.mrb[0].mxu0
        %v578 = vadd.f32 0.0, %v577
        %v579 = vpop.f32.mrb[0].mxu0
        %v580 = vpop.f32.mrb[0].mxu0
        %v581 = vadd.f32 0.0, %v580
        %v582 = vpop.f32.mrb[0].mxu0
        %583 = vmatprep.mubr.bf16.mxu0 0
        %584 = vmatmul.mubr.bf16.gmra.mrb[0].mxu0 %v438
        %v585 = vpop.f32.mrb[0].mxu0
        %v586 = vadd.f32 0.0, %v585
        %v587 = vpop.f32.mrb[0].mxu0
        %v588 = vpop.f32.mrb[0].mxu0
        %v589 = vadd.f32 0.0, %v588
        %v590 = vpop.f32.mrb[0].mxu0
        %591 = vdwg.mxu0
        %v608 = vunpack.c.l.b16 %v333
        %v609 = vunpack.c.l.b16 %v334
        %v610 = vunpack.c.l.b16 %v335
        %v611 = vunpack.c.l.b16 %v336
        %v612 = vunpack.c.l.b16 %v337
        %v613 = vunpack.c.l.b16 %v338
        %v614 = vunpack.c.l.b16 %v339
        %v615 = vunpack.c.l.b16 %v340
        %v616 = vunpack.c.l.b16 %v341
        %v617 = vunpack.c.l.b16 %v342
        %v618 = vunpack.c.l.b16 %v343
        %v619 = vunpack.c.l.b16 %v344
        %v620 = vunpack.c.l.b16 %v345
        %v621 = vunpack.c.l.b16 %v346
        %v622 = vunpack.c.l.b16 %v347
        %v623 = vunpack.c.l.b16 %v348
        %v624 = vpack.c.b16 %v609, %v608
        %v625 = vpack.c.b16 %v611, %v610
        %v626 = vpack.c.b16 %v613, %v612
        %v627 = vpack.c.b16 %v615, %v614
        %v628 = vpack.c.b16 %v617, %v616
        %v629 = vpack.c.b16 %v619, %v618
        %v630 = vpack.c.b16 %v621, %v620
        %v631 = vpack.c.b16 %v623, %v622
        %v656 = vunpack.c.l.b16 %v349
        %v657 = vunpack.c.l.b16 %v350
        %v658 = vunpack.c.l.b16 %v351
        %v659 = vunpack.c.l.b16 %v352
        %v660 = vunpack.c.l.b16 %v353
        %v661 = vunpack.c.l.b16 %v354
        %v662 = vunpack.c.l.b16 %v355
        %v663 = vunpack.c.l.b16 %v356
        %v664 = vunpack.c.l.b16 %v357
        %v665 = vunpack.c.l.b16 %v358
        %v666 = vunpack.c.l.b16 %v359
        %v667 = vunpack.c.l.b16 %v360
        %v668 = vunpack.c.l.b16 %v361
        %v669 = vunpack.c.l.b16 %v362
        %v670 = vunpack.c.l.b16 %v363
        %v671 = vunpack.c.l.b16 %v364
        %v672 = vpack.c.b16 %v657, %v656
        %v673 = vpack.c.b16 %v659, %v658
        %v674 = vpack.c.b16 %v661, %v660
        %v675 = vpack.c.b16 %v663, %v662
        %v676 = vpack.c.b16 %v665, %v664
        %v677 = vpack.c.b16 %v667, %v666
        %v678 = vpack.c.b16 %v669, %v668
        %v679 = vpack.c.b16 %v671, %v670
        %688 = vmatprep.subr.bf16.mxu0 0
        %689 = vmatpush1.bf16.msra.mxu0 %v672
        %690 = vmatprep.subr.bf16.mxu0 0
        %691 = vmatpush1.bf16.msra.mxu0 %v673
        %692 = vmatprep.subr.bf16.mxu0 0
        %693 = vmatpush1.bf16.msra.mxu0 %v674
        %694 = vmatprep.subr.bf16.mxu0 0
        %695 = vmatpush1.bf16.msra.mxu0 %v675
        %696 = vmatprep.subr.bf16.mxu0 0
        %697 = vmatpush1.bf16.msra.mxu0 %v676
        %698 = vmatprep.subr.bf16.mxu0 0
        %699 = vmatpush1.bf16.msra.mxu0 %v677
        %700 = vmatprep.subr.bf16.mxu0 0
        %701 = vmatpush1.bf16.msra.mxu0 %v678
        %702 = vmatprep.subr.bf16.mxu0 0
        %703 = vmatpush1.bf16.msra.mxu0 %v679
        %704 = vmatprep.subr.bf16.mxu0 0
        %705 = vmatpush1.bf16.msra.mxu0 0
        %706 = vmatprep.subr.bf16.mxu0 0
        %707 = vmatpush1.bf16.msra.mxu0 0
        %708 = vmatprep.subr.bf16.mxu0 0
        %709 = vmatpush1.bf16.msra.mxu0 0
        %710 = vmatprep.subr.bf16.mxu0 0
        %711 = vmatpush1.bf16.msra.mxu0 0
        %712 = vmatprep.subr.bf16.mxu0 0
        %713 = vmatpush1.bf16.msra.mxu0 0
        %714 = vmatprep.subr.bf16.mxu0 0
        %715 = vmatpush1.bf16.msra.mxu0 0
        %716 = vmatprep.subr.bf16.mxu0 0
        %717 = vmatpush1.bf16.msra.mxu0 0
        %718 = vmatprep.subr.bf16.mxu0 0
        %719 = vmatpush1.bf16.msra.mxu0 0
        %720 = vmatprep.mubr.bf16.mxu0 0
        %721 = vmatmul.mubr.bf16.gmra.mrb[0].mxu0 %v624
        %v722 = vpop.f32.mrb[0].mxu0
        %v723 = vadd.f32 %v530, %v722
        %v724 = vpop.f32.mrb[0].mxu0
        %v725 = vpop.f32.mrb[0].mxu0
        %v726 = vadd.f32 %v533, %v725
        %v727 = vpop.f32.mrb[0].mxu0
        %728 = vmatprep.mubr.bf16.mxu0 0
        %729 = vmatmul.mubr.bf16.gmra.mrb[0].mxu0 %v625
        %v730 = vpop.f32.mrb[0].mxu0
        %v731 = vadd.f32 %v538, %v730
        %v732 = vpop.f32.mrb[0].mxu0
        %v733 = vpop.f32.mrb[0].mxu0
        %v734 = vadd.f32 %v541, %v733
        %v735 = vpop.f32.mrb[0].mxu0
        %736 = vmatprep.mubr.bf16.mxu0 0
        %737 = vmatmul.mubr.bf16.gmra.mrb[0].mxu0 %v626
        %v738 = vpop.f32.mrb[0].mxu0
        %v739 = vadd.f32 %v546, %v738
        %v740 = vpop.f32.mrb[0].mxu0
        %v741 = vpop.f32.mrb[0].mxu0
        %v742 = vadd.f32 %v549, %v741
        %v743 = vpop.f32.mrb[0].mxu0
        %744 = vmatprep.mubr.bf16.mxu0 0
        %745 = vmatmul.mubr.bf16.gmra.mrb[0].mxu0 %v627
        %v746 = vpop.f32.mrb[0].mxu0
        %v747 = vadd.f32 %v554, %v746
        %v748 = vpop.f32.mrb[0].mxu0
        %v749 = vpop.f32.mrb[0].mxu0
        %v750 = vadd.f32 %v557, %v749
        %v751 = vpop.f32.mrb[0].mxu0
        %752 = vmatprep.mubr.bf16.mxu0 0
        %753 = vmatmul.mubr.bf16.gmra.mrb[0].mxu0 %v628
        %v754 = vpop.f32.mrb[0].mxu0
        %v755 = vadd.f32 %v562, %v754
        %v756 = vpop.f32.mrb[0].mxu0
        %v757 = vpop.f32.mrb[0].mxu0
        %v758 = vadd.f32 %v565, %v757
        %v759 = vpop.f32.mrb[0].mxu0
        %760 = vmatprep.mubr.bf16.mxu0 0
        %761 = vmatmul.mubr.bf16.gmra.mrb[0].mxu0 %v629
        %v762 = vpop.f32.mrb[0].mxu0
        %v763 = vadd.f32 %v570, %v762
        %v764 = vpop.f32.mrb[0].mxu0
        %v765 = vpop.f32.mrb[0].mxu0
        %v766 = vadd.f32 %v573, %v765
        %v767 = vpop.f32.mrb[0].mxu0
        %768 = vmatprep.mubr.bf16.mxu0 0
        %769 = vmatmul.mubr.bf16.gmra.mrb[0].mxu0 %v630
        %v770 = vpop.f32.mrb[0].mxu0
        %v771 = vadd.f32 %v578, %v770
        %v772 = vpop.f32.mrb[0].mxu0
        %v773 = vpop.f32.mrb[0].mxu0
        %v774 = vadd.f32 %v581, %v773
        %v775 = vpop.f32.mrb[0].mxu0
        %776 = vmatprep.mubr.bf16.mxu0 0
        %777 = vmatmul.mubr.bf16.gmra.mrb[0].mxu0 %v631
        %v778 = vpop.f32.mrb[0].mxu0
        %v779 = vadd.f32 %v586, %v778
        %v780 = vpop.f32.mrb[0].mxu0
        %v781 = vpop.f32.mrb[0].mxu0
        %v782 = vadd.f32 %v589, %v781
        %v783 = vpop.f32.mrb[0].mxu0
        %784 = vdwg.mxu0
        %s785 = scalar_lea.vmem %s289, 144 [#allocation2]
        %v786 = vld [vmem:[%s785] sm:$0xf]
        %v787 = vld [vmem:[%s785 + $0x4] sm:$0xf]
        %v788 = vld [vmem:[%s785 + $0x8] sm:$0xf]
        %v789 = vld [vmem:[%s785 + $0xc] sm:$0xf]
        %v790 = vld [vmem:[%s785 + $0x10] sm:$0xf]
        %v791 = vld [vmem:[%s785 + $0x14] sm:$0xf]
        %v792 = vld [vmem:[%s785 + $0x18] sm:$0xf]
        %v793 = vld [vmem:[%s785 + $0x1c] sm:$0xf]
        %v794 = vld [vmem:[%s785 + $0x20] sm:$0xf]
        %v795 = vld [vmem:[%s785 + $0x24] sm:$0xf]
        %v796 = vld [vmem:[%s785 + $0x28] sm:$0xf]
        %v797 = vld [vmem:[%s785 + $0x2c] sm:$0xf]
        %v798 = vld [vmem:[%s785 + $0x30] sm:$0xf]
        %v799 = vld [vmem:[%s785 + $0x34] sm:$0xf]
        %v800 = vld [vmem:[%s785 + $0x38] sm:$0xf]
        %v801 = vld [vmem:[%s785 + $0x3c] sm:$0xf]
        %s802 = scalar_lea.vmem [#allocation5], 128
        %v803 = vld [vmem:[%s802] sm:$0xf]
        %v804 = vld [vmem:[%s802 + $0x4] sm:$0xf]
        %v805 = vld [vmem:[%s802 + $0x8] sm:$0xf]
        %v806 = vld [vmem:[%s802 + $0xc] sm:$0xf]
        %v807 = vld [vmem:[%s802 + $0x10] sm:$0xf]
        %v808 = vld [vmem:[%s802 + $0x14] sm:$0xf]
        %v809 = vld [vmem:[%s802 + $0x18] sm:$0xf]
        %v810 = vld [vmem:[%s802 + $0x1c] sm:$0xf]
        %v811 = vld [vmem:[%s802 + $0x20] sm:$0xf]
        %v812 = vld [vmem:[%s802 + $0x24] sm:$0xf]
        %v813 = vld [vmem:[%s802 + $0x28] sm:$0xf]
        %v814 = vld [vmem:[%s802 + $0x2c] sm:$0xf]
        %v815 = vld [vmem:[%s802 + $0x30] sm:$0xf]
        %v816 = vld [vmem:[%s802 + $0x34] sm:$0xf]
        %v817 = vld [vmem:[%s802 + $0x38] sm:$0xf]
        %v818 = vld [vmem:[%s802 + $0x3c] sm:$0xf]
        %v835 = vunpack.c.l.b16 %v786
        %v836 = vunpack.c.l.b16 %v787
        %v837 = vunpack.c.l.b16 %v788
        %v838 = vunpack.c.l.b16 %v789
        %v839 = vunpack.c.l.b16 %v790
        %v840 = vunpack.c.l.b16 %v791
        %v841 = vunpack.c.l.b16 %v792
        %v842 = vunpack.c.l.b16 %v793
        %v843 = vunpack.c.l.b16 %v794
        %v844 = vunpack.c.l.b16 %v795
        %v845 = vunpack.c.l.b16 %v796
        %v846 = vunpack.c.l.b16 %v797
        %v847 = vunpack.c.l.b16 %v798
        %v848 = vunpack.c.l.b16 %v799
        %v849 = vunpack.c.l.b16 %v800
        %v850 = vunpack.c.l.b16 %v801
        %v851 = vpack.c.b16 %v836, %v835
        %v852 = vpack.c.b16 %v838, %v837
        %v853 = vpack.c.b16 %v840, %v839
        %v854 = vpack.c.b16 %v842, %v841
        %v855 = vpack.c.b16 %v844, %v843
        %v856 = vpack.c.b16 %v846, %v845
        %v857 = vpack.c.b16 %v848, %v847
        %v858 = vpack.c.b16 %v850, %v849
        %v883 = vunpack.c.l.b16 %v803
        %v884 = vunpack.c.l.b16 %v804
        %v885 = vunpack.c.l.b16 %v805
        %v886 = vunpack.c.l.b16 %v806
        %v887 = vunpack.c.l.b16 %v807
        %v888 = vunpack.c.l.b16 %v808
        %v889 = vunpack.c.l.b16 %v809
        %v890 = vunpack.c.l.b16 %v810
        %v891 = vunpack.c.l.b16 %v811
        %v892 = vunpack.c.l.b16 %v812
        %v893 = vunpack.c.l.b16 %v813
        %v894 = vunpack.c.l.b16 %v814
        %v895 = vunpack.c.l.b16 %v815
        %v896 = vunpack.c.l.b16 %v816
        %v897 = vunpack.c.l.b16 %v817
        %v898 = vunpack.c.l.b16 %v818
        %v899 = vpack.c.b16 %v884, %v883
        %v900 = vpack.c.b16 %v886, %v885
        %v901 = vpack.c.b16 %v888, %v887
        %v902 = vpack.c.b16 %v890, %v889
        %v903 = vpack.c.b16 %v892, %v891
        %v904 = vpack.c.b16 %v894, %v893
        %v905 = vpack.c.b16 %v896, %v895
        %v906 = vpack.c.b16 %v898, %v897
        %915 = vmatprep.subr.bf16.mxu0 0
        %916 = vmatpush1.bf16.msra.mxu0 %v899
        %917 = vmatprep.subr.bf16.mxu0 0
        %918 = vmatpush1.bf16.msra.mxu0 %v900
        %919 = vmatprep.subr.bf16.mxu0 0
        %920 = vmatpush1.bf16.msra.mxu0 %v901
        %921 = vmatprep.subr.bf16.mxu0 0
        %922 = vmatpush1.bf16.msra.mxu0 %v902
        %923 = vmatprep.subr.bf16.mxu0 0
        %924 = vmatpush1.bf16.msra.mxu0 %v903
        %925 = vmatprep.subr.bf16.mxu0 0
        %926 = vmatpush1.bf16.msra.mxu0 %v904
        %927 = vmatprep.subr.bf16.mxu0 0
        %928 = vmatpush1.bf16.msra.mxu0 %v905
        %929 = vmatprep.subr.bf16.mxu0 0
        %930 = vmatpush1.bf16.msra.mxu0 %v906
        %931 = vmatprep.subr.bf16.mxu0 0
        %932 = vmatpush1.bf16.msra.mxu0 0
        %933 = vmatprep.subr.bf16.mxu0 0
        %934 = vmatpush1.bf16.msra.mxu0 0
        %935 = vmatprep.subr.bf16.mxu0 0
        %936 = vmatpush1.bf16.msra.mxu0 0
        %937 = vmatprep.subr.bf16.mxu0 0
        %938 = vmatpush1.bf16.msra.mxu0 0
        %939 = vmatprep.subr.bf16.mxu0 0
        %940 = vmatpush1.bf16.msra.mxu0 0
        %941 = vmatprep.subr.bf16.mxu0 0
        %942 = vmatpush1.bf16.msra.mxu0 0
        %943 = vmatprep.subr.bf16.mxu0 0
        %944 = vmatpush1.bf16.msra.mxu0 0
        %945 = vmatprep.subr.bf16.mxu0 0
        %946 = vmatpush1.bf16.msra.mxu0 0
        %947 = vmatprep.mubr.bf16.mxu0 0
        %948 = vmatmul.mubr.bf16.gmra.mrb[0].mxu0 %v851
        %v949 = vpop.f32.mrb[0].mxu0
        %v950 = vadd.f32 0.0, %v949
        %v951 = vpop.f32.mrb[0].mxu0
        %v952 = vpop.f32.mrb[0].mxu0
        %v953 = vadd.f32 0.0, %v952
        %v954 = vpop.f32.mrb[0].mxu0
        %955 = vmatprep.mubr.bf16.mxu0 0
        %956 = vmatmul.mubr.bf16.gmra.mrb[0].mxu0 %v852
        %v957 = vpop.f32.mrb[0].mxu0
        %v958 = vadd.f32 0.0, %v957
        %v959 = vpop.f32.mrb[0].mxu0
        %v960 = vpop.f32.mrb[0].mxu0
        %v961 = vadd.f32 0.0, %v960
        %v962 = vpop.f32.mrb[0].mxu0
        %963 = vmatprep.mubr.bf16.mxu0 0
        %964 = vmatmul.mubr.bf16.gmra.mrb[0].mxu0 %v853
        %v965 = vpop.f32.mrb[0].mxu0
        %v966 = vadd.f32 0.0, %v965
        %v967 = vpop.f32.mrb[0].mxu0
        %v968 = vpop.f32.mrb[0].mxu0
        %v969 = vadd.f32 0.0, %v968
        %v970 = vpop.f32.mrb[0].mxu0
        %971 = vmatprep.mubr.bf16.mxu0 0
        %972 = vmatmul.mubr.bf16.gmra.mrb[0].mxu0 %v854
        %v973 = vpop.f32.mrb[0].mxu0
        %v974 = vadd.f32 0.0, %v973
        %v975 = vpop.f32.mrb[0].mxu0
        %v976 = vpop.f32.mrb[0].mxu0
        %v977 = vadd.f32 0.0, %v976
        %v978 = vpop.f32.mrb[0].mxu0
        %979 = vmatprep.mubr.bf16.mxu0 0
        %980 = vmatmul.mubr.bf16.gmra.mrb[0].mxu0 %v855
        %v981 = vpop.f32.mrb[0].mxu0
        %v982 = vadd.f32 0.0, %v981
        %v983 = vpop.f32.mrb[0].mxu0
        %v984 = vpop.f32.mrb[0].mxu0
        %v985 = vadd.f32 0.0, %v984
        %v986 = vpop.f32.mrb[0].mxu0
        %987 = vmatprep.mubr.bf16.mxu0 0
        %988 = vmatmul.mubr.bf16.gmra.mrb[0].mxu0 %v856
        %v989 = vpop.f32.mrb[0].mxu0
        %v990 = vadd.f32 0.0, %v989
        %v991 = vpop.f32.mrb[0].mxu0
        %v992 = vpop.f32.mrb[0].mxu0
        %v993 = vadd.f32 0.0, %v992
        %v994 = vpop.f32.mrb[0].mxu0
        %995 = vmatprep.mubr.bf16.mxu0 0
        %996 = vmatmul.mubr.bf16.gmra.mrb[0].mxu0 %v857
        %v997 = vpop.f32.mrb[0].mxu0
        %v998 = vadd.f32 0.0, %v997
        %v999 = vpop.f32.mrb[0].mxu0
        %v1000 = vpop.f32.mrb[0].mxu0
        %v1001 = vadd.f32 0.0, %v1000
        %v1002 = vpop.f32.mrb[0].mxu0
        %1003 = vmatprep.mubr.bf16.mxu0 0
        %1004 = vmatmul.mubr.bf16.gmra.mrb[0].mxu0 %v858
        %v1005 = vpop.f32.mrb[0].mxu0
        %v1006 = vadd.f32 0.0, %v1005
        %v1007 = vpop.f32.mrb[0].mxu0
        %v1008 = vpop.f32.mrb[0].mxu0
        %v1009 = vadd.f32 0.0, %v1008
        %v1010 = vpop.f32.mrb[0].mxu0
        %1011 = vdwg.mxu0
        %v1012 = vadd.f32 %v723, %v950
        %v1013 = vadd.f32 %v726, %v953
        %v1014 = vadd.f32 %v731, %v958
        %v1015 = vadd.f32 %v734, %v961
        %v1016 = vadd.f32 %v739, %v966
        %v1017 = vadd.f32 %v742, %v969
        %v1018 = vadd.f32 %v747, %v974
        %v1019 = vadd.f32 %v750, %v977
        %v1020 = vadd.f32 %v755, %v982
        %v1021 = vadd.f32 %v758, %v985
        %v1022 = vadd.f32 %v763, %v990
        %v1023 = vadd.f32 %v766, %v993
        %v1024 = vadd.f32 %v771, %v998
        %v1025 = vadd.f32 %v774, %v1001
        %v1026 = vadd.f32 %v779, %v1006
        %v1027 = vadd.f32 %v782, %v1009
        %s1028 = scalar_lea.vmem %s289, 216 [#allocation2]
        %v1029 = vld [vmem:[%s1028] sm:$0xf]
        %v1030 = vld [vmem:[%s1028 + $0x4] sm:$0xf]
        %v1031 = vld [vmem:[%s1028 + $0x8] sm:$0xf]
        %v1032 = vld [vmem:[%s1028 + $0xc] sm:$0xf]
        %v1033 = vld [vmem:[%s1028 + $0x10] sm:$0xf]
        %v1034 = vld [vmem:[%s1028 + $0x14] sm:$0xf]
        %v1035 = vld [vmem:[%s1028 + $0x18] sm:$0xf]
        %v1036 = vld [vmem:[%s1028 + $0x1c] sm:$0xf]
        %v1037 = vld [vmem:[%s1028 + $0x20] sm:$0xf]
        %v1038 = vld [vmem:[%s1028 + $0x24] sm:$0xf]
        %v1039 = vld [vmem:[%s1028 + $0x28] sm:$0xf]
        %v1040 = vld [vmem:[%s1028 + $0x2c] sm:$0xf]
        %v1041 = vld [vmem:[%s1028 + $0x30] sm:$0xf]
        %v1042 = vld [vmem:[%s1028 + $0x34] sm:$0xf]
        %v1043 = vld [vmem:[%s1028 + $0x38] sm:$0xf]
        %v1044 = vld [vmem:[%s1028 + $0x3c] sm:$0xf]
        %s1045 = scalar_lea.vmem [#allocation5], 192
        %v1046 = vld [vmem:[%s1045] sm:$0xf]
        %v1047 = vld [vmem:[%s1045 + $0x4] sm:$0xf]
        %v1048 = vld [vmem:[%s1045 + $0x8] sm:$0xf]
        %v1049 = vld [vmem:[%s1045 + $0xc] sm:$0xf]
        %v1050 = vld [vmem:[%s1045 + $0x10] sm:$0xf]
        %v1051 = vld [vmem:[%s1045 + $0x14] sm:$0xf]
        %v1052 = vld [vmem:[%s1045 + $0x18] sm:$0xf]
        %v1053 = vld [vmem:[%s1045 + $0x1c] sm:$0xf]
        %v1054 = vld [vmem:[%s1045 + $0x20] sm:$0xf]
        %v1055 = vld [vmem:[%s1045 + $0x24] sm:$0xf]
        %v1056 = vld [vmem:[%s1045 + $0x28] sm:$0xf]
        %v1057 = vld [vmem:[%s1045 + $0x2c] sm:$0xf]
        %v1058 = vld [vmem:[%s1045 + $0x30] sm:$0xf]
        %v1059 = vld [vmem:[%s1045 + $0x34] sm:$0xf]
        %v1060 = vld [vmem:[%s1045 + $0x38] sm:$0xf]
        %v1061 = vld [vmem:[%s1045 + $0x3c] sm:$0xf]
        %v1078 = vunpack.c.l.b16 %v1029
        %v1079 = vunpack.c.l.b16 %v1030
        %v1080 = vunpack.c.l.b16 %v1031
        %v1081 = vunpack.c.l.b16 %v1032
        %v1082 = vunpack.c.l.b16 %v1033
        %v1083 = vunpack.c.l.b16 %v1034
        %v1084 = vunpack.c.l.b16 %v1035
        %v1085 = vunpack.c.l.b16 %v1036
        %v1086 = vunpack.c.l.b16 %v1037
        %v1087 = vunpack.c.l.b16 %v1038
        %v1088 = vunpack.c.l.b16 %v1039
        %v1089 = vunpack.c.l.b16 %v1040
        %v1090 = vunpack.c.l.b16 %v1041
        %v1091 = vunpack.c.l.b16 %v1042
        %v1092 = vunpack.c.l.b16 %v1043
        %v1093 = vunpack.c.l.b16 %v1044
        %v1094 = vpack.c.b16 %v1079, %v1078
        %v1095 = vpack.c.b16 %v1081, %v1080
        %v1096 = vpack.c.b16 %v1083, %v1082
        %v1097 = vpack.c.b16 %v1085, %v1084
        %v1098 = vpack.c.b16 %v1087, %v1086
        %v1099 = vpack.c.b16 %v1089, %v1088
        %v1100 = vpack.c.b16 %v1091, %v1090
        %v1101 = vpack.c.b16 %v1093, %v1092
        %v1126 = vunpack.c.l.b16 %v1046
        %v1127 = vunpack.c.l.b16 %v1047
        %v1128 = vunpack.c.l.b16 %v1048
        %v1129 = vunpack.c.l.b16 %v1049
        %v1130 = vunpack.c.l.b16 %v1050
        %v1131 = vunpack.c.l.b16 %v1051
        %v1132 = vunpack.c.l.b16 %v1052
        %v1133 = vunpack.c.l.b16 %v1053
        %v1134 = vunpack.c.l.b16 %v1054
        %v1135 = vunpack.c.l.b16 %v1055
        %v1136 = vunpack.c.l.b16 %v1056
        %v1137 = vunpack.c.l.b16 %v1057
        %v1138 = vunpack.c.l.b16 %v1058
        %v1139 = vunpack.c.l.b16 %v1059
        %v1140 = vunpack.c.l.b16 %v1060
        %v1141 = vunpack.c.l.b16 %v1061
        %v1142 = vpack.c.b16 %v1127, %v1126
        %v1143 = vpack.c.b16 %v1129, %v1128
        %v1144 = vpack.c.b16 %v1131, %v1130
        %v1145 = vpack.c.b16 %v1133, %v1132
        %v1146 = vpack.c.b16 %v1135, %v1134
        %v1147 = vpack.c.b16 %v1137, %v1136
        %v1148 = vpack.c.b16 %v1139, %v1138
        %v1149 = vpack.c.b16 %v1141, %v1140
        %1158 = vmatprep.subr.bf16.mxu0 0
        %1159 = vmatpush1.bf16.msra.mxu0 %v1142
        %1160 = vmatprep.subr.bf16.mxu0 0
        %1161 = vmatpush1.bf16.msra.mxu0 %v1143
        %1162 = vmatprep.subr.bf16.mxu0 0
        %1163 = vmatpush1.bf16.msra.mxu0 %v1144
        %1164 = vmatprep.subr.bf16.mxu0 0
        %1165 = vmatpush1.bf16.msra.mxu0 %v1145
        %1166 = vmatprep.subr.bf16.mxu0 0
        %1167 = vmatpush1.bf16.msra.mxu0 %v1146
        %1168 = vmatprep.subr.bf16.mxu0 0
        %1169 = vmatpush1.bf16.msra.mxu0 %v1147
        %1170 = vmatprep.subr.bf16.mxu0 0
        %1171 = vmatpush1.bf16.msra.mxu0 %v1148
        %1172 = vmatprep.subr.bf16.mxu0 0
        %1173 = vmatpush1.bf16.msra.mxu0 %v1149
        %1174 = vmatprep.subr.bf16.mxu0 0
        %1175 = vmatpush1.bf16.msra.mxu0 0
        %1176 = vmatprep.subr.bf16.mxu0 0
        %1177 = vmatpush1.bf16.msra.mxu0 0
        %1178 = vmatprep.subr.bf16.mxu0 0
        %1179 = vmatpush1.bf16.msra.mxu0 0
        %1180 = vmatprep.subr.bf16.mxu0 0
        %1181 = vmatpush1.bf16.msra.mxu0 0
        %1182 = vmatprep.subr.bf16.mxu0 0
        %1183 = vmatpush1.bf16.msra.mxu0 0
        %1184 = vmatprep.subr.bf16.mxu0 0
        %1185 = vmatpush1.bf16.msra.mxu0 0
        %1186 = vmatprep.subr.bf16.mxu0 0
        %1187 = vmatpush1.bf16.msra.mxu0 0
        %1188 = vmatprep.subr.bf16.mxu0 0
        %1189 = vmatpush1.bf16.msra.mxu0 0
        %1190 = vmatprep.mubr.bf16.mxu0 0
        %1191 = vmatmul.mubr.bf16.gmra.mrb[0].mxu0 %v1094
        %v1192 = vpop.f32.mrb[0].mxu0
        %v1193 = vadd.f32 0.0, %v1192
        %v1194 = vpop.f32.mrb[0].mxu0
        %v1195 = vpop.f32.mrb[0].mxu0
        %v1196 = vadd.f32 0.0, %v1195
        %v1197 = vpop.f32.mrb[0].mxu0
        %1198 = vmatprep.mubr.bf16.mxu0 0
        %1199 = vmatmul.mubr.bf16.gmra.mrb[0].mxu0 %v1095
        %v1200 = vpop.f32.mrb[0].mxu0
        %v1201 = vadd.f32 0.0, %v1200
        %v1202 = vpop.f32.mrb[0].mxu0
        %v1203 = vpop.f32.mrb[0].mxu0
        %v1204 = vadd.f32 0.0, %v1203
        %v1205 = vpop.f32.mrb[0].mxu0
        %1206 = vmatprep.mubr.bf16.mxu0 0
        %1207 = vmatmul.mubr.bf16.gmra.mrb[0].mxu0 %v1096
        %v1208 = vpop.f32.mrb[0].mxu0
        %v1209 = vadd.f32 0.0, %v1208
        %v1210 = vpop.f32.mrb[0].mxu0
        %v1211 = vpop.f32.mrb[0].mxu0
        %v1212 = vadd.f32 0.0, %v1211
        %v1213 = vpop.f32.mrb[0].mxu0
        %1214 = vmatprep.mubr.bf16.mxu0 0
        %1215 = vmatmul.mubr.bf16.gmra.mrb[0].mxu0 %v1097
        %v1216 = vpop.f32.mrb[0].mxu0
        %v1217 = vadd.f32 0.0, %v1216
        %v1218 = vpop.f32.mrb[0].mxu0
        %v1219 = vpop.f32.mrb[0].mxu0
        %v1220 = vadd.f32 0.0, %v1219
        %v1221 = vpop.f32.mrb[0].mxu0
        %1222 = vmatprep.mubr.bf16.mxu0 0
        %1223 = vmatmul.mubr.bf16.gmra.mrb[0].mxu0 %v1098
        %v1224 = vpop.f32.mrb[0].mxu0
        %v1225 = vadd.f32 0.0, %v1224
        %v1226 = vpop.f32.mrb[0].mxu0
        %v1227 = vpop.f32.mrb[0].mxu0
        %v1228 = vadd.f32 0.0, %v1227
        %v1229 = vpop.f32.mrb[0].mxu0
        %1230 = vmatprep.mubr.bf16.mxu0 0
        %1231 = vmatmul.mubr.bf16.gmra.mrb[0].mxu0 %v1099
        %v1232 = vpop.f32.mrb[0].mxu0
        %v1233 = vadd.f32 0.0, %v1232
        %v1234 = vpop.f32.mrb[0].mxu0
        %v1235 = vpop.f32.mrb[0].mxu0
        %v1236 = vadd.f32 0.0, %v1235
        %v1237 = vpop.f32.mrb[0].mxu0
        %1238 = vmatprep.mubr.bf16.mxu0 0
        %1239 = vmatmul.mubr.bf16.gmra.mrb[0].mxu0 %v1100
        %v1240 = vpop.f32.mrb[0].mxu0
        %v1241 = vadd.f32 0.0, %v1240
        %v1242 = vpop.f32.mrb[0].mxu0
        %v1243 = vpop.f32.mrb[0].mxu0
        %v1244 = vadd.f32 0.0, %v1243
        %v1245 = vpop.f32.mrb[0].mxu0
        %1246 = vmatprep.mubr.bf16.mxu0 0
        %1247 = vmatmul.mubr.bf16.gmra.mrb[0].mxu0 %v1101
        %v1248 = vpop.f32.mrb[0].mxu0
        %v1249 = vadd.f32 0.0, %v1248
        %v1250 = vpop.f32.mrb[0].mxu0
        %v1251 = vpop.f32.mrb[0].mxu0
        %v1252 = vadd.f32 0.0, %v1251
        %v1253 = vpop.f32.mrb[0].mxu0
        %1254 = vdwg.mxu0
        %v1255 = vadd.f32 %v1012, %v1193
        %v1256 = vadd.f32 %v1013, %v1196
        %v1257 = vadd.f32 %v1014, %v1201
        %v1258 = vadd.f32 %v1015, %v1204
        %v1259 = vadd.f32 %v1016, %v1209
        %v1260 = vadd.f32 %v1017, %v1212
        %v1261 = vadd.f32 %v1018, %v1217
        %v1262 = vadd.f32 %v1019, %v1220
        %v1263 = vadd.f32 %v1020, %v1225
        %v1264 = vadd.f32 %v1021, %v1228
        %v1265 = vadd.f32 %v1022, %v1233
        %v1266 = vadd.f32 %v1023, %v1236
        %v1267 = vadd.f32 %v1024, %v1241
        %v1268 = vadd.f32 %v1025, %v1244
        %v1269 = vadd.f32 %v1026, %v1249
        %v1270 = vadd.f32 %v1027, %v1252
        %s1271 = scalar_lea.vmem %s289, 288 [#allocation2]
        %v1272 = vld [vmem:[%s1271] sm:$0xf]
        %v1273 = vld [vmem:[%s1271 + $0x4] sm:$0xf]
        %v1274 = vld [vmem:[%s1271 + $0x8] sm:$0xf]
        %v1275 = vld [vmem:[%s1271 + $0xc] sm:$0xf]
        %v1276 = vld [vmem:[%s1271 + $0x10] sm:$0xf]
        %v1277 = vld [vmem:[%s1271 + $0x14] sm:$0xf]
        %v1278 = vld [vmem:[%s1271 + $0x18] sm:$0xf]
        %v1279 = vld [vmem:[%s1271 + $0x1c] sm:$0xf]
        %v1280 = vld [vmem:[%s1271 + $0x20] sm:$0xf]
        %v1281 = vld [vmem:[%s1271 + $0x24] sm:$0xf]
        %v1282 = vld [vmem:[%s1271 + $0x28] sm:$0xf]
        %v1283 = vld [vmem:[%s1271 + $0x2c] sm:$0xf]
        %v1284 = vld [vmem:[%s1271 + $0x30] sm:$0xf]
        %v1285 = vld [vmem:[%s1271 + $0x34] sm:$0xf]
        %v1286 = vld [vmem:[%s1271 + $0x38] sm:$0xf]
        %v1287 = vld [vmem:[%s1271 + $0x3c] sm:$0xf]
        %s1288 = scalar_lea.vmem [#allocation5], 256
        %v1289 = vld [vmem:[%s1288] sm:$0xf]
        %v1290 = vld [vmem:[%s1288 + $0x4] sm:$0xf]
        %v1291 = vld [vmem:[%s1288 + $0x8] sm:$0xf]
        %v1292 = vld [vmem:[%s1288 + $0xc] sm:$0xf]
        %v1293 = vld [vmem:[%s1288 + $0x10] sm:$0xf]
        %v1294 = vld [vmem:[%s1288 + $0x14] sm:$0xf]
        %v1295 = vld [vmem:[%s1288 + $0x18] sm:$0xf]
        %v1296 = vld [vmem:[%s1288 + $0x1c] sm:$0xf]
        %v1297 = vld [vmem:[%s1288 + $0x20] sm:$0xf]
        %v1298 = vld [vmem:[%s1288 + $0x24] sm:$0xf]
        %v1299 = vld [vmem:[%s1288 + $0x28] sm:$0xf]
        %v1300 = vld [vmem:[%s1288 + $0x2c] sm:$0xf]
        %v1301 = vld [vmem:[%s1288 + $0x30] sm:$0xf]
        %v1302 = vld [vmem:[%s1288 + $0x34] sm:$0xf]
        %v1303 = vld [vmem:[%s1288 + $0x38] sm:$0xf]
        %v1304 = vld [vmem:[%s1288 + $0x3c] sm:$0xf]
        %v1321 = vunpack.c.l.b16 %v1272
        %v1322 = vunpack.c.l.b16 %v1273
        %v1323 = vunpack.c.l.b16 %v1274
        %v1324 = vunpack.c.l.b16 %v1275
        %v1325 = vunpack.c.l.b16 %v1276
        %v1326 = vunpack.c.l.b16 %v1277
        %v1327 = vunpack.c.l.b16 %v1278
        %v1328 = vunpack.c.l.b16 %v1279
        %v1329 = vunpack.c.l.b16 %v1280
        %v1330 = vunpack.c.l.b16 %v1281
        %v1331 = vunpack.c.l.b16 %v1282
        %v1332 = vunpack.c.l.b16 %v1283
        %v1333 = vunpack.c.l.b16 %v1284
        %v1334 = vunpack.c.l.b16 %v1285
        %v1335 = vunpack.c.l.b16 %v1286
        %v1336 = vunpack.c.l.b16 %v1287
        %v1337 = vpack.c.b16 %v1322, %v1321
        %v1338 = vpack.c.b16 %v1324, %v1323
        %v1339 = vpack.c.b16 %v1326, %v1325
        %v1340 = vpack.c.b16 %v1328, %v1327
        %v1341 = vpack.c.b16 %v1330, %v1329
        %v1342 = vpack.c.b16 %v1332, %v1331
        %v1343 = vpack.c.b16 %v1334, %v1333
        %v1344 = vpack.c.b16 %v1336, %v1335
        %v1369 = vunpack.c.l.b16 %v1289
        %v1370 = vunpack.c.l.b16 %v1290
        %v1371 = vunpack.c.l.b16 %v1291
        %v1372 = vunpack.c.l.b16 %v1292
        %v1373 = vunpack.c.l.b16 %v1293
        %v1374 = vunpack.c.l.b16 %v1294
        %v1375 = vunpack.c.l.b16 %v1295
        %v1376 = vunpack.c.l.b16 %v1296
        %v1377 = vunpack.c.l.b16 %v1297
        %v1378 = vunpack.c.l.b16 %v1298
        %v1379 = vunpack.c.l.b16 %v1299
        %v1380 = vunpack.c.l.b16 %v1300
        %v1381 = vunpack.c.l.b16 %v1301
        %v1382 = vunpack.c.l.b16 %v1302
        %v1383 = vunpack.c.l.b16 %v1303
        %v1384 = vunpack.c.l.b16 %v1304
        %v1385 = vpack.c.b16 %v1370, %v1369
        %v1386 = vpack.c.b16 %v1372, %v1371
        %v1387 = vpack.c.b16 %v1374, %v1373
        %v1388 = vpack.c.b16 %v1376, %v1375
        %v1389 = vpack.c.b16 %v1378, %v1377
        %v1390 = vpack.c.b16 %v1380, %v1379
        %v1391 = vpack.c.b16 %v1382, %v1381
        %v1392 = vpack.c.b16 %v1384, %v1383
        %1401 = vmatprep.subr.bf16.mxu0 0
        %1402 = vmatpush1.bf16.msra.mxu0 %v1385
        %1403 = vmatprep.subr.bf16.mxu0 0
        %1404 = vmatpush1.bf16.msra.mxu0 %v1386
        %1405 = vmatprep.subr.bf16.mxu0 0
        %1406 = vmatpush1.bf16.msra.mxu0 %v1387
        %1407 = vmatprep.subr.bf16.mxu0 0
        %1408 = vmatpush1.bf16.msra.mxu0 %v1388
        %1409 = vmatprep.subr.bf16.mxu0 0
        %1410 = vmatpush1.bf16.msra.mxu0 %v1389
        %1411 = vmatprep.subr.bf16.mxu0 0
        %1412 = vmatpush1.bf16.msra.mxu0 %v1390
        %1413 = vmatprep.subr.bf16.mxu0 0
        %1414 = vmatpush1.bf16.msra.mxu0 %v1391
        %1415 = vmatprep.subr.bf16.mxu0 0
        %1416 = vmatpush1.bf16.msra.mxu0 %v1392
        %1417 = vmatprep.subr.bf16.mxu0 0
        %1418 = vmatpush1.bf16.msra.mxu0 0
        %1419 = vmatprep.subr.bf16.mxu0 0
        %1420 = vmatpush1.bf16.msra.mxu0 0
        %1421 = vmatprep.subr.bf16.mxu0 0
        %1422 = vmatpush1.bf16.msra.mxu0 0
        %1423 = vmatprep.subr.bf16.mxu0 0
        %1424 = vmatpush1.bf16.msra.mxu0 0
        %1425 = vmatprep.subr.bf16.mxu0 0
        %1426 = vmatpush1.bf16.msra.mxu0 0
        %1427 = vmatprep.subr.bf16.mxu0 0
        %1428 = vmatpush1.bf16.msra.mxu0 0
        %1429 = vmatprep.subr.bf16.mxu0 0
        %1430 = vmatpush1.bf16.msra.mxu0 0
        %1431 = vmatprep.subr.bf16.mxu0 0
        %1432 = vmatpush1.bf16.msra.mxu0 0
        %1433 = vmatprep.mubr.bf16.mxu0 0
        %1434 = vmatmul.mubr.bf16.gmra.mrb[0].mxu0 %v1337
        %v1435 = vpop.f32.mrb[0].mxu0
        %v1436 = vadd.f32 0.0, %v1435
        %v1437 = vpop.f32.mrb[0].mxu0
        %v1438 = vpop.f32.mrb[0].mxu0
        %v1439 = vadd.f32 0.0, %v1438
        %v1440 = vpop.f32.mrb[0].mxu0
        %1441 = vmatprep.mubr.bf16.mxu0 0
        %1442 = vmatmul.mubr.bf16.gmra.mrb[0].mxu0 %v1338
        %v1443 = vpop.f32.mrb[0].mxu0
        %v1444 = vadd.f32 0.0, %v1443
        %v1445 = vpop.f32.mrb[0].mxu0
        %v1446 = vpop.f32.mrb[0].mxu0
        %v1447 = vadd.f32 0.0, %v1446
        %v1448 = vpop.f32.mrb[0].mxu0
        %1449 = vmatprep.mubr.bf16.mxu0 0
        %1450 = vmatmul.mubr.bf16.gmra.mrb[0].mxu0 %v1339
        %v1451 = vpop.f32.mrb[0].mxu0
        %v1452 = vadd.f32 0.0, %v1451
        %v1453 = vpop.f32.mrb[0].mxu0
        %v1454 = vpop.f32.mrb[0].mxu0
        %v1455 = vadd.f32 0.0, %v1454
        %v1456 = vpop.f32.mrb[0].mxu0
        %1457 = vmatprep.mubr.bf16.mxu0 0
        %1458 = vmatmul.mubr.bf16.gmra.mrb[0].mxu0 %v1340
        %v1459 = vpop.f32.mrb[0].mxu0
        %v1460 = vadd.f32 0.0, %v1459
        %v1461 = vpop.f32.mrb[0].mxu0
        %v1462 = vpop.f32.mrb[0].mxu0
        %v1463 = vadd.f32 0.0, %v1462
        %v1464 = vpop.f32.mrb[0].mxu0
        %1465 = vmatprep.mubr.bf16.mxu0 0
        %1466 = vmatmul.mubr.bf16.gmra.mrb[0].mxu0 %v1341
        %v1467 = vpop.f32.mrb[0].mxu0
        %v1468 = vadd.f32 0.0, %v1467
        %v1469 = vpop.f32.mrb[0].mxu0
        %v1470 = vpop.f32.mrb[0].mxu0
        %v1471 = vadd.f32 0.0, %v1470
        %v1472 = vpop.f32.mrb[0].mxu0
        %1473 = vmatprep.mubr.bf16.mxu0 0
        %1474 = vmatmul.mubr.bf16.gmra.mrb[0].mxu0 %v1342
        %v1475 = vpop.f32.mrb[0].mxu0
        %v1476 = vadd.f32 0.0, %v1475
        %v1477 = vpop.f32.mrb[0].mxu0
        %v1478 = vpop.f32.mrb[0].mxu0
        %v1479 = vadd.f32 0.0, %v1478
        %v1480 = vpop.f32.mrb[0].mxu0
        %1481 = vmatprep.mubr.bf16.mxu0 0
        %1482 = vmatmul.mubr.bf16.gmra.mrb[0].mxu0 %v1343
        %v1483 = vpop.f32.mrb[0].mxu0
        %v1484 = vadd.f32 0.0, %v1483
        %v1485 = vpop.f32.mrb[0].mxu0
        %v1486 = vpop.f32.mrb[0].mxu0
        %v1487 = vadd.f32 0.0, %v1486
        %v1488 = vpop.f32.mrb[0].mxu0
        %1489 = vmatprep.mubr.bf16.mxu0 0
        %1490 = vmatmul.mubr.bf16.gmra.mrb[0].mxu0 %v1344
        %v1491 = vpop.f32.mrb[0].mxu0
        %v1492 = vadd.f32 0.0, %v1491
        %v1493 = vpop.f32.mrb[0].mxu0
        %v1494 = vpop.f32.mrb[0].mxu0
        %v1495 = vadd.f32 0.0, %v1494
        %v1496 = vpop.f32.mrb[0].mxu0
        %1497 = vdwg.mxu0
        %v1498 = vadd.f32 %v1255, %v1436
        %v1499 = vadd.f32 %v1256, %v1439
        %v1500 = vadd.f32 %v1257, %v1444
        %v1501 = vadd.f32 %v1258, %v1447
        %v1502 = vadd.f32 %v1259, %v1452
        %v1503 = vadd.f32 %v1260, %v1455
        %v1504 = vadd.f32 %v1261, %v1460
        %v1505 = vadd.f32 %v1262, %v1463
        %v1506 = vadd.f32 %v1263, %v1468
        %v1507 = vadd.f32 %v1264, %v1471
        %v1508 = vadd.f32 %v1265, %v1476
        %v1509 = vadd.f32 %v1266, %v1479
        %v1510 = vadd.f32 %v1267, %v1484
        %v1511 = vadd.f32 %v1268, %v1487
        %v1512 = vadd.f32 %v1269, %v1492
        %v1513 = vadd.f32 %v1270, %v1495
        %s1514 = scalar_lea.vmem %s289, 360 [#allocation2]
        %v1515 = vld [vmem:[%s1514] sm:$0xf]
        %v1516 = vld [vmem:[%s1514 + $0x4] sm:$0xf]
        %v1517 = vld [vmem:[%s1514 + $0x8] sm:$0xf]
        %v1518 = vld [vmem:[%s1514 + $0xc] sm:$0xf]
        %v1519 = vld [vmem:[%s1514 + $0x10] sm:$0xf]
        %v1520 = vld [vmem:[%s1514 + $0x14] sm:$0xf]
        %v1521 = vld [vmem:[%s1514 + $0x18] sm:$0xf]
        %v1522 = vld [vmem:[%s1514 + $0x1c] sm:$0xf]
        %v1523 = vld [vmem:[%s1514 + $0x20] sm:$0xf]
        %v1524 = vld [vmem:[%s1514 + $0x24] sm:$0xf]
        %v1525 = vld [vmem:[%s1514 + $0x28] sm:$0xf]
        %v1526 = vld [vmem:[%s1514 + $0x2c] sm:$0xf]
        %v1527 = vld [vmem:[%s1514 + $0x30] sm:$0xf]
        %v1528 = vld [vmem:[%s1514 + $0x34] sm:$0xf]
        %v1529 = vld [vmem:[%s1514 + $0x38] sm:$0xf]
        %v1530 = vld [vmem:[%s1514 + $0x3c] sm:$0xf]
        %s1531 = scalar_lea.vmem [#allocation5], 320
        %v1532 = vld [vmem:[%s1531] sm:$0xf]
        %v1533 = vld [vmem:[%s1531 + $0x4] sm:$0xf]
        %v1534 = vld [vmem:[%s1531 + $0x8] sm:$0xf]
        %v1535 = vld [vmem:[%s1531 + $0xc] sm:$0xf]
        %v1536 = vld [vmem:[%s1531 + $0x10] sm:$0xf]
        %v1537 = vld [vmem:[%s1531 + $0x14] sm:$0xf]
        %v1538 = vld [vmem:[%s1531 + $0x18] sm:$0xf]
        %v1539 = vld [vmem:[%s1531 + $0x1c] sm:$0xf]
        %v1540 = vld [vmem:[%s1531 + $0x20] sm:$0xf]
        %v1541 = vld [vmem:[%s1531 + $0x24] sm:$0xf]
        %v1542 = vld [vmem:[%s1531 + $0x28] sm:$0xf]
        %v1543 = vld [vmem:[%s1531 + $0x2c] sm:$0xf]
        %v1544 = vld [vmem:[%s1531 + $0x30] sm:$0xf]
        %v1545 = vld [vmem:[%s1531 + $0x34] sm:$0xf]
        %v1546 = vld [vmem:[%s1531 + $0x38] sm:$0xf]
        %v1547 = vld [vmem:[%s1531 + $0x3c] sm:$0xf]
        %v1564 = vunpack.c.l.b16 %v1515
        %v1565 = vunpack.c.l.b16 %v1516
        %v1566 = vunpack.c.l.b16 %v1517
        %v1567 = vunpack.c.l.b16 %v1518
        %v1568 = vunpack.c.l.b16 %v1519
        %v1569 = vunpack.c.l.b16 %v1520
        %v1570 = vunpack.c.l.b16 %v1521
        %v1571 = vunpack.c.l.b16 %v1522
        %v1572 = vunpack.c.l.b16 %v1523
        %v1573 = vunpack.c.l.b16 %v1524
        %v1574 = vunpack.c.l.b16 %v1525
        %v1575 = vunpack.c.l.b16 %v1526
        %v1576 = vunpack.c.l.b16 %v1527
        %v1577 = vunpack.c.l.b16 %v1528
        %v1578 = vunpack.c.l.b16 %v1529
        %v1579 = vunpack.c.l.b16 %v1530
        %v1580 = vpack.c.b16 %v1565, %v1564
        %v1581 = vpack.c.b16 %v1567, %v1566
        %v1582 = vpack.c.b16 %v1569, %v1568
        %v1583 = vpack.c.b16 %v1571, %v1570
        %v1584 = vpack.c.b16 %v1573, %v1572
        %v1585 = vpack.c.b16 %v1575, %v1574
        %v1586 = vpack.c.b16 %v1577, %v1576
        %v1587 = vpack.c.b16 %v1579, %v1578
        %v1612 = vunpack.c.l.b16 %v1532
        %v1613 = vunpack.c.l.b16 %v1533
        %v1614 = vunpack.c.l.b16 %v1534
        %v1615 = vunpack.c.l.b16 %v1535
        %v1616 = vunpack.c.l.b16 %v1536
        %v1617 = vunpack.c.l.b16 %v1537
        %v1618 = vunpack.c.l.b16 %v1538
        %v1619 = vunpack.c.l.b16 %v1539
        %v1620 = vunpack.c.l.b16 %v1540
        %v1621 = vunpack.c.l.b16 %v1541
        %v1622 = vunpack.c.l.b16 %v1542
        %v1623 = vunpack.c.l.b16 %v1543
        %v1624 = vunpack.c.l.b16 %v1544
        %v1625 = vunpack.c.l.b16 %v1545
        %v1626 = vunpack.c.l.b16 %v1546
        %v1627 = vunpack.c.l.b16 %v1547
        %v1628 = vpack.c.b16 %v1613, %v1612
        %v1629 = vpack.c.b16 %v1615, %v1614
        %v1630 = vpack.c.b16 %v1617, %v1616
        %v1631 = vpack.c.b16 %v1619, %v1618
        %v1632 = vpack.c.b16 %v1621, %v1620
        %v1633 = vpack.c.b16 %v1623, %v1622
        %v1634 = vpack.c.b16 %v1625, %v1624
        %v1635 = vpack.c.b16 %v1627, %v1626
        %1644 = vmatprep.subr.bf16.mxu0 0
        %1645 = vmatpush1.bf16.msra.mxu0 %v1628
        %1646 = vmatprep.subr.bf16.mxu0 0
        %1647 = vmatpush1.bf16.msra.mxu0 %v1629
        %1648 = vmatprep.subr.bf16.mxu0 0
        %1649 = vmatpush1.bf16.msra.mxu0 %v1630
        %1650 = vmatprep.subr.bf16.mxu0 0
        %1651 = vmatpush1.bf16.msra.mxu0 %v1631
        %1652 = vmatprep.subr.bf16.mxu0 0
        %1653 = vmatpush1.bf16.msra.mxu0 %v1632
        %1654 = vmatprep.subr.bf16.mxu0 0
        %1655 = vmatpush1.bf16.msra.mxu0 %v1633
        %1656 = vmatprep.subr.bf16.mxu0 0
        %1657 = vmatpush1.bf16.msra.mxu0 %v1634
        %1658 = vmatprep.subr.bf16.mxu0 0
        %1659 = vmatpush1.bf16.msra.mxu0 %v1635
        %1660 = vmatprep.subr.bf16.mxu0 0
        %1661 = vmatpush1.bf16.msra.mxu0 0
        %1662 = vmatprep.subr.bf16.mxu0 0
        %1663 = vmatpush1.bf16.msra.mxu0 0
        %1664 = vmatprep.subr.bf16.mxu0 0
        %1665 = vmatpush1.bf16.msra.mxu0 0
        %1666 = vmatprep.subr.bf16.mxu0 0
        %1667 = vmatpush1.bf16.msra.mxu0 0
        %1668 = vmatprep.subr.bf16.mxu0 0
        %1669 = vmatpush1.bf16.msra.mxu0 0
        %1670 = vmatprep.subr.bf16.mxu0 0
        %1671 = vmatpush1.bf16.msra.mxu0 0
        %1672 = vmatprep.subr.bf16.mxu0 0
        %1673 = vmatpush1.bf16.msra.mxu0 0
        %1674 = vmatprep.subr.bf16.mxu0 0
        %1675 = vmatpush1.bf16.msra.mxu0 0
        %1676 = vmatprep.mubr.bf16.mxu0 0
        %1677 = vmatmul.mubr.bf16.gmra.mrb[0].mxu0 %v1580
        %v1678 = vpop.f32.mrb[0].mxu0
        %v1679 = vadd.f32 0.0, %v1678
        %v1680 = vpop.f32.mrb[0].mxu0
        %v1681 = vpop.f32.mrb[0].mxu0
        %v1682 = vadd.f32 0.0, %v1681
        %v1683 = vpop.f32.mrb[0].mxu0
        %1684 = vmatprep.mubr.bf16.mxu0 0
        %1685 = vmatmul.mubr.bf16.gmra.mrb[0].mxu0 %v1581
        %v1686 = vpop.f32.mrb[0].mxu0
        %v1687 = vadd.f32 0.0, %v1686
        %v1688 = vpop.f32.mrb[0].mxu0
        %v1689 = vpop.f32.mrb[0].mxu0
        %v1690 = vadd.f32 0.0, %v1689
        %v1691 = vpop.f32.mrb[0].mxu0
        %1692 = vmatprep.mubr.bf16.mxu0 0
        %1693 = vmatmul.mubr.bf16.gmra.mrb[0].mxu0 %v1582
        %v1694 = vpop.f32.mrb[0].mxu0
        %v1695 = vadd.f32 0.0, %v1694
        %v1696 = vpop.f32.mrb[0].mxu0
        %v1697 = vpop.f32.mrb[0].mxu0
        %v1698 = vadd.f32 0.0, %v1697
        %v1699 = vpop.f32.mrb[0].mxu0
        %1700 = vmatprep.mubr.bf16.mxu0 0
        %1701 = vmatmul.mubr.bf16.gmra.mrb[0].mxu0 %v1583
        %v1702 = vpop.f32.mrb[0].mxu0
        %v1703 = vadd.f32 0.0, %v1702
        %v1704 = vpop.f32.mrb[0].mxu0
        %v1705 = vpop.f32.mrb[0].mxu0
        %v1706 = vadd.f32 0.0, %v1705
        %v1707 = vpop.f32.mrb[0].mxu0
        %1708 = vmatprep.mubr.bf16.mxu0 0
        %1709 = vmatmul.mubr.bf16.gmra.mrb[0].mxu0 %v1584
        %v1710 = vpop.f32.mrb[0].mxu0
        %v1711 = vadd.f32 0.0, %v1710
        %v1712 = vpop.f32.mrb[0].mxu0
        %v1713 = vpop.f32.mrb[0].mxu0
        %v1714 = vadd.f32 0.0, %v1713
        %v1715 = vpop.f32.mrb[0].mxu0
        %1716 = vmatprep.mubr.bf16.mxu0 0
        %1717 = vmatmul.mubr.bf16.gmra.mrb[0].mxu0 %v1585
        %v1718 = vpop.f32.mrb[0].mxu0
        %v1719 = vadd.f32 0.0, %v1718
        %v1720 = vpop.f32.mrb[0].mxu0
        %v1721 = vpop.f32.mrb[0].mxu0
        %v1722 = vadd.f32 0.0, %v1721
        %v1723 = vpop.f32.mrb[0].mxu0
        %1724 = vmatprep.mubr.bf16.mxu0 0
        %1725 = vmatmul.mubr.bf16.gmra.mrb[0].mxu0 %v1586
        %v1726 = vpop.f32.mrb[0].mxu0
        %v1727 = vadd.f32 0.0, %v1726
        %v1728 = vpop.f32.mrb[0].mxu0
        %v1729 = vpop.f32.mrb[0].mxu0
        %v1730 = vadd.f32 0.0, %v1729
        %v1731 = vpop.f32.mrb[0].mxu0
        %1732 = vmatprep.mubr.bf16.mxu0 0
        %1733 = vmatmul.mubr.bf16.gmra.mrb[0].mxu0 %v1587
        %v1734 = vpop.f32.mrb[0].mxu0
        %v1735 = vadd.f32 0.0, %v1734
        %v1736 = vpop.f32.mrb[0].mxu0
        %v1737 = vpop.f32.mrb[0].mxu0
        %v1738 = vadd.f32 0.0, %v1737
        %v1739 = vpop.f32.mrb[0].mxu0
        %1740 = vdwg.mxu0
        %v1741 = vadd.f32 %v1498, %v1679
        %v1742 = vadd.f32 %v1499, %v1682
        %v1743 = vadd.f32 %v1500, %v1687
        %v1744 = vadd.f32 %v1501, %v1690
        %v1745 = vadd.f32 %v1502, %v1695
        %v1746 = vadd.f32 %v1503, %v1698
        %v1747 = vadd.f32 %v1504, %v1703
        %v1748 = vadd.f32 %v1505, %v1706
        %v1749 = vadd.f32 %v1506, %v1711
        %v1750 = vadd.f32 %v1507, %v1714
        %v1751 = vadd.f32 %v1508, %v1719
        %v1752 = vadd.f32 %v1509, %v1722
        %v1753 = vadd.f32 %v1510, %v1727
        %v1754 = vadd.f32 %v1511, %v1730
        %v1755 = vadd.f32 %v1512, %v1735
        %v1756 = vadd.f32 %v1513, %v1738
        %v1757 = vld [vmem:[%s289 + $0x8] sm:$0xf]
        %v1758 = vld [vmem:[%s289 + $0xc] sm:$0xf]
        %v1759 = vld [vmem:[%s289 + $0x10] sm:$0xf]
        %v1760 = vld [vmem:[%s289 + $0x14] sm:$0xf]
        %v1761 = vld [vmem:[%s289 + $0x18] sm:$0xf]
        %v1762 = vld [vmem:[%s289 + $0x1c] sm:$0xf]
        %v1763 = vld [vmem:[%s289 + $0x20] sm:$0xf]
        %v1764 = vld [vmem:[%s289 + $0x24] sm:$0xf]
        %v1765 = vld [vmem:[%s289 + $0x28] sm:$0xf]
        %v1766 = vld [vmem:[%s289 + $0x2c] sm:$0xf]
        %v1767 = vld [vmem:[%s289 + $0x30] sm:$0xf]
        %v1768 = vld [vmem:[%s289 + $0x34] sm:$0xf]
        %v1769 = vld [vmem:[%s289 + $0x38] sm:$0xf]
        %v1770 = vld [vmem:[%s289 + $0x3c] sm:$0xf]
        %v1771 = vld [vmem:[%s289 + $0x40] sm:$0xf]
        %v1772 = vld [vmem:[%s289 + $0x44] sm:$0xf]
        %s1773 = scalar_lea.vmem [#allocation5], 384
        %v1774 = vld [vmem:[%s1773] sm:$0xf]
        %v1775 = vld [vmem:[%s1773 + $0x4] sm:$0xf]
        %v1776 = vld [vmem:[%s1773 + $0x8] sm:$0xf]
        %v1777 = vld [vmem:[%s1773 + $0xc] sm:$0xf]
        %v1778 = vld [vmem:[%s1773 + $0x10] sm:$0xf]
        %v1779 = vld [vmem:[%s1773 + $0x14] sm:$0xf]
        %v1780 = vld [vmem:[%s1773 + $0x18] sm:$0xf]
        %v1781 = vld [vmem:[%s1773 + $0x1c] sm:$0xf]
        %v1782 = vld [vmem:[%s1773 + $0x20] sm:$0xf]
        %v1783 = vld [vmem:[%s1773 + $0x24] sm:$0xf]
        %v1784 = vld [vmem:[%s1773 + $0x28] sm:$0xf]
        %v1785 = vld [vmem:[%s1773 + $0x2c] sm:$0xf]
        %v1786 = vld [vmem:[%s1773 + $0x30] sm:$0xf]
        %v1787 = vld [vmem:[%s1773 + $0x34] sm:$0xf]
        %v1788 = vld [vmem:[%s1773 + $0x38] sm:$0xf]
        %v1789 = vld [vmem:[%s1773 + $0x3c] sm:$0xf]
        %v1806 = vunpack.c.l.b16 %v1757
        %v1807 = vunpack.c.l.b16 %v1758
        %v1808 = vunpack.c.l.b16 %v1759
        %v1809 = vunpack.c.l.b16 %v1760
        %v1810 = vunpack.c.l.b16 %v1761
        %v1811 = vunpack.c.l.b16 %v1762
        %v1812 = vunpack.c.l.b16 %v1763
        %v1813 = vunpack.c.l.b16 %v1764
        %v1814 = vunpack.c.l.b16 %v1765
        %v1815 = vunpack.c.l.b16 %v1766
        %v1816 = vunpack.c.l.b16 %v1767
        %v1817 = vunpack.c.l.b16 %v1768
        %v1818 = vunpack.c.l.b16 %v1769
        %v1819 = vunpack.c.l.b16 %v1770
        %v1820 = vunpack.c.l.b16 %v1771
        %v1821 = vunpack.c.l.b16 %v1772
        %v1822 = vpack.c.b16 %v1807, %v1806
        %v1823 = vpack.c.b16 %v1809, %v1808
        %v1824 = vpack.c.b16 %v1811, %v1810
        %v1825 = vpack.c.b16 %v1813, %v1812
        %v1826 = vpack.c.b16 %v1815, %v1814
        %v1827 = vpack.c.b16 %v1817, %v1816
        %v1828 = vpack.c.b16 %v1819, %v1818
        %v1829 = vpack.c.b16 %v1821, %v1820
        %v1854 = vunpack.c.l.b16 %v1774
        %v1855 = vunpack.c.l.b16 %v1775
        %v1856 = vunpack.c.l.b16 %v1776
        %v1857 = vunpack.c.l.b16 %v1777
        %v1858 = vunpack.c.l.b16 %v1778
        %v1859 = vunpack.c.l.b16 %v1779
        %v1860 = vunpack.c.l.b16 %v1780
        %v1861 = vunpack.c.l.b16 %v1781
        %v1862 = vunpack.c.l.b16 %v1782
        %v1863 = vunpack.c.l.b16 %v1783
        %v1864 = vunpack.c.l.b16 %v1784
        %v1865 = vunpack.c.l.b16 %v1785
        %v1866 = vunpack.c.l.b16 %v1786
        %v1867 = vunpack.c.l.b16 %v1787
        %v1868 = vunpack.c.l.b16 %v1788
        %v1869 = vunpack.c.l.b16 %v1789
        %v1870 = vpack.c.b16 %v1855, %v1854
        %v1871 = vpack.c.b16 %v1857, %v1856
        %v1872 = vpack.c.b16 %v1859, %v1858
        %v1873 = vpack.c.b16 %v1861, %v1860
        %v1874 = vpack.c.b16 %v1863, %v1862
        %v1875 = vpack.c.b16 %v1865, %v1864
        %v1876 = vpack.c.b16 %v1867, %v1866
        %v1877 = vpack.c.b16 %v1869, %v1868
        %1886 = vmatprep.subr.bf16.mxu0 0
        %1887 = vmatpush1.bf16.msra.mxu0 %v1870
        %1888 = vmatprep.subr.bf16.mxu0 0
        %1889 = vmatpush1.bf16.msra.mxu0 %v1871
        %1890 = vmatprep.subr.bf16.mxu0 0
        %1891 = vmatpush1.bf16.msra.mxu0 %v1872
        %1892 = vmatprep.subr.bf16.mxu0 0
        %1893 = vmatpush1.bf16.msra.mxu0 %v1873
        %1894 = vmatprep.subr.bf16.mxu0 0
        %1895 = vmatpush1.bf16.msra.mxu0 %v1874
        %1896 = vmatprep.subr.bf16.mxu0 0
        %1897 = vmatpush1.bf16.msra.mxu0 %v1875
        %1898 = vmatprep.subr.bf16.mxu0 0
        %1899 = vmatpush1.bf16.msra.mxu0 %v1876
        %1900 = vmatprep.subr.bf16.mxu0 0
        %1901 = vmatpush1.bf16.msra.mxu0 %v1877
        %1902 = vmatprep.subr.bf16.mxu0 0
        %1903 = vmatpush1.bf16.msra.mxu0 0
        %1904 = vmatprep.subr.bf16.mxu0 0
        %1905 = vmatpush1.bf16.msra.mxu0 0
        %1906 = vmatprep.subr.bf16.mxu0 0
        %1907 = vmatpush1.bf16.msra.mxu0 0
        %1908 = vmatprep.subr.bf16.mxu0 0
        %1909 = vmatpush1.bf16.msra.mxu0 0
        %1910 = vmatprep.subr.bf16.mxu0 0
        %1911 = vmatpush1.bf16.msra.mxu0 0
        %1912 = vmatprep.subr.bf16.mxu0 0
        %1913 = vmatpush1.bf16.msra.mxu0 0
        %1914 = vmatprep.subr.bf16.mxu0 0
        %1915 = vmatpush1.bf16.msra.mxu0 0
        %1916 = vmatprep.subr.bf16.mxu0 0
        %1917 = vmatpush1.bf16.msra.mxu0 0
        %1918 = vmatprep.mubr.bf16.mxu0 0
        %1919 = vmatmul.mubr.bf16.gmra.mrb[0].mxu0 %v1822
        %v1920 = vpop.f32.mrb[0].mxu0
        %v1921 = vadd.f32 0.0, %v1920
        %v1922 = vpop.f32.mrb[0].mxu0
        %v1923 = vpop.f32.mrb[0].mxu0
        %v1924 = vadd.f32 0.0, %v1923
        %v1925 = vpop.f32.mrb[0].mxu0
        %1926 = vmatprep.mubr.bf16.mxu0 0
        %1927 = vmatmul.mubr.bf16.gmra.mrb[0].mxu0 %v1823
        %v1928 = vpop.f32.mrb[0].mxu0
        %v1929 = vadd.f32 0.0, %v1928
        %v1930 = vpop.f32.mrb[0].mxu0
        %v1931 = vpop.f32.mrb[0].mxu0
        %v1932 = vadd.f32 0.0, %v1931
        %v1933 = vpop.f32.mrb[0].mxu0
        %1934 = vmatprep.mubr.bf16.mxu0 0
        %1935 = vmatmul.mubr.bf16.gmra.mrb[0].mxu0 %v1824
        %v1936 = vpop.f32.mrb[0].mxu0
        %v1937 = vadd.f32 0.0, %v1936
        %v1938 = vpop.f32.mrb[0].mxu0
        %v1939 = vpop.f32.mrb[0].mxu0
        %v1940 = vadd.f32 0.0, %v1939
        %v1941 = vpop.f32.mrb[0].mxu0
        %1942 = vmatprep.mubr.bf16.mxu0 0
        %1943 = vmatmul.mubr.bf16.gmra.mrb[0].mxu0 %v1825
        %v1944 = vpop.f32.mrb[0].mxu0
        %v1945 = vadd.f32 0.0, %v1944
        %v1946 = vpop.f32.mrb[0].mxu0
        %v1947 = vpop.f32.mrb[0].mxu0
        %v1948 = vadd.f32 0.0, %v1947
        %v1949 = vpop.f32.mrb[0].mxu0
        %1950 = vmatprep.mubr.bf16.mxu0 0
        %1951 = vmatmul.mubr.bf16.gmra.mrb[0].mxu0 %v1826
        %v1952 = vpop.f32.mrb[0].mxu0
        %v1953 = vadd.f32 0.0, %v1952
        %v1954 = vpop.f32.mrb[0].mxu0
        %v1955 = vpop.f32.mrb[0].mxu0
        %v1956 = vadd.f32 0.0, %v1955
        %v1957 = vpop.f32.mrb[0].mxu0
        %1958 = vmatprep.mubr.bf16.mxu0 0
        %1959 = vmatmul.mubr.bf16.gmra.mrb[0].mxu0 %v1827
        %v1960 = vpop.f32.mrb[0].mxu0
        %v1961 = vadd.f32 0.0, %v1960
        %v1962 = vpop.f32.mrb[0].mxu0
        %v1963 = vpop.f32.mrb[0].mxu0
        %v1964 = vadd.f32 0.0, %v1963
        %v1965 = vpop.f32.mrb[0].mxu0
        %1966 = vmatprep.mubr.bf16.mxu0 0
        %1967 = vmatmul.mubr.bf16.gmra.mrb[0].mxu0 %v1828
        %v1968 = vpop.f32.mrb[0].mxu0
        %v1969 = vadd.f32 0.0, %v1968
        %v1970 = vpop.f32.mrb[0].mxu0
        %v1971 = vpop.f32.mrb[0].mxu0
        %v1972 = vadd.f32 0.0, %v1971
        %v1973 = vpop.f32.mrb[0].mxu0
        %1974 = vmatprep.mubr.bf16.mxu0 0
        %1975 = vmatmul.mubr.bf16.gmra.mrb[0].mxu0 %v1829
        %v1976 = vpop.f32.mrb[0].mxu0
        %v1977 = vadd.f32 0.0, %v1976
        %v1978 = vpop.f32.mrb[0].mxu0
        %v1979 = vpop.f32.mrb[0].mxu0
        %v1980 = vadd.f32 0.0, %v1979
        %v1981 = vpop.f32.mrb[0].mxu0
        %1982 = vdwg.mxu0
        %v1983 = vadd.f32 %v1741, %v1921
        %v1984 = vadd.f32 %v1742, %v1924
        %v1985 = vadd.f32 %v1743, %v1929
        %v1986 = vadd.f32 %v1744, %v1932
        %v1987 = vadd.f32 %v1745, %v1937
        %v1988 = vadd.f32 %v1746, %v1940
        %v1989 = vadd.f32 %v1747, %v1945
        %v1990 = vadd.f32 %v1748, %v1948
        %v1991 = vadd.f32 %v1749, %v1953
        %v1992 = vadd.f32 %v1750, %v1956
        %v1993 = vadd.f32 %v1751, %v1961
        %v1994 = vadd.f32 %v1752, %v1964
        %v1995 = vadd.f32 %v1753, %v1969
        %v1996 = vadd.f32 %v1754, %v1972
        %v1997 = vadd.f32 %v1755, %v1977
        %v1998 = vadd.f32 %v1756, %v1980
        %v1999 = vld [vmem:[%s365 + $0x8] sm:$0xf]
        %v2000 = vld [vmem:[%s365 + $0xc] sm:$0xf]
        %v2001 = vld [vmem:[%s365 + $0x10] sm:$0xf]
        %v2002 = vld [vmem:[%s365 + $0x14] sm:$0xf]
        %v2003 = vld [vmem:[%s365 + $0x18] sm:$0xf]
        %v2004 = vld [vmem:[%s365 + $0x1c] sm:$0xf]
        %v2005 = vld [vmem:[%s365 + $0x20] sm:$0xf]
        %v2006 = vld [vmem:[%s365 + $0x24] sm:$0xf]
        %v2007 = vld [vmem:[%s365 + $0x28] sm:$0xf]
        %v2008 = vld [vmem:[%s365 + $0x2c] sm:$0xf]
        %v2009 = vld [vmem:[%s365 + $0x30] sm:$0xf]
        %v2010 = vld [vmem:[%s365 + $0x34] sm:$0xf]
        %v2011 = vld [vmem:[%s365 + $0x38] sm:$0xf]
        %v2012 = vld [vmem:[%s365 + $0x3c] sm:$0xf]
        %v2013 = vld [vmem:[%s365 + $0x40] sm:$0xf]
        %v2014 = vld [vmem:[%s365 + $0x44] sm:$0xf]
        %s2015 = scalar_lea.vmem [#allocation5], 448
        %v2016 = vld [vmem:[%s2015] sm:$0xf]
        %v2017 = vld [vmem:[%s2015 + $0x4] sm:$0xf]
        %v2018 = vld [vmem:[%s2015 + $0x8] sm:$0xf]
        %v2019 = vld [vmem:[%s2015 + $0xc] sm:$0xf]
        %v2020 = vld [vmem:[%s2015 + $0x10] sm:$0xf]
        %v2021 = vld [vmem:[%s2015 + $0x14] sm:$0xf]
        %v2022 = vld [vmem:[%s2015 + $0x18] sm:$0xf]
        %v2023 = vld [vmem:[%s2015 + $0x1c] sm:$0xf]
        %v2024 = vld [vmem:[%s2015 + $0x20] sm:$0xf]
        %v2025 = vld [vmem:[%s2015 + $0x24] sm:$0xf]
        %v2026 = vld [vmem:[%s2015 + $0x28] sm:$0xf]
        %v2027 = vld [vmem:[%s2015 + $0x2c] sm:$0xf]
        %v2028 = vld [vmem:[%s2015 + $0x30] sm:$0xf]
        %v2029 = vld [vmem:[%s2015 + $0x34] sm:$0xf]
        %v2030 = vld [vmem:[%s2015 + $0x38] sm:$0xf]
        %v2031 = vld [vmem:[%s2015 + $0x3c] sm:$0xf]
        %v2048 = vunpack.c.l.b16 %v1999
        %v2049 = vunpack.c.l.b16 %v2000
        %v2050 = vunpack.c.l.b16 %v2001
        %v2051 = vunpack.c.l.b16 %v2002
        %v2052 = vunpack.c.l.b16 %v2003
        %v2053 = vunpack.c.l.b16 %v2004
        %v2054 = vunpack.c.l.b16 %v2005
        %v2055 = vunpack.c.l.b16 %v2006
        %v2056 = vunpack.c.l.b16 %v2007
        %v2057 = vunpack.c.l.b16 %v2008
        %v2058 = vunpack.c.l.b16 %v2009
        %v2059 = vunpack.c.l.b16 %v2010
        %v2060 = vunpack.c.l.b16 %v2011
        %v2061 = vunpack.c.l.b16 %v2012
        %v2062 = vunpack.c.l.b16 %v2013
        %v2063 = vunpack.c.l.b16 %v2014
        %v2064 = vpack.c.b16 %v2049, %v2048
        %v2065 = vpack.c.b16 %v2051, %v2050
        %v2066 = vpack.c.b16 %v2053, %v2052
        %v2067 = vpack.c.b16 %v2055, %v2054
        %v2068 = vpack.c.b16 %v2057, %v2056
        %v2069 = vpack.c.b16 %v2059, %v2058
        %v2070 = vpack.c.b16 %v2061, %v2060
        %v2071 = vpack.c.b16 %v2063, %v2062
        %v2096 = vunpack.c.l.b16 %v2016
        %v2097 = vunpack.c.l.b16 %v2017
        %v2098 = vunpack.c.l.b16 %v2018
        %v2099 = vunpack.c.l.b16 %v2019
        %v2100 = vunpack.c.l.b16 %v2020
        %v2101 = vunpack.c.l.b16 %v2021
        %v2102 = vunpack.c.l.b16 %v2022
        %v2103 = vunpack.c.l.b16 %v2023
        %v2104 = vunpack.c.l.b16 %v2024
        %v2105 = vunpack.c.l.b16 %v2025
        %v2106 = vunpack.c.l.b16 %v2026
        %v2107 = vunpack.c.l.b16 %v2027
        %v2108 = vunpack.c.l.b16 %v2028
        %v2109 = vunpack.c.l.b16 %v2029
        %v2110 = vunpack.c.l.b16 %v2030
        %v2111 = vunpack.c.l.b16 %v2031
        %v2112 = vpack.c.b16 %v2097, %v2096
        %v2113 = vpack.c.b16 %v2099, %v2098
        %v2114 = vpack.c.b16 %v2101, %v2100
        %v2115 = vpack.c.b16 %v2103, %v2102
        %v2116 = vpack.c.b16 %v2105, %v2104
        %v2117 = vpack.c.b16 %v2107, %v2106
        %v2118 = vpack.c.b16 %v2109, %v2108
        %v2119 = vpack.c.b16 %v2111, %v2110
        %2128 = vmatprep.subr.bf16.mxu0 0
        %2129 = vmatpush1.bf16.msra.mxu0 %v2112
        %2130 = vmatprep.subr.bf16.mxu0 0
        %2131 = vmatpush1.bf16.msra.mxu0 %v2113
        %2132 = vmatprep.subr.bf16.mxu0 0
        %2133 = vmatpush1.bf16.msra.mxu0 %v2114
        %2134 = vmatprep.subr.bf16.mxu0 0
        %2135 = vmatpush1.bf16.msra.mxu0 %v2115
        %2136 = vmatprep.subr.bf16.mxu0 0
        %2137 = vmatpush1.bf16.msra.mxu0 %v2116
        %2138 = vmatprep.subr.bf16.mxu0 0
        %2139 = vmatpush1.bf16.msra.mxu0 %v2117
        %2140 = vmatprep.subr.bf16.mxu0 0
        %2141 = vmatpush1.bf16.msra.mxu0 %v2118
        %2142 = vmatprep.subr.bf16.mxu0 0
        %2143 = vmatpush1.bf16.msra.mxu0 %v2119
        %2144 = vmatprep.subr.bf16.mxu0 0
        %2145 = vmatpush1.bf16.msra.mxu0 0
        %2146 = vmatprep.subr.bf16.mxu0 0
        %2147 = vmatpush1.bf16.msra.mxu0 0
        %2148 = vmatprep.subr.bf16.mxu0 0
        %2149 = vmatpush1.bf16.msra.mxu0 0
        %2150 = vmatprep.subr.bf16.mxu0 0
        %2151 = vmatpush1.bf16.msra.mxu0 0
        %2152 = vmatprep.subr.bf16.mxu0 0
        %2153 = vmatpush1.bf16.msra.mxu0 0
        %2154 = vmatprep.subr.bf16.mxu0 0
        %2155 = vmatpush1.bf16.msra.mxu0 0
        %2156 = vmatprep.subr.bf16.mxu0 0
        %2157 = vmatpush1.bf16.msra.mxu0 0
        %2158 = vmatprep.subr.bf16.mxu0 0
        %2159 = vmatpush1.bf16.msra.mxu0 0
        %2160 = vmatprep.mubr.bf16.mxu0 0
        %2161 = vmatmul.mubr.bf16.gmra.mrb[0].mxu0 %v2064
        %v2162 = vpop.f32.mrb[0].mxu0
        %v2163 = vadd.f32 0.0, %v2162
        %v2164 = vpop.f32.mrb[0].mxu0
        %v2165 = vpop.f32.mrb[0].mxu0
        %v2166 = vadd.f32 0.0, %v2165
        %v2167 = vpop.f32.mrb[0].mxu0
        %2168 = vmatprep.mubr.bf16.mxu0 0
        %2169 = vmatmul.mubr.bf16.gmra.mrb[0].mxu0 %v2065
        %v2170 = vpop.f32.mrb[0].mxu0
        %v2171 = vadd.f32 0.0, %v2170
        %v2172 = vpop.f32.mrb[0].mxu0
        %v2173 = vpop.f32.mrb[0].mxu0
        %v2174 = vadd.f32 0.0, %v2173
        %v2175 = vpop.f32.mrb[0].mxu0
        %2176 = vmatprep.mubr.bf16.mxu0 0
        %2177 = vmatmul.mubr.bf16.gmra.mrb[0].mxu0 %v2066
        %v2178 = vpop.f32.mrb[0].mxu0
        %v2179 = vadd.f32 0.0, %v2178
        %v2180 = vpop.f32.mrb[0].mxu0
        %v2181 = vpop.f32.mrb[0].mxu0
        %v2182 = vadd.f32 0.0, %v2181
        %v2183 = vpop.f32.mrb[0].mxu0
        %2184 = vmatprep.mubr.bf16.mxu0 0
        %2185 = vmatmul.mubr.bf16.gmra.mrb[0].mxu0 %v2067
        %v2186 = vpop.f32.mrb[0].mxu0
        %v2187 = vadd.f32 0.0, %v2186
        %v2188 = vpop.f32.mrb[0].mxu0
        %v2189 = vpop.f32.mrb[0].mxu0
        %v2190 = vadd.f32 0.0, %v2189
        %v2191 = vpop.f32.mrb[0].mxu0
        %2192 = vmatprep.mubr.bf16.mxu0 0
        %2193 = vmatmul.mubr.bf16.gmra.mrb[0].mxu0 %v2068
        %v2194 = vpop.f32.mrb[0].mxu0
        %v2195 = vadd.f32 0.0, %v2194
        %v2196 = vpop.f32.mrb[0].mxu0
        %v2197 = vpop.f32.mrb[0].mxu0
        %v2198 = vadd.f32 0.0, %v2197
        %v2199 = vpop.f32.mrb[0].mxu0
        %2200 = vmatprep.mubr.bf16.mxu0 0
        %2201 = vmatmul.mubr.bf16.gmra.mrb[0].mxu0 %v2069
        %v2202 = vpop.f32.mrb[0].mxu0
        %v2203 = vadd.f32 0.0, %v2202
        %v2204 = vpop.f32.mrb[0].mxu0
        %v2205 = vpop.f32.mrb[0].mxu0
        %v2206 = vadd.f32 0.0, %v2205
        %v2207 = vpop.f32.mrb[0].mxu0
        %2208 = vmatprep.mubr.bf16.mxu0 0
        %2209 = vmatmul.mubr.bf16.gmra.mrb[0].mxu0 %v2070
        %v2210 = vpop.f32.mrb[0].mxu0
        %v2211 = vadd.f32 0.0, %v2210
        %v2212 = vpop.f32.mrb[0].mxu0
        %v2213 = vpop.f32.mrb[0].mxu0
        %v2214 = vadd.f32 0.0, %v2213
        %v2215 = vpop.f32.mrb[0].mxu0
        %2216 = vmatprep.mubr.bf16.mxu0 0
        %2217 = vmatmul.mubr.bf16.gmra.mrb[0].mxu0 %v2071
        %v2218 = vpop.f32.mrb[0].mxu0
        %v2219 = vadd.f32 0.0, %v2218
        %v2220 = vpop.f32.mrb[0].mxu0
        %v2221 = vpop.f32.mrb[0].mxu0
        %v2222 = vadd.f32 0.0, %v2221
        %v2223 = vpop.f32.mrb[0].mxu0
        %2224 = vdwg.mxu0
        %v2225 = vadd.f32 %v1983, %v2163
        %v2226 = vadd.f32 %v1984, %v2166
        %v2227 = vadd.f32 %v1985, %v2171
        %v2228 = vadd.f32 %v1986, %v2174
        %v2229 = vadd.f32 %v1987, %v2179
        %v2230 = vadd.f32 %v1988, %v2182
        %v2231 = vadd.f32 %v1989, %v2187
        %v2232 = vadd.f32 %v1990, %v2190
        %v2233 = vadd.f32 %v1991, %v2195
        %v2234 = vadd.f32 %v1992, %v2198
        %v2235 = vadd.f32 %v1993, %v2203
        %v2236 = vadd.f32 %v1994, %v2206
        %v2237 = vadd.f32 %v1995, %v2211
        %v2238 = vadd.f32 %v1996, %v2214
        %v2239 = vadd.f32 %v1997, %v2219
        %v2240 = vadd.f32 %v1998, %v2222
        %v2241 = vld [vmem:[%s785 + $0x8] sm:$0xf]
        %v2242 = vld [vmem:[%s785 + $0xc] sm:$0xf]
        %v2243 = vld [vmem:[%s785 + $0x10] sm:$0xf]
        %v2244 = vld [vmem:[%s785 + $0x14] sm:$0xf]
        %v2245 = vld [vmem:[%s785 + $0x18] sm:$0xf]
        %v2246 = vld [vmem:[%s785 + $0x1c] sm:$0xf]
        %v2247 = vld [vmem:[%s785 + $0x20] sm:$0xf]
        %v2248 = vld [vmem:[%s785 + $0x24] sm:$0xf]
        %v2249 = vld [vmem:[%s785 + $0x28] sm:$0xf]
        %v2250 = vld [vmem:[%s785 + $0x2c] sm:$0xf]
        %v2251 = vld [vmem:[%s785 + $0x30] sm:$0xf]
        %v2252 = vld [vmem:[%s785 + $0x34] sm:$0xf]
        %v2253 = vld [vmem:[%s785 + $0x38] sm:$0xf]
        %v2254 = vld [vmem:[%s785 + $0x3c] sm:$0xf]
        %v2255 = vld [vmem:[%s785 + $0x40] sm:$0xf]
        %v2256 = vld [vmem:[%s785 + $0x44] sm:$0xf]
        %s2257 = scalar_lea.vmem [#allocation5], 512
        %v2258 = vld [vmem:[%s2257] sm:$0xf]
        %v2259 = vld [vmem:[%s2257 + $0x4] sm:$0xf]
        %v2260 = vld [vmem:[%s2257 + $0x8] sm:$0xf]
        %v2261 = vld [vmem:[%s2257 + $0xc] sm:$0xf]
        %v2262 = vld [vmem:[%s2257 + $0x10] sm:$0xf]
        %v2263 = vld [vmem:[%s2257 + $0x14] sm:$0xf]
        %v2264 = vld [vmem:[%s2257 + $0x18] sm:$0xf]
        %v2265 = vld [vmem:[%s2257 + $0x1c] sm:$0xf]
        %v2266 = vld [vmem:[%s2257 + $0x20] sm:$0xf]
        %v2267 = vld [vmem:[%s2257 + $0x24] sm:$0xf]
        %v2268 = vld [vmem:[%s2257 + $0x28] sm:$0xf]
        %v2269 = vld [vmem:[%s2257 + $0x2c] sm:$0xf]
        %v2270 = vld [vmem:[%s2257 + $0x30] sm:$0xf]
        %v2271 = vld [vmem:[%s2257 + $0x34] sm:$0xf]
        %v2272 = vld [vmem:[%s2257 + $0x38] sm:$0xf]
        %v2273 = vld [vmem:[%s2257 + $0x3c] sm:$0xf]
        %v2290 = vunpack.c.l.b16 %v2241
        %v2291 = vunpack.c.l.b16 %v2242
        %v2292 = vunpack.c.l.b16 %v2243
        %v2293 = vunpack.c.l.b16 %v2244
        %v2294 = vunpack.c.l.b16 %v2245
        %v2295 = vunpack.c.l.b16 %v2246
        %v2296 = vunpack.c.l.b16 %v2247
        %v2297 = vunpack.c.l.b16 %v2248
        %v2298 = vunpack.c.l.b16 %v2249
        %v2299 = vunpack.c.l.b16 %v2250
        %v2300 = vunpack.c.l.b16 %v2251
        %v2301 = vunpack.c.l.b16 %v2252
        %v2302 = vunpack.c.l.b16 %v2253
        %v2303 = vunpack.c.l.b16 %v2254
        %v2304 = vunpack.c.l.b16 %v2255
        %v2305 = vunpack.c.l.b16 %v2256
        %v2306 = vpack.c.b16 %v2291, %v2290
        %v2307 = vpack.c.b16 %v2293, %v2292
        %v2308 = vpack.c.b16 %v2295, %v2294
        %v2309 = vpack.c.b16 %v2297, %v2296
        %v2310 = vpack.c.b16 %v2299, %v2298
        %v2311 = vpack.c.b16 %v2301, %v2300
        %v2312 = vpack.c.b16 %v2303, %v2302
        %v2313 = vpack.c.b16 %v2305, %v2304
        %v2338 = vunpack.c.l.b16 %v2258
        %v2339 = vunpack.c.l.b16 %v2259
        %v2340 = vunpack.c.l.b16 %v2260
        %v2341 = vunpack.c.l.b16 %v2261
        %v2342 = vunpack.c.l.b16 %v2262
        %v2343 = vunpack.c.l.b16 %v2263
        %v2344 = vunpack.c.l.b16 %v2264
        %v2345 = vunpack.c.l.b16 %v2265
        %v2346 = vunpack.c.l.b16 %v2266
        %v2347 = vunpack.c.l.b16 %v2267
        %v2348 = vunpack.c.l.b16 %v2268
        %v2349 = vunpack.c.l.b16 %v2269
        %v2350 = vunpack.c.l.b16 %v2270
        %v2351 = vunpack.c.l.b16 %v2271
        %v2352 = vunpack.c.l.b16 %v2272
        %v2353 = vunpack.c.l.b16 %v2273
        %v2354 = vpack.c.b16 %v2339, %v2338
        %v2355 = vpack.c.b16 %v2341, %v2340
        %v2356 = vpack.c.b16 %v2343, %v2342
        %v2357 = vpack.c.b16 %v2345, %v2344
        %v2358 = vpack.c.b16 %v2347, %v2346
        %v2359 = vpack.c.b16 %v2349, %v2348
        %v2360 = vpack.c.b16 %v2351, %v2350
        %v2361 = vpack.c.b16 %v2353, %v2352
        %2370 = vmatprep.subr.bf16.mxu0 0
        %2371 = vmatpush1.bf16.msra.mxu0 %v2354
        %2372 = vmatprep.subr.bf16.mxu0 0
        %2373 = vmatpush1.bf16.msra.mxu0 %v2355
        %2374 = vmatprep.subr.bf16.mxu0 0
        %2375 = vmatpush1.bf16.msra.mxu0 %v2356
        %2376 = vmatprep.subr.bf16.mxu0 0
        %2377 = vmatpush1.bf16.msra.mxu0 %v2357
        %2378 = vmatprep.subr.bf16.mxu0 0
        %2379 = vmatpush1.bf16.msra.mxu0 %v2358
        %2380 = vmatprep.subr.bf16.mxu0 0
        %2381 = vmatpush1.bf16.msra.mxu0 %v2359
        %2382 = vmatprep.subr.bf16.mxu0 0
        %2383 = vmatpush1.bf16.msra.mxu0 %v2360
        %2384 = vmatprep.subr.bf16.mxu0 0
        %2385 = vmatpush1.bf16.msra.mxu0 %v2361
        %2386 = vmatprep.subr.bf16.mxu0 0
        %2387 = vmatpush1.bf16.msra.mxu0 0
        %2388 = vmatprep.subr.bf16.mxu0 0
        %2389 = vmatpush1.bf16.msra.mxu0 0
        %2390 = vmatprep.subr.bf16.mxu0 0
        %2391 = vmatpush1.bf16.msra.mxu0 0
        %2392 = vmatprep.subr.bf16.mxu0 0
        %2393 = vmatpush1.bf16.msra.mxu0 0
        %2394 = vmatprep.subr.bf16.mxu0 0
        %2395 = vmatpush1.bf16.msra.mxu0 0
        %2396 = vmatprep.subr.bf16.mxu0 0
        %2397 = vmatpush1.bf16.msra.mxu0 0
        %2398 = vmatprep.subr.bf16.mxu0 0
        %2399 = vmatpush1.bf16.msra.mxu0 0
        %2400 = vmatprep.subr.bf16.mxu0 0
        %2401 = vmatpush1.bf16.msra.mxu0 0
        %2402 = vmatprep.mubr.bf16.mxu0 0
        %2403 = vmatmul.mubr.bf16.gmra.mrb[0].mxu0 %v2306
        %v2404 = vpop.f32.mrb[0].mxu0
        %v2405 = vadd.f32 0.0, %v2404
        %v2406 = vpop.f32.mrb[0].mxu0
        %v2407 = vpop.f32.mrb[0].mxu0
        %v2408 = vadd.f32 0.0, %v2407
        %v2409 = vpop.f32.mrb[0].mxu0
        %2410 = vmatprep.mubr.bf16.mxu0 0
        %2411 = vmatmul.mubr.bf16.gmra.mrb[0].mxu0 %v2307
        %v2412 = vpop.f32.mrb[0].mxu0
        %v2413 = vadd.f32 0.0, %v2412
        %v2414 = vpop.f32.mrb[0].mxu0
        %v2415 = vpop.f32.mrb[0].mxu0
        %v2416 = vadd.f32 0.0, %v2415
        %v2417 = vpop.f32.mrb[0].mxu0
        %2418 = vmatprep.mubr.bf16.mxu0 0
        %2419 = vmatmul.mubr.bf16.gmra.mrb[0].mxu0 %v2308
        %v2420 = vpop.f32.mrb[0].mxu0
        %v2421 = vadd.f32 0.0, %v2420
        %v2422 = vpop.f32.mrb[0].mxu0
        %v2423 = vpop.f32.mrb[0].mxu0
        %v2424 = vadd.f32 0.0, %v2423
        %v2425 = vpop.f32.mrb[0].mxu0
        %2426 = vmatprep.mubr.bf16.mxu0 0
        %2427 = vmatmul.mubr.bf16.gmra.mrb[0].mxu0 %v2309
        %v2428 = vpop.f32.mrb[0].mxu0
        %v2429 = vadd.f32 0.0, %v2428
        %v2430 = vpop.f32.mrb[0].mxu0
        %v2431 = vpop.f32.mrb[0].mxu0
        %v2432 = vadd.f32 0.0, %v2431
        %v2433 = vpop.f32.mrb[0].mxu0
        %2434 = vmatprep.mubr.bf16.mxu0 0
        %2435 = vmatmul.mubr.bf16.gmra.mrb[0].mxu0 %v2310
        %v2436 = vpop.f32.mrb[0].mxu0
        %v2437 = vadd.f32 0.0, %v2436
        %v2438 = vpop.f32.mrb[0].mxu0
        %v2439 = vpop.f32.mrb[0].mxu0
        %v2440 = vadd.f32 0.0, %v2439
        %v2441 = vpop.f32.mrb[0].mxu0
        %2442 = vmatprep.mubr.bf16.mxu0 0
        %2443 = vmatmul.mubr.bf16.gmra.mrb[0].mxu0 %v2311
        %v2444 = vpop.f32.mrb[0].mxu0
        %v2445 = vadd.f32 0.0, %v2444
        %v2446 = vpop.f32.mrb[0].mxu0
        %v2447 = vpop.f32.mrb[0].mxu0
        %v2448 = vadd.f32 0.0, %v2447
        %v2449 = vpop.f32.mrb[0].mxu0
        %2450 = vmatprep.mubr.bf16.mxu0 0
        %2451 = vmatmul.mubr.bf16.gmra.mrb[0].mxu0 %v2312
        %v2452 = vpop.f32.mrb[0].mxu0
        %v2453 = vadd.f32 0.0, %v2452
        %v2454 = vpop.f32.mrb[0].mxu0
        %v2455 = vpop.f32.mrb[0].mxu0
        %v2456 = vadd.f32 0.0, %v2455
        %v2457 = vpop.f32.mrb[0].mxu0
        %2458 = vmatprep.mubr.bf16.mxu0 0
        %2459 = vmatmul.mubr.bf16.gmra.mrb[0].mxu0 %v2313
        %v2460 = vpop.f32.mrb[0].mxu0
        %v2461 = vadd.f32 0.0, %v2460
        %v2462 = vpop.f32.mrb[0].mxu0
        %v2463 = vpop.f32.mrb[0].mxu0
        %v2464 = vadd.f32 0.0, %v2463
        %v2465 = vpop.f32.mrb[0].mxu0
        %2466 = vdwg.mxu0
        %v2467 = vadd.f32 %v2225, %v2405
        %v2468 = vadd.f32 %v2226, %v2408
        %v2469 = vadd.f32 %v2227, %v2413
        %v2470 = vadd.f32 %v2228, %v2416
        %v2471 = vadd.f32 %v2229, %v2421
        %v2472 = vadd.f32 %v2230, %v2424
        %v2473 = vadd.f32 %v2231, %v2429
        %v2474 = vadd.f32 %v2232, %v2432
        %v2475 = vadd.f32 %v2233, %v2437
        %v2476 = vadd.f32 %v2234, %v2440
        %v2477 = vadd.f32 %v2235, %v2445
        %v2478 = vadd.f32 %v2236, %v2448
        %v2479 = vadd.f32 %v2237, %v2453
        %v2480 = vadd.f32 %v2238, %v2456
        %v2481 = vadd.f32 %v2239, %v2461
        %v2482 = vadd.f32 %v2240, %v2464
        %v2483 = vld [vmem:[#allocation7] sm:$0x1]
        %v2485 = vlaneseq
        %v2486 = vshrl.u32 %v2485, 7
        %v2487 = vsub.s32 0, %v2486
        %v2488 = vrot.slane %v2483, %v2487
        %v2490 = vmul.f32 %v2467, %v2488
        %v2491 = vmul.f32 %v2468, %v2488
        %v2492 = vmul.f32 %v2469, %v2488
        %v2493 = vmul.f32 %v2470, %v2488
        %v2494 = vmul.f32 %v2471, %v2488
        %v2495 = vmul.f32 %v2472, %v2488
        %v2496 = vmul.f32 %v2473, %v2488
        %v2497 = vmul.f32 %v2474, %v2488
        %v2498 = vmul.f32 %v2475, %v2488
        %v2499 = vmul.f32 %v2476, %v2488
        %v2500 = vmul.f32 %v2477, %v2488
        %v2501 = vmul.f32 %v2478, %v2488
        %v2502 = vmul.f32 %v2479, %v2488
        %v2503 = vmul.f32 %v2480, %v2488
        %v2504 = vmul.f32 %v2481, %v2488
        %v2505 = vmul.f32 %v2482, %v2488
        %v2506 = vld [vmem:[#allocation8] sm:$0x1]
        %v2508 = vlaneseq
        %v2509 = vshrl.u32 %v2508, 7
        %v2510 = vsub.s32 0, %v2509
        %v2511 = vrot.slane %v2506, %v2510
        %v2513 = vadd.f32 %v2490, %v2511
        %v2514 = vadd.f32 %v2491, %v2511
        %v2515 = vadd.f32 %v2492, %v2511
        %v2516 = vadd.f32 %v2493, %v2511
        %v2517 = vadd.f32 %v2494, %v2511
        %v2518 = vadd.f32 %v2495, %v2511
        %v2519 = vadd.f32 %v2496, %v2511
        %v2520 = vadd.f32 %v2497, %v2511
        %v2521 = vadd.f32 %v2498, %v2511
        %v2522 = vadd.f32 %v2499, %v2511
        %v2523 = vadd.f32 %v2500, %v2511
        %v2524 = vadd.f32 %v2501, %v2511
        %v2525 = vadd.f32 %v2502, %v2511
        %v2526 = vadd.f32 %v2503, %v2511
        %v2527 = vadd.f32 %v2504, %v2511
        %v2528 = vadd.f32 %v2505, %v2511
        %v2529 = vmax.f32 %v2513, 0.0
        %v2530 = vmax.f32 %v2514, 0.0
        %v2531 = vmax.f32 %v2515, 0.0
        %v2532 = vmax.f32 %v2516, 0.0
        %v2533 = vmax.f32 %v2517, 0.0
        %v2534 = vmax.f32 %v2518, 0.0
        %v2535 = vmax.f32 %v2519, 0.0
        %v2536 = vmax.f32 %v2520, 0.0
        %v2537 = vmax.f32 %v2521, 0.0
        %v2538 = vmax.f32 %v2522, 0.0
        %v2539 = vmax.f32 %v2523, 0.0
        %v2540 = vmax.f32 %v2524, 0.0
        %v2541 = vmax.f32 %v2525, 0.0
        %v2542 = vmax.f32 %v2526, 0.0
        %v2543 = vmax.f32 %v2527, 0.0
        %v2544 = vmax.f32 %v2528, 0.0
        %v2545 = vld [vmem:[#allocation10] sm:$0xff]
        %v2546 = vld [vmem:[#allocation10 + $0x8] sm:$0xff]
        %v2547 = vld [vmem:[#allocation10 + $0x10] sm:$0xff]
        %v2548 = vld [vmem:[#allocation10 + $0x18] sm:$0xff]
        %v2549 = vld [vmem:[#allocation10 + $0x20] sm:$0xff]
        %v2550 = vld [vmem:[#allocation10 + $0x28] sm:$0xff]
        %v2551 = vld [vmem:[#allocation10 + $0x30] sm:$0xff]
        %v2552 = vld [vmem:[#allocation10 + $0x38] sm:$0xff]
        %v2553 = vld [vmem:[#allocation10 + $0x40] sm:$0xff]
        %v2554 = vld [vmem:[#allocation10 + $0x48] sm:$0xff]
        %v2555 = vld [vmem:[#allocation10 + $0x50] sm:$0xff]
        %v2556 = vld [vmem:[#allocation10 + $0x58] sm:$0xff]
        %v2557 = vld [vmem:[#allocation10 + $0x60] sm:$0xff]
        %v2558 = vld [vmem:[#allocation10 + $0x68] sm:$0xff]
        %v2559 = vld [vmem:[#allocation10 + $0x70] sm:$0xff]
        %v2560 = vld [vmem:[#allocation10 + $0x78] sm:$0xff]
        %2562 = vset.pattern.permute.xlu0 0
        %2563 = vperm.xlu0 %2562, %v2545
        %v2564 = vpop.permute.xlu0 %2563
        %2567 = vset.pattern.permute.xlu0 0
        %2568 = vperm.xlu0 %2567, %v2546
        %v2569 = vpop.permute.xlu0 %2568
        %2572 = vset.pattern.permute.xlu0 0
        %2573 = vperm.xlu0 %2572, %v2547
        %v2574 = vpop.permute.xlu0 %2573
        %2577 = vset.pattern.permute.xlu0 0
        %2578 = vperm.xlu0 %2577, %v2548
        %v2579 = vpop.permute.xlu0 %2578
        %2582 = vset.pattern.permute.xlu0 0
        %2583 = vperm.xlu0 %2582, %v2549
        %v2584 = vpop.permute.xlu0 %2583
        %2587 = vset.pattern.permute.xlu0 0
        %2588 = vperm.xlu0 %2587, %v2550
        %v2589 = vpop.permute.xlu0 %2588
        %2592 = vset.pattern.permute.xlu0 0
        %2593 = vperm.xlu0 %2592, %v2551
        %v2594 = vpop.permute.xlu0 %2593
        %2597 = vset.pattern.permute.xlu0 0
        %2598 = vperm.xlu0 %2597, %v2552
        %v2599 = vpop.permute.xlu0 %2598
        %2602 = vset.pattern.permute.xlu0 0
        %2603 = vperm.xlu0 %2602, %v2553
        %v2604 = vpop.permute.xlu0 %2603
        %2607 = vset.pattern.permute.xlu0 0
        %2608 = vperm.xlu0 %2607, %v2554
        %v2609 = vpop.permute.xlu0 %2608
        %2612 = vset.pattern.permute.xlu0 0
        %2613 = vperm.xlu0 %2612, %v2555
        %v2614 = vpop.permute.xlu0 %2613
        %2617 = vset.pattern.permute.xlu0 0
        %2618 = vperm.xlu0 %2617, %v2556
        %v2619 = vpop.permute.xlu0 %2618
        %2622 = vset.pattern.permute.xlu0 0
        %2623 = vperm.xlu0 %2622, %v2557
        %v2624 = vpop.permute.xlu0 %2623
        %2627 = vset.pattern.permute.xlu0 0
        %2628 = vperm.xlu0 %2627, %v2558
        %v2629 = vpop.permute.xlu0 %2628
        %2632 = vset.pattern.permute.xlu0 0
        %2633 = vperm.xlu0 %2632, %v2559
        %v2634 = vpop.permute.xlu0 %2633
        %2637 = vset.pattern.permute.xlu0 0
        %2638 = vperm.xlu0 %2637, %v2560
        %v2639 = vpop.permute.xlu0 %2638
        %v2641 = vmul.f32 %v2529, %v2564
        %v2642 = vmul.f32 %v2530, %v2569
        %v2643 = vmul.f32 %v2531, %v2574
        %v2644 = vmul.f32 %v2532, %v2579
        %v2645 = vmul.f32 %v2533, %v2584
        %v2646 = vmul.f32 %v2534, %v2589
        %v2647 = vmul.f32 %v2535, %v2594
        %v2648 = vmul.f32 %v2536, %v2599
        %v2649 = vmul.f32 %v2537, %v2604
        %v2650 = vmul.f32 %v2538, %v2609
        %v2651 = vmul.f32 %v2539, %v2614
        %v2652 = vmul.f32 %v2540, %v2619
        %v2653 = vmul.f32 %v2541, %v2624
        %v2654 = vmul.f32 %v2542, %v2629
        %v2655 = vmul.f32 %v2543, %v2634
        %v2656 = vmul.f32 %v2544, %v2639
        %2657 = vst [vmem:[%s331] sm:$0xf] 0
        %2658 = vst [vmem:[%s331 + $0x4] sm:$0xf] 0
        %2659 = vst [vmem:[%s331 + $0x8] sm:$0xf] 0
        %v2660 = vpack.c.bf16 %v2642, %v2641
        %v2661 = vpack.c.bf16 %v2644, %v2643
        %v2662 = vpack.c.bf16 %v2646, %v2645
        %v2663 = vpack.c.bf16 %v2648, %v2647
        %v2664 = vpack.c.bf16 %v2650, %v2649
        %v2665 = vpack.c.bf16 %v2652, %v2651
        %v2666 = vpack.c.bf16 %v2654, %v2653
        %v2667 = vpack.c.bf16 %v2656, %v2655
        %v2676 = vunpack.c.l.b16 %v2660
        %v2677 = vunpack.c.h.b16 %v2660
        %v2678 = vunpack.c.l.b16 %v2661
        %v2679 = vunpack.c.h.b16 %v2661
        %v2680 = vunpack.c.l.b16 %v2662
        %v2681 = vunpack.c.h.b16 %v2662
        %v2682 = vunpack.c.l.b16 %v2663
        %v2683 = vunpack.c.h.b16 %v2663
        %v2684 = vunpack.c.l.b16 %v2664
        %v2685 = vunpack.c.h.b16 %v2664
        %v2686 = vunpack.c.l.b16 %v2665
        %v2687 = vunpack.c.h.b16 %v2665
        %v2688 = vunpack.c.l.b16 %v2666
        %v2689 = vunpack.c.h.b16 %v2666
        %v2690 = vunpack.c.l.b16 %v2667
        %v2691 = vunpack.c.h.b16 %v2667
        %v2692 = vpack.c.b16 %v2676, %v2676
        %v2693 = vpack.c.b16 %v2677, %v2677
        %v2694 = vpack.c.b16 %v2678, %v2678
        %v2695 = vpack.c.b16 %v2679, %v2679
        %v2696 = vpack.c.b16 %v2680, %v2680
        %v2697 = vpack.c.b16 %v2681, %v2681
        %v2698 = vpack.c.b16 %v2682, %v2682
        %v2699 = vpack.c.b16 %v2683, %v2683
        %v2700 = vpack.c.b16 %v2684, %v2684
        %v2701 = vpack.c.b16 %v2685, %v2685
        %v2702 = vpack.c.b16 %v2686, %v2686
        %v2703 = vpack.c.b16 %v2687, %v2687
        %v2704 = vpack.c.b16 %v2688, %v2688
        %v2705 = vpack.c.b16 %v2689, %v2689
        %v2706 = vpack.c.b16 %v2690, %v2690
        %v2707 = vpack.c.b16 %v2691, %v2691
        %2724 = vst [vmem:[%s331 + $0xc] sm:$0xf] %v2692
        %2725 = vst [vmem:[%s331 + $0x10] sm:$0xf] %v2693
        %2726 = vst [vmem:[%s331 + $0x14] sm:$0xf] %v2694
        %2727 = vst [vmem:[%s331 + $0x18] sm:$0xf] %v2695
        %2728 = vst [vmem:[%s331 + $0x1c] sm:$0xf] %v2696
        %2729 = vst [vmem:[%s331 + $0x20] sm:$0xf] %v2697
        %2730 = vst [vmem:[%s331 + $0x24] sm:$0xf] %v2698
        %2731 = vst [vmem:[%s331 + $0x28] sm:$0xf] %v2699
        %2732 = vst [vmem:[%s331 + $0x2c] sm:$0xf] %v2700
        %2733 = vst [vmem:[%s331 + $0x30] sm:$0xf] %v2701
        %2734 = vst [vmem:[%s331 + $0x34] sm:$0xf] %v2702
        %2735 = vst [vmem:[%s331 + $0x38] sm:$0xf] %v2703
        %2736 = vst [vmem:[%s331 + $0x3c] sm:$0xf] %v2704
        %2737 = vst [vmem:[%s331 + $0x40] sm:$0xf] %v2705
        %2738 = vst [vmem:[%s331 + $0x44] sm:$0xf] %v2706
        %2739 = vst [vmem:[%s331 + $0x48] sm:$0xf] %v2707
        %2740 = vst [vmem:[%s331 + $0x4c] sm:$0xf] 0
        %2741 = vst [vmem:[%s331 + $0x50] sm:$0xf] 0
        %2742 = vst [vmem:[%s331 + $0x54] sm:$0xf] 0
        %s2743 = sand.u32 %s171, 1
        %s2744 = scalar_lea.sflag [#allocation4], %s2743
        %s2745 = sand.u32 %s171, 1
        %s2746 = smul.addr %s2745, 88
        %s2747 = scalar_lea.vmem [#allocation11], %s2746
        // Predicated region
        $region61: #{resnet_swin_forward.3} parent=39 // pred_check
          %p2748 = pneg %p181
        $region62: #{resnet_swin_forward.3} parent=39 // pred_check_branch
          %2750 = sbr.rel (%p2748) target = $region64
        $region63: #{resnet_swin_forward.3} parent=39 // pred_region
          %s2752 = ssub.s32 1408, 1408
          %2753 = vsyncadd %s2744, %s2752
          %s2754 = smul.addr %s28, 22
          %s2755 = sadd.s32 %s29, %s2754
          %s2756 = smul.addr %s2755, 64
          %s2757 = scalar_lea.hbm %s5, %s2756
          %s2758 = sshll.u32 %s2747, 4
          %s2759 = int_to_ptr.vmem [resolvable:$true] %s2758
          %2764 = dma.vmem_to_hbm [thread:$0]  %s2759, 1408, %s2757, %s2744, 64, 64, 4
        $region64: #{resnet_swin_forward.3} parent=39 // pred_fallthru
          _
      $region40: #{resnet_swin_forward.3} parent=5 // pred_fallthru
        _
      %p2765 = scmp.le.s32.totalorder 2, %s19
      // Predicated region
      $region65: #{resnet_swin_forward.3} parent=5 // pred_check
        %p2766 = pneg %p2765
      $region66: #{resnet_swin_forward.3} parent=5 // pred_check_branch
        %2768 = sbr.rel (%p2766) target = $region68
      $region67: #{resnet_swin_forward.3} parent=5 // pred_region
        %s2769 = ssub.s32 %s19, 2
        // Predicated region
        $region69: #{resnet_swin_forward.3} parent=67 // pred_check
          %p2770 = pneg %p187
        $region70: #{resnet_swin_forward.3} parent=67 // pred_check_branch
          %2772 = sbr.rel (%p2770) target = $region72
        $region71: #{resnet_swin_forward.3} parent=67 // pred_region
          %s2773 = sand.u32 %s172, 1
          %s2774 = scalar_lea.sflag [#allocation4], %s2773
          %s2775 = sand.u32 %s172, 1
          %s2776 = smul.addr %s2775, 88
          %s2777 = scalar_lea.vmem [#allocation11], %s2776
          %2778 = dma.done %s2774, 1408
        $region72: #{resnet_swin_forward.3} parent=67 // pred_fallthru
          _
      $region68: #{resnet_swin_forward.3} parent=5 // pred_fallthru
        _
    $region6: #{resnet_swin_forward.3} parent=1 // loop_footer
      %s23 = sadd.s32 1, %s19
    $region7: #{resnet_swin_forward.3} parent=1 // loop_footer_branch
      %18 = sbr.rel target = $region3
    $region8: #{resnet_swin_forward.3} parent=1 // loop_exit
      _
    %2779 = vsyncpa [#allocation3], 1
    %s2780 = scalar_lea.sflag [#allocation3], 1
    %2781 = vsyncpa %s2780, 1
    %2782 = vsyncpa [#allocation6], 1
    %2783 = vsyncpa [#allocation9], 1
    %2784 = vsyncpa [#allocation4], 1
    %s2785 = scalar_lea.sflag [#allocation4], 1
    %2786 = vsyncpa %s2785, 1

// kernel: resnet_swin_forward.4
$region0: #{resnet_swin_forward.4}
  #allocation0 [shape = 'u32[]', space=smem, size = 0x4, offset = 0x4, fixed_abs, tag = 'smem constant byte address 0x4 - core index']
  #allocation1 [shape = 'u32[144,128]{1,0:T(1,128)}', space=vmem, size = 0x12000, scoped, tag = 'internal scratch']
  #allocation2 [shape = 'bf16[3,160,128]{2,1,0:T(16,128)(2,1)}', space=vmem, size = 0x1e000, scoped, tag = 'scratch operand']
  #allocation3 [shape = 'bf16[176,128]{1,0:T(16,128)(2,1)}', space=vmem, size = 0xb000, scoped, tag = 'scratch operand']
  #allocation4 [shape = 'bf16[128,1152]{1,0:T(16,128)(2,1)}', space=vmem, size = 0x48000, scoped, tag = 'scratch operand']
  #allocation5 [shape = 'f32[128,128]{1,0:T(8,128)}', space=vmem, size = 0x10000, scoped, tag = 'scratch operand']
  #allocation6 [shape = 'f32[64,128]{1,0:T(8,128)}', space=vmem, size = 0x8000, scoped, tag = 'scratch operand']
  %s0 = inlined_call_operand.hbm [shape: bf16[2,176,128], index: 0, kind: input, shape index: {}]
  %s1 = inlined_call_operand.hbm [shape: bf16[9,128,128], index: 1, kind: input, shape index: {}, may-alias: {1,2}]
  %s2 = inlined_call_operand.hbm [shape: bf16[1,1152,128], index: 2, kind: input, shape index: {}, may-alias: {1,2}]
  %s3 = inlined_call_operand.hbm [shape: bf16[128,128], index: 3, kind: input, shape index: {}]
  %s4 = inlined_call_operand.hbm [shape: bf16[2,64,128], index: 4, kind: input, shape index: {}]
  %s5 = inlined_call_operand.hbm [shape: f32[1,128], index: 5, kind: input, shape index: {}]
  %s6 = inlined_call_operand.hbm [shape: f32[1,128], index: 6, kind: input, shape index: {}]
  %s7 = inlined_call_operand.hbm [shape: f32[128,1], index: 7, kind: input, shape index: {}]
  %s8 = inlined_call_operand.hbm [shape: bf16[2,64,128], index: 8, kind: output, shape index: {}]
  %s9 = sld [smem:[#allocation0]]
  $region113: #{resnet_swin_forward.4} parent=0
    _
  %s11 = ssub.s32 1, %s9
  %s12 = scalar_select 0, %s11, %s9
  $region1: #{resnet_swin_forward.4} parent=0
    #allocation7 [shape = 'u8[90112]{0}', space=vmem, size = 0x16000, scoped, tag = 'input window, operand 0']
    #allocation8 [shape = 's32[2]{0}', space=sflag, size = 0x8, scoped, tag = 'scoped memory for resnet_swin_forward.4']
    #allocation9 [shape = 's32[2]{0}', space=sflag, size = 0x8, scoped, tag = 'scoped memory for resnet_swin_forward.4']
    #allocation10 [shape = 'u8[294912]{0}', space=vmem, size = 0x48000, scoped, tag = 'input window, operand 1, single buffered']
    #allocation11 [shape = 's32[1]{0}', space=sflag, size = 0x4, scoped, tag = 'scoped memory for resnet_swin_forward.4']
    #allocation12 [shape = 'u8[294912]{0}', space=vmem, size = 0x48000, scoped, tag = 'input window, operand 2, single buffered']
    #allocation13 [shape = 'u8[32768]{0}', space=vmem, size = 0x8000, scoped, tag = 'input window, operand 3, single buffered']
    #allocation14 [shape = 's32[1]{0}', space=sflag, size = 0x4, scoped, tag = 'scoped memory for resnet_swin_forward.4']
    #allocation15 [shape = 'u8[32768]{0}', space=vmem, size = 0x8000, scoped, tag = 'input window, operand 4']
    #allocation16 [shape = 'u8[512]{0}', space=vmem, size = 0x400, scoped, tag = 'input window, operand 5, single buffered']
    #allocation17 [shape = 'u8[512]{0}', space=vmem, size = 0x400, scoped, tag = 'input window, operand 6, single buffered']
    #allocation18 [shape = 'u8[65536]{0}', space=vmem, size = 0x10000, scoped, tag = 'input window, operand 7, single buffered']
    #allocation19 [shape = 's32[1]{0}', space=sflag, size = 0x4, scoped, tag = 'scoped memory for resnet_swin_forward.4']
    #allocation20 [shape = 'u8[32768]{0}', space=vmem, size = 0x8000, scoped, tag = 'output window, operand 0']
    %13 = vsyncpa [#allocation8], 0
    %s14 = scalar_lea.sflag [#allocation8], 1
    %15 = vsyncpa %s14, 0
    %16 = vsyncpa [#allocation11], 0
    %17 = vsyncpa [#allocation14], 0
    %18 = vsyncpa [#allocation19], 0
    %19 = vsyncpa [#allocation9], 0
    %s20 = scalar_lea.sflag [#allocation9], 1
    %21 = vsyncpa %s20, 0
    loop: start=0, step=1, limit=4
    $region2: #{resnet_swin_forward.4} parent=1 // loop_pre_header
      _
    $region3: #{resnet_swin_forward.4} parent=1 // loop_header
      %s23 = sphi 0, %s27
      %p24 = scmp.ge.s32.totalorder %s23, 4
      %s30 = sphi 0, %s42
      %s31 = sphi 0, %s38
      %s32 = sphi 0, %s30
      %s33 = sphi 0, %s31
      %s34 = sphi 0, %s32
      %s35 = sphi 0, %s33
      %s45 = sphi 0, %s47
      %s48 = sphi 0, %s45
      %s49 = sphi 0, %s48
      %s65 = sphi 0, %s49
      %s71 = sphi 0, %s73
      %s74 = sphi 0, %s71
      %s75 = sphi 0, %s74
      %s91 = sphi 0, %s75
      %s97 = sphi 0, %s99
      %s100 = sphi 0, %s97
      %s101 = sphi 0, %s100
      %s117 = sphi 0, %s101
      %s121 = sphi 0, %s121
      %s123 = sphi 0, %s121
      %s124 = sphi 0, %s123
      %s138 = sphi 0, %s124
      %s144 = sphi 0, %s146
      %s147 = sphi 0, %s144
      %s148 = sphi 0, %s147
      %s164 = sphi 0, %s148
      %s168 = sphi 0, %s168
      %s170 = sphi 0, %s168
      %s171 = sphi 0, %s170
      %s185 = sphi 0, %s171
      %s189 = sphi 0, %s189
      %s191 = sphi 0, %s189
      %s192 = sphi 0, %s191
      %s206 = sphi 0, %s192
      %s210 = sphi 0, %s210
      %s212 = sphi 0, %s210
      %s213 = sphi 0, %s212
      %s227 = sphi 0, %s213
      %s233 = sphi 0, %s235
      %s236 = sphi 0, %s233
      %s237 = sphi 0, %s236
      %s253 = sphi 0, %s237
    $region4: #{resnet_swin_forward.4} parent=1 // loop_header_branch
      %26 = sbr.rel (%p24) target = $region8
    $region5: #{resnet_swin_forward.4} parent=1 // loop_body
      %s28 = ssub.s32 %s23, 1
      %s29 = ssub.s32 %s23, 2
      %s36 = sadd.s32 1, %s31
      %p37 = scmp.ge.s32.totalorder %s36, 1
      %s38 = scalar_select %p37, 0, %s36
      %s39 = sadd.s32 1, %s30
      %s40 = scalar_select %p37, %s39, %s30
      %p41 = scmp.ge.s32.totalorder %s40, 2
      %s42 = scalar_select %p41, 0, %s40
      %s43 = ssub.s32 %s30, %s42
      %p44 = scmp.eq.s32.totalorder %s43, 0
      %s46 = sadd.s32 %s45, 1
      %s47 = scalar_select %p44, %s45, %s46
      %p50 = pneg %p44
      %p51 = scmp.eq.s32.totalorder %s23, 1
      %p52 = por %p50, %p51
      %p53 = scmp.ne.s32.totalorder %s45, %s48
      %p54 = scmp.eq.s32.totalorder %s23, 0
      %p55 = por %p53, %p54
      %p56 = scmp.ne.s32.totalorder %s45, %s48
      %p57 = scmp.eq.s32.totalorder %s28, 1
      %p58 = por %p56, %p57
      %p59 = scmp.ne.s32.totalorder %s48, %s49
      %p60 = scmp.eq.s32.totalorder %s28, 0
      %p61 = por %p59, %p60
      %p62 = scmp.ne.s32.totalorder %s48, %s49
      %p63 = scmp.eq.s32.totalorder %s29, 1
      %p64 = por %p62, %p63
      %p66 = scmp.ne.s32.totalorder %s49, %s65
      %p67 = scmp.eq.s32.totalorder %s29, 0
      %p68 = por %p66, %p67
      %s69 = ssub.s32 %s31, %s38
      %p70 = scmp.eq.s32.totalorder %s69, 0
      %s72 = sadd.s32 %s71, 1
      %s73 = scalar_select %p70, %s71, %s72
      %p76 = pneg %p70
      %p77 = scmp.eq.s32.totalorder %s23, 1
      %p78 = por %p76, %p77
      %p79 = scmp.ne.s32.totalorder %s71, %s74
      %p80 = scmp.eq.s32.totalorder %s23, 0
      %p81 = por %p79, %p80
      %p82 = scmp.ne.s32.totalorder %s71, %s74
      %p83 = scmp.eq.s32.totalorder %s28, 1
      %p84 = por %p82, %p83
      %p85 = scmp.ne.s32.totalorder %s74, %s75
      %p86 = scmp.eq.s32.totalorder %s28, 0
      %p87 = por %p85, %p86
      %p88 = scmp.ne.s32.totalorder %s74, %s75
      %p89 = scmp.eq.s32.totalorder %s29, 1
      %p90 = por %p88, %p89
      %p92 = scmp.ne.s32.totalorder %s75, %s91
      %p93 = scmp.eq.s32.totalorder %s29, 0
      %p94 = por %p92, %p93
      %s95 = ssub.s32 %s31, %s38
      %p96 = scmp.eq.s32.totalorder %s95, 0
      %s98 = sadd.s32 %s97, 1
      %s99 = scalar_select %p96, %s97, %s98
      %p102 = pneg %p96
      %p103 = scmp.eq.s32.totalorder %s23, 1
      %p104 = por %p102, %p103
      %p105 = scmp.ne.s32.totalorder %s97, %s100
      %p106 = scmp.eq.s32.totalorder %s23, 0
      %p107 = por %p105, %p106
      %p108 = scmp.ne.s32.totalorder %s97, %s100
      %p109 = scmp.eq.s32.totalorder %s28, 1
      %p110 = por %p108, %p109
      %p111 = scmp.ne.s32.totalorder %s100, %s101
      %p112 = scmp.eq.s32.totalorder %s28, 0
      %p113 = por %p111, %p112
      %p114 = scmp.ne.s32.totalorder %s100, %s101
      %p115 = scmp.eq.s32.totalorder %s29, 1
      %p116 = por %p114, %p115
      %p118 = scmp.ne.s32.totalorder %s101, %s117
      %p119 = scmp.eq.s32.totalorder %s29, 0
      %p120 = por %p118, %p119
      %s122 = sadd.s32 %s121, 1
      %p125 = scmp.eq.s32.totalorder %s23, 1
      %p126 = scmp.ne.s32.totalorder %s121, %s123
      %p127 = scmp.eq.s32.totalorder %s23, 0
      %p128 = por %p126, %p127
      %p129 = scmp.ne.s32.totalorder %s121, %s123
      %p130 = scmp.eq.s32.totalorder %s28, 1
      %p131 = por %p129, %p130
      %p132 = scmp.ne.s32.totalorder %s123, %s124
      %p133 = scmp.eq.s32.totalorder %s28, 0
      %p134 = por %p132, %p133
      %p135 = scmp.ne.s32.totalorder %s123, %s124
      %p136 = scmp.eq.s32.totalorder %s29, 1
      %p137 = por %p135, %p136
      %p139 = scmp.ne.s32.totalorder %s124, %s138
      %p140 = scmp.eq.s32.totalorder %s29, 0
      %p141 = por %p139, %p140
      %s142 = ssub.s32 %s30, %s42
      %p143 = scmp.eq.s32.totalorder %s142, 0
      %s145 = sadd.s32 %s144, 1
      %s146 = scalar_select %p143, %s144, %s145
      %p149 = pneg %p143
      %p150 = scmp.eq.s32.totalorder %s23, 1
      %p151 = por %p149, %p150
      %p152 = scmp.ne.s32.totalorder %s144, %s147
      %p153 = scmp.eq.s32.totalorder %s23, 0
      %p154 = por %p152, %p153
      %p155 = scmp.ne.s32.totalorder %s144, %s147
      %p156 = scmp.eq.s32.totalorder %s28, 1
      %p157 = por %p155, %p156
      %p158 = scmp.ne.s32.totalorder %s147, %s148
      %p159 = scmp.eq.s32.totalorder %s28, 0
      %p160 = por %p158, %p159
      %p161 = scmp.ne.s32.totalorder %s147, %s148
      %p162 = scmp.eq.s32.totalorder %s29, 1
      %p163 = por %p161, %p162
      %p165 = scmp.ne.s32.totalorder %s148, %s164
      %p166 = scmp.eq.s32.totalorder %s29, 0
      %p167 = por %p165, %p166
      %s169 = sadd.s32 %s168, 1
      %p172 = scmp.eq.s32.totalorder %s23, 1
      %p173 = scmp.ne.s32.totalorder %s168, %s170
      %p174 = scmp.eq.s32.totalorder %s23, 0
      %p175 = por %p173, %p174
      %p176 = scmp.ne.s32.totalorder %s168, %s170
      %p177 = scmp.eq.s32.totalorder %s28, 1
      %p178 = por %p176, %p177
      %p179 = scmp.ne.s32.totalorder %s170, %s171
      %p180 = scmp.eq.s32.totalorder %s28, 0
      %p181 = por %p179, %p180
      %p182 = scmp.ne.s32.totalorder %s170, %s171
      %p183 = scmp.eq.s32.totalorder %s29, 1
      %p184 = por %p182, %p183
      %p186 = scmp.ne.s32.totalorder %s171, %s185
      %p187 = scmp.eq.s32.totalorder %s29, 0
      %p188 = por %p186, %p187
      %s190 = sadd.s32 %s189, 1
      %p193 = scmp.eq.s32.totalorder %s23, 1
      %p194 = scmp.ne.s32.totalorder %s189, %s191
      %p195 = scmp.eq.s32.totalorder %s23, 0
      %p196 = por %p194, %p195
      %p197 = scmp.ne.s32.totalorder %s189, %s191
      %p198 = scmp.eq.s32.totalorder %s28, 1
      %p199 = por %p197, %p198
      %p200 = scmp.ne.s32.totalorder %s191, %s192
      %p201 = scmp.eq.s32.totalorder %s28, 0
      %p202 = por %p200, %p201
      %p203 = scmp.ne.s32.totalorder %s191, %s192
      %p204 = scmp.eq.s32.totalorder %s29, 1
      %p205 = por %p203, %p204
      %p207 = scmp.ne.s32.totalorder %s192, %s206
      %p208 = scmp.eq.s32.totalorder %s29, 0
      %p209 = por %p207, %p208
      %s211 = sadd.s32 %s210, 1
      %p214 = scmp.eq.s32.totalorder %s23, 1
      %p215 = scmp.ne.s32.totalorder %s210, %s212
      %p216 = scmp.eq.s32.totalorder %s23, 0
      %p217 = por %p215, %p216
      %p218 = scmp.ne.s32.totalorder %s210, %s212
      %p219 = scmp.eq.s32.totalorder %s28, 1
      %p220 = por %p218, %p219
      %p221 = scmp.ne.s32.totalorder %s212, %s213
      %p222 = scmp.eq.s32.totalorder %s28, 0
      %p223 = por %p221, %p222
      %p224 = scmp.ne.s32.totalorder %s212, %s213
      %p225 = scmp.eq.s32.totalorder %s29, 1
      %p226 = por %p224, %p225
      %p228 = scmp.ne.s32.totalorder %s213, %s227
      %p229 = scmp.eq.s32.totalorder %s29, 0
      %p230 = por %p228, %p229
      %s231 = ssub.s32 %s30, %s42
      %p232 = scmp.eq.s32.totalorder %s231, 0
      %s234 = sadd.s32 %s233, 1
      %s235 = scalar_select %p232, %s233, %s234
      %p238 = pneg %p232
      %p239 = scmp.eq.s32.totalorder %s23, 1
      %p240 = por %p238, %p239
      %p241 = scmp.ne.s32.totalorder %s233, %s236
      %p242 = scmp.eq.s32.totalorder %s23, 0
      %p243 = por %p241, %p242
      %p244 = scmp.ne.s32.totalorder %s233, %s236
      %p245 = scmp.eq.s32.totalorder %s28, 1
      %p246 = por %p244, %p245
      %p247 = scmp.ne.s32.totalorder %s236, %s237
      %p248 = scmp.eq.s32.totalorder %s28, 0
      %p249 = por %p247, %p248
      %p250 = scmp.ne.s32.totalorder %s236, %s237
      %p251 = scmp.eq.s32.totalorder %s29, 1
      %p252 = por %p250, %p251
      %p254 = scmp.ne.s32.totalorder %s237, %s253
      %p255 = scmp.eq.s32.totalorder %s29, 0
      %p256 = por %p254, %p255
      %p257 = scmp.le.s32.totalorder 1, %s23
      %p258 = scmp.lt.s32.totalorder %s23, 3
      %p259 = pnand %p257, %p258
      %p260 = pneg %p259
      // Predicated region
      $region9: #{resnet_swin_forward.4} parent=5 // pred_check
        _
      $region10: #{resnet_swin_forward.4} parent=5 // pred_check_branch
        %262 = sbr.rel (%p259) target = $region12
      $region11: #{resnet_swin_forward.4} parent=5 // pred_region
        %s263 = ssub.s32 %s23, 1
        // Predicated region
        $region13: #{resnet_swin_forward.4} parent=11 // pred_check
          %p264 = pneg %p87
        $region14: #{resnet_swin_forward.4} parent=11 // pred_check_branch
          %266 = sbr.rel (%p264) target = $region16
        $region15: #{resnet_swin_forward.4} parent=11 // pred_region
          %s268 = ssub.s32 9216, 9216
          %269 = vsyncadd [#allocation11], %s268
          %s270 = smul.addr %s33, 64
          %s271 = scalar_lea.hbm %s1, %s270
          %s272 = sshll.u32 [#allocation10], 4
          %s273 = int_to_ptr.vmem [resolvable:$true] %s272
          %278 = dma.hbm_to_vmem [thread:$0]  %s271, 9216, %s273, [#allocation11], 64, 64, 4
        $region16: #{resnet_swin_forward.4} parent=11 // pred_fallthru
          _
        // Predicated region
        $region17: #{resnet_swin_forward.4} parent=11 // pred_check
          %p279 = pneg %p113
        $region18: #{resnet_swin_forward.4} parent=11 // pred_check_branch
          %281 = sbr.rel (%p279) target = $region20
        $region19: #{resnet_swin_forward.4} parent=11 // pred_region
          %s283 = ssub.s32 9216, 9216
          %284 = vsyncadd [#allocation11], %s283
          %s285 = smul.addr %s33, 144
          %s286 = smul.addr %s285, 64
          %s287 = scalar_lea.hbm %s2, %s286
          %s288 = sshll.u32 [#allocation12], 4
          %s289 = int_to_ptr.vmem [resolvable:$true] %s288
          %294 = dma.hbm_to_vmem [thread:$0]  %s287, 9216, %s289, [#allocation11], 64, 64, 4
        $region20: #{resnet_swin_forward.4} parent=11 // pred_fallthru
          _
        // Predicated region
        $region21: #{resnet_swin_forward.4} parent=11 // pred_check
          %p295 = pneg %p134
        $region22: #{resnet_swin_forward.4} parent=11 // pred_check_branch
          %297 = sbr.rel (%p295) target = $region24
        $region23: #{resnet_swin_forward.4} parent=11 // pred_region
          %s299 = ssub.s32 1024, 1024
          %300 = vsyncadd [#allocation14], %s299
          %s301 = sshll.u32 [#allocation13], 4
          %s302 = int_to_ptr.vmem [resolvable:$true] %s301
          %307 = dma.hbm_to_vmem [thread:$0]  %s3, 1024, %s302, [#allocation14], 64, 64, 4
        $region24: #{resnet_swin_forward.4} parent=11 // pred_fallthru
          _
        // Predicated region
        $region25: #{resnet_swin_forward.4} parent=11 // pred_check
          %p308 = pneg %p181
        $region26: #{resnet_swin_forward.4} parent=11 // pred_check_branch
          %310 = sbr.rel (%p308) target = $region28
        $region27: #{resnet_swin_forward.4} parent=11 // pred_region
          %s312 = ssub.s32 16, 16
          %313 = vsyncadd [#allocation11], %s312
          %s315 = sshll.u32 [#allocation16], 4
          %s316 = int_to_ptr.vmem [resolvable:$true] %s315
          %318 = dma.hbm_to_vmem [thread:$0]  %s5, 16, %s316, [#allocation11]
        $region28: #{resnet_swin_forward.4} parent=11 // pred_fallthru
          _
        // Predicated region
        $region29: #{resnet_swin_forward.4} parent=11 // pred_check
          %p319 = pneg %p202
        $region30: #{resnet_swin_forward.4} parent=11 // pred_check_branch
          %321 = sbr.rel (%p319) target = $region32
        $region31: #{resnet_swin_forward.4} parent=11 // pred_region
          %s323 = ssub.s32 16, 16
          %324 = vsyncadd [#allocation14], %s323
          %s326 = sshll.u32 [#allocation17], 4
          %s327 = int_to_ptr.vmem [resolvable:$true] %s326
          %329 = dma.hbm_to_vmem [thread:$0]  %s6, 16, %s327, [#allocation14]
        $region32: #{resnet_swin_forward.4} parent=11 // pred_fallthru
          _
        // Predicated region
        $region33: #{resnet_swin_forward.4} parent=11 // pred_check
          %p330 = pneg %p223
        $region34: #{resnet_swin_forward.4} parent=11 // pred_check_branch
          %332 = sbr.rel (%p330) target = $region36
        $region35: #{resnet_swin_forward.4} parent=11 // pred_region
          %s334 = ssub.s32 2048, 2048
          %335 = vsyncadd [#allocation19], %s334
          %s336 = sshll.u32 [#allocation18], 4
          %s337 = int_to_ptr.vmem [resolvable:$true] %s336
          %342 = dma.hbm_to_vmem [thread:$0]  %s7, 2048, %s337, [#allocation19], 128, 128, 8
        $region36: #{resnet_swin_forward.4} parent=11 // pred_fallthru
          _
      $region12: #{resnet_swin_forward.4} parent=5 // pred_fallthru
        _
      %p343 = scmp.lt.s32.totalorder %s23, 2
      // Predicated region
      $region37: #{resnet_swin_forward.4} parent=5 // pred_check
        %p344 = pneg %p343
      $region38: #{resnet_swin_forward.4} parent=5 // pred_check_branch
        %346 = sbr.rel (%p344) target = $region40
      $region39: #{resnet_swin_forward.4} parent=5 // pred_region
        // Predicated region
        $region41: #{resnet_swin_forward.4} parent=39 // pred_check
          %p347 = pneg %p55
        $region42: #{resnet_swin_forward.4} parent=39 // pred_check_branch
          %349 = sbr.rel (%p347) target = $region44
        $region43: #{resnet_swin_forward.4} parent=39 // pred_region
          %s350 = sand.u32 %s23, 1
          %s351 = scalar_lea.sflag [#allocation8], %s350
          %s352 = sand.u32 %s45, 1
          %s353 = smul.addr %s352, 88
          %s354 = scalar_lea.vmem [#allocation7], %s353
          %s356 = ssub.s32 1408, 1408
          %357 = vsyncadd %s351, %s356
          %s358 = smul.addr %s30, 22
          %s359 = smul.addr %s358, 64
          %s360 = scalar_lea.hbm %s0, %s359
          %s361 = sshll.u32 %s354, 4
          %s362 = int_to_ptr.vmem [resolvable:$true] %s361
          %367 = dma.hbm_to_vmem [thread:$0]  %s360, 1408, %s362, %s351, 64, 64, 4
        $region44: #{resnet_swin_forward.4} parent=39 // pred_fallthru
          _
        // Predicated region
        $region45: #{resnet_swin_forward.4} parent=39 // pred_check
          %p368 = pneg %p154
        $region46: #{resnet_swin_forward.4} parent=39 // pred_check_branch
          %370 = sbr.rel (%p368) target = $region48
        $region47: #{resnet_swin_forward.4} parent=39 // pred_region
          %s371 = sand.u32 %s23, 1
          %s372 = scalar_lea.sflag [#allocation8], %s371
          %s373 = sand.u32 %s144, 1
          %s374 = smul.addr %s373, 32
          %s375 = scalar_lea.vmem [#allocation15], %s374
          %s377 = ssub.s32 512, 512
          %378 = vsyncadd %s372, %s377
          %s379 = smul.addr %s30, 8
          %s380 = smul.addr %s379, 64
          %s381 = scalar_lea.hbm %s4, %s380
          %s382 = sshll.u32 %s375, 4
          %s383 = int_to_ptr.vmem [resolvable:$true] %s382
          %388 = dma.hbm_to_vmem [thread:$0]  %s381, 512, %s383, %s372, 64, 64, 4
        $region48: #{resnet_swin_forward.4} parent=39 // pred_fallthru
          _
      $region40: #{resnet_swin_forward.4} parent=5 // pred_fallthru
        _
      %p389 = scmp.le.s32.totalorder 1, %s23
      %p390 = scmp.lt.s32.totalorder %s23, 3
      %p391 = pnand %p389, %p390
      %p392 = pneg %p391
      // Predicated region
      $region49: #{resnet_swin_forward.4} parent=5 // pred_check
        _
      $region50: #{resnet_swin_forward.4} parent=5 // pred_check_branch
        %394 = sbr.rel (%p391) target = $region52
      $region51: #{resnet_swin_forward.4} parent=5 // pred_region
        %s395 = ssub.s32 %s23, 1
        %s396 = sand.u32 %s28, 1
        %s397 = scalar_lea.sflag [#allocation8], %s396
        %s398 = sand.u32 %s48, 1
        %s399 = smul.addr %s398, 88
        %s400 = scalar_lea.vmem [#allocation7], %s399
        // Predicated region
        $region53: #{resnet_swin_forward.4} parent=51 // pred_check
          %p401 = pneg %p61
        $region54: #{resnet_swin_forward.4} parent=51 // pred_check_branch
          %403 = sbr.rel (%p401) target = $region56
        $region55: #{resnet_swin_forward.4} parent=51 // pred_region
          %404 = dma.done %s397, 1408
        $region56: #{resnet_swin_forward.4} parent=51 // pred_fallthru
          _
        // Predicated region
        $region57: #{resnet_swin_forward.4} parent=51 // pred_check
          %p405 = pneg %p87
        $region58: #{resnet_swin_forward.4} parent=51 // pred_check_branch
          %407 = sbr.rel (%p405) target = $region60
        $region59: #{resnet_swin_forward.4} parent=51 // pred_region
          %408 = dma.done [#allocation11], 9216
        $region60: #{resnet_swin_forward.4} parent=51 // pred_fallthru
          _
        // Predicated region
        $region61: #{resnet_swin_forward.4} parent=51 // pred_check
          %p409 = pneg %p113
        $region62: #{resnet_swin_forward.4} parent=51 // pred_check_branch
          %411 = sbr.rel (%p409) target = $region64
        $region63: #{resnet_swin_forward.4} parent=51 // pred_region
          %412 = dma.done [#allocation11], 9216
        $region64: #{resnet_swin_forward.4} parent=51 // pred_fallthru
          _
        // Predicated region
        $region65: #{resnet_swin_forward.4} parent=51 // pred_check
          %p413 = pneg %p134
        $region66: #{resnet_swin_forward.4} parent=51 // pred_check_branch
          %415 = sbr.rel (%p413) target = $region68
        $region67: #{resnet_swin_forward.4} parent=51 // pred_region
          %416 = dma.done [#allocation14], 1024
        $region68: #{resnet_swin_forward.4} parent=51 // pred_fallthru
          _
        %s417 = sand.u32 %s28, 1
        %s418 = scalar_lea.sflag [#allocation8], %s417
        %s419 = sand.u32 %s147, 1
        %s420 = smul.addr %s419, 32
        %s421 = scalar_lea.vmem [#allocation15], %s420
        // Predicated region
        $region69: #{resnet_swin_forward.4} parent=51 // pred_check
          %p422 = pneg %p160
        $region70: #{resnet_swin_forward.4} parent=51 // pred_check_branch
          %424 = sbr.rel (%p422) target = $region72
        $region71: #{resnet_swin_forward.4} parent=51 // pred_region
          %425 = dma.done %s418, 512
        $region72: #{resnet_swin_forward.4} parent=51 // pred_fallthru
          _
        // Predicated region
        $region73: #{resnet_swin_forward.4} parent=51 // pred_check
          %p426 = pneg %p181
        $region74: #{resnet_swin_forward.4} parent=51 // pred_check_branch
          %428 = sbr.rel (%p426) target = $region76
        $region75: #{resnet_swin_forward.4} parent=51 // pred_region
          %429 = dma.done [#allocation11], 16
        $region76: #{resnet_swin_forward.4} parent=51 // pred_fallthru
          _
        // Predicated region
        $region77: #{resnet_swin_forward.4} parent=51 // pred_check
          %p430 = pneg %p202
        $region78: #{resnet_swin_forward.4} parent=51 // pred_check_branch
          %432 = sbr.rel (%p430) target = $region80
        $region79: #{resnet_swin_forward.4} parent=51 // pred_region
          %433 = dma.done [#allocation14], 16
        $region80: #{resnet_swin_forward.4} parent=51 // pred_fallthru
          _
        // Predicated region
        $region81: #{resnet_swin_forward.4} parent=51 // pred_check
          %p434 = pneg %p223
        $region82: #{resnet_swin_forward.4} parent=51 // pred_check_branch
          %436 = sbr.rel (%p434) target = $region84
        $region83: #{resnet_swin_forward.4} parent=51 // pred_region
          %437 = dma.done [#allocation19], 2048
        $region84: #{resnet_swin_forward.4} parent=51 // pred_fallthru
          _
        %s438 = sand.u32 %s28, 1
        %s439 = scalar_lea.sflag [#allocation8], %s438
        %s440 = sand.u32 %s48, 1
        %s441 = smul.addr %s440, 88
        %s442 = scalar_lea.vmem [#allocation7], %s441
        %p443 = pneg %p61
        %p444 = pneg %p58
        %p445 = pneg %p87
        %p446 = pneg %p84
        %p447 = pneg %p113
        %p448 = pneg %p110
        %p449 = pneg %p134
        %p450 = pneg %p131
        %s451 = sand.u32 %s28, 1
        %s452 = scalar_lea.sflag [#allocation8], %s451
        %s453 = sand.u32 %s147, 1
        %s454 = smul.addr %s453, 32
        %s455 = scalar_lea.vmem [#allocation15], %s454
        %p456 = pneg %p160
        %p457 = pneg %p157
        %p458 = pneg %p181
        %p459 = pneg %p178
        %p460 = pneg %p202
        %p461 = pneg %p199
        %p462 = pneg %p223
        %p463 = pneg %p220
        %p464 = pneg %p249
        %p465 = pneg %p246
        %s466 = sand.u32 %s236, 1
        %s467 = scalar_lea.sflag [#allocation9], %s466
        %s468 = sand.u32 %s236, 1
        %s469 = smul.addr %s468, 32
        %s470 = scalar_lea.vmem [#allocation20], %s469
        %p472 = scmp.eq.s32.totalorder %s33, 0
        // Predicated region
        $region85: #{resnet_swin_forward.4} parent=51 // pred_check
          %p473 = pneg %p472
        $region86: #{resnet_swin_forward.4} parent=51 // pred_check_branch
          %475 = sbr.rel (%p473) target = $region88
        $region87: #{resnet_swin_forward.4} parent=51 // pred_region
          %v476 = vld [vmem:[%s400] sm:$0x8]
          %v477 = vld [vmem:[%s400 + $0x4] sm:$0xf]
          %v478 = vld [vmem:[%s400 + $0x8] sm:$0xf]
          %v479 = vld [vmem:[%s400 + $0xc] sm:$0xf]
          %v480 = vld [vmem:[%s400 + $0x10] sm:$0xf]
          %v481 = vld [vmem:[%s400 + $0x14] sm:$0xf]
          %v482 = vld [vmem:[%s400 + $0x18] sm:$0xf]
          %v483 = vld [vmem:[%s400 + $0x1c] sm:$0xf]
          %v484 = vld [vmem:[%s400 + $0x20] sm:$0xf]
          %v485 = vld [vmem:[%s400 + $0x24] sm:$0xf]
          %v486 = vld [vmem:[%s400 + $0x28] sm:$0xf]
          %v487 = vld [vmem:[%s400 + $0x2c] sm:$0xf]
          %v488 = vld [vmem:[%s400 + $0x30] sm:$0xf]
          %v489 = vld [vmem:[%s400 + $0x34] sm:$0xf]
          %v490 = vld [vmem:[%s400 + $0x38] sm:$0xf]
          %v491 = vld [vmem:[%s400 + $0x3c] sm:$0xf]
          %v492 = vld [vmem:[%s400 + $0x40] sm:$0xf]
          %v493 = vld [vmem:[%s400 + $0x44] sm:$0xf]
          %v494 = vld [vmem:[%s400 + $0x48] sm:$0xf]
          %v495 = vld [vmem:[%s400 + $0x4c] sm:$0xf]
          %v496 = vld [vmem:[%s400 + $0x50] sm:$0xf]
          %v518 = vunpack.c.l.b16 %v476
          %v519 = vunpack.c.l.b16 %v477
          %v520 = vunpack.c.l.b16 %v478
          %v521 = vunpack.c.l.b16 %v479
          %v522 = vunpack.c.l.b16 %v480
          %v523 = vunpack.c.l.b16 %v481
          %v524 = vunpack.c.l.b16 %v482
          %v525 = vunpack.c.l.b16 %v483
          %v526 = vunpack.c.l.b16 %v484
          %v527 = vunpack.c.l.b16 %v485
          %v528 = vunpack.c.l.b16 %v486
          %v529 = vunpack.c.l.b16 %v487
          %v530 = vunpack.c.l.b16 %v488
          %v531 = vunpack.c.l.b16 %v489
          %v532 = vunpack.c.l.b16 %v490
          %v533 = vunpack.c.l.b16 %v491
          %v534 = vunpack.c.l.b16 %v492
          %v535 = vunpack.c.l.b16 %v493
          %v536 = vunpack.c.l.b16 %v494
          %v537 = vunpack.c.l.b16 %v495
          %v538 = vunpack.c.l.b16 %v496
          %v539 = vpack.c.b16 %v519, %v518
          %v540 = vpack.c.b16 %v521, %v520
          %v541 = vpack.c.b16 %v523, %v522
          %v542 = vpack.c.b16 %v525, %v524
          %v543 = vpack.c.b16 %v527, %v526
          %v544 = vpack.c.b16 %v529, %v528
          %v545 = vpack.c.b16 %v531, %v530
          %v546 = vpack.c.b16 %v533, %v532
          %v547 = vpack.c.b16 %v535, %v534
          %v548 = vpack.c.b16 %v537, %v536
          %v549 = vpack.c.b16 %v538, %v538
          %vm550 = vsmask.f32 4352
          %v552 = vshrl.u32 %v539, 16
          %v554 = vrot.slane %v552, 3
          %v555 = vshll.u32 %v539, 16
          %v557 = vrot.slane %v555, 4
          %v558 = vor.u32 %v554, %v557
          %v560 = vshrl.u32 %v540, 16
          %v562 = vrot.slane %v560, 3
          %v563 = vshll.u32 %v540, 16
          %v565 = vrot.slane %v563, 4
          %v566 = vor.u32 %v562, %v565
          %v567 = vsel %vm550, %v558, %v566
          %v569 = vshrl.u32 %v541, 16
          %v571 = vrot.slane %v569, 3
          %v572 = vshll.u32 %v541, 16
          %v574 = vrot.slane %v572, 4
          %v575 = vor.u32 %v571, %v574
          %v576 = vsel %vm550, %v566, %v575
          %v578 = vshrl.u32 %v542, 16
          %v580 = vrot.slane %v578, 3
          %v581 = vshll.u32 %v542, 16
          %v583 = vrot.slane %v581, 4
          %v584 = vor.u32 %v580, %v583
          %v585 = vsel %vm550, %v575, %v584
          %v587 = vshrl.u32 %v543, 16
          %v589 = vrot.slane %v587, 3
          %v590 = vshll.u32 %v543, 16
          %v592 = vrot.slane %v590, 4
          %v593 = vor.u32 %v589, %v592
          %v594 = vsel %vm550, %v584, %v593
          %v596 = vshrl.u32 %v544, 16
          %v598 = vrot.slane %v596, 3
          %v599 = vshll.u32 %v544, 16
          %v601 = vrot.slane %v599, 4
          %v602 = vor.u32 %v598, %v601
          %v603 = vsel %vm550, %v593, %v602
          %v605 = vshrl.u32 %v545, 16
          %v607 = vrot.slane %v605, 3
          %v608 = vshll.u32 %v545, 16
          %v610 = vrot.slane %v608, 4
          %v611 = vor.u32 %v607, %v610
          %v612 = vsel %vm550, %v602, %v611
          %v614 = vshrl.u32 %v546, 16
          %v616 = vrot.slane %v614, 3
          %v617 = vshll.u32 %v546, 16
          %v619 = vrot.slane %v617, 4
          %v620 = vor.u32 %v616, %v619
          %v621 = vsel %vm550, %v611, %v620
          %v623 = vshrl.u32 %v547, 16
          %v625 = vrot.slane %v623, 3
          %v626 = vshll.u32 %v547, 16
          %v628 = vrot.slane %v626, 4
          %v629 = vor.u32 %v625, %v628
          %v630 = vsel %vm550, %v620, %v629
          %v632 = vshrl.u32 %v548, 16
          %v634 = vrot.slane %v632, 3
          %v635 = vshll.u32 %v548, 16
          %v637 = vrot.slane %v635, 4
          %v638 = vor.u32 %v634, %v637
          %v639 = vsel %vm550, %v629, %v638
          %v641 = vshrl.u32 %v549, 16
          %v643 = vrot.slane %v641, 3
          %v644 = vshll.u32 %v549, 16
          %v646 = vrot.slane %v644, 4
          %v647 = vor.u32 %v643, %v646
          %v648 = vsel %vm550, %v638, %v647
          %659 = vst [vmem:[#allocation2] sm:$0xff] %v567
          %660 = vst [vmem:[#allocation2 + $0x8] sm:$0xff] %v576
          %661 = vst [vmem:[#allocation2 + $0x10] sm:$0xff] %v585
          %662 = vst [vmem:[#allocation2 + $0x18] sm:$0xff] %v594
          %663 = vst [vmem:[#allocation2 + $0x20] sm:$0xff] %v603
          %664 = vst [vmem:[#allocation2 + $0x28] sm:$0xff] %v612
          %665 = vst [vmem:[#allocation2 + $0x30] sm:$0xff] %v621
          %666 = vst [vmem:[#allocation2 + $0x38] sm:$0xff] %v630
          %667 = vst [vmem:[#allocation2 + $0x40] sm:$0xff] %v639
          %668 = vst [vmem:[#allocation2 + $0x48] sm:$0xff] %v648
          %v669 = vld [vmem:[%s400 + $0x4] sm:$0xf]
          %v670 = vld [vmem:[%s400 + $0x8] sm:$0xf]
          %v671 = vld [vmem:[%s400 + $0xc] sm:$0xf]
          %v672 = vld [vmem:[%s400 + $0x10] sm:$0xf]
          %v673 = vld [vmem:[%s400 + $0x14] sm:$0xf]
          %v674 = vld [vmem:[%s400 + $0x18] sm:$0xf]
          %v675 = vld [vmem:[%s400 + $0x1c] sm:$0xf]
          %v676 = vld [vmem:[%s400 + $0x20] sm:$0xf]
          %v677 = vld [vmem:[%s400 + $0x24] sm:$0xf]
          %v678 = vld [vmem:[%s400 + $0x28] sm:$0xf]
          %v679 = vld [vmem:[%s400 + $0x2c] sm:$0xf]
          %v680 = vld [vmem:[%s400 + $0x30] sm:$0xf]
          %v681 = vld [vmem:[%s400 + $0x34] sm:$0xf]
          %v682 = vld [vmem:[%s400 + $0x38] sm:$0xf]
          %v683 = vld [vmem:[%s400 + $0x3c] sm:$0xf]
          %v684 = vld [vmem:[%s400 + $0x40] sm:$0xf]
          %v685 = vld [vmem:[%s400 + $0x44] sm:$0xf]
          %v686 = vld [vmem:[%s400 + $0x48] sm:$0xf]
          %v687 = vld [vmem:[%s400 + $0x4c] sm:$0xf]
          %v688 = vld [vmem:[%s400 + $0x50] sm:$0xf]
          %v709 = vunpack.c.l.b16 %v669
          %v710 = vunpack.c.l.b16 %v670
          %v711 = vunpack.c.l.b16 %v671
          %v712 = vunpack.c.l.b16 %v672
          %v713 = vunpack.c.l.b16 %v673
          %v714 = vunpack.c.l.b16 %v674
          %v715 = vunpack.c.l.b16 %v675
          %v716 = vunpack.c.l.b16 %v676
          %v717 = vunpack.c.l.b16 %v677
          %v718 = vunpack.c.l.b16 %v678
          %v719 = vunpack.c.l.b16 %v679
          %v720 = vunpack.c.l.b16 %v680
          %v721 = vunpack.c.l.b16 %v681
          %v722 = vunpack.c.l.b16 %v682
          %v723 = vunpack.c.l.b16 %v683
          %v724 = vunpack.c.l.b16 %v684
          %v725 = vunpack.c.l.b16 %v685
          %v726 = vunpack.c.l.b16 %v686
          %v727 = vunpack.c.l.b16 %v687
          %v728 = vunpack.c.l.b16 %v688
          %v729 = vpack.c.b16 %v710, %v709
          %v730 = vpack.c.b16 %v712, %v711
          %v731 = vpack.c.b16 %v714, %v713
          %v732 = vpack.c.b16 %v716, %v715
          %v733 = vpack.c.b16 %v718, %v717
          %v734 = vpack.c.b16 %v720, %v719
          %v735 = vpack.c.b16 %v722, %v721
          %v736 = vpack.c.b16 %v724, %v723
          %v737 = vpack.c.b16 %v726, %v725
          %v738 = vpack.c.b16 %v728, %v727
          %s749 = scalar_lea.vmem [#allocation2], 80
          %750 = vst [vmem:[%s749] sm:$0xff] %v729
          %751 = vst [vmem:[%s749 + $0x8] sm:$0xff] %v730
          %752 = vst [vmem:[%s749 + $0x10] sm:$0xff] %v731
          %753 = vst [vmem:[%s749 + $0x18] sm:$0xff] %v732
          %754 = vst [vmem:[%s749 + $0x20] sm:$0xff] %v733
          %755 = vst [vmem:[%s749 + $0x28] sm:$0xff] %v734
          %756 = vst [vmem:[%s749 + $0x30] sm:$0xff] %v735
          %757 = vst [vmem:[%s749 + $0x38] sm:$0xff] %v736
          %758 = vst [vmem:[%s749 + $0x40] sm:$0xff] %v737
          %759 = vst [vmem:[%s749 + $0x48] sm:$0xff] %v738
          %v760 = vld [vmem:[%s400 + $0x4] sm:$0xf]
          %v761 = vld [vmem:[%s400 + $0x8] sm:$0xf]
          %v762 = vld [vmem:[%s400 + $0xc] sm:$0xf]
          %v763 = vld [vmem:[%s400 + $0x10] sm:$0xf]
          %v764 = vld [vmem:[%s400 + $0x14] sm:$0xf]
          %v765 = vld [vmem:[%s400 + $0x18] sm:$0xf]
          %v766 = vld [vmem:[%s400 + $0x1c] sm:$0xf]
          %v767 = vld [vmem:[%s400 + $0x20] sm:$0xf]
          %v768 = vld [vmem:[%s400 + $0x24] sm:$0xf]
          %v769 = vld [vmem:[%s400 + $0x28] sm:$0xf]
          %v770 = vld [vmem:[%s400 + $0x2c] sm:$0xf]
          %v771 = vld [vmem:[%s400 + $0x30] sm:$0xf]
          %v772 = vld [vmem:[%s400 + $0x34] sm:$0xf]
          %v773 = vld [vmem:[%s400 + $0x38] sm:$0xf]
          %v774 = vld [vmem:[%s400 + $0x3c] sm:$0xf]
          %v775 = vld [vmem:[%s400 + $0x40] sm:$0xf]
          %v776 = vld [vmem:[%s400 + $0x44] sm:$0xf]
          %v777 = vld [vmem:[%s400 + $0x48] sm:$0xf]
          %v778 = vld [vmem:[%s400 + $0x4c] sm:$0xf]
          %v779 = vld [vmem:[%s400 + $0x50] sm:$0xf]
          %v780 = vld [vmem:[%s400 + $0x54] sm:$0x1]
          %v802 = vunpack.c.l.b16 %v760
          %v803 = vunpack.c.l.b16 %v761
          %v804 = vunpack.c.l.b16 %v762
          %v805 = vunpack.c.l.b16 %v763
          %v806 = vunpack.c.l.b16 %v764
          %v807 = vunpack.c.l.b16 %v765
          %v808 = vunpack.c.l.b16 %v766
          %v809 = vunpack.c.l.b16 %v767
          %v810 = vunpack.c.l.b16 %v768
          %v811 = vunpack.c.l.b16 %v769
          %v812 = vunpack.c.l.b16 %v770
          %v813 = vunpack.c.l.b16 %v771
          %v814 = vunpack.c.l.b16 %v772
          %v815 = vunpack.c.l.b16 %v773
          %v816 = vunpack.c.l.b16 %v774
          %v817 = vunpack.c.l.b16 %v775
          %v818 = vunpack.c.l.b16 %v776
          %v819 = vunpack.c.l.b16 %v777
          %v820 = vunpack.c.l.b16 %v778
          %v821 = vunpack.c.l.b16 %v779
          %v822 = vunpack.c.l.b16 %v780
          %v823 = vpack.c.b16 %v803, %v802
          %v824 = vpack.c.b16 %v805, %v804
          %v825 = vpack.c.b16 %v807, %v806
          %v826 = vpack.c.b16 %v809, %v808
          %v827 = vpack.c.b16 %v811, %v810
          %v828 = vpack.c.b16 %v813, %v812
          %v829 = vpack.c.b16 %v815, %v814
          %v830 = vpack.c.b16 %v817, %v816
          %v831 = vpack.c.b16 %v819, %v818
          %v832 = vpack.c.b16 %v821, %v820
          %v833 = vpack.c.b16 %v822, %v822
          %vm834 = vsmask.f32 7424
          %v836 = vshrl.u32 %v823, 16
          %v838 = vshll.u32 %v823, 16
          %v840 = vrot.slane %v838, 1
          %v841 = vor.u32 %v836, %v840
          %v843 = vshll.u32 %v824, 16
          %v845 = vrot.slane %v843, 1
          %v846 = vsel %vm834, %v841, %v845
          %v847 = vshrl.u32 %v824, 16
          %v849 = vor.u32 %v847, %v845
          %v851 = vshll.u32 %v825, 16
          %v853 = vrot.slane %v851, 1
          %v854 = vsel %vm834, %v849, %v853
          %v855 = vshrl.u32 %v825, 16
          %v857 = vor.u32 %v855, %v853
          %v859 = vshll.u32 %v826, 16
          %v861 = vrot.slane %v859, 1
          %v862 = vsel %vm834, %v857, %v861
          %v863 = vshrl.u32 %v826, 16
          %v865 = vor.u32 %v863, %v861
          %v867 = vshll.u32 %v827, 16
          %v869 = vrot.slane %v867, 1
          %v870 = vsel %vm834, %v865, %v869
          %v871 = vshrl.u32 %v827, 16
          %v873 = vor.u32 %v871, %v869
          %v875 = vshll.u32 %v828, 16
          %v877 = vrot.slane %v875, 1
          %v878 = vsel %vm834, %v873, %v877
          %v879 = vshrl.u32 %v828, 16
          %v881 = vor.u32 %v879, %v877
          %v883 = vshll.u32 %v829, 16
          %v885 = vrot.slane %v883, 1
          %v886 = vsel %vm834, %v881, %v885
          %v887 = vshrl.u32 %v829, 16
          %v889 = vor.u32 %v887, %v885
          %v891 = vshll.u32 %v830, 16
          %v893 = vrot.slane %v891, 1
          %v894 = vsel %vm834, %v889, %v893
          %v895 = vshrl.u32 %v830, 16
          %v897 = vor.u32 %v895, %v893
          %v899 = vshll.u32 %v831, 16
          %v901 = vrot.slane %v899, 1
          %v902 = vsel %vm834, %v897, %v901
          %v903 = vshrl.u32 %v831, 16
          %v905 = vor.u32 %v903, %v901
          %v907 = vshll.u32 %v832, 16
          %v909 = vrot.slane %v907, 1
          %v910 = vsel %vm834, %v905, %v909
          %v911 = vshrl.u32 %v832, 16
          %v913 = vor.u32 %v911, %v909
          %v915 = vshll.u32 %v833, 16
          %v917 = vrot.slane %v915, 1
          %v918 = vsel %vm834, %v913, %v917
          %s929 = scalar_lea.vmem [#allocation2], 160
          %930 = vst [vmem:[%s929] sm:$0xff] %v846
          %931 = vst [vmem:[%s929 + $0x8] sm:$0xff] %v854
          %932 = vst [vmem:[%s929 + $0x10] sm:$0xff] %v862
          %933 = vst [vmem:[%s929 + $0x18] sm:$0xff] %v870
          %934 = vst [vmem:[%s929 + $0x20] sm:$0xff] %v878
          %935 = vst [vmem:[%s929 + $0x28] sm:$0xff] %v886
          %936 = vst [vmem:[%s929 + $0x30] sm:$0xff] %v894
          %937 = vst [vmem:[%s929 + $0x38] sm:$0xff] %v902
          %938 = vst [vmem:[%s929 + $0x40] sm:$0xff] %v910
          %939 = vst [vmem:[%s929 + $0x48] sm:$0xff] %v918
          %940 = vst [vmem:[#allocation3] sm:$0xff] 0
          %941 = vst [vmem:[#allocation3 + $0x8] sm:$0xff] 0
          %942 = vst [vmem:[#allocation3 + $0x10] sm:$0xff] 0
          %943 = vst [vmem:[#allocation3 + $0x18] sm:$0xff] 0
          %944 = vst [vmem:[#allocation3 + $0x20] sm:$0xff] 0
          %945 = vst [vmem:[#allocation3 + $0x28] sm:$0xff] 0
          %946 = vst [vmem:[#allocation3 + $0x30] sm:$0xff] 0
          %947 = vst [vmem:[#allocation3 + $0x38] sm:$0xff] 0
          %948 = vst [vmem:[#allocation3 + $0x40] sm:$0xff] 0
          %949 = vst [vmem:[#allocation3 + $0x48] sm:$0xff] 0
          %950 = vst [vmem:[#allocation3 + $0x50] sm:$0xff] 0
        $region88: #{resnet_swin_forward.4} parent=51 // pred_fallthru
          _
        %v951 = vld [vmem:[#allocation2] sm:$0xff]
        %v952 = vld [vmem:[#allocation2 + $0x8] sm:$0xff]
        %v953 = vld [vmem:[#allocation2 + $0x10] sm:$0xff]
        %v954 = vld [vmem:[#allocation2 + $0x18] sm:$0xff]
        %v955 = vld [vmem:[#allocation2 + $0x20] sm:$0xff]
        %v956 = vld [vmem:[#allocation2 + $0x28] sm:$0xff]
        %v957 = vld [vmem:[#allocation2 + $0x30] sm:$0xff]
        %v958 = vld [vmem:[#allocation2 + $0x38] sm:$0xff]
        %v959 = vld [vmem:[#allocation10] sm:$0xf]
        %v960 = vld [vmem:[#allocation10 + $0x4] sm:$0xf]
        %v961 = vld [vmem:[#allocation10 + $0x8] sm:$0xf]
        %v962 = vld [vmem:[#allocation10 + $0xc] sm:$0xf]
        %v963 = vld [vmem:[#allocation10 + $0x10] sm:$0xf]
        %v964 = vld [vmem:[#allocation10 + $0x14] sm:$0xf]
        %v965 = vld [vmem:[#allocation10 + $0x18] sm:$0xf]
        %v966 = vld [vmem:[#allocation10 + $0x1c] sm:$0xf]
        %v967 = vld [vmem:[#allocation10 + $0x20] sm:$0xf]
        %v968 = vld [vmem:[#allocation10 + $0x24] sm:$0xf]
        %v969 = vld [vmem:[#allocation10 + $0x28] sm:$0xf]
        %v970 = vld [vmem:[#allocation10 + $0x2c] sm:$0xf]
        %v971 = vld [vmem:[#allocation10 + $0x30] sm:$0xf]
        %v972 = vld [vmem:[#allocation10 + $0x34] sm:$0xf]
        %v973 = vld [vmem:[#allocation10 + $0x38] sm:$0xf]
        %v974 = vld [vmem:[#allocation10 + $0x3c] sm:$0xf]
        %s975 = scalar_lea.vmem [#allocation2], 80
        %v976 = vld [vmem:[%s975] sm:$0xff]
        %v977 = vld [vmem:[%s975 + $0x8] sm:$0xff]
        %v978 = vld [vmem:[%s975 + $0x10] sm:$0xff]
        %v979 = vld [vmem:[%s975 + $0x18] sm:$0xff]
        %v980 = vld [vmem:[%s975 + $0x20] sm:$0xff]
        %v981 = vld [vmem:[%s975 + $0x28] sm:$0xff]
        %v982 = vld [vmem:[%s975 + $0x30] sm:$0xff]
        %v983 = vld [vmem:[%s975 + $0x38] sm:$0xff]
        %s984 = scalar_lea.vmem [#allocation10], 64
        %v985 = vld [vmem:[%s984] sm:$0xf]
        %v986 = vld [vmem:[%s984 + $0x4] sm:$0xf]
        %v987 = vld [vmem:[%s984 + $0x8] sm:$0xf]
        %v988 = vld [vmem:[%s984 + $0xc] sm:$0xf]
        %v989 = vld [vmem:[%s984 + $0x10] sm:$0xf]
        %v990 = vld [vmem:[%s984 + $0x14] sm:$0xf]
        %v991 = vld [vmem:[%s984 + $0x18] sm:$0xf]
        %v992 = vld [vmem:[%s984 + $0x1c] sm:$0xf]
        %v993 = vld [vmem:[%s984 + $0x20] sm:$0xf]
        %v994 = vld [vmem:[%s984 + $0x24] sm:$0xf]
        %v995 = vld [vmem:[%s984 + $0x28] sm:$0xf]
        %v996 = vld [vmem:[%s984 + $0x2c] sm:$0xf]
        %v997 = vld [vmem:[%s984 + $0x30] sm:$0xf]
        %v998 = vld [vmem:[%s984 + $0x34] sm:$0xf]
        %v999 = vld [vmem:[%s984 + $0x38] sm:$0xf]
        %v1000 = vld [vmem:[%s984 + $0x3c] sm:$0xf]
        %v1017 = vunpack.c.l.b16 %v985
        %v1018 = vunpack.c.l.b16 %v986
        %v1019 = vunpack.c.l.b16 %v987
        %v1020 = vunpack.c.l.b16 %v988
        %v1021 = vunpack.c.l.b16 %v989
        %v1022 = vunpack.c.l.b16 %v990
        %v1023 = vunpack.c.l.b16 %v991
        %v1024 = vunpack.c.l.b16 %v992
        %v1025 = vunpack.c.l.b16 %v993
        %v1026 = vunpack.c.l.b16 %v994
        %v1027 = vunpack.c.l.b16 %v995
        %v1028 = vunpack.c.l.b16 %v996
        %v1029 = vunpack.c.l.b16 %v997
        %v1030 = vunpack.c.l.b16 %v998
        %v1031 = vunpack.c.l.b16 %v999
        %v1032 = vunpack.c.l.b16 %v1000
        %v1033 = vpack.c.b16 %v1018, %v1017
        %v1034 = vpack.c.b16 %v1020, %v1019
        %v1035 = vpack.c.b16 %v1022, %v1021
        %v1036 = vpack.c.b16 %v1024, %v1023
        %v1037 = vpack.c.b16 %v1026, %v1025
        %v1038 = vpack.c.b16 %v1028, %v1027
        %v1039 = vpack.c.b16 %v1030, %v1029
        %v1040 = vpack.c.b16 %v1032, %v1031
        %1049 = vmatprep.subr.bf16.mxu0 0
        %1050 = vmatpush1.bf16.msra.mxu0 %v1033
        %1051 = vmatprep.subr.bf16.mxu0 0
        %1052 = vmatpush1.bf16.msra.mxu0 %v1034
        %1053 = vmatprep.subr.bf16.mxu0 0
        %1054 = vmatpush1.bf16.msra.mxu0 %v1035
        %1055 = vmatprep.subr.bf16.mxu0 0
        %1056 = vmatpush1.bf16.msra.mxu0 %v1036
        %1057 = vmatprep.subr.bf16.mxu0 0
        %1058 = vmatpush1.bf16.msra.mxu0 %v1037
        %1059 = vmatprep.subr.bf16.mxu0 0
        %1060 = vmatpush1.bf16.msra.mxu0 %v1038
        %1061 = vmatprep.subr.bf16.mxu0 0
        %1062 = vmatpush1.bf16.msra.mxu0 %v1039
        %1063 = vmatprep.subr.bf16.mxu0 0
        %1064 = vmatpush1.bf16.msra.mxu0 %v1040
        %1065 = vmatprep.subr.bf16.mxu0 0
        %1066 = vmatpush1.bf16.msra.mxu0 0
        %1067 = vmatprep.subr.bf16.mxu0 0
        %1068 = vmatpush1.bf16.msra.mxu0 0
        %1069 = vmatprep.subr.bf16.mxu0 0
        %1070 = vmatpush1.bf16.msra.mxu0 0
        %1071 = vmatprep.subr.bf16.mxu0 0
        %1072 = vmatpush1.bf16.msra.mxu0 0
        %1073 = vmatprep.subr.bf16.mxu0 0
        %1074 = vmatpush1.bf16.msra.mxu0 0
        %1075 = vmatprep.subr.bf16.mxu0 0
        %1076 = vmatpush1.bf16.msra.mxu0 0
        %1077 = vmatprep.subr.bf16.mxu0 0
        %1078 = vmatpush1.bf16.msra.mxu0 0
        %1079 = vmatprep.subr.bf16.mxu0 0
        %1080 = vmatpush1.bf16.msra.mxu0 0
        %1081 = vmatprep.mubr.bf16.mxu0 0
        %1082 = vmatmul.mubr.bf16.gmra.mrb[0].mxu0 %v976
        %v1083 = vpop.f32.mrb[0].mxu0
        %v1084 = vadd.f32 0.0, %v1083
        %v1085 = vpop.f32.mrb[0].mxu0
        %v1086 = vpop.f32.mrb[0].mxu0
        %v1087 = vadd.f32 0.0, %v1086
        %v1088 = vpop.f32.mrb[0].mxu0
        %1089 = vmatprep.mubr.bf16.mxu0 0
        %1090 = vmatmul.mubr.bf16.gmra.mrb[0].mxu0 %v977
        %v1091 = vpop.f32.mrb[0].mxu0
        %v1092 = vadd.f32 0.0, %v1091
        %v1093 = vpop.f32.mrb[0].mxu0
        %v1094 = vpop.f32.mrb[0].mxu0
        %v1095 = vadd.f32 0.0, %v1094
        %v1096 = vpop.f32.mrb[0].mxu0
        %1097 = vmatprep.mubr.bf16.mxu0 0
        %1098 = vmatmul.mubr.bf16.gmra.mrb[0].mxu0 %v978
        %v1099 = vpop.f32.mrb[0].mxu0
        %v1100 = vadd.f32 0.0, %v1099
        %v1101 = vpop.f32.mrb[0].mxu0
        %v1102 = vpop.f32.mrb[0].mxu0
        %v1103 = vadd.f32 0.0, %v1102
        %v1104 = vpop.f32.mrb[0].mxu0
        %1105 = vmatprep.mubr.bf16.mxu0 0
        %1106 = vmatmul.mubr.bf16.gmra.mrb[0].mxu0 %v979
        %v1107 = vpop.f32.mrb[0].mxu0
        %v1108 = vadd.f32 0.0, %v1107
        %v1109 = vpop.f32.mrb[0].mxu0
        %v1110 = vpop.f32.mrb[0].mxu0
        %v1111 = vadd.f32 0.0, %v1110
        %v1112 = vpop.f32.mrb[0].mxu0
        %1113 = vmatprep.mubr.bf16.mxu0 0
        %1114 = vmatmul.mubr.bf16.gmra.mrb[0].mxu0 %v980
        %v1115 = vpop.f32.mrb[0].mxu0
        %v1116 = vadd.f32 0.0, %v1115
        %v1117 = vpop.f32.mrb[0].mxu0
        %v1118 = vpop.f32.mrb[0].mxu0
        %v1119 = vadd.f32 0.0, %v1118
        %v1120 = vpop.f32.mrb[0].mxu0
        %1121 = vmatprep.mubr.bf16.mxu0 0
        %1122 = vmatmul.mubr.bf16.gmra.mrb[0].mxu0 %v981
        %v1123 = vpop.f32.mrb[0].mxu0
        %v1124 = vadd.f32 0.0, %v1123
        %v1125 = vpop.f32.mrb[0].mxu0
        %v1126 = vpop.f32.mrb[0].mxu0
        %v1127 = vadd.f32 0.0, %v1126
        %v1128 = vpop.f32.mrb[0].mxu0
        %1129 = vmatprep.mubr.bf16.mxu0 0
        %1130 = vmatmul.mubr.bf16.gmra.mrb[0].mxu0 %v982
        %v1131 = vpop.f32.mrb[0].mxu0
        %v1132 = vadd.f32 0.0, %v1131
        %v1133 = vpop.f32.mrb[0].mxu0
        %v1134 = vpop.f32.mrb[0].mxu0
        %v1135 = vadd.f32 0.0, %v1134
        %v1136 = vpop.f32.mrb[0].mxu0
        %1137 = vmatprep.mubr.bf16.mxu0 0
        %1138 = vmatmul.mubr.bf16.gmra.mrb[0].mxu0 %v983
        %v1139 = vpop.f32.mrb[0].mxu0
        %v1140 = vadd.f32 0.0, %v1139
        %v1141 = vpop.f32.mrb[0].mxu0
        %v1142 = vpop.f32.mrb[0].mxu0
        %v1143 = vadd.f32 0.0, %v1142
        %v1144 = vpop.f32.mrb[0].mxu0
        %1145 = vdwg.mxu0
        %v1162 = vunpack.c.l.b16 %v959
        %v1163 = vunpack.c.l.b16 %v960
        %v1164 = vunpack.c.l.b16 %v961
        %v1165 = vunpack.c.l.b16 %v962
        %v1166 = vunpack.c.l.b16 %v963
        %v1167 = vunpack.c.l.b16 %v964
        %v1168 = vunpack.c.l.b16 %v965
        %v1169 = vunpack.c.l.b16 %v966
        %v1170 = vunpack.c.l.b16 %v967
        %v1171 = vunpack.c.l.b16 %v968
        %v1172 = vunpack.c.l.b16 %v969
        %v1173 = vunpack.c.l.b16 %v970
        %v1174 = vunpack.c.l.b16 %v971
        %v1175 = vunpack.c.l.b16 %v972
        %v1176 = vunpack.c.l.b16 %v973
        %v1177 = vunpack.c.l.b16 %v974
        %v1178 = vpack.c.b16 %v1163, %v1162
        %v1179 = vpack.c.b16 %v1165, %v1164
        %v1180 = vpack.c.b16 %v1167, %v1166
        %v1181 = vpack.c.b16 %v1169, %v1168
        %v1182 = vpack.c.b16 %v1171, %v1170
        %v1183 = vpack.c.b16 %v1173, %v1172
        %v1184 = vpack.c.b16 %v1175, %v1174
        %v1185 = vpack.c.b16 %v1177, %v1176
        %1194 = vmatprep.subr.bf16.mxu0 0
        %1195 = vmatpush1.bf16.msra.mxu0 %v1178
        %1196 = vmatprep.subr.bf16.mxu0 0
        %1197 = vmatpush1.bf16.msra.mxu0 %v1179
        %1198 = vmatprep.subr.bf16.mxu0 0
        %1199 = vmatpush1.bf16.msra.mxu0 %v1180
        %1200 = vmatprep.subr.bf16.mxu0 0
        %1201 = vmatpush1.bf16.msra.mxu0 %v1181
        %1202 = vmatprep.subr.bf16.mxu0 0
        %1203 = vmatpush1.bf16.msra.mxu0 %v1182
        %1204 = vmatprep.subr.bf16.mxu0 0
        %1205 = vmatpush1.bf16.msra.mxu0 %v1183
        %1206 = vmatprep.subr.bf16.mxu0 0
        %1207 = vmatpush1.bf16.msra.mxu0 %v1184
        %1208 = vmatprep.subr.bf16.mxu0 0
        %1209 = vmatpush1.bf16.msra.mxu0 %v1185
        %1210 = vmatprep.subr.bf16.mxu0 0
        %1211 = vmatpush1.bf16.msra.mxu0 0
        %1212 = vmatprep.subr.bf16.mxu0 0
        %1213 = vmatpush1.bf16.msra.mxu0 0
        %1214 = vmatprep.subr.bf16.mxu0 0
        %1215 = vmatpush1.bf16.msra.mxu0 0
        %1216 = vmatprep.subr.bf16.mxu0 0
        %1217 = vmatpush1.bf16.msra.mxu0 0
        %1218 = vmatprep.subr.bf16.mxu0 0
        %1219 = vmatpush1.bf16.msra.mxu0 0
        %1220 = vmatprep.subr.bf16.mxu0 0
        %1221 = vmatpush1.bf16.msra.mxu0 0
        %1222 = vmatprep.subr.bf16.mxu0 0
        %1223 = vmatpush1.bf16.msra.mxu0 0
        %1224 = vmatprep.subr.bf16.mxu0 0
        %1225 = vmatpush1.bf16.msra.mxu0 0
        %1226 = vmatprep.mubr.bf16.mxu0 0
        %1227 = vmatmul.mubr.bf16.gmra.mrb[0].mxu0 %v951
        %v1228 = vpop.f32.mrb[0].mxu0
        %v1229 = vadd.f32 %v1084, %v1228
        %v1230 = vpop.f32.mrb[0].mxu0
        %v1231 = vpop.f32.mrb[0].mxu0
        %v1232 = vadd.f32 %v1087, %v1231
        %v1233 = vpop.f32.mrb[0].mxu0
        %1234 = vmatprep.mubr.bf16.mxu0 0
        %1235 = vmatmul.mubr.bf16.gmra.mrb[0].mxu0 %v952
        %v1236 = vpop.f32.mrb[0].mxu0
        %v1237 = vadd.f32 %v1092, %v1236
        %v1238 = vpop.f32.mrb[0].mxu0
        %v1239 = vpop.f32.mrb[0].mxu0
        %v1240 = vadd.f32 %v1095, %v1239
        %v1241 = vpop.f32.mrb[0].mxu0
        %1242 = vmatprep.mubr.bf16.mxu0 0
        %1243 = vmatmul.mubr.bf16.gmra.mrb[0].mxu0 %v953
        %v1244 = vpop.f32.mrb[0].mxu0
        %v1245 = vadd.f32 %v1100, %v1244
        %v1246 = vpop.f32.mrb[0].mxu0
        %v1247 = vpop.f32.mrb[0].mxu0
        %v1248 = vadd.f32 %v1103, %v1247
        %v1249 = vpop.f32.mrb[0].mxu0
        %1250 = vmatprep.mubr.bf16.mxu0 0
        %1251 = vmatmul.mubr.bf16.gmra.mrb[0].mxu0 %v954
        %v1252 = vpop.f32.mrb[0].mxu0
        %v1253 = vadd.f32 %v1108, %v1252
        %v1254 = vpop.f32.mrb[0].mxu0
        %v1255 = vpop.f32.mrb[0].mxu0
        %v1256 = vadd.f32 %v1111, %v1255
        %v1257 = vpop.f32.mrb[0].mxu0
        %1258 = vmatprep.mubr.bf16.mxu0 0
        %1259 = vmatmul.mubr.bf16.gmra.mrb[0].mxu0 %v955
        %v1260 = vpop.f32.mrb[0].mxu0
        %v1261 = vadd.f32 %v1116, %v1260
        %v1262 = vpop.f32.mrb[0].mxu0
        %v1263 = vpop.f32.mrb[0].mxu0
        %v1264 = vadd.f32 %v1119, %v1263
        %v1265 = vpop.f32.mrb[0].mxu0
        %1266 = vmatprep.mubr.bf16.mxu0 0
        %1267 = vmatmul.mubr.bf16.gmra.mrb[0].mxu0 %v956
        %v1268 = vpop.f32.mrb[0].mxu0
        %v1269 = vadd.f32 %v1124, %v1268
        %v1270 = vpop.f32.mrb[0].mxu0
        %v1271 = vpop.f32.mrb[0].mxu0
        %v1272 = vadd.f32 %v1127, %v1271
        %v1273 = vpop.f32.mrb[0].mxu0
        %1274 = vmatprep.mubr.bf16.mxu0 0
        %1275 = vmatmul.mubr.bf16.gmra.mrb[0].mxu0 %v957
        %v1276 = vpop.f32.mrb[0].mxu0
        %v1277 = vadd.f32 %v1132, %v1276
        %v1278 = vpop.f32.mrb[0].mxu0
        %v1279 = vpop.f32.mrb[0].mxu0
        %v1280 = vadd.f32 %v1135, %v1279
        %v1281 = vpop.f32.mrb[0].mxu0
        %1282 = vmatprep.mubr.bf16.mxu0 0
        %1283 = vmatmul.mubr.bf16.gmra.mrb[0].mxu0 %v958
        %v1284 = vpop.f32.mrb[0].mxu0
        %v1285 = vadd.f32 %v1140, %v1284
        %v1286 = vpop.f32.mrb[0].mxu0
        %v1287 = vpop.f32.mrb[0].mxu0
        %v1288 = vadd.f32 %v1143, %v1287
        %v1289 = vpop.f32.mrb[0].mxu0
        %1290 = vdwg.mxu0
        %s1291 = scalar_lea.vmem [#allocation2], 160
        %v1292 = vld [vmem:[%s1291] sm:$0xff]
        %v1293 = vld [vmem:[%s1291 + $0x8] sm:$0xff]
        %v1294 = vld [vmem:[%s1291 + $0x10] sm:$0xff]
        %v1295 = vld [vmem:[%s1291 + $0x18] sm:$0xff]
        %v1296 = vld [vmem:[%s1291 + $0x20] sm:$0xff]
        %v1297 = vld [vmem:[%s1291 + $0x28] sm:$0xff]
        %v1298 = vld [vmem:[%s1291 + $0x30] sm:$0xff]
        %v1299 = vld [vmem:[%s1291 + $0x38] sm:$0xff]
        %s1300 = scalar_lea.vmem [#allocation10], 128
        %v1301 = vld [vmem:[%s1300] sm:$0xf]
        %v1302 = vld [vmem:[%s1300 + $0x4] sm:$0xf]
        %v1303 = vld [vmem:[%s1300 + $0x8] sm:$0xf]
        %v1304 = vld [vmem:[%s1300 + $0xc] sm:$0xf]
        %v1305 = vld [vmem:[%s1300 + $0x10] sm:$0xf]
        %v1306 = vld [vmem:[%s1300 + $0x14] sm:$0xf]
        %v1307 = vld [vmem:[%s1300 + $0x18] sm:$0xf]
        %v1308 = vld [vmem:[%s1300 + $0x1c] sm:$0xf]
        %v1309 = vld [vmem:[%s1300 + $0x20] sm:$0xf]
        %v1310 = vld [vmem:[%s1300 + $0x24] sm:$0xf]
        %v1311 = vld [vmem:[%s1300 + $0x28] sm:$0xf]
        %v1312 = vld [vmem:[%s1300 + $0x2c] sm:$0xf]
        %v1313 = vld [vmem:[%s1300 + $0x30] sm:$0xf]
        %v1314 = vld [vmem:[%s1300 + $0x34] sm:$0xf]
        %v1315 = vld [vmem:[%s1300 + $0x38] sm:$0xf]
        %v1316 = vld [vmem:[%s1300 + $0x3c] sm:$0xf]
        %v1333 = vunpack.c.l.b16 %v1301
        %v1334 = vunpack.c.l.b16 %v1302
        %v1335 = vunpack.c.l.b16 %v1303
        %v1336 = vunpack.c.l.b16 %v1304
        %v1337 = vunpack.c.l.b16 %v1305
        %v1338 = vunpack.c.l.b16 %v1306
        %v1339 = vunpack.c.l.b16 %v1307
        %v1340 = vunpack.c.l.b16 %v1308
        %v1341 = vunpack.c.l.b16 %v1309
        %v1342 = vunpack.c.l.b16 %v1310
        %v1343 = vunpack.c.l.b16 %v1311
        %v1344 = vunpack.c.l.b16 %v1312
        %v1345 = vunpack.c.l.b16 %v1313
        %v1346 = vunpack.c.l.b16 %v1314
        %v1347 = vunpack.c.l.b16 %v1315
        %v1348 = vunpack.c.l.b16 %v1316
        %v1349 = vpack.c.b16 %v1334, %v1333
        %v1350 = vpack.c.b16 %v1336, %v1335
        %v1351 = vpack.c.b16 %v1338, %v1337
        %v1352 = vpack.c.b16 %v1340, %v1339
        %v1353 = vpack.c.b16 %v1342, %v1341
        %v1354 = vpack.c.b16 %v1344, %v1343
        %v1355 = vpack.c.b16 %v1346, %v1345
        %v1356 = vpack.c.b16 %v1348, %v1347
        %1365 = vmatprep.subr.bf16.mxu0 0
        %1366 = vmatpush1.bf16.msra.mxu0 %v1349
        %1367 = vmatprep.subr.bf16.mxu0 0
        %1368 = vmatpush1.bf16.msra.mxu0 %v1350
        %1369 = vmatprep.subr.bf16.mxu0 0
        %1370 = vmatpush1.bf16.msra.mxu0 %v1351
        %1371 = vmatprep.subr.bf16.mxu0 0
        %1372 = vmatpush1.bf16.msra.mxu0 %v1352
        %1373 = vmatprep.subr.bf16.mxu0 0
        %1374 = vmatpush1.bf16.msra.mxu0 %v1353
        %1375 = vmatprep.subr.bf16.mxu0 0
        %1376 = vmatpush1.bf16.msra.mxu0 %v1354
        %1377 = vmatprep.subr.bf16.mxu0 0
        %1378 = vmatpush1.bf16.msra.mxu0 %v1355
        %1379 = vmatprep.subr.bf16.mxu0 0
        %1380 = vmatpush1.bf16.msra.mxu0 %v1356
        %1381 = vmatprep.subr.bf16.mxu0 0
        %1382 = vmatpush1.bf16.msra.mxu0 0
        %1383 = vmatprep.subr.bf16.mxu0 0
        %1384 = vmatpush1.bf16.msra.mxu0 0
        %1385 = vmatprep.subr.bf16.mxu0 0
        %1386 = vmatpush1.bf16.msra.mxu0 0
        %1387 = vmatprep.subr.bf16.mxu0 0
        %1388 = vmatpush1.bf16.msra.mxu0 0
        %1389 = vmatprep.subr.bf16.mxu0 0
        %1390 = vmatpush1.bf16.msra.mxu0 0
        %1391 = vmatprep.subr.bf16.mxu0 0
        %1392 = vmatpush1.bf16.msra.mxu0 0
        %1393 = vmatprep.subr.bf16.mxu0 0
        %1394 = vmatpush1.bf16.msra.mxu0 0
        %1395 = vmatprep.subr.bf16.mxu0 0
        %1396 = vmatpush1.bf16.msra.mxu0 0
        %1397 = vmatprep.mubr.bf16.mxu0 0
        %1398 = vmatmul.mubr.bf16.gmra.mrb[0].mxu0 %v1292
        %v1399 = vpop.f32.mrb[0].mxu0
        %v1400 = vadd.f32 0.0, %v1399
        %v1401 = vpop.f32.mrb[0].mxu0
        %v1402 = vpop.f32.mrb[0].mxu0
        %v1403 = vadd.f32 0.0, %v1402
        %v1404 = vpop.f32.mrb[0].mxu0
        %1405 = vmatprep.mubr.bf16.mxu0 0
        %1406 = vmatmul.mubr.bf16.gmra.mrb[0].mxu0 %v1293
        %v1407 = vpop.f32.mrb[0].mxu0
        %v1408 = vadd.f32 0.0, %v1407
        %v1409 = vpop.f32.mrb[0].mxu0
        %v1410 = vpop.f32.mrb[0].mxu0
        %v1411 = vadd.f32 0.0, %v1410
        %v1412 = vpop.f32.mrb[0].mxu0
        %1413 = vmatprep.mubr.bf16.mxu0 0
        %1414 = vmatmul.mubr.bf16.gmra.mrb[0].mxu0 %v1294
        %v1415 = vpop.f32.mrb[0].mxu0
        %v1416 = vadd.f32 0.0, %v1415
        %v1417 = vpop.f32.mrb[0].mxu0
        %v1418 = vpop.f32.mrb[0].mxu0
        %v1419 = vadd.f32 0.0, %v1418
        %v1420 = vpop.f32.mrb[0].mxu0
        %1421 = vmatprep.mubr.bf16.mxu0 0
        %1422 = vmatmul.mubr.bf16.gmra.mrb[0].mxu0 %v1295
        %v1423 = vpop.f32.mrb[0].mxu0
        %v1424 = vadd.f32 0.0, %v1423
        %v1425 = vpop.f32.mrb[0].mxu0
        %v1426 = vpop.f32.mrb[0].mxu0
        %v1427 = vadd.f32 0.0, %v1426
        %v1428 = vpop.f32.mrb[0].mxu0
        %1429 = vmatprep.mubr.bf16.mxu0 0
        %1430 = vmatmul.mubr.bf16.gmra.mrb[0].mxu0 %v1296
        %v1431 = vpop.f32.mrb[0].mxu0
        %v1432 = vadd.f32 0.0, %v1431
        %v1433 = vpop.f32.mrb[0].mxu0
        %v1434 = vpop.f32.mrb[0].mxu0
        %v1435 = vadd.f32 0.0, %v1434
        %v1436 = vpop.f32.mrb[0].mxu0
        %1437 = vmatprep.mubr.bf16.mxu0 0
        %1438 = vmatmul.mubr.bf16.gmra.mrb[0].mxu0 %v1297
        %v1439 = vpop.f32.mrb[0].mxu0
        %v1440 = vadd.f32 0.0, %v1439
        %v1441 = vpop.f32.mrb[0].mxu0
        %v1442 = vpop.f32.mrb[0].mxu0
        %v1443 = vadd.f32 0.0, %v1442
        %v1444 = vpop.f32.mrb[0].mxu0
        %1445 = vmatprep.mubr.bf16.mxu0 0
        %1446 = vmatmul.mubr.bf16.gmra.mrb[0].mxu0 %v1298
        %v1447 = vpop.f32.mrb[0].mxu0
        %v1448 = vadd.f32 0.0, %v1447
        %v1449 = vpop.f32.mrb[0].mxu0
        %v1450 = vpop.f32.mrb[0].mxu0
        %v1451 = vadd.f32 0.0, %v1450
        %v1452 = vpop.f32.mrb[0].mxu0
        %1453 = vmatprep.mubr.bf16.mxu0 0
        %1454 = vmatmul.mubr.bf16.gmra.mrb[0].mxu0 %v1299
        %v1455 = vpop.f32.mrb[0].mxu0
        %v1456 = vadd.f32 0.0, %v1455
        %v1457 = vpop.f32.mrb[0].mxu0
        %v1458 = vpop.f32.mrb[0].mxu0
        %v1459 = vadd.f32 0.0, %v1458
        %v1460 = vpop.f32.mrb[0].mxu0
        %1461 = vdwg.mxu0
        %v1462 = vadd.f32 %v1229, %v1400
        %v1463 = vadd.f32 %v1232, %v1403
        %v1464 = vadd.f32 %v1237, %v1408
        %v1465 = vadd.f32 %v1240, %v1411
        %v1466 = vadd.f32 %v1245, %v1416
        %v1467 = vadd.f32 %v1248, %v1419
        %v1468 = vadd.f32 %v1253, %v1424
        %v1469 = vadd.f32 %v1256, %v1427
        %v1470 = vadd.f32 %v1261, %v1432
        %v1471 = vadd.f32 %v1264, %v1435
        %v1472 = vadd.f32 %v1269, %v1440
        %v1473 = vadd.f32 %v1272, %v1443
        %v1474 = vadd.f32 %v1277, %v1448
        %v1475 = vadd.f32 %v1280, %v1451
        %v1476 = vadd.f32 %v1285, %v1456
        %v1477 = vadd.f32 %v1288, %v1459
        %v1478 = vld [vmem:[#allocation2 + $0x8] sm:$0xff]
        %v1479 = vld [vmem:[#allocation2 + $0x10] sm:$0xff]
        %v1480 = vld [vmem:[#allocation2 + $0x18] sm:$0xff]
        %v1481 = vld [vmem:[#allocation2 + $0x20] sm:$0xff]
        %v1482 = vld [vmem:[#allocation2 + $0x28] sm:$0xff]
        %v1483 = vld [vmem:[#allocation2 + $0x30] sm:$0xff]
        %v1484 = vld [vmem:[#allocation2 + $0x38] sm:$0xff]
        %v1485 = vld [vmem:[#allocation2 + $0x40] sm:$0xff]
        %s1486 = scalar_lea.vmem [#allocation10], 192
        %v1487 = vld [vmem:[%s1486] sm:$0xf]
        %v1488 = vld [vmem:[%s1486 + $0x4] sm:$0xf]
        %v1489 = vld [vmem:[%s1486 + $0x8] sm:$0xf]
        %v1490 = vld [vmem:[%s1486 + $0xc] sm:$0xf]
        %v1491 = vld [vmem:[%s1486 + $0x10] sm:$0xf]
        %v1492 = vld [vmem:[%s1486 + $0x14] sm:$0xf]
        %v1493 = vld [vmem:[%s1486 + $0x18] sm:$0xf]
        %v1494 = vld [vmem:[%s1486 + $0x1c] sm:$0xf]
        %v1495 = vld [vmem:[%s1486 + $0x20] sm:$0xf]
        %v1496 = vld [vmem:[%s1486 + $0x24] sm:$0xf]
        %v1497 = vld [vmem:[%s1486 + $0x28] sm:$0xf]
        %v1498 = vld [vmem:[%s1486 + $0x2c] sm:$0xf]
        %v1499 = vld [vmem:[%s1486 + $0x30] sm:$0xf]
        %v1500 = vld [vmem:[%s1486 + $0x34] sm:$0xf]
        %v1501 = vld [vmem:[%s1486 + $0x38] sm:$0xf]
        %v1502 = vld [vmem:[%s1486 + $0x3c] sm:$0xf]
        %v1519 = vunpack.c.l.b16 %v1487
        %v1520 = vunpack.c.l.b16 %v1488
        %v1521 = vunpack.c.l.b16 %v1489
        %v1522 = vunpack.c.l.b16 %v1490
        %v1523 = vunpack.c.l.b16 %v1491
        %v1524 = vunpack.c.l.b16 %v1492
        %v1525 = vunpack.c.l.b16 %v1493
        %v1526 = vunpack.c.l.b16 %v1494
        %v1527 = vunpack.c.l.b16 %v1495
        %v1528 = vunpack.c.l.b16 %v1496
        %v1529 = vunpack.c.l.b16 %v1497
        %v1530 = vunpack.c.l.b16 %v1498
        %v1531 = vunpack.c.l.b16 %v1499
        %v1532 = vunpack.c.l.b16 %v1500
        %v1533 = vunpack.c.l.b16 %v1501
        %v1534 = vunpack.c.l.b16 %v1502
        %v1535 = vpack.c.b16 %v1520, %v1519
        %v1536 = vpack.c.b16 %v1522, %v1521
        %v1537 = vpack.c.b16 %v1524, %v1523
        %v1538 = vpack.c.b16 %v1526, %v1525
        %v1539 = vpack.c.b16 %v1528, %v1527
        %v1540 = vpack.c.b16 %v1530, %v1529
        %v1541 = vpack.c.b16 %v1532, %v1531
        %v1542 = vpack.c.b16 %v1534, %v1533
        %1551 = vmatprep.subr.bf16.mxu0 0
        %1552 = vmatpush1.bf16.msra.mxu0 %v1535
        %1553 = vmatprep.subr.bf16.mxu0 0
        %1554 = vmatpush1.bf16.msra.mxu0 %v1536
        %1555 = vmatprep.subr.bf16.mxu0 0
        %1556 = vmatpush1.bf16.msra.mxu0 %v1537
        %1557 = vmatprep.subr.bf16.mxu0 0
        %1558 = vmatpush1.bf16.msra.mxu0 %v1538
        %1559 = vmatprep.subr.bf16.mxu0 0
        %1560 = vmatpush1.bf16.msra.mxu0 %v1539
        %1561 = vmatprep.subr.bf16.mxu0 0
        %1562 = vmatpush1.bf16.msra.mxu0 %v1540
        %1563 = vmatprep.subr.bf16.mxu0 0
        %1564 = vmatpush1.bf16.msra.mxu0 %v1541
        %1565 = vmatprep.subr.bf16.mxu0 0
        %1566 = vmatpush1.bf16.msra.mxu0 %v1542
        %1567 = vmatprep.subr.bf16.mxu0 0
        %1568 = vmatpush1.bf16.msra.mxu0 0
        %1569 = vmatprep.subr.bf16.mxu0 0
        %1570 = vmatpush1.bf16.msra.mxu0 0
        %1571 = vmatprep.subr.bf16.mxu0 0
        %1572 = vmatpush1.bf16.msra.mxu0 0
        %1573 = vmatprep.subr.bf16.mxu0 0
        %1574 = vmatpush1.bf16.msra.mxu0 0
        %1575 = vmatprep.subr.bf16.mxu0 0
        %1576 = vmatpush1.bf16.msra.mxu0 0
        %1577 = vmatprep.subr.bf16.mxu0 0
        %1578 = vmatpush1.bf16.msra.mxu0 0
        %1579 = vmatprep.subr.bf16.mxu0 0
        %1580 = vmatpush1.bf16.msra.mxu0 0
        %1581 = vmatprep.subr.bf16.mxu0 0
        %1582 = vmatpush1.bf16.msra.mxu0 0
        %1583 = vmatprep.mubr.bf16.mxu0 0
        %1584 = vmatmul.mubr.bf16.gmra.mrb[0].mxu0 %v1478
        %v1585 = vpop.f32.mrb[0].mxu0
        %v1586 = vadd.f32 0.0, %v1585
        %v1587 = vpop.f32.mrb[0].mxu0
        %v1588 = vpop.f32.mrb[0].mxu0
        %v1589 = vadd.f32 0.0, %v1588
        %v1590 = vpop.f32.mrb[0].mxu0
        %1591 = vmatprep.mubr.bf16.mxu0 0
        %1592 = vmatmul.mubr.bf16.gmra.mrb[0].mxu0 %v1479
        %v1593 = vpop.f32.mrb[0].mxu0
        %v1594 = vadd.f32 0.0, %v1593
        %v1595 = vpop.f32.mrb[0].mxu0
        %v1596 = vpop.f32.mrb[0].mxu0
        %v1597 = vadd.f32 0.0, %v1596
        %v1598 = vpop.f32.mrb[0].mxu0
        %1599 = vmatprep.mubr.bf16.mxu0 0
        %1600 = vmatmul.mubr.bf16.gmra.mrb[0].mxu0 %v1480
        %v1601 = vpop.f32.mrb[0].mxu0
        %v1602 = vadd.f32 0.0, %v1601
        %v1603 = vpop.f32.mrb[0].mxu0
        %v1604 = vpop.f32.mrb[0].mxu0
        %v1605 = vadd.f32 0.0, %v1604
        %v1606 = vpop.f32.mrb[0].mxu0
        %1607 = vmatprep.mubr.bf16.mxu0 0
        %1608 = vmatmul.mubr.bf16.gmra.mrb[0].mxu0 %v1481
        %v1609 = vpop.f32.mrb[0].mxu0
        %v1610 = vadd.f32 0.0, %v1609
        %v1611 = vpop.f32.mrb[0].mxu0
        %v1612 = vpop.f32.mrb[0].mxu0
        %v1613 = vadd.f32 0.0, %v1612
        %v1614 = vpop.f32.mrb[0].mxu0
        %1615 = vmatprep.mubr.bf16.mxu0 0
        %1616 = vmatmul.mubr.bf16.gmra.mrb[0].mxu0 %v1482
        %v1617 = vpop.f32.mrb[0].mxu0
        %v1618 = vadd.f32 0.0, %v1617
        %v1619 = vpop.f32.mrb[0].mxu0
        %v1620 = vpop.f32.mrb[0].mxu0
        %v1621 = vadd.f32 0.0, %v1620
        %v1622 = vpop.f32.mrb[0].mxu0
        %1623 = vmatprep.mubr.bf16.mxu0 0
        %1624 = vmatmul.mubr.bf16.gmra.mrb[0].mxu0 %v1483
        %v1625 = vpop.f32.mrb[0].mxu0
        %v1626 = vadd.f32 0.0, %v1625
        %v1627 = vpop.f32.mrb[0].mxu0
        %v1628 = vpop.f32.mrb[0].mxu0
        %v1629 = vadd.f32 0.0, %v1628
        %v1630 = vpop.f32.mrb[0].mxu0
        %1631 = vmatprep.mubr.bf16.mxu0 0
        %1632 = vmatmul.mubr.bf16.gmra.mrb[0].mxu0 %v1484
        %v1633 = vpop.f32.mrb[0].mxu0
        %v1634 = vadd.f32 0.0, %v1633
        %v1635 = vpop.f32.mrb[0].mxu0
        %v1636 = vpop.f32.mrb[0].mxu0
        %v1637 = vadd.f32 0.0, %v1636
        %v1638 = vpop.f32.mrb[0].mxu0
        %1639 = vmatprep.mubr.bf16.mxu0 0
        %1640 = vmatmul.mubr.bf16.gmra.mrb[0].mxu0 %v1485
        %v1641 = vpop.f32.mrb[0].mxu0
        %v1642 = vadd.f32 0.0, %v1641
        %v1643 = vpop.f32.mrb[0].mxu0
        %v1644 = vpop.f32.mrb[0].mxu0
        %v1645 = vadd.f32 0.0, %v1644
        %v1646 = vpop.f32.mrb[0].mxu0
        %1647 = vdwg.mxu0
        %v1648 = vadd.f32 %v1462, %v1586
        %v1649 = vadd.f32 %v1463, %v1589
        %v1650 = vadd.f32 %v1464, %v1594
        %v1651 = vadd.f32 %v1465, %v1597
        %v1652 = vadd.f32 %v1466, %v1602
        %v1653 = vadd.f32 %v1467, %v1605
        %v1654 = vadd.f32 %v1468, %v1610
        %v1655 = vadd.f32 %v1469, %v1613
        %v1656 = vadd.f32 %v1470, %v1618
        %v1657 = vadd.f32 %v1471, %v1621
        %v1658 = vadd.f32 %v1472, %v1626
        %v1659 = vadd.f32 %v1473, %v1629
        %v1660 = vadd.f32 %v1474, %v1634
        %v1661 = vadd.f32 %v1475, %v1637
        %v1662 = vadd.f32 %v1476, %v1642
        %v1663 = vadd.f32 %v1477, %v1645
        %v1664 = vld [vmem:[%s975 + $0x8] sm:$0xff]
        %v1665 = vld [vmem:[%s975 + $0x10] sm:$0xff]
        %v1666 = vld [vmem:[%s975 + $0x18] sm:$0xff]
        %v1667 = vld [vmem:[%s975 + $0x20] sm:$0xff]
        %v1668 = vld [vmem:[%s975 + $0x28] sm:$0xff]
        %v1669 = vld [vmem:[%s975 + $0x30] sm:$0xff]
        %v1670 = vld [vmem:[%s975 + $0x38] sm:$0xff]
        %v1671 = vld [vmem:[%s975 + $0x40] sm:$0xff]
        %s1672 = scalar_lea.vmem [#allocation10], 256
        %v1673 = vld [vmem:[%s1672] sm:$0xf]
        %v1674 = vld [vmem:[%s1672 + $0x4] sm:$0xf]
        %v1675 = vld [vmem:[%s1672 + $0x8] sm:$0xf]
        %v1676 = vld [vmem:[%s1672 + $0xc] sm:$0xf]
        %v1677 = vld [vmem:[%s1672 + $0x10] sm:$0xf]
        %v1678 = vld [vmem:[%s1672 + $0x14] sm:$0xf]
        %v1679 = vld [vmem:[%s1672 + $0x18] sm:$0xf]
        %v1680 = vld [vmem:[%s1672 + $0x1c] sm:$0xf]
        %v1681 = vld [vmem:[%s1672 + $0x20] sm:$0xf]
        %v1682 = vld [vmem:[%s1672 + $0x24] sm:$0xf]
        %v1683 = vld [vmem:[%s1672 + $0x28] sm:$0xf]
        %v1684 = vld [vmem:[%s1672 + $0x2c] sm:$0xf]
        %v1685 = vld [vmem:[%s1672 + $0x30] sm:$0xf]
        %v1686 = vld [vmem:[%s1672 + $0x34] sm:$0xf]
        %v1687 = vld [vmem:[%s1672 + $0x38] sm:$0xf]
        %v1688 = vld [vmem:[%s1672 + $0x3c] sm:$0xf]
        %v1705 = vunpack.c.l.b16 %v1673
        %v1706 = vunpack.c.l.b16 %v1674
        %v1707 = vunpack.c.l.b16 %v1675
        %v1708 = vunpack.c.l.b16 %v1676
        %v1709 = vunpack.c.l.b16 %v1677
        %v1710 = vunpack.c.l.b16 %v1678
        %v1711 = vunpack.c.l.b16 %v1679
        %v1712 = vunpack.c.l.b16 %v1680
        %v1713 = vunpack.c.l.b16 %v1681
        %v1714 = vunpack.c.l.b16 %v1682
        %v1715 = vunpack.c.l.b16 %v1683
        %v1716 = vunpack.c.l.b16 %v1684
        %v1717 = vunpack.c.l.b16 %v1685
        %v1718 = vunpack.c.l.b16 %v1686
        %v1719 = vunpack.c.l.b16 %v1687
        %v1720 = vunpack.c.l.b16 %v1688
        %v1721 = vpack.c.b16 %v1706, %v1705
        %v1722 = vpack.c.b16 %v1708, %v1707
        %v1723 = vpack.c.b16 %v1710, %v1709
        %v1724 = vpack.c.b16 %v1712, %v1711
        %v1725 = vpack.c.b16 %v1714, %v1713
        %v1726 = vpack.c.b16 %v1716, %v1715
        %v1727 = vpack.c.b16 %v1718, %v1717
        %v1728 = vpack.c.b16 %v1720, %v1719
        %1737 = vmatprep.subr.bf16.mxu0 0
        %1738 = vmatpush1.bf16.msra.mxu0 %v1721
        %1739 = vmatprep.subr.bf16.mxu0 0
        %1740 = vmatpush1.bf16.msra.mxu0 %v1722
        %1741 = vmatprep.subr.bf16.mxu0 0
        %1742 = vmatpush1.bf16.msra.mxu0 %v1723
        %1743 = vmatprep.subr.bf16.mxu0 0
        %1744 = vmatpush1.bf16.msra.mxu0 %v1724
        %1745 = vmatprep.subr.bf16.mxu0 0
        %1746 = vmatpush1.bf16.msra.mxu0 %v1725
        %1747 = vmatprep.subr.bf16.mxu0 0
        %1748 = vmatpush1.bf16.msra.mxu0 %v1726
        %1749 = vmatprep.subr.bf16.mxu0 0
        %1750 = vmatpush1.bf16.msra.mxu0 %v1727
        %1751 = vmatprep.subr.bf16.mxu0 0
        %1752 = vmatpush1.bf16.msra.mxu0 %v1728
        %1753 = vmatprep.subr.bf16.mxu0 0
        %1754 = vmatpush1.bf16.msra.mxu0 0
        %1755 = vmatprep.subr.bf16.mxu0 0
        %1756 = vmatpush1.bf16.msra.mxu0 0
        %1757 = vmatprep.subr.bf16.mxu0 0
        %1758 = vmatpush1.bf16.msra.mxu0 0
        %1759 = vmatprep.subr.bf16.mxu0 0
        %1760 = vmatpush1.bf16.msra.mxu0 0
        %1761 = vmatprep.subr.bf16.mxu0 0
        %1762 = vmatpush1.bf16.msra.mxu0 0
        %1763 = vmatprep.subr.bf16.mxu0 0
        %1764 = vmatpush1.bf16.msra.mxu0 0
        %1765 = vmatprep.subr.bf16.mxu0 0
        %1766 = vmatpush1.bf16.msra.mxu0 0
        %1767 = vmatprep.subr.bf16.mxu0 0
        %1768 = vmatpush1.bf16.msra.mxu0 0
        %1769 = vmatprep.mubr.bf16.mxu0 0
        %1770 = vmatmul.mubr.bf16.gmra.mrb[0].mxu0 %v1664
        %v1771 = vpop.f32.mrb[0].mxu0
        %v1772 = vadd.f32 0.0, %v1771
        %v1773 = vpop.f32.mrb[0].mxu0
        %v1774 = vpop.f32.mrb[0].mxu0
        %v1775 = vadd.f32 0.0, %v1774
        %v1776 = vpop.f32.mrb[0].mxu0
        %1777 = vmatprep.mubr.bf16.mxu0 0
        %1778 = vmatmul.mubr.bf16.gmra.mrb[0].mxu0 %v1665
        %v1779 = vpop.f32.mrb[0].mxu0
        %v1780 = vadd.f32 0.0, %v1779
        %v1781 = vpop.f32.mrb[0].mxu0
        %v1782 = vpop.f32.mrb[0].mxu0
        %v1783 = vadd.f32 0.0, %v1782
        %v1784 = vpop.f32.mrb[0].mxu0
        %1785 = vmatprep.mubr.bf16.mxu0 0
        %1786 = vmatmul.mubr.bf16.gmra.mrb[0].mxu0 %v1666
        %v1787 = vpop.f32.mrb[0].mxu0
        %v1788 = vadd.f32 0.0, %v1787
        %v1789 = vpop.f32.mrb[0].mxu0
        %v1790 = vpop.f32.mrb[0].mxu0
        %v1791 = vadd.f32 0.0, %v1790
        %v1792 = vpop.f32.mrb[0].mxu0
        %1793 = vmatprep.mubr.bf16.mxu0 0
        %1794 = vmatmul.mubr.bf16.gmra.mrb[0].mxu0 %v1667
        %v1795 = vpop.f32.mrb[0].mxu0
        %v1796 = vadd.f32 0.0, %v1795
        %v1797 = vpop.f32.mrb[0].mxu0
        %v1798 = vpop.f32.mrb[0].mxu0
        %v1799 = vadd.f32 0.0, %v1798
        %v1800 = vpop.f32.mrb[0].mxu0
        %1801 = vmatprep.mubr.bf16.mxu0 0
        %1802 = vmatmul.mubr.bf16.gmra.mrb[0].mxu0 %v1668
        %v1803 = vpop.f32.mrb[0].mxu0
        %v1804 = vadd.f32 0.0, %v1803
        %v1805 = vpop.f32.mrb[0].mxu0
        %v1806 = vpop.f32.mrb[0].mxu0
        %v1807 = vadd.f32 0.0, %v1806
        %v1808 = vpop.f32.mrb[0].mxu0
        %1809 = vmatprep.mubr.bf16.mxu0 0
        %1810 = vmatmul.mubr.bf16.gmra.mrb[0].mxu0 %v1669
        %v1811 = vpop.f32.mrb[0].mxu0
        %v1812 = vadd.f32 0.0, %v1811
        %v1813 = vpop.f32.mrb[0].mxu0
        %v1814 = vpop.f32.mrb[0].mxu0
        %v1815 = vadd.f32 0.0, %v1814
        %v1816 = vpop.f32.mrb[0].mxu0
        %1817 = vmatprep.mubr.bf16.mxu0 0
        %1818 = vmatmul.mubr.bf16.gmra.mrb[0].mxu0 %v1670
        %v1819 = vpop.f32.mrb[0].mxu0
        %v1820 = vadd.f32 0.0, %v1819
        %v1821 = vpop.f32.mrb[0].mxu0
        %v1822 = vpop.f32.mrb[0].mxu0
        %v1823 = vadd.f32 0.0, %v1822
        %v1824 = vpop.f32.mrb[0].mxu0
        %1825 = vmatprep.mubr.bf16.mxu0 0
        %1826 = vmatmul.mubr.bf16.gmra.mrb[0].mxu0 %v1671
        %v1827 = vpop.f32.mrb[0].mxu0
        %v1828 = vadd.f32 0.0, %v1827
        %v1829 = vpop.f32.mrb[0].mxu0
        %v1830 = vpop.f32.mrb[0].mxu0
        %v1831 = vadd.f32 0.0, %v1830
        %v1832 = vpop.f32.mrb[0].mxu0
        %1833 = vdwg.mxu0
        %v1834 = vadd.f32 %v1648, %v1772
        %v1835 = vadd.f32 %v1649, %v1775
        %v1836 = vadd.f32 %v1650, %v1780
        %v1837 = vadd.f32 %v1651, %v1783
        %v1838 = vadd.f32 %v1652, %v1788
        %v1839 = vadd.f32 %v1653, %v1791
        %v1840 = vadd.f32 %v1654, %v1796
        %v1841 = vadd.f32 %v1655, %v1799
        %v1842 = vadd.f32 %v1656, %v1804
        %v1843 = vadd.f32 %v1657, %v1807
        %v1844 = vadd.f32 %v1658, %v1812
        %v1845 = vadd.f32 %v1659, %v1815
        %v1846 = vadd.f32 %v1660, %v1820
        %v1847 = vadd.f32 %v1661, %v1823
        %v1848 = vadd.f32 %v1662, %v1828
        %v1849 = vadd.f32 %v1663, %v1831
        %v1850 = vld [vmem:[%s1291 + $0x8] sm:$0xff]
        %v1851 = vld [vmem:[%s1291 + $0x10] sm:$0xff]
        %v1852 = vld [vmem:[%s1291 + $0x18] sm:$0xff]
        %v1853 = vld [vmem:[%s1291 + $0x20] sm:$0xff]
        %v1854 = vld [vmem:[%s1291 + $0x28] sm:$0xff]
        %v1855 = vld [vmem:[%s1291 + $0x30] sm:$0xff]
        %v1856 = vld [vmem:[%s1291 + $0x38] sm:$0xff]
        %v1857 = vld [vmem:[%s1291 + $0x40] sm:$0xff]
        %s1858 = scalar_lea.vmem [#allocation10], 320
        %v1859 = vld [vmem:[%s1858] sm:$0xf]
        %v1860 = vld [vmem:[%s1858 + $0x4] sm:$0xf]
        %v1861 = vld [vmem:[%s1858 + $0x8] sm:$0xf]
        %v1862 = vld [vmem:[%s1858 + $0xc] sm:$0xf]
        %v1863 = vld [vmem:[%s1858 + $0x10] sm:$0xf]
        %v1864 = vld [vmem:[%s1858 + $0x14] sm:$0xf]
        %v1865 = vld [vmem:[%s1858 + $0x18] sm:$0xf]
        %v1866 = vld [vmem:[%s1858 + $0x1c] sm:$0xf]
        %v1867 = vld [vmem:[%s1858 + $0x20] sm:$0xf]
        %v1868 = vld [vmem:[%s1858 + $0x24] sm:$0xf]
        %v1869 = vld [vmem:[%s1858 + $0x28] sm:$0xf]
        %v1870 = vld [vmem:[%s1858 + $0x2c] sm:$0xf]
        %v1871 = vld [vmem:[%s1858 + $0x30] sm:$0xf]
        %v1872 = vld [vmem:[%s1858 + $0x34] sm:$0xf]
        %v1873 = vld [vmem:[%s1858 + $0x38] sm:$0xf]
        %v1874 = vld [vmem:[%s1858 + $0x3c] sm:$0xf]
        %v1891 = vunpack.c.l.b16 %v1859
        %v1892 = vunpack.c.l.b16 %v1860
        %v1893 = vunpack.c.l.b16 %v1861
        %v1894 = vunpack.c.l.b16 %v1862
        %v1895 = vunpack.c.l.b16 %v1863
        %v1896 = vunpack.c.l.b16 %v1864
        %v1897 = vunpack.c.l.b16 %v1865
        %v1898 = vunpack.c.l.b16 %v1866
        %v1899 = vunpack.c.l.b16 %v1867
        %v1900 = vunpack.c.l.b16 %v1868
        %v1901 = vunpack.c.l.b16 %v1869
        %v1902 = vunpack.c.l.b16 %v1870
        %v1903 = vunpack.c.l.b16 %v1871
        %v1904 = vunpack.c.l.b16 %v1872
        %v1905 = vunpack.c.l.b16 %v1873
        %v1906 = vunpack.c.l.b16 %v1874
        %v1907 = vpack.c.b16 %v1892, %v1891
        %v1908 = vpack.c.b16 %v1894, %v1893
        %v1909 = vpack.c.b16 %v1896, %v1895
        %v1910 = vpack.c.b16 %v1898, %v1897
        %v1911 = vpack.c.b16 %v1900, %v1899
        %v1912 = vpack.c.b16 %v1902, %v1901
        %v1913 = vpack.c.b16 %v1904, %v1903
        %v1914 = vpack.c.b16 %v1906, %v1905
        %1923 = vmatprep.subr.bf16.mxu0 0
        %1924 = vmatpush1.bf16.msra.mxu0 %v1907
        %1925 = vmatprep.subr.bf16.mxu0 0
        %1926 = vmatpush1.bf16.msra.mxu0 %v1908
        %1927 = vmatprep.subr.bf16.mxu0 0
        %1928 = vmatpush1.bf16.msra.mxu0 %v1909
        %1929 = vmatprep.subr.bf16.mxu0 0
        %1930 = vmatpush1.bf16.msra.mxu0 %v1910
        %1931 = vmatprep.subr.bf16.mxu0 0
        %1932 = vmatpush1.bf16.msra.mxu0 %v1911
        %1933 = vmatprep.subr.bf16.mxu0 0
        %1934 = vmatpush1.bf16.msra.mxu0 %v1912
        %1935 = vmatprep.subr.bf16.mxu0 0
        %1936 = vmatpush1.bf16.msra.mxu0 %v1913
        %1937 = vmatprep.subr.bf16.mxu0 0
        %1938 = vmatpush1.bf16.msra.mxu0 %v1914
        %1939 = vmatprep.subr.bf16.mxu0 0
        %1940 = vmatpush1.bf16.msra.mxu0 0
        %1941 = vmatprep.subr.bf16.mxu0 0
        %1942 = vmatpush1.bf16.msra.mxu0 0
        %1943 = vmatprep.subr.bf16.mxu0 0
        %1944 = vmatpush1.bf16.msra.mxu0 0
        %1945 = vmatprep.subr.bf16.mxu0 0
        %1946 = vmatpush1.bf16.msra.mxu0 0
        %1947 = vmatprep.subr.bf16.mxu0 0
        %1948 = vmatpush1.bf16.msra.mxu0 0
        %1949 = vmatprep.subr.bf16.mxu0 0
        %1950 = vmatpush1.bf16.msra.mxu0 0
        %1951 = vmatprep.subr.bf16.mxu0 0
        %1952 = vmatpush1.bf16.msra.mxu0 0
        %1953 = vmatprep.subr.bf16.mxu0 0
        %1954 = vmatpush1.bf16.msra.mxu0 0
        %1955 = vmatprep.mubr.bf16.mxu0 0
        %1956 = vmatmul.mubr.bf16.gmra.mrb[0].mxu0 %v1850
        %v1957 = vpop.f32.mrb[0].mxu0
        %v1958 = vadd.f32 0.0, %v1957
        %v1959 = vpop.f32.mrb[0].mxu0
        %v1960 = vpop.f32.mrb[0].mxu0
        %v1961 = vadd.f32 0.0, %v1960
        %v1962 = vpop.f32.mrb[0].mxu0
        %1963 = vmatprep.mubr.bf16.mxu0 0
        %1964 = vmatmul.mubr.bf16.gmra.mrb[0].mxu0 %v1851
        %v1965 = vpop.f32.mrb[0].mxu0
        %v1966 = vadd.f32 0.0, %v1965
        %v1967 = vpop.f32.mrb[0].mxu0
        %v1968 = vpop.f32.mrb[0].mxu0
        %v1969 = vadd.f32 0.0, %v1968
        %v1970 = vpop.f32.mrb[0].mxu0
        %1971 = vmatprep.mubr.bf16.mxu0 0
        %1972 = vmatmul.mubr.bf16.gmra.mrb[0].mxu0 %v1852
        %v1973 = vpop.f32.mrb[0].mxu0
        %v1974 = vadd.f32 0.0, %v1973
        %v1975 = vpop.f32.mrb[0].mxu0
        %v1976 = vpop.f32.mrb[0].mxu0
        %v1977 = vadd.f32 0.0, %v1976
        %v1978 = vpop.f32.mrb[0].mxu0
        %1979 = vmatprep.mubr.bf16.mxu0 0
        %1980 = vmatmul.mubr.bf16.gmra.mrb[0].mxu0 %v1853
        %v1981 = vpop.f32.mrb[0].mxu0
        %v1982 = vadd.f32 0.0, %v1981
        %v1983 = vpop.f32.mrb[0].mxu0
        %v1984 = vpop.f32.mrb[0].mxu0
        %v1985 = vadd.f32 0.0, %v1984
        %v1986 = vpop.f32.mrb[0].mxu0
        %1987 = vmatprep.mubr.bf16.mxu0 0
        %1988 = vmatmul.mubr.bf16.gmra.mrb[0].mxu0 %v1854
        %v1989 = vpop.f32.mrb[0].mxu0
        %v1990 = vadd.f32 0.0, %v1989
        %v1991 = vpop.f32.mrb[0].mxu0
        %v1992 = vpop.f32.mrb[0].mxu0
        %v1993 = vadd.f32 0.0, %v1992
        %v1994 = vpop.f32.mrb[0].mxu0
        %1995 = vmatprep.mubr.bf16.mxu0 0
        %1996 = vmatmul.mubr.bf16.gmra.mrb[0].mxu0 %v1855
        %v1997 = vpop.f32.mrb[0].mxu0
        %v1998 = vadd.f32 0.0, %v1997
        %v1999 = vpop.f32.mrb[0].mxu0
        %v2000 = vpop.f32.mrb[0].mxu0
        %v2001 = vadd.f32 0.0, %v2000
        %v2002 = vpop.f32.mrb[0].mxu0
        %2003 = vmatprep.mubr.bf16.mxu0 0
        %2004 = vmatmul.mubr.bf16.gmra.mrb[0].mxu0 %v1856
        %v2005 = vpop.f32.mrb[0].mxu0
        %v2006 = vadd.f32 0.0, %v2005
        %v2007 = vpop.f32.mrb[0].mxu0
        %v2008 = vpop.f32.mrb[0].mxu0
        %v2009 = vadd.f32 0.0, %v2008
        %v2010 = vpop.f32.mrb[0].mxu0
        %2011 = vmatprep.mubr.bf16.mxu0 0
        %2012 = vmatmul.mubr.bf16.gmra.mrb[0].mxu0 %v1857
        %v2013 = vpop.f32.mrb[0].mxu0
        %v2014 = vadd.f32 0.0, %v2013
        %v2015 = vpop.f32.mrb[0].mxu0
        %v2016 = vpop.f32.mrb[0].mxu0
        %v2017 = vadd.f32 0.0, %v2016
        %v2018 = vpop.f32.mrb[0].mxu0
        %2019 = vdwg.mxu0
        %v2020 = vadd.f32 %v1834, %v1958
        %v2021 = vadd.f32 %v1835, %v1961
        %v2022 = vadd.f32 %v1836, %v1966
        %v2023 = vadd.f32 %v1837, %v1969
        %v2024 = vadd.f32 %v1838, %v1974
        %v2025 = vadd.f32 %v1839, %v1977
        %v2026 = vadd.f32 %v1840, %v1982
        %v2027 = vadd.f32 %v1841, %v1985
        %v2028 = vadd.f32 %v1842, %v1990
        %v2029 = vadd.f32 %v1843, %v1993
        %v2030 = vadd.f32 %v1844, %v1998
        %v2031 = vadd.f32 %v1845, %v2001
        %v2032 = vadd.f32 %v1846, %v2006
        %v2033 = vadd.f32 %v1847, %v2009
        %v2034 = vadd.f32 %v1848, %v2014
        %v2035 = vadd.f32 %v1849, %v2017
        %v2036 = vld [vmem:[#allocation2 + $0x10] sm:$0xff]
        %v2037 = vld [vmem:[#allocation2 + $0x18] sm:$0xff]
        %v2038 = vld [vmem:[#allocation2 + $0x20] sm:$0xff]
        %v2039 = vld [vmem:[#allocation2 + $0x28] sm:$0xff]
        %v2040 = vld [vmem:[#allocation2 + $0x30] sm:$0xff]
        %v2041 = vld [vmem:[#allocation2 + $0x38] sm:$0xff]
        %v2042 = vld [vmem:[#allocation2 + $0x40] sm:$0xff]
        %v2043 = vld [vmem:[#allocation2 + $0x48] sm:$0xff]
        %s2044 = scalar_lea.vmem [#allocation10], 384
        %v2045 = vld [vmem:[%s2044] sm:$0xf]
        %v2046 = vld [vmem:[%s2044 + $0x4] sm:$0xf]
        %v2047 = vld [vmem:[%s2044 + $0x8] sm:$0xf]
        %v2048 = vld [vmem:[%s2044 + $0xc] sm:$0xf]
        %v2049 = vld [vmem:[%s2044 + $0x10] sm:$0xf]
        %v2050 = vld [vmem:[%s2044 + $0x14] sm:$0xf]
        %v2051 = vld [vmem:[%s2044 + $0x18] sm:$0xf]
        %v2052 = vld [vmem:[%s2044 + $0x1c] sm:$0xf]
        %v2053 = vld [vmem:[%s2044 + $0x20] sm:$0xf]
        %v2054 = vld [vmem:[%s2044 + $0x24] sm:$0xf]
        %v2055 = vld [vmem:[%s2044 + $0x28] sm:$0xf]
        %v2056 = vld [vmem:[%s2044 + $0x2c] sm:$0xf]
        %v2057 = vld [vmem:[%s2044 + $0x30] sm:$0xf]
        %v2058 = vld [vmem:[%s2044 + $0x34] sm:$0xf]
        %v2059 = vld [vmem:[%s2044 + $0x38] sm:$0xf]
        %v2060 = vld [vmem:[%s2044 + $0x3c] sm:$0xf]
        %v2077 = vunpack.c.l.b16 %v2045
        %v2078 = vunpack.c.l.b16 %v2046
        %v2079 = vunpack.c.l.b16 %v2047
        %v2080 = vunpack.c.l.b16 %v2048
        %v2081 = vunpack.c.l.b16 %v2049
        %v2082 = vunpack.c.l.b16 %v2050
        %v2083 = vunpack.c.l.b16 %v2051
        %v2084 = vunpack.c.l.b16 %v2052
        %v2085 = vunpack.c.l.b16 %v2053
        %v2086 = vunpack.c.l.b16 %v2054
        %v2087 = vunpack.c.l.b16 %v2055
        %v2088 = vunpack.c.l.b16 %v2056
        %v2089 = vunpack.c.l.b16 %v2057
        %v2090 = vunpack.c.l.b16 %v2058
        %v2091 = vunpack.c.l.b16 %v2059
        %v2092 = vunpack.c.l.b16 %v2060
        %v2093 = vpack.c.b16 %v2078, %v2077
        %v2094 = vpack.c.b16 %v2080, %v2079
        %v2095 = vpack.c.b16 %v2082, %v2081
        %v2096 = vpack.c.b16 %v2084, %v2083
        %v2097 = vpack.c.b16 %v2086, %v2085
        %v2098 = vpack.c.b16 %v2088, %v2087
        %v2099 = vpack.c.b16 %v2090, %v2089
        %v2100 = vpack.c.b16 %v2092, %v2091
        %2109 = vmatprep.subr.bf16.mxu0 0
        %2110 = vmatpush1.bf16.msra.mxu0 %v2093
        %2111 = vmatprep.subr.bf16.mxu0 0
        %2112 = vmatpush1.bf16.msra.mxu0 %v2094
        %2113 = vmatprep.subr.bf16.mxu0 0
        %2114 = vmatpush1.bf16.msra.mxu0 %v2095
        %2115 = vmatprep.subr.bf16.mxu0 0
        %2116 = vmatpush1.bf16.msra.mxu0 %v2096
        %2117 = vmatprep.subr.bf16.mxu0 0
        %2118 = vmatpush1.bf16.msra.mxu0 %v2097
        %2119 = vmatprep.subr.bf16.mxu0 0
        %2120 = vmatpush1.bf16.msra.mxu0 %v2098
        %2121 = vmatprep.subr.bf16.mxu0 0
        %2122 = vmatpush1.bf16.msra.mxu0 %v2099
        %2123 = vmatprep.subr.bf16.mxu0 0
        %2124 = vmatpush1.bf16.msra.mxu0 %v2100
        %2125 = vmatprep.subr.bf16.mxu0 0
        %2126 = vmatpush1.bf16.msra.mxu0 0
        %2127 = vmatprep.subr.bf16.mxu0 0
        %2128 = vmatpush1.bf16.msra.mxu0 0
        %2129 = vmatprep.subr.bf16.mxu0 0
        %2130 = vmatpush1.bf16.msra.mxu0 0
        %2131 = vmatprep.subr.bf16.mxu0 0
        %2132 = vmatpush1.bf16.msra.mxu0 0
        %2133 = vmatprep.subr.bf16.mxu0 0
        %2134 = vmatpush1.bf16.msra.mxu0 0
        %2135 = vmatprep.subr.bf16.mxu0 0
        %2136 = vmatpush1.bf16.msra.mxu0 0
        %2137 = vmatprep.subr.bf16.mxu0 0
        %2138 = vmatpush1.bf16.msra.mxu0 0
        %2139 = vmatprep.subr.bf16.mxu0 0
        %2140 = vmatpush1.bf16.msra.mxu0 0
        %2141 = vmatprep.mubr.bf16.mxu0 0
        %2142 = vmatmul.mubr.bf16.gmra.mrb[0].mxu0 %v2036
        %v2143 = vpop.f32.mrb[0].mxu0
        %v2144 = vadd.f32 0.0, %v2143
        %v2145 = vpop.f32.mrb[0].mxu0
        %v2146 = vpop.f32.mrb[0].mxu0
        %v2147 = vadd.f32 0.0, %v2146
        %v2148 = vpop.f32.mrb[0].mxu0
        %2149 = vmatprep.mubr.bf16.mxu0 0
        %2150 = vmatmul.mubr.bf16.gmra.mrb[0].mxu0 %v2037
        %v2151 = vpop.f32.mrb[0].mxu0
        %v2152 = vadd.f32 0.0, %v2151
        %v2153 = vpop.f32.mrb[0].mxu0
        %v2154 = vpop.f32.mrb[0].mxu0
        %v2155 = vadd.f32 0.0, %v2154
        %v2156 = vpop.f32.mrb[0].mxu0
        %2157 = vmatprep.mubr.bf16.mxu0 0
        %2158 = vmatmul.mubr.bf16.gmra.mrb[0].mxu0 %v2038
        %v2159 = vpop.f32.mrb[0].mxu0
        %v2160 = vadd.f32 0.0, %v2159
        %v2161 = vpop.f32.mrb[0].mxu0
        %v2162 = vpop.f32.mrb[0].mxu0
        %v2163 = vadd.f32 0.0, %v2162
        %v2164 = vpop.f32.mrb[0].mxu0
        %2165 = vmatprep.mubr.bf16.mxu0 0
        %2166 = vmatmul.mubr.bf16.gmra.mrb[0].mxu0 %v2039
        %v2167 = vpop.f32.mrb[0].mxu0
        %v2168 = vadd.f32 0.0, %v2167
        %v2169 = vpop.f32.mrb[0].mxu0
        %v2170 = vpop.f32.mrb[0].mxu0
        %v2171 = vadd.f32 0.0, %v2170
        %v2172 = vpop.f32.mrb[0].mxu0
        %2173 = vmatprep.mubr.bf16.mxu0 0
        %2174 = vmatmul.mubr.bf16.gmra.mrb[0].mxu0 %v2040
        %v2175 = vpop.f32.mrb[0].mxu0
        %v2176 = vadd.f32 0.0, %v2175
        %v2177 = vpop.f32.mrb[0].mxu0
        %v2178 = vpop.f32.mrb[0].mxu0
        %v2179 = vadd.f32 0.0, %v2178
        %v2180 = vpop.f32.mrb[0].mxu0
        %2181 = vmatprep.mubr.bf16.mxu0 0
        %2182 = vmatmul.mubr.bf16.gmra.mrb[0].mxu0 %v2041
        %v2183 = vpop.f32.mrb[0].mxu0
        %v2184 = vadd.f32 0.0, %v2183
        %v2185 = vpop.f32.mrb[0].mxu0
        %v2186 = vpop.f32.mrb[0].mxu0
        %v2187 = vadd.f32 0.0, %v2186
        %v2188 = vpop.f32.mrb[0].mxu0
        %2189 = vmatprep.mubr.bf16.mxu0 0
        %2190 = vmatmul.mubr.bf16.gmra.mrb[0].mxu0 %v2042
        %v2191 = vpop.f32.mrb[0].mxu0
        %v2192 = vadd.f32 0.0, %v2191
        %v2193 = vpop.f32.mrb[0].mxu0
        %v2194 = vpop.f32.mrb[0].mxu0
        %v2195 = vadd.f32 0.0, %v2194
        %v2196 = vpop.f32.mrb[0].mxu0
        %2197 = vmatprep.mubr.bf16.mxu0 0
        %2198 = vmatmul.mubr.bf16.gmra.mrb[0].mxu0 %v2043
        %v2199 = vpop.f32.mrb[0].mxu0
        %v2200 = vadd.f32 0.0, %v2199
        %v2201 = vpop.f32.mrb[0].mxu0
        %v2202 = vpop.f32.mrb[0].mxu0
        %v2203 = vadd.f32 0.0, %v2202
        %v2204 = vpop.f32.mrb[0].mxu0
        %2205 = vdwg.mxu0
        %v2206 = vadd.f32 %v2020, %v2144
        %v2207 = vadd.f32 %v2021, %v2147
        %v2208 = vadd.f32 %v2022, %v2152
        %v2209 = vadd.f32 %v2023, %v2155
        %v2210 = vadd.f32 %v2024, %v2160
        %v2211 = vadd.f32 %v2025, %v2163
        %v2212 = vadd.f32 %v2026, %v2168
        %v2213 = vadd.f32 %v2027, %v2171
        %v2214 = vadd.f32 %v2028, %v2176
        %v2215 = vadd.f32 %v2029, %v2179
        %v2216 = vadd.f32 %v2030, %v2184
        %v2217 = vadd.f32 %v2031, %v2187
        %v2218 = vadd.f32 %v2032, %v2192
        %v2219 = vadd.f32 %v2033, %v2195
        %v2220 = vadd.f32 %v2034, %v2200
        %v2221 = vadd.f32 %v2035, %v2203
        %v2222 = vld [vmem:[%s975 + $0x10] sm:$0xff]
        %v2223 = vld [vmem:[%s975 + $0x18] sm:$0xff]
        %v2224 = vld [vmem:[%s975 + $0x20] sm:$0xff]
        %v2225 = vld [vmem:[%s975 + $0x28] sm:$0xff]
        %v2226 = vld [vmem:[%s975 + $0x30] sm:$0xff]
        %v2227 = vld [vmem:[%s975 + $0x38] sm:$0xff]
        %v2228 = vld [vmem:[%s975 + $0x40] sm:$0xff]
        %v2229 = vld [vmem:[%s975 + $0x48] sm:$0xff]
        %s2230 = scalar_lea.vmem [#allocation10], 448
        %v2231 = vld [vmem:[%s2230] sm:$0xf]
        %v2232 = vld [vmem:[%s2230 + $0x4] sm:$0xf]
        %v2233 = vld [vmem:[%s2230 + $0x8] sm:$0xf]
        %v2234 = vld [vmem:[%s2230 + $0xc] sm:$0xf]
        %v2235 = vld [vmem:[%s2230 + $0x10] sm:$0xf]
        %v2236 = vld [vmem:[%s2230 + $0x14] sm:$0xf]
        %v2237 = vld [vmem:[%s2230 + $0x18] sm:$0xf]
        %v2238 = vld [vmem:[%s2230 + $0x1c] sm:$0xf]
        %v2239 = vld [vmem:[%s2230 + $0x20] sm:$0xf]
        %v2240 = vld [vmem:[%s2230 + $0x24] sm:$0xf]
        %v2241 = vld [vmem:[%s2230 + $0x28] sm:$0xf]
        %v2242 = vld [vmem:[%s2230 + $0x2c] sm:$0xf]
        %v2243 = vld [vmem:[%s2230 + $0x30] sm:$0xf]
        %v2244 = vld [vmem:[%s2230 + $0x34] sm:$0xf]
        %v2245 = vld [vmem:[%s2230 + $0x38] sm:$0xf]
        %v2246 = vld [vmem:[%s2230 + $0x3c] sm:$0xf]
        %v2263 = vunpack.c.l.b16 %v2231
        %v2264 = vunpack.c.l.b16 %v2232
        %v2265 = vunpack.c.l.b16 %v2233
        %v2266 = vunpack.c.l.b16 %v2234
        %v2267 = vunpack.c.l.b16 %v2235
        %v2268 = vunpack.c.l.b16 %v2236
        %v2269 = vunpack.c.l.b16 %v2237
        %v2270 = vunpack.c.l.b16 %v2238
        %v2271 = vunpack.c.l.b16 %v2239
        %v2272 = vunpack.c.l.b16 %v2240
        %v2273 = vunpack.c.l.b16 %v2241
        %v2274 = vunpack.c.l.b16 %v2242
        %v2275 = vunpack.c.l.b16 %v2243
        %v2276 = vunpack.c.l.b16 %v2244
        %v2277 = vunpack.c.l.b16 %v2245
        %v2278 = vunpack.c.l.b16 %v2246
        %v2279 = vpack.c.b16 %v2264, %v2263
        %v2280 = vpack.c.b16 %v2266, %v2265
        %v2281 = vpack.c.b16 %v2268, %v2267
        %v2282 = vpack.c.b16 %v2270, %v2269
        %v2283 = vpack.c.b16 %v2272, %v2271
        %v2284 = vpack.c.b16 %v2274, %v2273
        %v2285 = vpack.c.b16 %v2276, %v2275
        %v2286 = vpack.c.b16 %v2278, %v2277
        %2295 = vmatprep.subr.bf16.mxu0 0
        %2296 = vmatpush1.bf16.msra.mxu0 %v2279
        %2297 = vmatprep.subr.bf16.mxu0 0
        %2298 = vmatpush1.bf16.msra.mxu0 %v2280
        %2299 = vmatprep.subr.bf16.mxu0 0
        %2300 = vmatpush1.bf16.msra.mxu0 %v2281
        %2301 = vmatprep.subr.bf16.mxu0 0
        %2302 = vmatpush1.bf16.msra.mxu0 %v2282
        %2303 = vmatprep.subr.bf16.mxu0 0
        %2304 = vmatpush1.bf16.msra.mxu0 %v2283
        %2305 = vmatprep.subr.bf16.mxu0 0
        %2306 = vmatpush1.bf16.msra.mxu0 %v2284
        %2307 = vmatprep.subr.bf16.mxu0 0
        %2308 = vmatpush1.bf16.msra.mxu0 %v2285
        %2309 = vmatprep.subr.bf16.mxu0 0
        %2310 = vmatpush1.bf16.msra.mxu0 %v2286
        %2311 = vmatprep.subr.bf16.mxu0 0
        %2312 = vmatpush1.bf16.msra.mxu0 0
        %2313 = vmatprep.subr.bf16.mxu0 0
        %2314 = vmatpush1.bf16.msra.mxu0 0
        %2315 = vmatprep.subr.bf16.mxu0 0
        %2316 = vmatpush1.bf16.msra.mxu0 0
        %2317 = vmatprep.subr.bf16.mxu0 0
        %2318 = vmatpush1.bf16.msra.mxu0 0
        %2319 = vmatprep.subr.bf16.mxu0 0
        %2320 = vmatpush1.bf16.msra.mxu0 0
        %2321 = vmatprep.subr.bf16.mxu0 0
        %2322 = vmatpush1.bf16.msra.mxu0 0
        %2323 = vmatprep.subr.bf16.mxu0 0
        %2324 = vmatpush1.bf16.msra.mxu0 0
        %2325 = vmatprep.subr.bf16.mxu0 0
        %2326 = vmatpush1.bf16.msra.mxu0 0
        %2327 = vmatprep.mubr.bf16.mxu0 0
        %2328 = vmatmul.mubr.bf16.gmra.mrb[0].mxu0 %v2222
        %v2329 = vpop.f32.mrb[0].mxu0
        %v2330 = vadd.f32 0.0, %v2329
        %v2331 = vpop.f32.mrb[0].mxu0
        %v2332 = vpop.f32.mrb[0].mxu0
        %v2333 = vadd.f32 0.0, %v2332
        %v2334 = vpop.f32.mrb[0].mxu0
        %2335 = vmatprep.mubr.bf16.mxu0 0
        %2336 = vmatmul.mubr.bf16.gmra.mrb[0].mxu0 %v2223
        %v2337 = vpop.f32.mrb[0].mxu0
        %v2338 = vadd.f32 0.0, %v2337
        %v2339 = vpop.f32.mrb[0].mxu0
        %v2340 = vpop.f32.mrb[0].mxu0
        %v2341 = vadd.f32 0.0, %v2340
        %v2342 = vpop.f32.mrb[0].mxu0
        %2343 = vmatprep.mubr.bf16.mxu0 0
        %2344 = vmatmul.mubr.bf16.gmra.mrb[0].mxu0 %v2224
        %v2345 = vpop.f32.mrb[0].mxu0
        %v2346 = vadd.f32 0.0, %v2345
        %v2347 = vpop.f32.mrb[0].mxu0
        %v2348 = vpop.f32.mrb[0].mxu0
        %v2349 = vadd.f32 0.0, %v2348
        %v2350 = vpop.f32.mrb[0].mxu0
        %2351 = vmatprep.mubr.bf16.mxu0 0
        %2352 = vmatmul.mubr.bf16.gmra.mrb[0].mxu0 %v2225
        %v2353 = vpop.f32.mrb[0].mxu0
        %v2354 = vadd.f32 0.0, %v2353
        %v2355 = vpop.f32.mrb[0].mxu0
        %v2356 = vpop.f32.mrb[0].mxu0
        %v2357 = vadd.f32 0.0, %v2356
        %v2358 = vpop.f32.mrb[0].mxu0
        %2359 = vmatprep.mubr.bf16.mxu0 0
        %2360 = vmatmul.mubr.bf16.gmra.mrb[0].mxu0 %v2226
        %v2361 = vpop.f32.mrb[0].mxu0
        %v2362 = vadd.f32 0.0, %v2361
        %v2363 = vpop.f32.mrb[0].mxu0
        %v2364 = vpop.f32.mrb[0].mxu0
        %v2365 = vadd.f32 0.0, %v2364
        %v2366 = vpop.f32.mrb[0].mxu0
        %2367 = vmatprep.mubr.bf16.mxu0 0
        %2368 = vmatmul.mubr.bf16.gmra.mrb[0].mxu0 %v2227
        %v2369 = vpop.f32.mrb[0].mxu0
        %v2370 = vadd.f32 0.0, %v2369
        %v2371 = vpop.f32.mrb[0].mxu0
        %v2372 = vpop.f32.mrb[0].mxu0
        %v2373 = vadd.f32 0.0, %v2372
        %v2374 = vpop.f32.mrb[0].mxu0
        %2375 = vmatprep.mubr.bf16.mxu0 0
        %2376 = vmatmul.mubr.bf16.gmra.mrb[0].mxu0 %v2228
        %v2377 = vpop.f32.mrb[0].mxu0
        %v2378 = vadd.f32 0.0, %v2377
        %v2379 = vpop.f32.mrb[0].mxu0
        %v2380 = vpop.f32.mrb[0].mxu0
        %v2381 = vadd.f32 0.0, %v2380
        %v2382 = vpop.f32.mrb[0].mxu0
        %2383 = vmatprep.mubr.bf16.mxu0 0
        %2384 = vmatmul.mubr.bf16.gmra.mrb[0].mxu0 %v2229
        %v2385 = vpop.f32.mrb[0].mxu0
        %v2386 = vadd.f32 0.0, %v2385
        %v2387 = vpop.f32.mrb[0].mxu0
        %v2388 = vpop.f32.mrb[0].mxu0
        %v2389 = vadd.f32 0.0, %v2388
        %v2390 = vpop.f32.mrb[0].mxu0
        %2391 = vdwg.mxu0
        %v2392 = vadd.f32 %v2206, %v2330
        %v2393 = vadd.f32 %v2207, %v2333
        %v2394 = vadd.f32 %v2208, %v2338
        %v2395 = vadd.f32 %v2209, %v2341
        %v2396 = vadd.f32 %v2210, %v2346
        %v2397 = vadd.f32 %v2211, %v2349
        %v2398 = vadd.f32 %v2212, %v2354
        %v2399 = vadd.f32 %v2213, %v2357
        %v2400 = vadd.f32 %v2214, %v2362
        %v2401 = vadd.f32 %v2215, %v2365
        %v2402 = vadd.f32 %v2216, %v2370
        %v2403 = vadd.f32 %v2217, %v2373
        %v2404 = vadd.f32 %v2218, %v2378
        %v2405 = vadd.f32 %v2219, %v2381
        %v2406 = vadd.f32 %v2220, %v2386
        %v2407 = vadd.f32 %v2221, %v2389
        %v2408 = vld [vmem:[%s1291 + $0x10] sm:$0xff]
        %v2409 = vld [vmem:[%s1291 + $0x18] sm:$0xff]
        %v2410 = vld [vmem:[%s1291 + $0x20] sm:$0xff]
        %v2411 = vld [vmem:[%s1291 + $0x28] sm:$0xff]
        %v2412 = vld [vmem:[%s1291 + $0x30] sm:$0xff]
        %v2413 = vld [vmem:[%s1291 + $0x38] sm:$0xff]
        %v2414 = vld [vmem:[%s1291 + $0x40] sm:$0xff]
        %v2415 = vld [vmem:[%s1291 + $0x48] sm:$0xff]
        %s2416 = scalar_lea.vmem [#allocation10], 512
        %v2417 = vld [vmem:[%s2416] sm:$0xf]
        %v2418 = vld [vmem:[%s2416 + $0x4] sm:$0xf]
        %v2419 = vld [vmem:[%s2416 + $0x8] sm:$0xf]
        %v2420 = vld [vmem:[%s2416 + $0xc] sm:$0xf]
        %v2421 = vld [vmem:[%s2416 + $0x10] sm:$0xf]
        %v2422 = vld [vmem:[%s2416 + $0x14] sm:$0xf]
        %v2423 = vld [vmem:[%s2416 + $0x18] sm:$0xf]
        %v2424 = vld [vmem:[%s2416 + $0x1c] sm:$0xf]
        %v2425 = vld [vmem:[%s2416 + $0x20] sm:$0xf]
        %v2426 = vld [vmem:[%s2416 + $0x24] sm:$0xf]
        %v2427 = vld [vmem:[%s2416 + $0x28] sm:$0xf]
        %v2428 = vld [vmem:[%s2416 + $0x2c] sm:$0xf]
        %v2429 = vld [vmem:[%s2416 + $0x30] sm:$0xf]
        %v2430 = vld [vmem:[%s2416 + $0x34] sm:$0xf]
        %v2431 = vld [vmem:[%s2416 + $0x38] sm:$0xf]
        %v2432 = vld [vmem:[%s2416 + $0x3c] sm:$0xf]
        %v2449 = vunpack.c.l.b16 %v2417
        %v2450 = vunpack.c.l.b16 %v2418
        %v2451 = vunpack.c.l.b16 %v2419
        %v2452 = vunpack.c.l.b16 %v2420
        %v2453 = vunpack.c.l.b16 %v2421
        %v2454 = vunpack.c.l.b16 %v2422
        %v2455 = vunpack.c.l.b16 %v2423
        %v2456 = vunpack.c.l.b16 %v2424
        %v2457 = vunpack.c.l.b16 %v2425
        %v2458 = vunpack.c.l.b16 %v2426
        %v2459 = vunpack.c.l.b16 %v2427
        %v2460 = vunpack.c.l.b16 %v2428
        %v2461 = vunpack.c.l.b16 %v2429
        %v2462 = vunpack.c.l.b16 %v2430
        %v2463 = vunpack.c.l.b16 %v2431
        %v2464 = vunpack.c.l.b16 %v2432
        %v2465 = vpack.c.b16 %v2450, %v2449
        %v2466 = vpack.c.b16 %v2452, %v2451
        %v2467 = vpack.c.b16 %v2454, %v2453
        %v2468 = vpack.c.b16 %v2456, %v2455
        %v2469 = vpack.c.b16 %v2458, %v2457
        %v2470 = vpack.c.b16 %v2460, %v2459
        %v2471 = vpack.c.b16 %v2462, %v2461
        %v2472 = vpack.c.b16 %v2464, %v2463
        %2481 = vmatprep.subr.bf16.mxu0 0
        %2482 = vmatpush1.bf16.msra.mxu0 %v2465
        %2483 = vmatprep.subr.bf16.mxu0 0
        %2484 = vmatpush1.bf16.msra.mxu0 %v2466
        %2485 = vmatprep.subr.bf16.mxu0 0
        %2486 = vmatpush1.bf16.msra.mxu0 %v2467
        %2487 = vmatprep.subr.bf16.mxu0 0
        %2488 = vmatpush1.bf16.msra.mxu0 %v2468
        %2489 = vmatprep.subr.bf16.mxu0 0
        %2490 = vmatpush1.bf16.msra.mxu0 %v2469
        %2491 = vmatprep.subr.bf16.mxu0 0
        %2492 = vmatpush1.bf16.msra.mxu0 %v2470
        %2493 = vmatprep.subr.bf16.mxu0 0
        %2494 = vmatpush1.bf16.msra.mxu0 %v2471
        %2495 = vmatprep.subr.bf16.mxu0 0
        %2496 = vmatpush1.bf16.msra.mxu0 %v2472
        %2497 = vmatprep.subr.bf16.mxu0 0
        %2498 = vmatpush1.bf16.msra.mxu0 0
        %2499 = vmatprep.subr.bf16.mxu0 0
        %2500 = vmatpush1.bf16.msra.mxu0 0
        %2501 = vmatprep.subr.bf16.mxu0 0
        %2502 = vmatpush1.bf16.msra.mxu0 0
        %2503 = vmatprep.subr.bf16.mxu0 0
        %2504 = vmatpush1.bf16.msra.mxu0 0
        %2505 = vmatprep.subr.bf16.mxu0 0
        %2506 = vmatpush1.bf16.msra.mxu0 0
        %2507 = vmatprep.subr.bf16.mxu0 0
        %2508 = vmatpush1.bf16.msra.mxu0 0
        %2509 = vmatprep.subr.bf16.mxu0 0
        %2510 = vmatpush1.bf16.msra.mxu0 0
        %2511 = vmatprep.subr.bf16.mxu0 0
        %2512 = vmatpush1.bf16.msra.mxu0 0
        %2513 = vmatprep.mubr.bf16.mxu0 0
        %2514 = vmatmul.mubr.bf16.gmra.mrb[0].mxu0 %v2408
        %v2515 = vpop.f32.mrb[0].mxu0
        %v2516 = vadd.f32 0.0, %v2515
        %v2517 = vpop.f32.mrb[0].mxu0
        %v2518 = vpop.f32.mrb[0].mxu0
        %v2519 = vadd.f32 0.0, %v2518
        %v2520 = vpop.f32.mrb[0].mxu0
        %2521 = vmatprep.mubr.bf16.mxu0 0
        %2522 = vmatmul.mubr.bf16.gmra.mrb[0].mxu0 %v2409
        %v2523 = vpop.f32.mrb[0].mxu0
        %v2524 = vadd.f32 0.0, %v2523
        %v2525 = vpop.f32.mrb[0].mxu0
        %v2526 = vpop.f32.mrb[0].mxu0
        %v2527 = vadd.f32 0.0, %v2526
        %v2528 = vpop.f32.mrb[0].mxu0
        %2529 = vmatprep.mubr.bf16.mxu0 0
        %2530 = vmatmul.mubr.bf16.gmra.mrb[0].mxu0 %v2410
        %v2531 = vpop.f32.mrb[0].mxu0
        %v2532 = vadd.f32 0.0, %v2531
        %v2533 = vpop.f32.mrb[0].mxu0
        %v2534 = vpop.f32.mrb[0].mxu0
        %v2535 = vadd.f32 0.0, %v2534
        %v2536 = vpop.f32.mrb[0].mxu0
        %2537 = vmatprep.mubr.bf16.mxu0 0
        %2538 = vmatmul.mubr.bf16.gmra.mrb[0].mxu0 %v2411
        %v2539 = vpop.f32.mrb[0].mxu0
        %v2540 = vadd.f32 0.0, %v2539
        %v2541 = vpop.f32.mrb[0].mxu0
        %v2542 = vpop.f32.mrb[0].mxu0
        %v2543 = vadd.f32 0.0, %v2542
        %v2544 = vpop.f32.mrb[0].mxu0
        %2545 = vmatprep.mubr.bf16.mxu0 0
        %2546 = vmatmul.mubr.bf16.gmra.mrb[0].mxu0 %v2412
        %v2547 = vpop.f32.mrb[0].mxu0
        %v2548 = vadd.f32 0.0, %v2547
        %v2549 = vpop.f32.mrb[0].mxu0
        %v2550 = vpop.f32.mrb[0].mxu0
        %v2551 = vadd.f32 0.0, %v2550
        %v2552 = vpop.f32.mrb[0].mxu0
        %2553 = vmatprep.mubr.bf16.mxu0 0
        %2554 = vmatmul.mubr.bf16.gmra.mrb[0].mxu0 %v2413
        %v2555 = vpop.f32.mrb[0].mxu0
        %v2556 = vadd.f32 0.0, %v2555
        %v2557 = vpop.f32.mrb[0].mxu0
        %v2558 = vpop.f32.mrb[0].mxu0
        %v2559 = vadd.f32 0.0, %v2558
        %v2560 = vpop.f32.mrb[0].mxu0
        %2561 = vmatprep.mubr.bf16.mxu0 0
        %2562 = vmatmul.mubr.bf16.gmra.mrb[0].mxu0 %v2414
        %v2563 = vpop.f32.mrb[0].mxu0
        %v2564 = vadd.f32 0.0, %v2563
        %v2565 = vpop.f32.mrb[0].mxu0
        %v2566 = vpop.f32.mrb[0].mxu0
        %v2567 = vadd.f32 0.0, %v2566
        %v2568 = vpop.f32.mrb[0].mxu0
        %2569 = vmatprep.mubr.bf16.mxu0 0
        %2570 = vmatmul.mubr.bf16.gmra.mrb[0].mxu0 %v2415
        %v2571 = vpop.f32.mrb[0].mxu0
        %v2572 = vadd.f32 0.0, %v2571
        %v2573 = vpop.f32.mrb[0].mxu0
        %v2574 = vpop.f32.mrb[0].mxu0
        %v2575 = vadd.f32 0.0, %v2574
        %v2576 = vpop.f32.mrb[0].mxu0
        %2577 = vdwg.mxu0
        %v2578 = vadd.f32 %v2392, %v2516
        %v2579 = vadd.f32 %v2393, %v2519
        %v2580 = vadd.f32 %v2394, %v2524
        %v2581 = vadd.f32 %v2395, %v2527
        %v2582 = vadd.f32 %v2396, %v2532
        %v2583 = vadd.f32 %v2397, %v2535
        %v2584 = vadd.f32 %v2398, %v2540
        %v2585 = vadd.f32 %v2399, %v2543
        %v2586 = vadd.f32 %v2400, %v2548
        %v2587 = vadd.f32 %v2401, %v2551
        %v2588 = vadd.f32 %v2402, %v2556
        %v2589 = vadd.f32 %v2403, %v2559
        %v2590 = vadd.f32 %v2404, %v2564
        %v2591 = vadd.f32 %v2405, %v2567
        %v2592 = vadd.f32 %v2406, %v2572
        %v2593 = vadd.f32 %v2407, %v2575
        %v2594 = vld [vmem:[#allocation18] sm:$0xff]
        %v2595 = vld [vmem:[#allocation18 + $0x8] sm:$0xff]
        %v2596 = vld [vmem:[#allocation18 + $0x10] sm:$0xff]
        %v2597 = vld [vmem:[#allocation18 + $0x18] sm:$0xff]
        %v2598 = vld [vmem:[#allocation18 + $0x20] sm:$0xff]
        %v2599 = vld [vmem:[#allocation18 + $0x28] sm:$0xff]
        %v2600 = vld [vmem:[#allocation18 + $0x30] sm:$0xff]
        %v2601 = vld [vmem:[#allocation18 + $0x38] sm:$0xff]
        %v2602 = vld [vmem:[#allocation18 + $0x40] sm:$0xff]
        %v2603 = vld [vmem:[#allocation18 + $0x48] sm:$0xff]
        %v2604 = vld [vmem:[#allocation18 + $0x50] sm:$0xff]
        %v2605 = vld [vmem:[#allocation18 + $0x58] sm:$0xff]
        %v2606 = vld [vmem:[#allocation18 + $0x60] sm:$0xff]
        %v2607 = vld [vmem:[#allocation18 + $0x68] sm:$0xff]
        %v2608 = vld [vmem:[#allocation18 + $0x70] sm:$0xff]
        %v2609 = vld [vmem:[#allocation18 + $0x78] sm:$0xff]
        %2611 = vset.pattern.permute.xlu0 0
        %2612 = vperm.xlu0 %2611, %v2594
        %v2613 = vpop.permute.xlu0 %2612
        %2616 = vset.pattern.permute.xlu0 0
        %2617 = vperm.xlu0 %2616, %v2595
        %v2618 = vpop.permute.xlu0 %2617
        %2621 = vset.pattern.permute.xlu0 0
        %2622 = vperm.xlu0 %2621, %v2596
        %v2623 = vpop.permute.xlu0 %2622
        %2626 = vset.pattern.permute.xlu0 0
        %2627 = vperm.xlu0 %2626, %v2597
        %v2628 = vpop.permute.xlu0 %2627
        %2631 = vset.pattern.permute.xlu0 0
        %2632 = vperm.xlu0 %2631, %v2598
        %v2633 = vpop.permute.xlu0 %2632
        %2636 = vset.pattern.permute.xlu0 0
        %2637 = vperm.xlu0 %2636, %v2599
        %v2638 = vpop.permute.xlu0 %2637
        %2641 = vset.pattern.permute.xlu0 0
        %2642 = vperm.xlu0 %2641, %v2600
        %v2643 = vpop.permute.xlu0 %2642
        %2646 = vset.pattern.permute.xlu0 0
        %2647 = vperm.xlu0 %2646, %v2601
        %v2648 = vpop.permute.xlu0 %2647
        %2651 = vset.pattern.permute.xlu0 0
        %2652 = vperm.xlu0 %2651, %v2602
        %v2653 = vpop.permute.xlu0 %2652
        %2656 = vset.pattern.permute.xlu0 0
        %2657 = vperm.xlu0 %2656, %v2603
        %v2658 = vpop.permute.xlu0 %2657
        %2661 = vset.pattern.permute.xlu0 0
        %2662 = vperm.xlu0 %2661, %v2604
        %v2663 = vpop.permute.xlu0 %2662
        %2666 = vset.pattern.permute.xlu0 0
        %2667 = vperm.xlu0 %2666, %v2605
        %v2668 = vpop.permute.xlu0 %2667
        %2671 = vset.pattern.permute.xlu0 0
        %2672 = vperm.xlu0 %2671, %v2606
        %v2673 = vpop.permute.xlu0 %2672
        %2676 = vset.pattern.permute.xlu0 0
        %2677 = vperm.xlu0 %2676, %v2607
        %v2678 = vpop.permute.xlu0 %2677
        %2681 = vset.pattern.permute.xlu0 0
        %2682 = vperm.xlu0 %2681, %v2608
        %v2683 = vpop.permute.xlu0 %2682
        %2686 = vset.pattern.permute.xlu0 0
        %2687 = vperm.xlu0 %2686, %v2609
        %v2688 = vpop.permute.xlu0 %2687
        %v2690 = vmul.f32 %v2578, %v2613
        %v2691 = vmul.f32 %v2579, %v2618
        %v2692 = vmul.f32 %v2580, %v2623
        %v2693 = vmul.f32 %v2581, %v2628
        %v2694 = vmul.f32 %v2582, %v2633
        %v2695 = vmul.f32 %v2583, %v2638
        %v2696 = vmul.f32 %v2584, %v2643
        %v2697 = vmul.f32 %v2585, %v2648
        %v2698 = vmul.f32 %v2586, %v2653
        %v2699 = vmul.f32 %v2587, %v2658
        %v2700 = vmul.f32 %v2588, %v2663
        %v2701 = vmul.f32 %v2589, %v2668
        %v2702 = vmul.f32 %v2590, %v2673
        %v2703 = vmul.f32 %v2591, %v2678
        %v2704 = vmul.f32 %v2592, %v2683
        %v2705 = vmul.f32 %v2593, %v2688
        %v2706 = vpack.c.bf16 %v2691, %v2690
        %v2707 = vpack.c.bf16 %v2693, %v2692
        %v2708 = vpack.c.bf16 %v2695, %v2694
        %v2709 = vpack.c.bf16 %v2697, %v2696
        %v2710 = vpack.c.bf16 %v2699, %v2698
        %v2711 = vpack.c.bf16 %v2701, %v2700
        %v2712 = vpack.c.bf16 %v2703, %v2702
        %v2713 = vpack.c.bf16 %v2705, %v2704
        %vm2722 = vcmask 1043456
        %v2723 = vrot.slane %v2706, 4
        %v2724 = vrot.slane %v2707, 4
        %v2725 = vsel %vm2722, %v2723, %v2724
        %v2726 = vrot.slane %v2708, 4
        %v2727 = vsel %vm2722, %v2724, %v2726
        %v2728 = vrot.slane %v2709, 4
        %v2729 = vsel %vm2722, %v2726, %v2728
        %v2730 = vrot.slane %v2710, 4
        %v2731 = vsel %vm2722, %v2728, %v2730
        %v2732 = vrot.slane %v2711, 4
        %v2733 = vsel %vm2722, %v2730, %v2732
        %v2734 = vrot.slane %v2712, 4
        %v2735 = vsel %vm2722, %v2732, %v2734
        %v2736 = vrot.slane %v2713, 4
        %v2737 = vsel %vm2722, %v2734, %v2736
        %2747 = vst [vmem:[#allocation3 + $0x8] sm:$0xf0] %v2723
        %2748 = vst [vmem:[#allocation3 + $0x10] sm:$0xff] %v2725
        %2749 = vst [vmem:[#allocation3 + $0x18] sm:$0xff] %v2727
        %2750 = vst [vmem:[#allocation3 + $0x20] sm:$0xff] %v2729
        %2751 = vst [vmem:[#allocation3 + $0x28] sm:$0xff] %v2731
        %2752 = vst [vmem:[#allocation3 + $0x30] sm:$0xff] %v2733
        %2753 = vst [vmem:[#allocation3 + $0x38] sm:$0xff] %v2735
        %2754 = vst [vmem:[#allocation3 + $0x40] sm:$0xff] %v2737
        %2755 = vst [vmem:[#allocation3 + $0x48] sm:$0xf] %v2736
        %v2756 = vld [vmem:[#allocation3] sm:$0xf8]
        %v2757 = vld [vmem:[#allocation3 + $0x8] sm:$0xff]
        %v2758 = vld [vmem:[#allocation3 + $0x10] sm:$0xff]
        %v2759 = vld [vmem:[#allocation3 + $0x18] sm:$0xff]
        %v2760 = vld [vmem:[#allocation3 + $0x20] sm:$0xff]
        %v2761 = vld [vmem:[#allocation3 + $0x28] sm:$0xff]
        %v2762 = vld [vmem:[#allocation3 + $0x30] sm:$0xff]
        %v2763 = vld [vmem:[#allocation3 + $0x38] sm:$0xff]
        %v2764 = vld [vmem:[#allocation3 + $0x40] sm:$0xf]
        %vm2765 = vsmask.f32 4352
        %v2767 = vshrl.u32 %v2756, 16
        %v2769 = vrot.slane %v2767, 3
        %v2770 = vshll.u32 %v2756, 16
        %v2772 = vrot.slane %v2770, 4
        %v2773 = vor.u32 %v2769, %v2772
        %v2775 = vshrl.u32 %v2757, 16
        %v2777 = vrot.slane %v2775, 3
        %v2778 = vshll.u32 %v2757, 16
        %v2780 = vrot.slane %v2778, 4
        %v2781 = vor.u32 %v2777, %v2780
        %v2782 = vsel %vm2765, %v2773, %v2781
        %v2784 = vshrl.u32 %v2758, 16
        %v2786 = vrot.slane %v2784, 3
        %v2787 = vshll.u32 %v2758, 16
        %v2789 = vrot.slane %v2787, 4
        %v2790 = vor.u32 %v2786, %v2789
        %v2791 = vsel %vm2765, %v2781, %v2790
        %v2793 = vshrl.u32 %v2759, 16
        %v2795 = vrot.slane %v2793, 3
        %v2796 = vshll.u32 %v2759, 16
        %v2798 = vrot.slane %v2796, 4
        %v2799 = vor.u32 %v2795, %v2798
        %v2800 = vsel %vm2765, %v2790, %v2799
        %v2802 = vshrl.u32 %v2760, 16
        %v2804 = vrot.slane %v2802, 3
        %v2805 = vshll.u32 %v2760, 16
        %v2807 = vrot.slane %v2805, 4
        %v2808 = vor.u32 %v2804, %v2807
        %v2809 = vsel %vm2765, %v2799, %v2808
        %v2811 = vshrl.u32 %v2761, 16
        %v2813 = vrot.slane %v2811, 3
        %v2814 = vshll.u32 %v2761, 16
        %v2816 = vrot.slane %v2814, 4
        %v2817 = vor.u32 %v2813, %v2816
        %v2818 = vsel %vm2765, %v2808, %v2817
        %v2820 = vshrl.u32 %v2762, 16
        %v2822 = vrot.slane %v2820, 3
        %v2823 = vshll.u32 %v2762, 16
        %v2825 = vrot.slane %v2823, 4
        %v2826 = vor.u32 %v2822, %v2825
        %v2827 = vsel %vm2765, %v2817, %v2826
        %v2829 = vshrl.u32 %v2763, 16
        %v2831 = vrot.slane %v2829, 3
        %v2832 = vshll.u32 %v2763, 16
        %v2834 = vrot.slane %v2832, 4
        %v2835 = vor.u32 %v2831, %v2834
        %v2836 = vsel %vm2765, %v2826, %v2835
        %v2838 = vshrl.u32 %v2764, 16
        %v2840 = vrot.slane %v2838, 3
        %v2841 = vshll.u32 %v2764, 16
        %v2843 = vrot.slane %v2841, 4
        %v2844 = vor.u32 %v2840, %v2843
        %v2845 = vsel %vm2765, %v2835, %v2844
        %2854 = vst [vmem:[#allocation4] sm:$0xff] %v2782
        %2855 = vst [vmem:[#allocation4 + $0x48] sm:$0xff] %v2791
        %2856 = vst [vmem:[#allocation4 + $0x90] sm:$0xff] %v2800
        %2857 = vst [vmem:[#allocation4 + $0xd8] sm:$0xff] %v2809
        %2858 = vst [vmem:[#allocation4 + $0x120] sm:$0xff] %v2818
        %2859 = vst [vmem:[#allocation4 + $0x168] sm:$0xff] %v2827
        %2860 = vst [vmem:[#allocation4 + $0x1b0] sm:$0xff] %v2836
        %2861 = vst [vmem:[#allocation4 + $0x1f8] sm:$0xff] %v2845
        %v2862 = vld [vmem:[#allocation3] sm:$0xf0]
        %v2863 = vld [vmem:[#allocation3 + $0x8] sm:$0xff]
        %v2864 = vld [vmem:[#allocation3 + $0x10] sm:$0xff]
        %v2865 = vld [vmem:[#allocation3 + $0x18] sm:$0xff]
        %v2866 = vld [vmem:[#allocation3 + $0x20] sm:$0xff]
        %v2867 = vld [vmem:[#allocation3 + $0x28] sm:$0xff]
        %v2868 = vld [vmem:[#allocation3 + $0x30] sm:$0xff]
        %v2869 = vld [vmem:[#allocation3 + $0x38] sm:$0xff]
        %v2870 = vld [vmem:[#allocation3 + $0x40] sm:$0xf]
        %v2880 = vrot.slane %v2862, 4
        %v2881 = vrot.slane %v2863, 4
        %v2882 = vsel %vm2722, %v2880, %v2881
        %v2883 = vrot.slane %v2864, 4
        %v2884 = vsel %vm2722, %v2881, %v2883
        %v2885 = vrot.slane %v2865, 4
        %v2886 = vsel %vm2722, %v2883, %v2885
        %v2887 = vrot.slane %v2866, 4
        %v2888 = vsel %vm2722, %v2885, %v2887
        %v2889 = vrot.slane %v2867, 4
        %v2890 = vsel %vm2722, %v2887, %v2889
        %v2891 = vrot.slane %v2868, 4
        %v2892 = vsel %vm2722, %v2889, %v2891
        %v2893 = vrot.slane %v2869, 4
        %v2894 = vsel %vm2722, %v2891, %v2893
        %v2895 = vrot.slane %v2870, 4
        %v2896 = vsel %vm2722, %v2893, %v2895
        %2905 = vst [vmem:[#allocation4 + $0x8] sm:$0xff] %v2882
        %2906 = vst [vmem:[#allocation4 + $0x50] sm:$0xff] %v2884
        %2907 = vst [vmem:[#allocation4 + $0x98] sm:$0xff] %v2886
        %2908 = vst [vmem:[#allocation4 + $0xe0] sm:$0xff] %v2888
        %2909 = vst [vmem:[#allocation4 + $0x128] sm:$0xff] %v2890
        %2910 = vst [vmem:[#allocation4 + $0x170] sm:$0xff] %v2892
        %2911 = vst [vmem:[#allocation4 + $0x1b8] sm:$0xff] %v2894
        %2912 = vst [vmem:[#allocation4 + $0x200] sm:$0xff] %v2896
        %v2913 = vld [vmem:[#allocation3] sm:$0xf0]
        %v2914 = vld [vmem:[#allocation3 + $0x8] sm:$0xff]
        %v2915 = vld [vmem:[#allocation3 + $0x10] sm:$0xff]
        %v2916 = vld [vmem:[#allocation3 + $0x18] sm:$0xff]
        %v2917 = vld [vmem:[#allocation3 + $0x20] sm:$0xff]
        %v2918 = vld [vmem:[#allocation3 + $0x28] sm:$0xff]
        %v2919 = vld [vmem:[#allocation3 + $0x30] sm:$0xff]
        %v2920 = vld [vmem:[#allocation3 + $0x38] sm:$0xff]
        %v2921 = vld [vmem:[#allocation3 + $0x40] sm:$0x1f]
        %vm2922 = vsmask.f32 3328
        %v2924 = vshrl.u32 %v2913, 16
        %v2926 = vrot.slane %v2924, 4
        %v2927 = vshll.u32 %v2913, 16
        %v2929 = vrot.slane %v2927, 5
        %v2930 = vor.u32 %v2926, %v2929
        %v2932 = vshrl.u32 %v2914, 16
        %v2934 = vrot.slane %v2932, 4
        %v2935 = vshll.u32 %v2914, 16
        %v2937 = vrot.slane %v2935, 5
        %v2938 = vor.u32 %v2934, %v2937
        %v2939 = vsel %vm2922, %v2930, %v2938
        %v2941 = vshrl.u32 %v2915, 16
        %v2943 = vrot.slane %v2941, 4
        %v2944 = vshll.u32 %v2915, 16
        %v2946 = vrot.slane %v2944, 5
        %v2947 = vor.u32 %v2943, %v2946
        %v2948 = vsel %vm2922, %v2938, %v2947
        %v2950 = vshrl.u32 %v2916, 16
        %v2952 = vrot.slane %v2950, 4
        %v2953 = vshll.u32 %v2916, 16
        %v2955 = vrot.slane %v2953, 5
        %v2956 = vor.u32 %v2952, %v2955
        %v2957 = vsel %vm2922, %v2947, %v2956
        %v2959 = vshrl.u32 %v2917, 16
        %v2961 = vrot.slane %v2959, 4
        %v2962 = vshll.u32 %v2917, 16
        %v2964 = vrot.slane %v2962, 5
        %v2965 = vor.u32 %v2961, %v2964
        %v2966 = vsel %vm2922, %v2956, %v2965
        %v2968 = vshrl.u32 %v2918, 16
        %v2970 = vrot.slane %v2968, 4
        %v2971 = vshll.u32 %v2918, 16
        %v2973 = vrot.slane %v2971, 5
        %v2974 = vor.u32 %v2970, %v2973
        %v2975 = vsel %vm2922, %v2965, %v2974
        %v2977 = vshrl.u32 %v2919, 16
        %v2979 = vrot.slane %v2977, 4
        %v2980 = vshll.u32 %v2919, 16
        %v2982 = vrot.slane %v2980, 5
        %v2983 = vor.u32 %v2979, %v2982
        %v2984 = vsel %vm2922, %v2974, %v2983
        %v2986 = vshrl.u32 %v2920, 16
        %v2988 = vrot.slane %v2986, 4
        %v2989 = vshll.u32 %v2920, 16
        %v2991 = vrot.slane %v2989, 5
        %v2992 = vor.u32 %v2988, %v2991
        %v2993 = vsel %vm2922, %v2983, %v2992
        %v2995 = vshrl.u32 %v2921, 16
        %v2997 = vrot.slane %v2995, 4
        %v2998 = vshll.u32 %v2921, 16
        %v3000 = vrot.slane %v2998, 5
        %v3001 = vor.u32 %v2997, %v3000
        %v3002 = vsel %vm2922, %v2992, %v3001
        %3011 = vst [vmem:[#allocation4 + $0x10] sm:$0xff] %v2939
        %3012 = vst [vmem:[#allocation4 + $0x58] sm:$0xff] %v2948
        %3013 = vst [vmem:[#allocation4 + $0xa0] sm:$0xff] %v2957
        %3014 = vst [vmem:[#allocation4 + $0xe8] sm:$0xff] %v2966
        %3015 = vst [vmem:[#allocation4 + $0x130] sm:$0xff] %v2975
        %3016 = vst [vmem:[#allocation4 + $0x178] sm:$0xff] %v2984
        %3017 = vst [vmem:[#allocation4 + $0x1c0] sm:$0xff] %v2993
        %3018 = vst [vmem:[#allocation4 + $0x208] sm:$0xff] %v3002
        %v3019 = vld [vmem:[#allocation3 + $0x8] sm:$0xf8]
        %v3020 = vld [vmem:[#allocation3 + $0x10] sm:$0xff]
        %v3021 = vld [vmem:[#allocation3 + $0x18] sm:$0xff]
        %v3022 = vld [vmem:[#allocation3 + $0x20] sm:$0xff]
        %v3023 = vld [vmem:[#allocation3 + $0x28] sm:$0xff]
        %v3024 = vld [vmem:[#allocation3 + $0x30] sm:$0xff]
        %v3025 = vld [vmem:[#allocation3 + $0x38] sm:$0xff]
        %v3026 = vld [vmem:[#allocation3 + $0x40] sm:$0xff]
        %v3027 = vld [vmem:[#allocation3 + $0x48] sm:$0xf]
        %v3029 = vshrl.u32 %v3019, 16
        %v3031 = vrot.slane %v3029, 3
        %v3032 = vshll.u32 %v3019, 16
        %v3034 = vrot.slane %v3032, 4
        %v3035 = vor.u32 %v3031, %v3034
        %v3037 = vshrl.u32 %v3020, 16
        %v3039 = vrot.slane %v3037, 3
        %v3040 = vshll.u32 %v3020, 16
        %v3042 = vrot.slane %v3040, 4
        %v3043 = vor.u32 %v3039, %v3042
        %v3044 = vsel %vm2765, %v3035, %v3043
        %v3046 = vshrl.u32 %v3021, 16
        %v3048 = vrot.slane %v3046, 3
        %v3049 = vshll.u32 %v3021, 16
        %v3051 = vrot.slane %v3049, 4
        %v3052 = vor.u32 %v3048, %v3051
        %v3053 = vsel %vm2765, %v3043, %v3052
        %v3055 = vshrl.u32 %v3022, 16
        %v3057 = vrot.slane %v3055, 3
        %v3058 = vshll.u32 %v3022, 16
        %v3060 = vrot.slane %v3058, 4
        %v3061 = vor.u32 %v3057, %v3060
        %v3062 = vsel %vm2765, %v3052, %v3061
        %v3064 = vshrl.u32 %v3023, 16
        %v3066 = vrot.slane %v3064, 3
        %v3067 = vshll.u32 %v3023, 16
        %v3069 = vrot.slane %v3067, 4
        %v3070 = vor.u32 %v3066, %v3069
        %v3071 = vsel %vm2765, %v3061, %v3070
        %v3073 = vshrl.u32 %v3024, 16
        %v3075 = vrot.slane %v3073, 3
        %v3076 = vshll.u32 %v3024, 16
        %v3078 = vrot.slane %v3076, 4
        %v3079 = vor.u32 %v3075, %v3078
        %v3080 = vsel %vm2765, %v3070, %v3079
        %v3082 = vshrl.u32 %v3025, 16
        %v3084 = vrot.slane %v3082, 3
        %v3085 = vshll.u32 %v3025, 16
        %v3087 = vrot.slane %v3085, 4
        %v3088 = vor.u32 %v3084, %v3087
        %v3089 = vsel %vm2765, %v3079, %v3088
        %v3091 = vshrl.u32 %v3026, 16
        %v3093 = vrot.slane %v3091, 3
        %v3094 = vshll.u32 %v3026, 16
        %v3096 = vrot.slane %v3094, 4
        %v3097 = vor.u32 %v3093, %v3096
        %v3098 = vsel %vm2765, %v3088, %v3097
        %v3100 = vshrl.u32 %v3027, 16
        %v3102 = vrot.slane %v3100, 3
        %v3103 = vshll.u32 %v3027, 16
        %v3105 = vrot.slane %v3103, 4
        %v3106 = vor.u32 %v3102, %v3105
        %v3107 = vsel %vm2765, %v3097, %v3106
        %3116 = vst [vmem:[#allocation4 + $0x18] sm:$0xff] %v3044
        %3117 = vst [vmem:[#allocation4 + $0x60] sm:$0xff] %v3053
        %3118 = vst [vmem:[#allocation4 + $0xa8] sm:$0xff] %v3062
        %3119 = vst [vmem:[#allocation4 + $0xf0] sm:$0xff] %v3071
        %3120 = vst [vmem:[#allocation4 + $0x138] sm:$0xff] %v3080
        %3121 = vst [vmem:[#allocation4 + $0x180] sm:$0xff] %v3089
        %3122 = vst [vmem:[#allocation4 + $0x1c8] sm:$0xff] %v3098
        %3123 = vst [vmem:[#allocation4 + $0x210] sm:$0xff] %v3107
        %v3124 = vld [vmem:[#allocation3 + $0x8] sm:$0xf0]
        %v3125 = vld [vmem:[#allocation3 + $0x10] sm:$0xff]
        %v3126 = vld [vmem:[#allocation3 + $0x18] sm:$0xff]
        %v3127 = vld [vmem:[#allocation3 + $0x20] sm:$0xff]
        %v3128 = vld [vmem:[#allocation3 + $0x28] sm:$0xff]
        %v3129 = vld [vmem:[#allocation3 + $0x30] sm:$0xff]
        %v3130 = vld [vmem:[#allocation3 + $0x38] sm:$0xff]
        %v3131 = vld [vmem:[#allocation3 + $0x40] sm:$0xff]
        %v3132 = vld [vmem:[#allocation3 + $0x48] sm:$0xf]
        %v3142 = vrot.slane %v3124, 4
        %v3143 = vrot.slane %v3125, 4
        %v3144 = vsel %vm2722, %v3142, %v3143
        %v3145 = vrot.slane %v3126, 4
        %v3146 = vsel %vm2722, %v3143, %v3145
        %v3147 = vrot.slane %v3127, 4
        %v3148 = vsel %vm2722, %v3145, %v3147
        %v3149 = vrot.slane %v3128, 4
        %v3150 = vsel %vm2722, %v3147, %v3149
        %v3151 = vrot.slane %v3129, 4
        %v3152 = vsel %vm2722, %v3149, %v3151
        %v3153 = vrot.slane %v3130, 4
        %v3154 = vsel %vm2722, %v3151, %v3153
        %v3155 = vrot.slane %v3131, 4
        %v3156 = vsel %vm2722, %v3153, %v3155
        %v3157 = vrot.slane %v3132, 4
        %v3158 = vsel %vm2722, %v3155, %v3157
        %3167 = vst [vmem:[#allocation4 + $0x20] sm:$0xff] %v3144
        %3168 = vst [vmem:[#allocation4 + $0x68] sm:$0xff] %v3146
        %3169 = vst [vmem:[#allocation4 + $0xb0] sm:$0xff] %v3148
        %3170 = vst [vmem:[#allocation4 + $0xf8] sm:$0xff] %v3150
        %3171 = vst [vmem:[#allocation4 + $0x140] sm:$0xff] %v3152
        %3172 = vst [vmem:[#allocation4 + $0x188] sm:$0xff] %v3154
        %3173 = vst [vmem:[#allocation4 + $0x1d0] sm:$0xff] %v3156
        %3174 = vst [vmem:[#allocation4 + $0x218] sm:$0xff] %v3158
        %v3175 = vld [vmem:[#allocation3 + $0x8] sm:$0xf0]
        %v3176 = vld [vmem:[#allocation3 + $0x10] sm:$0xff]
        %v3177 = vld [vmem:[#allocation3 + $0x18] sm:$0xff]
        %v3178 = vld [vmem:[#allocation3 + $0x20] sm:$0xff]
        %v3179 = vld [vmem:[#allocation3 + $0x28] sm:$0xff]
        %v3180 = vld [vmem:[#allocation3 + $0x30] sm:$0xff]
        %v3181 = vld [vmem:[#allocation3 + $0x38] sm:$0xff]
        %v3182 = vld [vmem:[#allocation3 + $0x40] sm:$0xff]
        %v3183 = vld [vmem:[#allocation3 + $0x48] sm:$0x1f]
        %v3185 = vshrl.u32 %v3175, 16
        %v3187 = vrot.slane %v3185, 4
        %v3188 = vshll.u32 %v3175, 16
        %v3190 = vrot.slane %v3188, 5
        %v3191 = vor.u32 %v3187, %v3190
        %v3193 = vshrl.u32 %v3176, 16
        %v3195 = vrot.slane %v3193, 4
        %v3196 = vshll.u32 %v3176, 16
        %v3198 = vrot.slane %v3196, 5
        %v3199 = vor.u32 %v3195, %v3198
        %v3200 = vsel %vm2922, %v3191, %v3199
        %v3202 = vshrl.u32 %v3177, 16
        %v3204 = vrot.slane %v3202, 4
        %v3205 = vshll.u32 %v3177, 16
        %v3207 = vrot.slane %v3205, 5
        %v3208 = vor.u32 %v3204, %v3207
        %v3209 = vsel %vm2922, %v3199, %v3208
        %v3211 = vshrl.u32 %v3178, 16
        %v3213 = vrot.slane %v3211, 4
        %v3214 = vshll.u32 %v3178, 16
        %v3216 = vrot.slane %v3214, 5
        %v3217 = vor.u32 %v3213, %v3216
        %v3218 = vsel %vm2922, %v3208, %v3217
        %v3220 = vshrl.u32 %v3179, 16
        %v3222 = vrot.slane %v3220, 4
        %v3223 = vshll.u32 %v3179, 16
        %v3225 = vrot.slane %v3223, 5
        %v3226 = vor.u32 %v3222, %v3225
        %v3227 = vsel %vm2922, %v3217, %v3226
        %v3229 = vshrl.u32 %v3180, 16
        %v3231 = vrot.slane %v3229, 4
        %v3232 = vshll.u32 %v3180, 16
        %v3234 = vrot.slane %v3232, 5
        %v3235 = vor.u32 %v3231, %v3234
        %v3236 = vsel %vm2922, %v3226, %v3235
        %v3238 = vshrl.u32 %v3181, 16
        %v3240 = vrot.slane %v3238, 4
        %v3241 = vshll.u32 %v3181, 16
        %v3243 = vrot.slane %v3241, 5
        %v3244 = vor.u32 %v3240, %v3243
        %v3245 = vsel %vm2922, %v3235, %v3244
        %v3247 = vshrl.u32 %v3182, 16
        %v3249 = vrot.slane %v3247, 4
        %v3250 = vshll.u32 %v3182, 16
        %v3252 = vrot.slane %v3250, 5
        %v3253 = vor.u32 %v3249, %v3252
        %v3254 = vsel %vm2922, %v3244, %v3253
        %v3256 = vshrl.u32 %v3183, 16
        %v3258 = vrot.slane %v3256, 4
        %v3259 = vshll.u32 %v3183, 16
        %v3261 = vrot.slane %v3259, 5
        %v3262 = vor.u32 %v3258, %v3261
        %v3263 = vsel %vm2922, %v3253, %v3262
        %3272 = vst [vmem:[#allocation4 + $0x28] sm:$0xff] %v3200
        %3273 = vst [vmem:[#allocation4 + $0x70] sm:$0xff] %v3209
        %3274 = vst [vmem:[#allocation4 + $0xb8] sm:$0xff] %v3218
        %3275 = vst [vmem:[#allocation4 + $0x100] sm:$0xff] %v3227
        %3276 = vst [vmem:[#allocation4 + $0x148] sm:$0xff] %v3236
        %3277 = vst [vmem:[#allocation4 + $0x190] sm:$0xff] %v3245
        %3278 = vst [vmem:[#allocation4 + $0x1d8] sm:$0xff] %v3254
        %3279 = vst [vmem:[#allocation4 + $0x220] sm:$0xff] %v3263
        %v3280 = vld [vmem:[#allocation3 + $0x10] sm:$0xf8]
        %v3281 = vld [vmem:[#allocation3 + $0x18] sm:$0xff]
        %v3282 = vld [vmem:[#allocation3 + $0x20] sm:$0xff]
        %v3283 = vld [vmem:[#allocation3 + $0x28] sm:$0xff]
        %v3284 = vld [vmem:[#allocation3 + $0x30] sm:$0xff]
        %v3285 = vld [vmem:[#allocation3 + $0x38] sm:$0xff]
        %v3286 = vld [vmem:[#allocation3 + $0x40] sm:$0xff]
        %v3287 = vld [vmem:[#allocation3 + $0x48] sm:$0xff]
        %v3288 = vld [vmem:[#allocation3 + $0x50] sm:$0xf]
        %v3290 = vshrl.u32 %v3280, 16
        %v3292 = vrot.slane %v3290, 3
        %v3293 = vshll.u32 %v3280, 16
        %v3295 = vrot.slane %v3293, 4
        %v3296 = vor.u32 %v3292, %v3295
        %v3298 = vshrl.u32 %v3281, 16
        %v3300 = vrot.slane %v3298, 3
        %v3301 = vshll.u32 %v3281, 16
        %v3303 = vrot.slane %v3301, 4
        %v3304 = vor.u32 %v3300, %v3303
        %v3305 = vsel %vm2765, %v3296, %v3304
        %v3307 = vshrl.u32 %v3282, 16
        %v3309 = vrot.slane %v3307, 3
        %v3310 = vshll.u32 %v3282, 16
        %v3312 = vrot.slane %v3310, 4
        %v3313 = vor.u32 %v3309, %v3312
        %v3314 = vsel %vm2765, %v3304, %v3313
        %v3316 = vshrl.u32 %v3283, 16
        %v3318 = vrot.slane %v3316, 3
        %v3319 = vshll.u32 %v3283, 16
        %v3321 = vrot.slane %v3319, 4
        %v3322 = vor.u32 %v3318, %v3321
        %v3323 = vsel %vm2765, %v3313, %v3322
        %v3325 = vshrl.u32 %v3284, 16
        %v3327 = vrot.slane %v3325, 3
        %v3328 = vshll.u32 %v3284, 16
        %v3330 = vrot.slane %v3328, 4
        %v3331 = vor.u32 %v3327, %v3330
        %v3332 = vsel %vm2765, %v3322, %v3331
        %v3334 = vshrl.u32 %v3285, 16
        %v3336 = vrot.slane %v3334, 3
        %v3337 = vshll.u32 %v3285, 16
        %v3339 = vrot.slane %v3337, 4
        %v3340 = vor.u32 %v3336, %v3339
        %v3341 = vsel %vm2765, %v3331, %v3340
        %v3343 = vshrl.u32 %v3286, 16
        %v3345 = vrot.slane %v3343, 3
        %v3346 = vshll.u32 %v3286, 16
        %v3348 = vrot.slane %v3346, 4
        %v3349 = vor.u32 %v3345, %v3348
        %v3350 = vsel %vm2765, %v3340, %v3349
        %v3352 = vshrl.u32 %v3287, 16
        %v3354 = vrot.slane %v3352, 3
        %v3355 = vshll.u32 %v3287, 16
        %v3357 = vrot.slane %v3355, 4
        %v3358 = vor.u32 %v3354, %v3357
        %v3359 = vsel %vm2765, %v3349, %v3358
        %v3361 = vshrl.u32 %v3288, 16
        %v3363 = vrot.slane %v3361, 3
        %v3364 = vshll.u32 %v3288, 16
        %v3366 = vrot.slane %v3364, 4
        %v3367 = vor.u32 %v3363, %v3366
        %v3368 = vsel %vm2765, %v3358, %v3367
        %3377 = vst [vmem:[#allocation4 + $0x30] sm:$0xff] %v3305
        %3378 = vst [vmem:[#allocation4 + $0x78] sm:$0xff] %v3314
        %3379 = vst [vmem:[#allocation4 + $0xc0] sm:$0xff] %v3323
        %3380 = vst [vmem:[#allocation4 + $0x108] sm:$0xff] %v3332
        %3381 = vst [vmem:[#allocation4 + $0x150] sm:$0xff] %v3341
        %3382 = vst [vmem:[#allocation4 + $0x198] sm:$0xff] %v3350
        %3383 = vst [vmem:[#allocation4 + $0x1e0] sm:$0xff] %v3359
        %3384 = vst [vmem:[#allocation4 + $0x228] sm:$0xff] %v3368
        %v3385 = vld [vmem:[#allocation3 + $0x10] sm:$0xf0]
        %v3386 = vld [vmem:[#allocation3 + $0x18] sm:$0xff]
        %v3387 = vld [vmem:[#allocation3 + $0x20] sm:$0xff]
        %v3388 = vld [vmem:[#allocation3 + $0x28] sm:$0xff]
        %v3389 = vld [vmem:[#allocation3 + $0x30] sm:$0xff]
        %v3390 = vld [vmem:[#allocation3 + $0x38] sm:$0xff]
        %v3391 = vld [vmem:[#allocation3 + $0x40] sm:$0xff]
        %v3392 = vld [vmem:[#allocation3 + $0x48] sm:$0xff]
        %v3393 = vld [vmem:[#allocation3 + $0x50] sm:$0xf]
        %v3403 = vrot.slane %v3385, 4
        %v3404 = vrot.slane %v3386, 4
        %v3405 = vsel %vm2722, %v3403, %v3404
        %v3406 = vrot.slane %v3387, 4
        %v3407 = vsel %vm2722, %v3404, %v3406
        %v3408 = vrot.slane %v3388, 4
        %v3409 = vsel %vm2722, %v3406, %v3408
        %v3410 = vrot.slane %v3389, 4
        %v3411 = vsel %vm2722, %v3408, %v3410
        %v3412 = vrot.slane %v3390, 4
        %v3413 = vsel %vm2722, %v3410, %v3412
        %v3414 = vrot.slane %v3391, 4
        %v3415 = vsel %vm2722, %v3412, %v3414
        %v3416 = vrot.slane %v3392, 4
        %v3417 = vsel %vm2722, %v3414, %v3416
        %v3418 = vrot.slane %v3393, 4
        %v3419 = vsel %vm2722, %v3416, %v3418
        %3428 = vst [vmem:[#allocation4 + $0x38] sm:$0xff] %v3405
        %3429 = vst [vmem:[#allocation4 + $0x80] sm:$0xff] %v3407
        %3430 = vst [vmem:[#allocation4 + $0xc8] sm:$0xff] %v3409
        %3431 = vst [vmem:[#allocation4 + $0x110] sm:$0xff] %v3411
        %3432 = vst [vmem:[#allocation4 + $0x158] sm:$0xff] %v3413
        %3433 = vst [vmem:[#allocation4 + $0x1a0] sm:$0xff] %v3415
        %3434 = vst [vmem:[#allocation4 + $0x1e8] sm:$0xff] %v3417
        %3435 = vst [vmem:[#allocation4 + $0x230] sm:$0xff] %v3419
        %v3436 = vld [vmem:[#allocation3 + $0x10] sm:$0xf0]
        %v3437 = vld [vmem:[#allocation3 + $0x18] sm:$0xff]
        %v3438 = vld [vmem:[#allocation3 + $0x20] sm:$0xff]
        %v3439 = vld [vmem:[#allocation3 + $0x28] sm:$0xff]
        %v3440 = vld [vmem:[#allocation3 + $0x30] sm:$0xff]
        %v3441 = vld [vmem:[#allocation3 + $0x38] sm:$0xff]
        %v3442 = vld [vmem:[#allocation3 + $0x40] sm:$0xff]
        %v3443 = vld [vmem:[#allocation3 + $0x48] sm:$0xff]
        %v3444 = vld [vmem:[#allocation3 + $0x50] sm:$0x1f]
        %v3446 = vshrl.u32 %v3436, 16
        %v3448 = vrot.slane %v3446, 4
        %v3449 = vshll.u32 %v3436, 16
        %v3451 = vrot.slane %v3449, 5
        %v3452 = vor.u32 %v3448, %v3451
        %v3454 = vshrl.u32 %v3437, 16
        %v3456 = vrot.slane %v3454, 4
        %v3457 = vshll.u32 %v3437, 16
        %v3459 = vrot.slane %v3457, 5
        %v3460 = vor.u32 %v3456, %v3459
        %v3461 = vsel %vm2922, %v3452, %v3460
        %v3463 = vshrl.u32 %v3438, 16
        %v3465 = vrot.slane %v3463, 4
        %v3466 = vshll.u32 %v3438, 16
        %v3468 = vrot.slane %v3466, 5
        %v3469 = vor.u32 %v3465, %v3468
        %v3470 = vsel %vm2922, %v3460, %v3469
        %v3472 = vshrl.u32 %v3439, 16
        %v3474 = vrot.slane %v3472, 4
        %v3475 = vshll.u32 %v3439, 16
        %v3477 = vrot.slane %v3475, 5
        %v3478 = vor.u32 %v3474, %v3477
        %v3479 = vsel %vm2922, %v3469, %v3478
        %v3481 = vshrl.u32 %v3440, 16
        %v3483 = vrot.slane %v3481, 4
        %v3484 = vshll.u32 %v3440, 16
        %v3486 = vrot.slane %v3484, 5
        %v3487 = vor.u32 %v3483, %v3486
        %v3488 = vsel %vm2922, %v3478, %v3487
        %v3490 = vshrl.u32 %v3441, 16
        %v3492 = vrot.slane %v3490, 4
        %v3493 = vshll.u32 %v3441, 16
        %v3495 = vrot.slane %v3493, 5
        %v3496 = vor.u32 %v3492, %v3495
        %v3497 = vsel %vm2922, %v3487, %v3496
        %v3499 = vshrl.u32 %v3442, 16
        %v3501 = vrot.slane %v3499, 4
        %v3502 = vshll.u32 %v3442, 16
        %v3504 = vrot.slane %v3502, 5
        %v3505 = vor.u32 %v3501, %v3504
        %v3506 = vsel %vm2922, %v3496, %v3505
        %v3508 = vshrl.u32 %v3443, 16
        %v3510 = vrot.slane %v3508, 4
        %v3511 = vshll.u32 %v3443, 16
        %v3513 = vrot.slane %v3511, 5
        %v3514 = vor.u32 %v3510, %v3513
        %v3515 = vsel %vm2922, %v3505, %v3514
        %v3517 = vshrl.u32 %v3444, 16
        %v3519 = vrot.slane %v3517, 4
        %v3520 = vshll.u32 %v3444, 16
        %v3522 = vrot.slane %v3520, 5
        %v3523 = vor.u32 %v3519, %v3522
        %v3524 = vsel %vm2922, %v3514, %v3523
        %3533 = vst [vmem:[#allocation4 + $0x40] sm:$0xff] %v3461
        %3534 = vst [vmem:[#allocation4 + $0x88] sm:$0xff] %v3470
        %3535 = vst [vmem:[#allocation4 + $0xd0] sm:$0xff] %v3479
        %3536 = vst [vmem:[#allocation4 + $0x118] sm:$0xff] %v3488
        %3537 = vst [vmem:[#allocation4 + $0x160] sm:$0xff] %v3497
        %3538 = vst [vmem:[#allocation4 + $0x1a8] sm:$0xff] %v3506
        %3539 = vst [vmem:[#allocation4 + $0x1f0] sm:$0xff] %v3515
        %3540 = vst [vmem:[#allocation4 + $0x238] sm:$0xff] %v3524
        %v3541 = vld [vmem:[#allocation4] sm:$0xff]
        %v3542 = vld [vmem:[#allocation4 + $0x8] sm:$0xff]
        %v3543 = vld [vmem:[#allocation4 + $0x10] sm:$0xff]
        %v3544 = vld [vmem:[#allocation4 + $0x18] sm:$0xff]
        %v3545 = vld [vmem:[#allocation4 + $0x20] sm:$0xff]
        %v3546 = vld [vmem:[#allocation4 + $0x28] sm:$0xff]
        %v3547 = vld [vmem:[#allocation4 + $0x30] sm:$0xff]
        %v3548 = vld [vmem:[#allocation4 + $0x38] sm:$0xff]
        %v3549 = vld [vmem:[#allocation4 + $0x40] sm:$0xff]
        %v3550 = vld [vmem:[#allocation4 + $0x48] sm:$0xff]
        %v3551 = vld [vmem:[#allocation4 + $0x50] sm:$0xff]
        %v3552 = vld [vmem:[#allocation4 + $0x58] sm:$0xff]
        %v3553 = vld [vmem:[#allocation4 + $0x60] sm:$0xff]
        %v3554 = vld [vmem:[#allocation4 + $0x68] sm:$0xff]
        %v3555 = vld [vmem:[#allocation4 + $0x70] sm:$0xff]
        %v3556 = vld [vmem:[#allocation4 + $0x78] sm:$0xff]
        %v3557 = vld [vmem:[#allocation4 + $0x80] sm:$0xff]
        %v3558 = vld [vmem:[#allocation4 + $0x88] sm:$0xff]
        %v3559 = vld [vmem:[#allocation4 + $0x90] sm:$0xff]
        %v3560 = vld [vmem:[#allocation4 + $0x98] sm:$0xff]
        %v3561 = vld [vmem:[#allocation4 + $0xa0] sm:$0xff]
        %v3562 = vld [vmem:[#allocation4 + $0xa8] sm:$0xff]
        %v3563 = vld [vmem:[#allocation4 + $0xb0] sm:$0xff]
        %v3564 = vld [vmem:[#allocation4 + $0xb8] sm:$0xff]
        %v3565 = vld [vmem:[#allocation4 + $0xc0] sm:$0xff]
        %v3566 = vld [vmem:[#allocation4 + $0xc8] sm:$0xff]
        %v3567 = vld [vmem:[#allocation4 + $0xd0] sm:$0xff]
        %v3568 = vld [vmem:[#allocation4 + $0xd8] sm:$0xff]
        %v3569 = vld [vmem:[#allocation4 + $0xe0] sm:$0xff]
        %v3570 = vld [vmem:[#allocation4 + $0xe8] sm:$0xff]
        %v3571 = vld [vmem:[#allocation4 + $0xf0] sm:$0xff]
        %v3572 = vld [vmem:[#allocation4 + $0xf8] sm:$0xff]
        %v3573 = vld [vmem:[#allocation4 + $0x100] sm:$0xff]
        %v3574 = vld [vmem:[#allocation4 + $0x108] sm:$0xff]
        %v3575 = vld [vmem:[#allocation4 + $0x110] sm:$0xff]
        %v3576 = vld [vmem:[#allocation4 + $0x118] sm:$0xff]
        %v3577 = vld [vmem:[#allocation4 + $0x120] sm:$0xff]
        %v3578 = vld [vmem:[#allocation4 + $0x128] sm:$0xff]
        %v3579 = vld [vmem:[#allocation4 + $0x130] sm:$0xff]
        %v3580 = vld [vmem:[#allocation4 + $0x138] sm:$0xff]
        %v3581 = vld [vmem:[#allocation4 + $0x140] sm:$0xff]
        %v3582 = vld [vmem:[#allocation4 + $0x148] sm:$0xff]
        %v3583 = vld [vmem:[#allocation4 + $0x150] sm:$0xff]
        %v3584 = vld [vmem:[#allocation4 + $0x158] sm:$0xff]
        %v3585 = vld [vmem:[#allocation4 + $0x160] sm:$0xff]
        %v3586 = vld [vmem:[#allocation4 + $0x168] sm:$0xff]
        %v3587 = vld [vmem:[#allocation4 + $0x170] sm:$0xff]
        %v3588 = vld [vmem:[#allocation4 + $0x178] sm:$0xff]
        %v3589 = vld [vmem:[#allocation4 + $0x180] sm:$0xff]
        %v3590 = vld [vmem:[#allocation4 + $0x188] sm:$0xff]
        %v3591 = vld [vmem:[#allocation4 + $0x190] sm:$0xff]
        %v3592 = vld [vmem:[#allocation4 + $0x198] sm:$0xff]
        %v3593 = vld [vmem:[#allocation4 + $0x1a0] sm:$0xff]
        %v3594 = vld [vmem:[#allocation4 + $0x1a8] sm:$0xff]
        %v3595 = vld [vmem:[#allocation4 + $0x1b0] sm:$0xff]
        %v3596 = vld [vmem:[#allocation4 + $0x1b8] sm:$0xff]
        %v3597 = vld [vmem:[#allocation4 + $0x1c0] sm:$0xff]
        %v3598 = vld [vmem:[#allocation4 + $0x1c8] sm:$0xff]
        %v3599 = vld [vmem:[#allocation4 + $0x1d0] sm:$0xff]
        %v3600 = vld [vmem:[#allocation4 + $0x1d8] sm:$0xff]
        %v3601 = vld [vmem:[#allocation4 + $0x1e0] sm:$0xff]
        %v3602 = vld [vmem:[#allocation4 + $0x1e8] sm:$0xff]
        %v3603 = vld [vmem:[#allocation4 + $0x1f0] sm:$0xff]
        %v3604 = vld [vmem:[#allocation4 + $0x1f8] sm:$0xff]
        %v3605 = vld [vmem:[#allocation4 + $0x200] sm:$0xff]
        %v3606 = vld [vmem:[#allocation4 + $0x208] sm:$0xff]
        %v3607 = vld [vmem:[#allocation4 + $0x210] sm:$0xff]
        %v3608 = vld [vmem:[#allocation4 + $0x218] sm:$0xff]
        %v3609 = vld [vmem:[#allocation4 + $0x220] sm:$0xff]
        %v3610 = vld [vmem:[#allocation4 + $0x228] sm:$0xff]
        %v3611 = vld [vmem:[#allocation4 + $0x230] sm:$0xff]
        %v3612 = vld [vmem:[#allocation4 + $0x238] sm:$0xff]
        %v3613 = vld [vmem:[#allocation12] sm:$0xf]
        %v3614 = vld [vmem:[#allocation12 + $0x4] sm:$0xf]
        %v3615 = vld [vmem:[#allocation12 + $0x8] sm:$0xf]
        %v3616 = vld [vmem:[#allocation12 + $0xc] sm:$0xf]
        %v3617 = vld [vmem:[#allocation12 + $0x10] sm:$0xf]
        %v3618 = vld [vmem:[#allocation12 + $0x14] sm:$0xf]
        %v3619 = vld [vmem:[#allocation12 + $0x18] sm:$0xf]
        %v3620 = vld [vmem:[#allocation12 + $0x1c] sm:$0xf]
        %v3621 = vld [vmem:[#allocation12 + $0x20] sm:$0xf]
        %v3622 = vld [vmem:[#allocation12 + $0x24] sm:$0xf]
        %v3623 = vld [vmem:[#allocation12 + $0x28] sm:$0xf]
        %v3624 = vld [vmem:[#allocation12 + $0x2c] sm:$0xf]
        %v3625 = vld [vmem:[#allocation12 + $0x30] sm:$0xf]
        %v3626 = vld [vmem:[#allocation12 + $0x34] sm:$0xf]
        %v3627 = vld [vmem:[#allocation12 + $0x38] sm:$0xf]
        %v3628 = vld [vmem:[#allocation12 + $0x3c] sm:$0xf]
        %v3629 = vld [vmem:[#allocation12 + $0x40] sm:$0xf]
        %v3630 = vld [vmem:[#allocation12 + $0x44] sm:$0xf]
        %v3631 = vld [vmem:[#allocation12 + $0x48] sm:$0xf]
        %v3632 = vld [vmem:[#allocation12 + $0x4c] sm:$0xf]
        %v3633 = vld [vmem:[#allocation12 + $0x50] sm:$0xf]
        %v3634 = vld [vmem:[#allocation12 + $0x54] sm:$0xf]
        %v3635 = vld [vmem:[#allocation12 + $0x58] sm:$0xf]
        %v3636 = vld [vmem:[#allocation12 + $0x5c] sm:$0xf]
        %v3637 = vld [vmem:[#allocation12 + $0x60] sm:$0xf]
        %v3638 = vld [vmem:[#allocation12 + $0x64] sm:$0xf]
        %v3639 = vld [vmem:[#allocation12 + $0x68] sm:$0xf]
        %v3640 = vld [vmem:[#allocation12 + $0x6c] sm:$0xf]
        %v3641 = vld [vmem:[#allocation12 + $0x70] sm:$0xf]
        %v3642 = vld [vmem:[#allocation12 + $0x74] sm:$0xf]
        %v3643 = vld [vmem:[#allocation12 + $0x78] sm:$0xf]
        %v3644 = vld [vmem:[#allocation12 + $0x7c] sm:$0xf]
        %v3645 = vld [vmem:[#allocation12 + $0x80] sm:$0xf]
        %v3646 = vld [vmem:[#allocation12 + $0x84] sm:$0xf]
        %v3647 = vld [vmem:[#allocation12 + $0x88] sm:$0xf]
        %v3648 = vld [vmem:[#allocation12 + $0x8c] sm:$0xf]
        %v3649 = vld [vmem:[#allocation12 + $0x90] sm:$0xf]
        %v3650 = vld [vmem:[#allocation12 + $0x94] sm:$0xf]
        %v3651 = vld [vmem:[#allocation12 + $0x98] sm:$0xf]
        %v3652 = vld [vmem:[#allocation12 + $0x9c] sm:$0xf]
        %v3653 = vld [vmem:[#allocation12 + $0xa0] sm:$0xf]
        %v3654 = vld [vmem:[#allocation12 + $0xa4] sm:$0xf]
        %v3655 = vld [vmem:[#allocation12 + $0xa8] sm:$0xf]
        %v3656 = vld [vmem:[#allocation12 + $0xac] sm:$0xf]
        %v3657 = vld [vmem:[#allocation12 + $0xb0] sm:$0xf]
        %v3658 = vld [vmem:[#allocation12 + $0xb4] sm:$0xf]
        %v3659 = vld [vmem:[#allocation12 + $0xb8] sm:$0xf]
        %v3660 = vld [vmem:[#allocation12 + $0xbc] sm:$0xf]
        %v3661 = vld [vmem:[#allocation12 + $0xc0] sm:$0xf]
        %v3662 = vld [vmem:[#allocation12 + $0xc4] sm:$0xf]
        %v3663 = vld [vmem:[#allocation12 + $0xc8] sm:$0xf]
        %v3664 = vld [vmem:[#allocation12 + $0xcc] sm:$0xf]
        %v3665 = vld [vmem:[#allocation12 + $0xd0] sm:$0xf]
        %v3666 = vld [vmem:[#allocation12 + $0xd4] sm:$0xf]
        %v3667 = vld [vmem:[#allocation12 + $0xd8] sm:$0xf]
        %v3668 = vld [vmem:[#allocation12 + $0xdc] sm:$0xf]
        %v3669 = vld [vmem:[#allocation12 + $0xe0] sm:$0xf]
        %v3670 = vld [vmem:[#allocation12 + $0xe4] sm:$0xf]
        %v3671 = vld [vmem:[#allocation12 + $0xe8] sm:$0xf]
        %v3672 = vld [vmem:[#allocation12 + $0xec] sm:$0xf]
        %v3673 = vld [vmem:[#allocation12 + $0xf0] sm:$0xf]
        %v3674 = vld [vmem:[#allocation12 + $0xf4] sm:$0xf]
        %v3675 = vld [vmem:[#allocation12 + $0xf8] sm:$0xf]
        %v3676 = vld [vmem:[#allocation12 + $0xfc] sm:$0xf]
        %v3677 = vld [vmem:[#allocation12 + $0x100] sm:$0xf]
        %v3678 = vld [vmem:[#allocation12 + $0x104] sm:$0xf]
        %v3679 = vld [vmem:[#allocation12 + $0x108] sm:$0xf]
        %v3680 = vld [vmem:[#allocation12 + $0x10c] sm:$0xf]
        %v3681 = vld [vmem:[#allocation12 + $0x110] sm:$0xf]
        %v3682 = vld [vmem:[#allocation12 + $0x114] sm:$0xf]
        %v3683 = vld [vmem:[#allocation12 + $0x118] sm:$0xf]
        %v3684 = vld [vmem:[#allocation12 + $0x11c] sm:$0xf]
        %v3685 = vld [vmem:[#allocation12 + $0x120] sm:$0xf]
        %v3686 = vld [vmem:[#allocation12 + $0x124] sm:$0xf]
        %v3687 = vld [vmem:[#allocation12 + $0x128] sm:$0xf]
        %v3688 = vld [vmem:[#allocation12 + $0x12c] sm:$0xf]
        %v3689 = vld [vmem:[#allocation12 + $0x130] sm:$0xf]
        %v3690 = vld [vmem:[#allocation12 + $0x134] sm:$0xf]
        %v3691 = vld [vmem:[#allocation12 + $0x138] sm:$0xf]
        %v3692 = vld [vmem:[#allocation12 + $0x13c] sm:$0xf]
        %v3693 = vld [vmem:[#allocation12 + $0x140] sm:$0xf]
        %v3694 = vld [vmem:[#allocation12 + $0x144] sm:$0xf]
        %v3695 = vld [vmem:[#allocation12 + $0x148] sm:$0xf]
        %v3696 = vld [vmem:[#allocation12 + $0x14c] sm:$0xf]
        %v3697 = vld [vmem:[#allocation12 + $0x150] sm:$0xf]
        %v3698 = vld [vmem:[#allocation12 + $0x154] sm:$0xf]
        %v3699 = vld [vmem:[#allocation12 + $0x158] sm:$0xf]
        %v3700 = vld [vmem:[#allocation12 + $0x15c] sm:$0xf]
        %v3701 = vld [vmem:[#allocation12 + $0x160] sm:$0xf]
        %v3702 = vld [vmem:[#allocation12 + $0x164] sm:$0xf]
        %v3703 = vld [vmem:[#allocation12 + $0x168] sm:$0xf]
        %v3704 = vld [vmem:[#allocation12 + $0x16c] sm:$0xf]
        %v3705 = vld [vmem:[#allocation12 + $0x170] sm:$0xf]
        %v3706 = vld [vmem:[#allocation12 + $0x174] sm:$0xf]
        %v3707 = vld [vmem:[#allocation12 + $0x178] sm:$0xf]
        %v3708 = vld [vmem:[#allocation12 + $0x17c] sm:$0xf]
        %v3709 = vld [vmem:[#allocation12 + $0x180] sm:$0xf]
        %v3710 = vld [vmem:[#allocation12 + $0x184] sm:$0xf]
        %v3711 = vld [vmem:[#allocation12 + $0x188] sm:$0xf]
        %v3712 = vld [vmem:[#allocation12 + $0x18c] sm:$0xf]
        %v3713 = vld [vmem:[#allocation12 + $0x190] sm:$0xf]
        %v3714 = vld [vmem:[#allocation12 + $0x194] sm:$0xf]
        %v3715 = vld [vmem:[#allocation12 + $0x198] sm:$0xf]
        %v3716 = vld [vmem:[#allocation12 + $0x19c] sm:$0xf]
        %v3717 = vld [vmem:[#allocation12 + $0x1a0] sm:$0xf]
        %v3718 = vld [vmem:[#allocation12 + $0x1a4] sm:$0xf]
        %v3719 = vld [vmem:[#allocation12 + $0x1a8] sm:$0xf]
        %v3720 = vld [vmem:[#allocation12 + $0x1ac] sm:$0xf]
        %v3721 = vld [vmem:[#allocation12 + $0x1b0] sm:$0xf]
        %v3722 = vld [vmem:[#allocation12 + $0x1b4] sm:$0xf]
        %v3723 = vld [vmem:[#allocation12 + $0x1b8] sm:$0xf]
        %v3724 = vld [vmem:[#allocation12 + $0x1bc] sm:$0xf]
        %v3725 = vld [vmem:[#allocation12 + $0x1c0] sm:$0xf]
        %v3726 = vld [vmem:[#allocation12 + $0x1c4] sm:$0xf]
        %v3727 = vld [vmem:[#allocation12 + $0x1c8] sm:$0xf]
        %v3728 = vld [vmem:[#allocation12 + $0x1cc] sm:$0xf]
        %v3729 = vld [vmem:[#allocation12 + $0x1d0] sm:$0xf]
        %v3730 = vld [vmem:[#allocation12 + $0x1d4] sm:$0xf]
        %v3731 = vld [vmem:[#allocation12 + $0x1d8] sm:$0xf]
        %v3732 = vld [vmem:[#allocation12 + $0x1dc] sm:$0xf]
        %v3733 = vld [vmem:[#allocation12 + $0x1e0] sm:$0xf]
        %v3734 = vld [vmem:[#allocation12 + $0x1e4] sm:$0xf]
        %v3735 = vld [vmem:[#allocation12 + $0x1e8] sm:$0xf]
        %v3736 = vld [vmem:[#allocation12 + $0x1ec] sm:$0xf]
        %v3737 = vld [vmem:[#allocation12 + $0x1f0] sm:$0xf]
        %v3738 = vld [vmem:[#allocation12 + $0x1f4] sm:$0xf]
        %v3739 = vld [vmem:[#allocation12 + $0x1f8] sm:$0xf]
        %v3740 = vld [vmem:[#allocation12 + $0x1fc] sm:$0xf]
        %v3741 = vld [vmem:[#allocation12 + $0x200] sm:$0xf]
        %v3742 = vld [vmem:[#allocation12 + $0x204] sm:$0xf]
        %v3743 = vld [vmem:[#allocation12 + $0x208] sm:$0xf]
        %v3744 = vld [vmem:[#allocation12 + $0x20c] sm:$0xf]
        %v3745 = vld [vmem:[#allocation12 + $0x210] sm:$0xf]
        %v3746 = vld [vmem:[#allocation12 + $0x214] sm:$0xf]
        %v3747 = vld [vmem:[#allocation12 + $0x218] sm:$0xf]
        %v3748 = vld [vmem:[#allocation12 + $0x21c] sm:$0xf]
        %v3749 = vld [vmem:[#allocation12 + $0x220] sm:$0xf]
        %v3750 = vld [vmem:[#allocation12 + $0x224] sm:$0xf]
        %v3751 = vld [vmem:[#allocation12 + $0x228] sm:$0xf]
        %v3752 = vld [vmem:[#allocation12 + $0x22c] sm:$0xf]
        %v3753 = vld [vmem:[#allocation12 + $0x230] sm:$0xf]
        %v3754 = vld [vmem:[#allocation12 + $0x234] sm:$0xf]
        %v3755 = vld [vmem:[#allocation12 + $0x238] sm:$0xf]
        %v3756 = vld [vmem:[#allocation12 + $0x23c] sm:$0xf]
        %v3901 = vunpack.c.l.b16 %v3613
        %v3902 = vunpack.c.l.b16 %v3614
        %v3903 = vunpack.c.l.b16 %v3615
        %v3904 = vunpack.c.l.b16 %v3616
        %v3905 = vunpack.c.l.b16 %v3617
        %v3906 = vunpack.c.l.b16 %v3618
        %v3907 = vunpack.c.l.b16 %v3619
        %v3908 = vunpack.c.l.b16 %v3620
        %v3909 = vunpack.c.l.b16 %v3621
        %v3910 = vunpack.c.l.b16 %v3622
        %v3911 = vunpack.c.l.b16 %v3623
        %v3912 = vunpack.c.l.b16 %v3624
        %v3913 = vunpack.c.l.b16 %v3625
        %v3914 = vunpack.c.l.b16 %v3626
        %v3915 = vunpack.c.l.b16 %v3627
        %v3916 = vunpack.c.l.b16 %v3628
        %v3917 = vunpack.c.l.b16 %v3629
        %v3918 = vunpack.c.l.b16 %v3630
        %v3919 = vunpack.c.l.b16 %v3631
        %v3920 = vunpack.c.l.b16 %v3632
        %v3921 = vunpack.c.l.b16 %v3633
        %v3922 = vunpack.c.l.b16 %v3634
        %v3923 = vunpack.c.l.b16 %v3635
        %v3924 = vunpack.c.l.b16 %v3636
        %v3925 = vunpack.c.l.b16 %v3637
        %v3926 = vunpack.c.l.b16 %v3638
        %v3927 = vunpack.c.l.b16 %v3639
        %v3928 = vunpack.c.l.b16 %v3640
        %v3929 = vunpack.c.l.b16 %v3641
        %v3930 = vunpack.c.l.b16 %v3642
        %v3931 = vunpack.c.l.b16 %v3643
        %v3932 = vunpack.c.l.b16 %v3644
        %v3933 = vunpack.c.l.b16 %v3645
        %v3934 = vunpack.c.l.b16 %v3646
        %v3935 = vunpack.c.l.b16 %v3647
        %v3936 = vunpack.c.l.b16 %v3648
        %v3937 = vunpack.c.l.b16 %v3649
        %v3938 = vunpack.c.l.b16 %v3650
        %v3939 = vunpack.c.l.b16 %v3651
        %v3940 = vunpack.c.l.b16 %v3652
        %v3941 = vunpack.c.l.b16 %v3653
        %v3942 = vunpack.c.l.b16 %v3654
        %v3943 = vunpack.c.l.b16 %v3655
        %v3944 = vunpack.c.l.b16 %v3656
        %v3945 = vunpack.c.l.b16 %v3657
        %v3946 = vunpack.c.l.b16 %v3658
        %v3947 = vunpack.c.l.b16 %v3659
        %v3948 = vunpack.c.l.b16 %v3660
        %v3949 = vunpack.c.l.b16 %v3661
        %v3950 = vunpack.c.l.b16 %v3662
        %v3951 = vunpack.c.l.b16 %v3663
        %v3952 = vunpack.c.l.b16 %v3664
        %v3953 = vunpack.c.l.b16 %v3665
        %v3954 = vunpack.c.l.b16 %v3666
        %v3955 = vunpack.c.l.b16 %v3667
        %v3956 = vunpack.c.l.b16 %v3668
        %v3957 = vunpack.c.l.b16 %v3669
        %v3958 = vunpack.c.l.b16 %v3670
        %v3959 = vunpack.c.l.b16 %v3671
        %v3960 = vunpack.c.l.b16 %v3672
        %v3961 = vunpack.c.l.b16 %v3673
        %v3962 = vunpack.c.l.b16 %v3674
        %v3963 = vunpack.c.l.b16 %v3675
        %v3964 = vunpack.c.l.b16 %v3676
        %v3965 = vunpack.c.l.b16 %v3677
        %v3966 = vunpack.c.l.b16 %v3678
        %v3967 = vunpack.c.l.b16 %v3679
        %v3968 = vunpack.c.l.b16 %v3680
        %v3969 = vunpack.c.l.b16 %v3681
        %v3970 = vunpack.c.l.b16 %v3682
        %v3971 = vunpack.c.l.b16 %v3683
        %v3972 = vunpack.c.l.b16 %v3684
        %v3973 = vunpack.c.l.b16 %v3685
        %v3974 = vunpack.c.l.b16 %v3686
        %v3975 = vunpack.c.l.b16 %v3687
        %v3976 = vunpack.c.l.b16 %v3688
        %v3977 = vunpack.c.l.b16 %v3689
        %v3978 = vunpack.c.l.b16 %v3690
        %v3979 = vunpack.c.l.b16 %v3691
        %v3980 = vunpack.c.l.b16 %v3692
        %v3981 = vunpack.c.l.b16 %v3693
        %v3982 = vunpack.c.l.b16 %v3694
        %v3983 = vunpack.c.l.b16 %v3695
        %v3984 = vunpack.c.l.b16 %v3696
        %v3985 = vunpack.c.l.b16 %v3697
        %v3986 = vunpack.c.l.b16 %v3698
        %v3987 = vunpack.c.l.b16 %v3699
        %v3988 = vunpack.c.l.b16 %v3700
        %v3989 = vunpack.c.l.b16 %v3701
        %v3990 = vunpack.c.l.b16 %v3702
        %v3991 = vunpack.c.l.b16 %v3703
        %v3992 = vunpack.c.l.b16 %v3704
        %v3993 = vunpack.c.l.b16 %v3705
        %v3994 = vunpack.c.l.b16 %v3706
        %v3995 = vunpack.c.l.b16 %v3707
        %v3996 = vunpack.c.l.b16 %v3708
        %v3997 = vunpack.c.l.b16 %v3709
        %v3998 = vunpack.c.l.b16 %v3710
        %v3999 = vunpack.c.l.b16 %v3711
        %v4000 = vunpack.c.l.b16 %v3712
        %v4001 = vunpack.c.l.b16 %v3713
        %v4002 = vunpack.c.l.b16 %v3714
        %v4003 = vunpack.c.l.b16 %v3715
        %v4004 = vunpack.c.l.b16 %v3716
        %v4005 = vunpack.c.l.b16 %v3717
        %v4006 = vunpack.c.l.b16 %v3718
        %v4007 = vunpack.c.l.b16 %v3719
        %v4008 = vunpack.c.l.b16 %v3720
        %v4009 = vunpack.c.l.b16 %v3721
        %v4010 = vunpack.c.l.b16 %v3722
        %v4011 = vunpack.c.l.b16 %v3723
        %v4012 = vunpack.c.l.b16 %v3724
        %v4013 = vunpack.c.l.b16 %v3725
        %v4014 = vunpack.c.l.b16 %v3726
        %v4015 = vunpack.c.l.b16 %v3727
        %v4016 = vunpack.c.l.b16 %v3728
        %v4017 = vunpack.c.l.b16 %v3729
        %v4018 = vunpack.c.l.b16 %v3730
        %v4019 = vunpack.c.l.b16 %v3731
        %v4020 = vunpack.c.l.b16 %v3732
        %v4021 = vunpack.c.l.b16 %v3733
        %v4022 = vunpack.c.l.b16 %v3734
        %v4023 = vunpack.c.l.b16 %v3735
        %v4024 = vunpack.c.l.b16 %v3736
        %v4025 = vunpack.c.l.b16 %v3737
        %v4026 = vunpack.c.l.b16 %v3738
        %v4027 = vunpack.c.l.b16 %v3739
        %v4028 = vunpack.c.l.b16 %v3740
        %v4029 = vunpack.c.l.b16 %v3741
        %v4030 = vunpack.c.l.b16 %v3742
        %v4031 = vunpack.c.l.b16 %v3743
        %v4032 = vunpack.c.l.b16 %v3744
        %v4033 = vunpack.c.l.b16 %v3745
        %v4034 = vunpack.c.l.b16 %v3746
        %v4035 = vunpack.c.l.b16 %v3747
        %v4036 = vunpack.c.l.b16 %v3748
        %v4037 = vunpack.c.l.b16 %v3749
        %v4038 = vunpack.c.l.b16 %v3750
        %v4039 = vunpack.c.l.b16 %v3751
        %v4040 = vunpack.c.l.b16 %v3752
        %v4041 = vunpack.c.l.b16 %v3753
        %v4042 = vunpack.c.l.b16 %v3754
        %v4043 = vunpack.c.l.b16 %v3755
        %v4044 = vunpack.c.l.b16 %v3756
        %v4045 = vpack.c.b16 %v3902, %v3901
        %v4046 = vpack.c.b16 %v3904, %v3903
        %v4047 = vpack.c.b16 %v3906, %v3905
        %v4048 = vpack.c.b16 %v3908, %v3907
        %v4049 = vpack.c.b16 %v3910, %v3909
        %v4050 = vpack.c.b16 %v3912, %v3911
        %v4051 = vpack.c.b16 %v3914, %v3913
        %v4052 = vpack.c.b16 %v3916, %v3915
        %v4053 = vpack.c.b16 %v3918, %v3917
        %v4054 = vpack.c.b16 %v3920, %v3919
        %v4055 = vpack.c.b16 %v3922, %v3921
        %v4056 = vpack.c.b16 %v3924, %v3923
        %v4057 = vpack.c.b16 %v3926, %v3925
        %v4058 = vpack.c.b16 %v3928, %v3927
        %v4059 = vpack.c.b16 %v3930, %v3929
        %v4060 = vpack.c.b16 %v3932, %v3931
        %v4061 = vpack.c.b16 %v3934, %v3933
        %v4062 = vpack.c.b16 %v3936, %v3935
        %v4063 = vpack.c.b16 %v3938, %v3937
        %v4064 = vpack.c.b16 %v3940, %v3939
        %v4065 = vpack.c.b16 %v3942, %v3941
        %v4066 = vpack.c.b16 %v3944, %v3943
        %v4067 = vpack.c.b16 %v3946, %v3945
        %v4068 = vpack.c.b16 %v3948, %v3947
        %v4069 = vpack.c.b16 %v3950, %v3949
        %v4070 = vpack.c.b16 %v3952, %v3951
        %v4071 = vpack.c.b16 %v3954, %v3953
        %v4072 = vpack.c.b16 %v3956, %v3955
        %v4073 = vpack.c.b16 %v3958, %v3957
        %v4074 = vpack.c.b16 %v3960, %v3959
        %v4075 = vpack.c.b16 %v3962, %v3961
        %v4076 = vpack.c.b16 %v3964, %v3963
        %v4077 = vpack.c.b16 %v3966, %v3965
        %v4078 = vpack.c.b16 %v3968, %v3967
        %v4079 = vpack.c.b16 %v3970, %v3969
        %v4080 = vpack.c.b16 %v3972, %v3971
        %v4081 = vpack.c.b16 %v3974, %v3973
        %v4082 = vpack.c.b16 %v3976, %v3975
        %v4083 = vpack.c.b16 %v3978, %v3977
        %v4084 = vpack.c.b16 %v3980, %v3979
        %v4085 = vpack.c.b16 %v3982, %v3981
        %v4086 = vpack.c.b16 %v3984, %v3983
        %v4087 = vpack.c.b16 %v3986, %v3985
        %v4088 = vpack.c.b16 %v3988, %v3987
        %v4089 = vpack.c.b16 %v3990, %v3989
        %v4090 = vpack.c.b16 %v3992, %v3991
        %v4091 = vpack.c.b16 %v3994, %v3993
        %v4092 = vpack.c.b16 %v3996, %v3995
        %v4093 = vpack.c.b16 %v3998, %v3997
        %v4094 = vpack.c.b16 %v4000, %v3999
        %v4095 = vpack.c.b16 %v4002, %v4001
        %v4096 = vpack.c.b16 %v4004, %v4003
        %v4097 = vpack.c.b16 %v4006, %v4005
        %v4098 = vpack.c.b16 %v4008, %v4007
        %v4099 = vpack.c.b16 %v4010, %v4009
        %v4100 = vpack.c.b16 %v4012, %v4011
        %v4101 = vpack.c.b16 %v4014, %v4013
        %v4102 = vpack.c.b16 %v4016, %v4015
        %v4103 = vpack.c.b16 %v4018, %v4017
        %v4104 = vpack.c.b16 %v4020, %v4019
        %v4105 = vpack.c.b16 %v4022, %v4021
        %v4106 = vpack.c.b16 %v4024, %v4023
        %v4107 = vpack.c.b16 %v4026, %v4025
        %v4108 = vpack.c.b16 %v4028, %v4027
        %v4109 = vpack.c.b16 %v4030, %v4029
        %v4110 = vpack.c.b16 %v4032, %v4031
        %v4111 = vpack.c.b16 %v4034, %v4033
        %v4112 = vpack.c.b16 %v4036, %v4035
        %v4113 = vpack.c.b16 %v4038, %v4037
        %v4114 = vpack.c.b16 %v4040, %v4039
        %v4115 = vpack.c.b16 %v4042, %v4041
        %v4116 = vpack.c.b16 %v4044, %v4043
        %4189 = vmatprep.subr.bf16.mxu0 0
        %4190 = vmatpush1.bf16.msra.mxu0 %v4045
        %4191 = vmatprep.subr.bf16.mxu0 0
        %4192 = vmatpush1.bf16.msra.mxu0 %v4046
        %4193 = vmatprep.subr.bf16.mxu0 0
        %4194 = vmatpush1.bf16.msra.mxu0 %v4047
        %4195 = vmatprep.subr.bf16.mxu0 0
        %4196 = vmatpush1.bf16.msra.mxu0 %v4048
        %4197 = vmatprep.subr.bf16.mxu0 0
        %4198 = vmatpush1.bf16.msra.mxu0 %v4049
        %4199 = vmatprep.subr.bf16.mxu0 0
        %4200 = vmatpush1.bf16.msra.mxu0 %v4050
        %4201 = vmatprep.subr.bf16.mxu0 0
        %4202 = vmatpush1.bf16.msra.mxu0 %v4051
        %4203 = vmatprep.subr.bf16.mxu0 0
        %4204 = vmatpush1.bf16.msra.mxu0 %v4052
        %4205 = vmatprep.subr.bf16.mxu0 0
        %4206 = vmatpush1.bf16.msra.mxu0 %v4053
        %4207 = vmatprep.subr.bf16.mxu0 0
        %4208 = vmatpush1.bf16.msra.mxu0 %v4054
        %4209 = vmatprep.subr.bf16.mxu0 0
        %4210 = vmatpush1.bf16.msra.mxu0 %v4055
        %4211 = vmatprep.subr.bf16.mxu0 0
        %4212 = vmatpush1.bf16.msra.mxu0 %v4056
        %4213 = vmatprep.subr.bf16.mxu0 0
        %4214 = vmatpush1.bf16.msra.mxu0 %v4057
        %4215 = vmatprep.subr.bf16.mxu0 0
        %4216 = vmatpush1.bf16.msra.mxu0 %v4058
        %4217 = vmatprep.subr.bf16.mxu0 0
        %4218 = vmatpush1.bf16.msra.mxu0 %v4059
        %4219 = vmatprep.subr.bf16.mxu0 0
        %4220 = vmatpush1.bf16.msra.mxu0 %v4060
        %4221 = vmatprep.mubr.bf16.mxu0 %v3542
        %4222 = vmatmul.mubr.bf16.gmra.mrb[0].mxu0 %v3541
        %v4223 = vpop.f32.mrb[0].mxu0
        %v4224 = vadd.f32 0.0, %v4223
        %v4225 = vpop.f32.mrb[0].mxu0
        %v4226 = vpop.f32.mrb[0].mxu0
        %v4227 = vadd.f32 0.0, %v4226
        %v4228 = vpop.f32.mrb[0].mxu0
        %4229 = vmatprep.mubr.bf16.mxu0 %v3551
        %4230 = vmatmul.mubr.bf16.gmra.mrb[0].mxu0 %v3550
        %v4231 = vpop.f32.mrb[0].mxu0
        %v4232 = vadd.f32 0.0, %v4231
        %v4233 = vpop.f32.mrb[0].mxu0
        %v4234 = vpop.f32.mrb[0].mxu0
        %v4235 = vadd.f32 0.0, %v4234
        %v4236 = vpop.f32.mrb[0].mxu0
        %4237 = vmatprep.mubr.bf16.mxu0 %v3560
        %4238 = vmatmul.mubr.bf16.gmra.mrb[0].mxu0 %v3559
        %v4239 = vpop.f32.mrb[0].mxu0
        %v4240 = vadd.f32 0.0, %v4239
        %v4241 = vpop.f32.mrb[0].mxu0
        %v4242 = vpop.f32.mrb[0].mxu0
        %v4243 = vadd.f32 0.0, %v4242
        %v4244 = vpop.f32.mrb[0].mxu0
        %4245 = vmatprep.mubr.bf16.mxu0 %v3569
        %4246 = vmatmul.mubr.bf16.gmra.mrb[0].mxu0 %v3568
        %v4247 = vpop.f32.mrb[0].mxu0
        %v4248 = vadd.f32 0.0, %v4247
        %v4249 = vpop.f32.mrb[0].mxu0
        %v4250 = vpop.f32.mrb[0].mxu0
        %v4251 = vadd.f32 0.0, %v4250
        %v4252 = vpop.f32.mrb[0].mxu0
        %4253 = vmatprep.mubr.bf16.mxu0 %v3578
        %4254 = vmatmul.mubr.bf16.gmra.mrb[0].mxu0 %v3577
        %v4255 = vpop.f32.mrb[0].mxu0
        %v4256 = vadd.f32 0.0, %v4255
        %v4257 = vpop.f32.mrb[0].mxu0
        %v4258 = vpop.f32.mrb[0].mxu0
        %v4259 = vadd.f32 0.0, %v4258
        %v4260 = vpop.f32.mrb[0].mxu0
        %4261 = vmatprep.mubr.bf16.mxu0 %v3587
        %4262 = vmatmul.mubr.bf16.gmra.mrb[0].mxu0 %v3586
        %v4263 = vpop.f32.mrb[0].mxu0
        %v4264 = vadd.f32 0.0, %v4263
        %v4265 = vpop.f32.mrb[0].mxu0
        %v4266 = vpop.f32.mrb[0].mxu0
        %v4267 = vadd.f32 0.0, %v4266
        %v4268 = vpop.f32.mrb[0].mxu0
        %4269 = vmatprep.mubr.bf16.mxu0 %v3596
        %4270 = vmatmul.mubr.bf16.gmra.mrb[0].mxu0 %v3595
        %v4271 = vpop.f32.mrb[0].mxu0
        %v4272 = vadd.f32 0.0, %v4271
        %v4273 = vpop.f32.mrb[0].mxu0
        %v4274 = vpop.f32.mrb[0].mxu0
        %v4275 = vadd.f32 0.0, %v4274
        %v4276 = vpop.f32.mrb[0].mxu0
        %4277 = vmatprep.mubr.bf16.mxu0 %v3605
        %4278 = vmatmul.mubr.bf16.gmra.mrb[0].mxu0 %v3604
        %v4279 = vpop.f32.mrb[0].mxu0
        %v4280 = vadd.f32 0.0, %v4279
        %v4281 = vpop.f32.mrb[0].mxu0
        %v4282 = vpop.f32.mrb[0].mxu0
        %v4283 = vadd.f32 0.0, %v4282
        %v4284 = vpop.f32.mrb[0].mxu0
        %4285 = vdwg.mxu0
        %4286 = vmatprep.subr.bf16.mxu0 0
        %4287 = vmatpush1.bf16.msra.mxu0 %v4061
        %4288 = vmatprep.subr.bf16.mxu0 0
        %4289 = vmatpush1.bf16.msra.mxu0 %v4062
        %4290 = vmatprep.subr.bf16.mxu0 0
        %4291 = vmatpush1.bf16.msra.mxu0 %v4063
        %4292 = vmatprep.subr.bf16.mxu0 0
        %4293 = vmatpush1.bf16.msra.mxu0 %v4064
        %4294 = vmatprep.subr.bf16.mxu0 0
        %4295 = vmatpush1.bf16.msra.mxu0 %v4065
        %4296 = vmatprep.subr.bf16.mxu0 0
        %4297 = vmatpush1.bf16.msra.mxu0 %v4066
        %4298 = vmatprep.subr.bf16.mxu0 0
        %4299 = vmatpush1.bf16.msra.mxu0 %v4067
        %4300 = vmatprep.subr.bf16.mxu0 0
        %4301 = vmatpush1.bf16.msra.mxu0 %v4068
        %4302 = vmatprep.subr.bf16.mxu0 0
        %4303 = vmatpush1.bf16.msra.mxu0 %v4069
        %4304 = vmatprep.subr.bf16.mxu0 0
        %4305 = vmatpush1.bf16.msra.mxu0 %v4070
        %4306 = vmatprep.subr.bf16.mxu0 0
        %4307 = vmatpush1.bf16.msra.mxu0 %v4071
        %4308 = vmatprep.subr.bf16.mxu0 0
        %4309 = vmatpush1.bf16.msra.mxu0 %v4072
        %4310 = vmatprep.subr.bf16.mxu0 0
        %4311 = vmatpush1.bf16.msra.mxu0 %v4073
        %4312 = vmatprep.subr.bf16.mxu0 0
        %4313 = vmatpush1.bf16.msra.mxu0 %v4074
        %4314 = vmatprep.subr.bf16.mxu0 0
        %4315 = vmatpush1.bf16.msra.mxu0 %v4075
        %4316 = vmatprep.subr.bf16.mxu0 0
        %4317 = vmatpush1.bf16.msra.mxu0 %v4076
        %4318 = vmatprep.mubr.bf16.mxu0 %v3544
        %4319 = vmatmul.mubr.bf16.gmra.mrb[0].mxu0 %v3543
        %v4320 = vpop.f32.mrb[0].mxu0
        %v4321 = vadd.f32 %v4224, %v4320
        %v4322 = vpop.f32.mrb[0].mxu0
        %v4323 = vpop.f32.mrb[0].mxu0
        %v4324 = vadd.f32 %v4227, %v4323
        %v4325 = vpop.f32.mrb[0].mxu0
        %4326 = vmatprep.mubr.bf16.mxu0 %v3553
        %4327 = vmatmul.mubr.bf16.gmra.mrb[0].mxu0 %v3552
        %v4328 = vpop.f32.mrb[0].mxu0
        %v4329 = vadd.f32 %v4232, %v4328
        %v4330 = vpop.f32.mrb[0].mxu0
        %v4331 = vpop.f32.mrb[0].mxu0
        %v4332 = vadd.f32 %v4235, %v4331
        %v4333 = vpop.f32.mrb[0].mxu0
        %4334 = vmatprep.mubr.bf16.mxu0 %v3562
        %4335 = vmatmul.mubr.bf16.gmra.mrb[0].mxu0 %v3561
        %v4336 = vpop.f32.mrb[0].mxu0
        %v4337 = vadd.f32 %v4240, %v4336
        %v4338 = vpop.f32.mrb[0].mxu0
        %v4339 = vpop.f32.mrb[0].mxu0
        %v4340 = vadd.f32 %v4243, %v4339
        %v4341 = vpop.f32.mrb[0].mxu0
        %4342 = vmatprep.mubr.bf16.mxu0 %v3571
        %4343 = vmatmul.mubr.bf16.gmra.mrb[0].mxu0 %v3570
        %v4344 = vpop.f32.mrb[0].mxu0
        %v4345 = vadd.f32 %v4248, %v4344
        %v4346 = vpop.f32.mrb[0].mxu0
        %v4347 = vpop.f32.mrb[0].mxu0
        %v4348 = vadd.f32 %v4251, %v4347
        %v4349 = vpop.f32.mrb[0].mxu0
        %4350 = vmatprep.mubr.bf16.mxu0 %v3580
        %4351 = vmatmul.mubr.bf16.gmra.mrb[0].mxu0 %v3579
        %v4352 = vpop.f32.mrb[0].mxu0
        %v4353 = vadd.f32 %v4256, %v4352
        %v4354 = vpop.f32.mrb[0].mxu0
        %v4355 = vpop.f32.mrb[0].mxu0
        %v4356 = vadd.f32 %v4259, %v4355
        %v4357 = vpop.f32.mrb[0].mxu0
        %4358 = vmatprep.mubr.bf16.mxu0 %v3589
        %4359 = vmatmul.mubr.bf16.gmra.mrb[0].mxu0 %v3588
        %v4360 = vpop.f32.mrb[0].mxu0
        %v4361 = vadd.f32 %v4264, %v4360
        %v4362 = vpop.f32.mrb[0].mxu0
        %v4363 = vpop.f32.mrb[0].mxu0
        %v4364 = vadd.f32 %v4267, %v4363
        %v4365 = vpop.f32.mrb[0].mxu0
        %4366 = vmatprep.mubr.bf16.mxu0 %v3598
        %4367 = vmatmul.mubr.bf16.gmra.mrb[0].mxu0 %v3597
        %v4368 = vpop.f32.mrb[0].mxu0
        %v4369 = vadd.f32 %v4272, %v4368
        %v4370 = vpop.f32.mrb[0].mxu0
        %v4371 = vpop.f32.mrb[0].mxu0
        %v4372 = vadd.f32 %v4275, %v4371
        %v4373 = vpop.f32.mrb[0].mxu0
        %4374 = vmatprep.mubr.bf16.mxu0 %v3607
        %4375 = vmatmul.mubr.bf16.gmra.mrb[0].mxu0 %v3606
        %v4376 = vpop.f32.mrb[0].mxu0
        %v4377 = vadd.f32 %v4280, %v4376
        %v4378 = vpop.f32.mrb[0].mxu0
        %v4379 = vpop.f32.mrb[0].mxu0
        %v4380 = vadd.f32 %v4283, %v4379
        %v4381 = vpop.f32.mrb[0].mxu0
        %4382 = vdwg.mxu0
        %4383 = vmatprep.subr.bf16.mxu0 0
        %4384 = vmatpush1.bf16.msra.mxu0 %v4077
        %4385 = vmatprep.subr.bf16.mxu0 0
        %4386 = vmatpush1.bf16.msra.mxu0 %v4078
        %4387 = vmatprep.subr.bf16.mxu0 0
        %4388 = vmatpush1.bf16.msra.mxu0 %v4079
        %4389 = vmatprep.subr.bf16.mxu0 0
        %4390 = vmatpush1.bf16.msra.mxu0 %v4080
        %4391 = vmatprep.subr.bf16.mxu0 0
        %4392 = vmatpush1.bf16.msra.mxu0 %v4081
        %4393 = vmatprep.subr.bf16.mxu0 0
        %4394 = vmatpush1.bf16.msra.mxu0 %v4082
        %4395 = vmatprep.subr.bf16.mxu0 0
        %4396 = vmatpush1.bf16.msra.mxu0 %v4083
        %4397 = vmatprep.subr.bf16.mxu0 0
        %4398 = vmatpush1.bf16.msra.mxu0 %v4084
        %4399 = vmatprep.subr.bf16.mxu0 0
        %4400 = vmatpush1.bf16.msra.mxu0 %v4085
        %4401 = vmatprep.subr.bf16.mxu0 0
        %4402 = vmatpush1.bf16.msra.mxu0 %v4086
        %4403 = vmatprep.subr.bf16.mxu0 0
        %4404 = vmatpush1.bf16.msra.mxu0 %v4087
        %4405 = vmatprep.subr.bf16.mxu0 0
        %4406 = vmatpush1.bf16.msra.mxu0 %v4088
        %4407 = vmatprep.subr.bf16.mxu0 0
        %4408 = vmatpush1.bf16.msra.mxu0 %v4089
        %4409 = vmatprep.subr.bf16.mxu0 0
        %4410 = vmatpush1.bf16.msra.mxu0 %v4090
        %4411 = vmatprep.subr.bf16.mxu0 0
        %4412 = vmatpush1.bf16.msra.mxu0 %v4091
        %4413 = vmatprep.subr.bf16.mxu0 0
        %4414 = vmatpush1.bf16.msra.mxu0 %v4092
        %4415 = vmatprep.mubr.bf16.mxu0 %v3546
        %4416 = vmatmul.mubr.bf16.gmra.mrb[0].mxu0 %v3545
        %v4417 = vpop.f32.mrb[0].mxu0
        %v4418 = vadd.f32 %v4321, %v4417
        %v4419 = vpop.f32.mrb[0].mxu0
        %v4420 = vpop.f32.mrb[0].mxu0
        %v4421 = vadd.f32 %v4324, %v4420
        %v4422 = vpop.f32.mrb[0].mxu0
        %4423 = vmatprep.mubr.bf16.mxu0 %v3555
        %4424 = vmatmul.mubr.bf16.gmra.mrb[0].mxu0 %v3554
        %v4425 = vpop.f32.mrb[0].mxu0
        %v4426 = vadd.f32 %v4329, %v4425
        %v4427 = vpop.f32.mrb[0].mxu0
        %v4428 = vpop.f32.mrb[0].mxu0
        %v4429 = vadd.f32 %v4332, %v4428
        %v4430 = vpop.f32.mrb[0].mxu0
        %4431 = vmatprep.mubr.bf16.mxu0 %v3564
        %4432 = vmatmul.mubr.bf16.gmra.mrb[0].mxu0 %v3563
        %v4433 = vpop.f32.mrb[0].mxu0
        %v4434 = vadd.f32 %v4337, %v4433
        %v4435 = vpop.f32.mrb[0].mxu0
        %v4436 = vpop.f32.mrb[0].mxu0
        %v4437 = vadd.f32 %v4340, %v4436
        %v4438 = vpop.f32.mrb[0].mxu0
        %4439 = vmatprep.mubr.bf16.mxu0 %v3573
        %4440 = vmatmul.mubr.bf16.gmra.mrb[0].mxu0 %v3572
        %v4441 = vpop.f32.mrb[0].mxu0
        %v4442 = vadd.f32 %v4345, %v4441
        %v4443 = vpop.f32.mrb[0].mxu0
        %v4444 = vpop.f32.mrb[0].mxu0
        %v4445 = vadd.f32 %v4348, %v4444
        %v4446 = vpop.f32.mrb[0].mxu0
        %4447 = vmatprep.mubr.bf16.mxu0 %v3582
        %4448 = vmatmul.mubr.bf16.gmra.mrb[0].mxu0 %v3581
        %v4449 = vpop.f32.mrb[0].mxu0
        %v4450 = vadd.f32 %v4353, %v4449
        %v4451 = vpop.f32.mrb[0].mxu0
        %v4452 = vpop.f32.mrb[0].mxu0
        %v4453 = vadd.f32 %v4356, %v4452
        %v4454 = vpop.f32.mrb[0].mxu0
        %4455 = vmatprep.mubr.bf16.mxu0 %v3591
        %4456 = vmatmul.mubr.bf16.gmra.mrb[0].mxu0 %v3590
        %v4457 = vpop.f32.mrb[0].mxu0
        %v4458 = vadd.f32 %v4361, %v4457
        %v4459 = vpop.f32.mrb[0].mxu0
        %v4460 = vpop.f32.mrb[0].mxu0
        %v4461 = vadd.f32 %v4364, %v4460
        %v4462 = vpop.f32.mrb[0].mxu0
        %4463 = vmatprep.mubr.bf16.mxu0 %v3600
        %4464 = vmatmul.mubr.bf16.gmra.mrb[0].mxu0 %v3599
        %v4465 = vpop.f32.mrb[0].mxu0
        %v4466 = vadd.f32 %v4369, %v4465
        %v4467 = vpop.f32.mrb[0].mxu0
        %v4468 = vpop.f32.mrb[0].mxu0
        %v4469 = vadd.f32 %v4372, %v4468
        %v4470 = vpop.f32.mrb[0].mxu0
        %4471 = vmatprep.mubr.bf16.mxu0 %v3609
        %4472 = vmatmul.mubr.bf16.gmra.mrb[0].mxu0 %v3608
        %v4473 = vpop.f32.mrb[0].mxu0
        %v4474 = vadd.f32 %v4377, %v4473
        %v4475 = vpop.f32.mrb[0].mxu0
        %v4476 = vpop.f32.mrb[0].mxu0
        %v4477 = vadd.f32 %v4380, %v4476
        %v4478 = vpop.f32.mrb[0].mxu0
        %4479 = vdwg.mxu0
        %4480 = vmatprep.subr.bf16.mxu0 0
        %4481 = vmatpush1.bf16.msra.mxu0 %v4093
        %4482 = vmatprep.subr.bf16.mxu0 0
        %4483 = vmatpush1.bf16.msra.mxu0 %v4094
        %4484 = vmatprep.subr.bf16.mxu0 0
        %4485 = vmatpush1.bf16.msra.mxu0 %v4095
        %4486 = vmatprep.subr.bf16.mxu0 0
        %4487 = vmatpush1.bf16.msra.mxu0 %v4096
        %4488 = vmatprep.subr.bf16.mxu0 0
        %4489 = vmatpush1.bf16.msra.mxu0 %v4097
        %4490 = vmatprep.subr.bf16.mxu0 0
        %4491 = vmatpush1.bf16.msra.mxu0 %v4098
        %4492 = vmatprep.subr.bf16.mxu0 0
        %4493 = vmatpush1.bf16.msra.mxu0 %v4099
        %4494 = vmatprep.subr.bf16.mxu0 0
        %4495 = vmatpush1.bf16.msra.mxu0 %v4100
        %4496 = vmatprep.subr.bf16.mxu0 0
        %4497 = vmatpush1.bf16.msra.mxu0 %v4101
        %4498 = vmatprep.subr.bf16.mxu0 0
        %4499 = vmatpush1.bf16.msra.mxu0 %v4102
        %4500 = vmatprep.subr.bf16.mxu0 0
        %4501 = vmatpush1.bf16.msra.mxu0 %v4103
        %4502 = vmatprep.subr.bf16.mxu0 0
        %4503 = vmatpush1.bf16.msra.mxu0 %v4104
        %4504 = vmatprep.subr.bf16.mxu0 0
        %4505 = vmatpush1.bf16.msra.mxu0 %v4105
        %4506 = vmatprep.subr.bf16.mxu0 0
        %4507 = vmatpush1.bf16.msra.mxu0 %v4106
        %4508 = vmatprep.subr.bf16.mxu0 0
        %4509 = vmatpush1.bf16.msra.mxu0 %v4107
        %4510 = vmatprep.subr.bf16.mxu0 0
        %4511 = vmatpush1.bf16.msra.mxu0 %v4108
        %4512 = vmatprep.mubr.bf16.mxu0 %v3548
        %4513 = vmatmul.mubr.bf16.gmra.mrb[0].mxu0 %v3547
        %v4514 = vpop.f32.mrb[0].mxu0
        %v4515 = vadd.f32 %v4418, %v4514
        %v4516 = vpop.f32.mrb[0].mxu0
        %v4517 = vpop.f32.mrb[0].mxu0
        %v4518 = vadd.f32 %v4421, %v4517
        %v4519 = vpop.f32.mrb[0].mxu0
        %4520 = vmatprep.mubr.bf16.mxu0 %v3557
        %4521 = vmatmul.mubr.bf16.gmra.mrb[0].mxu0 %v3556
        %v4522 = vpop.f32.mrb[0].mxu0
        %v4523 = vadd.f32 %v4426, %v4522
        %v4524 = vpop.f32.mrb[0].mxu0
        %v4525 = vpop.f32.mrb[0].mxu0
        %v4526 = vadd.f32 %v4429, %v4525
        %v4527 = vpop.f32.mrb[0].mxu0
        %4528 = vmatprep.mubr.bf16.mxu0 %v3566
        %4529 = vmatmul.mubr.bf16.gmra.mrb[0].mxu0 %v3565
        %v4530 = vpop.f32.mrb[0].mxu0
        %v4531 = vadd.f32 %v4434, %v4530
        %v4532 = vpop.f32.mrb[0].mxu0
        %v4533 = vpop.f32.mrb[0].mxu0
        %v4534 = vadd.f32 %v4437, %v4533
        %v4535 = vpop.f32.mrb[0].mxu0
        %4536 = vmatprep.mubr.bf16.mxu0 %v3575
        %4537 = vmatmul.mubr.bf16.gmra.mrb[0].mxu0 %v3574
        %v4538 = vpop.f32.mrb[0].mxu0
        %v4539 = vadd.f32 %v4442, %v4538
        %v4540 = vpop.f32.mrb[0].mxu0
        %v4541 = vpop.f32.mrb[0].mxu0
        %v4542 = vadd.f32 %v4445, %v4541
        %v4543 = vpop.f32.mrb[0].mxu0
        %4544 = vmatprep.mubr.bf16.mxu0 %v3584
        %4545 = vmatmul.mubr.bf16.gmra.mrb[0].mxu0 %v3583
        %v4546 = vpop.f32.mrb[0].mxu0
        %v4547 = vadd.f32 %v4450, %v4546
        %v4548 = vpop.f32.mrb[0].mxu0
        %v4549 = vpop.f32.mrb[0].mxu0
        %v4550 = vadd.f32 %v4453, %v4549
        %v4551 = vpop.f32.mrb[0].mxu0
        %4552 = vmatprep.mubr.bf16.mxu0 %v3593
        %4553 = vmatmul.mubr.bf16.gmra.mrb[0].mxu0 %v3592
        %v4554 = vpop.f32.mrb[0].mxu0
        %v4555 = vadd.f32 %v4458, %v4554
        %v4556 = vpop.f32.mrb[0].mxu0
        %v4557 = vpop.f32.mrb[0].mxu0
        %v4558 = vadd.f32 %v4461, %v4557
        %v4559 = vpop.f32.mrb[0].mxu0
        %4560 = vmatprep.mubr.bf16.mxu0 %v3602
        %4561 = vmatmul.mubr.bf16.gmra.mrb[0].mxu0 %v3601
        %v4562 = vpop.f32.mrb[0].mxu0
        %v4563 = vadd.f32 %v4466, %v4562
        %v4564 = vpop.f32.mrb[0].mxu0
        %v4565 = vpop.f32.mrb[0].mxu0
        %v4566 = vadd.f32 %v4469, %v4565
        %v4567 = vpop.f32.mrb[0].mxu0
        %4568 = vmatprep.mubr.bf16.mxu0 %v3611
        %4569 = vmatmul.mubr.bf16.gmra.mrb[0].mxu0 %v3610
        %v4570 = vpop.f32.mrb[0].mxu0
        %v4571 = vadd.f32 %v4474, %v4570
        %v4572 = vpop.f32.mrb[0].mxu0
        %v4573 = vpop.f32.mrb[0].mxu0
        %v4574 = vadd.f32 %v4477, %v4573
        %v4575 = vpop.f32.mrb[0].mxu0
        %4576 = vdwg.mxu0
        %4577 = vmatprep.subr.bf16.mxu0 0
        %4578 = vmatpush1.bf16.msra.mxu0 %v4109
        %4579 = vmatprep.subr.bf16.mxu0 0
        %4580 = vmatpush1.bf16.msra.mxu0 %v4110
        %4581 = vmatprep.subr.bf16.mxu0 0
        %4582 = vmatpush1.bf16.msra.mxu0 %v4111
        %4583 = vmatprep.subr.bf16.mxu0 0
        %4584 = vmatpush1.bf16.msra.mxu0 %v4112
        %4585 = vmatprep.subr.bf16.mxu0 0
        %4586 = vmatpush1.bf16.msra.mxu0 %v4113
        %4587 = vmatprep.subr.bf16.mxu0 0
        %4588 = vmatpush1.bf16.msra.mxu0 %v4114
        %4589 = vmatprep.subr.bf16.mxu0 0
        %4590 = vmatpush1.bf16.msra.mxu0 %v4115
        %4591 = vmatprep.subr.bf16.mxu0 0
        %4592 = vmatpush1.bf16.msra.mxu0 %v4116
        %4593 = vmatprep.subr.bf16.mxu0 0
        %4594 = vmatpush1.bf16.msra.mxu0 0
        %4595 = vmatprep.subr.bf16.mxu0 0
        %4596 = vmatpush1.bf16.msra.mxu0 0
        %4597 = vmatprep.subr.bf16.mxu0 0
        %4598 = vmatpush1.bf16.msra.mxu0 0
        %4599 = vmatprep.subr.bf16.mxu0 0
        %4600 = vmatpush1.bf16.msra.mxu0 0
        %4601 = vmatprep.subr.bf16.mxu0 0
        %4602 = vmatpush1.bf16.msra.mxu0 0
        %4603 = vmatprep.subr.bf16.mxu0 0
        %4604 = vmatpush1.bf16.msra.mxu0 0
        %4605 = vmatprep.subr.bf16.mxu0 0
        %4606 = vmatpush1.bf16.msra.mxu0 0
        %4607 = vmatprep.subr.bf16.mxu0 0
        %4608 = vmatpush1.bf16.msra.mxu0 0
        %4609 = vmatprep.mubr.bf16.mxu0 0
        %4610 = vmatmul.mubr.bf16.gmra.mrb[0].mxu0 %v3549
        %v4611 = vpop.f32.mrb[0].mxu0
        %v4612 = vadd.f32 %v4515, %v4611
        %v4613 = vpop.f32.mrb[0].mxu0
        %v4614 = vpop.f32.mrb[0].mxu0
        %v4615 = vadd.f32 %v4518, %v4614
        %v4616 = vpop.f32.mrb[0].mxu0
        %4617 = vmatprep.mubr.bf16.mxu0 0
        %4618 = vmatmul.mubr.bf16.gmra.mrb[0].mxu0 %v3558
        %v4619 = vpop.f32.mrb[0].mxu0
        %v4620 = vadd.f32 %v4523, %v4619
        %v4621 = vpop.f32.mrb[0].mxu0
        %v4622 = vpop.f32.mrb[0].mxu0
        %v4623 = vadd.f32 %v4526, %v4622
        %v4624 = vpop.f32.mrb[0].mxu0
        %4625 = vmatprep.mubr.bf16.mxu0 0
        %4626 = vmatmul.mubr.bf16.gmra.mrb[0].mxu0 %v3567
        %v4627 = vpop.f32.mrb[0].mxu0
        %v4628 = vadd.f32 %v4531, %v4627
        %v4629 = vpop.f32.mrb[0].mxu0
        %v4630 = vpop.f32.mrb[0].mxu0
        %v4631 = vadd.f32 %v4534, %v4630
        %v4632 = vpop.f32.mrb[0].mxu0
        %4633 = vmatprep.mubr.bf16.mxu0 0
        %4634 = vmatmul.mubr.bf16.gmra.mrb[0].mxu0 %v3576
        %v4635 = vpop.f32.mrb[0].mxu0
        %v4636 = vadd.f32 %v4539, %v4635
        %v4637 = vpop.f32.mrb[0].mxu0
        %v4638 = vpop.f32.mrb[0].mxu0
        %v4639 = vadd.f32 %v4542, %v4638
        %v4640 = vpop.f32.mrb[0].mxu0
        %4641 = vmatprep.mubr.bf16.mxu0 0
        %4642 = vmatmul.mubr.bf16.gmra.mrb[0].mxu0 %v3585
        %v4643 = vpop.f32.mrb[0].mxu0
        %v4644 = vadd.f32 %v4547, %v4643
        %v4645 = vpop.f32.mrb[0].mxu0
        %v4646 = vpop.f32.mrb[0].mxu0
        %v4647 = vadd.f32 %v4550, %v4646
        %v4648 = vpop.f32.mrb[0].mxu0
        %4649 = vmatprep.mubr.bf16.mxu0 0
        %4650 = vmatmul.mubr.bf16.gmra.mrb[0].mxu0 %v3594
        %v4651 = vpop.f32.mrb[0].mxu0
        %v4652 = vadd.f32 %v4555, %v4651
        %v4653 = vpop.f32.mrb[0].mxu0
        %v4654 = vpop.f32.mrb[0].mxu0
        %v4655 = vadd.f32 %v4558, %v4654
        %v4656 = vpop.f32.mrb[0].mxu0
        %4657 = vmatprep.mubr.bf16.mxu0 0
        %4658 = vmatmul.mubr.bf16.gmra.mrb[0].mxu0 %v3603
        %v4659 = vpop.f32.mrb[0].mxu0
        %v4660 = vadd.f32 %v4563, %v4659
        %v4661 = vpop.f32.mrb[0].mxu0
        %v4662 = vpop.f32.mrb[0].mxu0
        %v4663 = vadd.f32 %v4566, %v4662
        %v4664 = vpop.f32.mrb[0].mxu0
        %4665 = vmatprep.mubr.bf16.mxu0 0
        %4666 = vmatmul.mubr.bf16.gmra.mrb[0].mxu0 %v3612
        %v4667 = vpop.f32.mrb[0].mxu0
        %v4668 = vadd.f32 %v4571, %v4667
        %v4669 = vpop.f32.mrb[0].mxu0
        %v4670 = vpop.f32.mrb[0].mxu0
        %v4671 = vadd.f32 %v4574, %v4670
        %v4672 = vpop.f32.mrb[0].mxu0
        %4673 = vdwg.mxu0
        // Predicated region
        $region89: #{resnet_swin_forward.4} parent=51 // pred_check
          %p4674 = pneg %p472
        $region90: #{resnet_swin_forward.4} parent=51 // pred_check_branch
          %4676 = sbr.rel (%p4674) target = $region92
        $region91: #{resnet_swin_forward.4} parent=51 // pred_region
          %4677 = vst [vmem:[#allocation5] sm:$0xff] %v4612
          %4678 = vst [vmem:[#allocation5 + $0x8] sm:$0xff] %v4615
          %4679 = vst [vmem:[#allocation5 + $0x10] sm:$0xff] %v4620
          %4680 = vst [vmem:[#allocation5 + $0x18] sm:$0xff] %v4623
          %4681 = vst [vmem:[#allocation5 + $0x20] sm:$0xff] %v4628
          %4682 = vst [vmem:[#allocation5 + $0x28] sm:$0xff] %v4631
          %4683 = vst [vmem:[#allocation5 + $0x30] sm:$0xff] %v4636
          %4684 = vst [vmem:[#allocation5 + $0x38] sm:$0xff] %v4639
          %4685 = vst [vmem:[#allocation5 + $0x40] sm:$0xff] %v4644
          %4686 = vst [vmem:[#allocation5 + $0x48] sm:$0xff] %v4647
          %4687 = vst [vmem:[#allocation5 + $0x50] sm:$0xff] %v4652
          %4688 = vst [vmem:[#allocation5 + $0x58] sm:$0xff] %v4655
          %4689 = vst [vmem:[#allocation5 + $0x60] sm:$0xff] %v4660
          %4690 = vst [vmem:[#allocation5 + $0x68] sm:$0xff] %v4663
          %4691 = vst [vmem:[#allocation5 + $0x70] sm:$0xff] %v4668
          %4692 = vst [vmem:[#allocation5 + $0x78] sm:$0xff] %v4671
        $region92: #{resnet_swin_forward.4} parent=51 // pred_fallthru
          _
        %p4693 = scmp.ne.s32.totalorder %s33, 0
        // Predicated region
        $region93: #{resnet_swin_forward.4} parent=51 // pred_check
          %p4694 = pneg %p4693
        $region94: #{resnet_swin_forward.4} parent=51 // pred_check_branch
          %4696 = sbr.rel (%p4694) target = $region96
        $region95: #{resnet_swin_forward.4} parent=51 // pred_region
          %v4697 = vld [vmem:[#allocation5] sm:$0xff]
          %v4698 = vld [vmem:[#allocation5 + $0x8] sm:$0xff]
          %v4699 = vld [vmem:[#allocation5 + $0x10] sm:$0xff]
          %v4700 = vld [vmem:[#allocation5 + $0x18] sm:$0xff]
          %v4701 = vld [vmem:[#allocation5 + $0x20] sm:$0xff]
          %v4702 = vld [vmem:[#allocation5 + $0x28] sm:$0xff]
          %v4703 = vld [vmem:[#allocation5 + $0x30] sm:$0xff]
          %v4704 = vld [vmem:[#allocation5 + $0x38] sm:$0xff]
          %v4705 = vld [vmem:[#allocation5 + $0x40] sm:$0xff]
          %v4706 = vld [vmem:[#allocation5 + $0x48] sm:$0xff]
          %v4707 = vld [vmem:[#allocation5 + $0x50] sm:$0xff]
          %v4708 = vld [vmem:[#allocation5 + $0x58] sm:$0xff]
          %v4709 = vld [vmem:[#allocation5 + $0x60] sm:$0xff]
          %v4710 = vld [vmem:[#allocation5 + $0x68] sm:$0xff]
          %v4711 = vld [vmem:[#allocation5 + $0x70] sm:$0xff]
          %v4712 = vld [vmem:[#allocation5 + $0x78] sm:$0xff]
          %v4713 = vadd.f32 %v4697, %v4612
          %v4714 = vadd.f32 %v4698, %v4615
          %v4715 = vadd.f32 %v4699, %v4620
          %v4716 = vadd.f32 %v4700, %v4623
          %v4717 = vadd.f32 %v4701, %v4628
          %v4718 = vadd.f32 %v4702, %v4631
          %v4719 = vadd.f32 %v4703, %v4636
          %v4720 = vadd.f32 %v4704, %v4639
          %v4721 = vadd.f32 %v4705, %v4644
          %v4722 = vadd.f32 %v4706, %v4647
          %v4723 = vadd.f32 %v4707, %v4652
          %v4724 = vadd.f32 %v4708, %v4655
          %v4725 = vadd.f32 %v4709, %v4660
          %v4726 = vadd.f32 %v4710, %v4663
          %v4727 = vadd.f32 %v4711, %v4668
          %v4728 = vadd.f32 %v4712, %v4671
          %4729 = vst [vmem:[#allocation5] sm:$0xff] %v4713
          %4730 = vst [vmem:[#allocation5 + $0x8] sm:$0xff] %v4714
          %4731 = vst [vmem:[#allocation5 + $0x10] sm:$0xff] %v4715
          %4732 = vst [vmem:[#allocation5 + $0x18] sm:$0xff] %v4716
          %4733 = vst [vmem:[#allocation5 + $0x20] sm:$0xff] %v4717
          %4734 = vst [vmem:[#allocation5 + $0x28] sm:$0xff] %v4718
          %4735 = vst [vmem:[#allocation5 + $0x30] sm:$0xff] %v4719
          %4736 = vst [vmem:[#allocation5 + $0x38] sm:$0xff] %v4720
          %4737 = vst [vmem:[#allocation5 + $0x40] sm:$0xff] %v4721
          %4738 = vst [vmem:[#allocation5 + $0x48] sm:$0xff] %v4722
          %4739 = vst [vmem:[#allocation5 + $0x50] sm:$0xff] %v4723
          %4740 = vst [vmem:[#allocation5 + $0x58] sm:$0xff] %v4724
          %4741 = vst [vmem:[#allocation5 + $0x60] sm:$0xff] %v4725
          %4742 = vst [vmem:[#allocation5 + $0x68] sm:$0xff] %v4726
          %4743 = vst [vmem:[#allocation5 + $0x70] sm:$0xff] %v4727
          %4744 = vst [vmem:[#allocation5 + $0x78] sm:$0xff] %v4728
        $region96: #{resnet_swin_forward.4} parent=51 // pred_fallthru
          _
        // Predicated region
        $region97: #{resnet_swin_forward.4} parent=51 // pred_check
          %p4745 = pneg %p472
        $region98: #{resnet_swin_forward.4} parent=51 // pred_check_branch
          %4747 = sbr.rel (%p4745) target = $region100
        $region99: #{resnet_swin_forward.4} parent=51 // pred_region
          %v4748 = vld [vmem:[%s421] sm:$0xf]
          %v4749 = vld [vmem:[%s421 + $0x4] sm:$0xf]
          %v4750 = vld [vmem:[%s421 + $0x8] sm:$0xf]
          %v4751 = vld [vmem:[%s421 + $0xc] sm:$0xf]
          %v4752 = vld [vmem:[%s421 + $0x10] sm:$0xf]
          %v4753 = vld [vmem:[%s421 + $0x14] sm:$0xf]
          %v4754 = vld [vmem:[%s421 + $0x18] sm:$0xf]
          %v4755 = vld [vmem:[%s421 + $0x1c] sm:$0xf]
          %v4756 = vld [vmem:[#allocation13] sm:$0xf]
          %v4757 = vld [vmem:[#allocation13 + $0x4] sm:$0xf]
          %v4758 = vld [vmem:[#allocation13 + $0x8] sm:$0xf]
          %v4759 = vld [vmem:[#allocation13 + $0xc] sm:$0xf]
          %v4760 = vld [vmem:[#allocation13 + $0x10] sm:$0xf]
          %v4761 = vld [vmem:[#allocation13 + $0x14] sm:$0xf]
          %v4762 = vld [vmem:[#allocation13 + $0x18] sm:$0xf]
          %v4763 = vld [vmem:[#allocation13 + $0x1c] sm:$0xf]
          %v4764 = vld [vmem:[#allocation13 + $0x20] sm:$0xf]
          %v4765 = vld [vmem:[#allocation13 + $0x24] sm:$0xf]
          %v4766 = vld [vmem:[#allocation13 + $0x28] sm:$0xf]
          %v4767 = vld [vmem:[#allocation13 + $0x2c] sm:$0xf]
          %v4768 = vld [vmem:[#allocation13 + $0x30] sm:$0xf]
          %v4769 = vld [vmem:[#allocation13 + $0x34] sm:$0xf]
          %v4770 = vld [vmem:[#allocation13 + $0x38] sm:$0xf]
          %v4771 = vld [vmem:[#allocation13 + $0x3c] sm:$0xf]
          %v4780 = vunpack.c.l.b16 %v4748
          %v4781 = vunpack.c.l.b16 %v4749
          %v4782 = vunpack.c.l.b16 %v4750
          %v4783 = vunpack.c.l.b16 %v4751
          %v4784 = vunpack.c.l.b16 %v4752
          %v4785 = vunpack.c.l.b16 %v4753
          %v4786 = vunpack.c.l.b16 %v4754
          %v4787 = vunpack.c.l.b16 %v4755
          %v4788 = vpack.c.b16 %v4781, %v4780
          %v4789 = vpack.c.b16 %v4783, %v4782
          %v4790 = vpack.c.b16 %v4785, %v4784
          %v4791 = vpack.c.b16 %v4787, %v4786
          %v4812 = vunpack.c.l.b16 %v4756
          %v4813 = vunpack.c.l.b16 %v4757
          %v4814 = vunpack.c.l.b16 %v4758
          %v4815 = vunpack.c.l.b16 %v4759
          %v4816 = vunpack.c.l.b16 %v4760
          %v4817 = vunpack.c.l.b16 %v4761
          %v4818 = vunpack.c.l.b16 %v4762
          %v4819 = vunpack.c.l.b16 %v4763
          %v4820 = vunpack.c.l.b16 %v4764
          %v4821 = vunpack.c.l.b16 %v4765
          %v4822 = vunpack.c.l.b16 %v4766
          %v4823 = vunpack.c.l.b16 %v4767
          %v4824 = vunpack.c.l.b16 %v4768
          %v4825 = vunpack.c.l.b16 %v4769
          %v4826 = vunpack.c.l.b16 %v4770
          %v4827 = vunpack.c.l.b16 %v4771
          %v4828 = vpack.c.b16 %v4813, %v4812
          %v4829 = vpack.c.b16 %v4815, %v4814
          %v4830 = vpack.c.b16 %v4817, %v4816
          %v4831 = vpack.c.b16 %v4819, %v4818
          %v4832 = vpack.c.b16 %v4821, %v4820
          %v4833 = vpack.c.b16 %v4823, %v4822
          %v4834 = vpack.c.b16 %v4825, %v4824
          %v4835 = vpack.c.b16 %v4827, %v4826
          %4844 = vmatprep.subr.bf16.mxu0 0
          %4845 = vmatpush1.bf16.msra.mxu0 %v4828
          %4846 = vmatprep.subr.bf16.mxu0 0
          %4847 = vmatpush1.bf16.msra.mxu0 %v4829
          %4848 = vmatprep.subr.bf16.mxu0 0
          %4849 = vmatpush1.bf16.msra.mxu0 %v4830
          %4850 = vmatprep.subr.bf16.mxu0 0
          %4851 = vmatpush1.bf16.msra.mxu0 %v4831
          %4852 = vmatprep.subr.bf16.mxu0 0
          %4853 = vmatpush1.bf16.msra.mxu0 %v4832
          %4854 = vmatprep.subr.bf16.mxu0 0
          %4855 = vmatpush1.bf16.msra.mxu0 %v4833
          %4856 = vmatprep.subr.bf16.mxu0 0
          %4857 = vmatpush1.bf16.msra.mxu0 %v4834
          %4858 = vmatprep.subr.bf16.mxu0 0
          %4859 = vmatpush1.bf16.msra.mxu0 %v4835
          %4860 = vmatprep.subr.bf16.mxu0 0
          %4861 = vmatpush1.bf16.msra.mxu0 0
          %4862 = vmatprep.subr.bf16.mxu0 0
          %4863 = vmatpush1.bf16.msra.mxu0 0
          %4864 = vmatprep.subr.bf16.mxu0 0
          %4865 = vmatpush1.bf16.msra.mxu0 0
          %4866 = vmatprep.subr.bf16.mxu0 0
          %4867 = vmatpush1.bf16.msra.mxu0 0
          %4868 = vmatprep.subr.bf16.mxu0 0
          %4869 = vmatpush1.bf16.msra.mxu0 0
          %4870 = vmatprep.subr.bf16.mxu0 0
          %4871 = vmatpush1.bf16.msra.mxu0 0
          %4872 = vmatprep.subr.bf16.mxu0 0
          %4873 = vmatpush1.bf16.msra.mxu0 0
          %4874 = vmatprep.subr.bf16.mxu0 0
          %4875 = vmatpush1.bf16.msra.mxu0 0
          %4876 = vmatprep.mubr.bf16.mxu0 0
          %4877 = vmatmul.mubr.bf16.gmra.mrb[0].mxu0 %v4788
          %v4878 = vpop.f32.mrb[0].mxu0
          %v4879 = vadd.f32 0.0, %v4878
          %v4880 = vpop.f32.mrb[0].mxu0
          %v4881 = vpop.f32.mrb[0].mxu0
          %v4882 = vadd.f32 0.0, %v4881
          %v4883 = vpop.f32.mrb[0].mxu0
          %4884 = vmatprep.mubr.bf16.mxu0 0
          %4885 = vmatmul.mubr.bf16.gmra.mrb[0].mxu0 %v4789
          %v4886 = vpop.f32.mrb[0].mxu0
          %v4887 = vadd.f32 0.0, %v4886
          %v4888 = vpop.f32.mrb[0].mxu0
          %v4889 = vpop.f32.mrb[0].mxu0
          %v4890 = vadd.f32 0.0, %v4889
          %v4891 = vpop.f32.mrb[0].mxu0
          %4892 = vmatprep.mubr.bf16.mxu0 0
          %4893 = vmatmul.mubr.bf16.gmra.mrb[0].mxu0 %v4790
          %v4894 = vpop.f32.mrb[0].mxu0
          %v4895 = vadd.f32 0.0, %v4894
          %v4896 = vpop.f32.mrb[0].mxu0
          %v4897 = vpop.f32.mrb[0].mxu0
          %v4898 = vadd.f32 0.0, %v4897
          %v4899 = vpop.f32.mrb[0].mxu0
          %4900 = vmatprep.mubr.bf16.mxu0 0
          %4901 = vmatmul.mubr.bf16.gmra.mrb[0].mxu0 %v4791
          %v4902 = vpop.f32.mrb[0].mxu0
          %v4903 = vadd.f32 0.0, %v4902
          %v4904 = vpop.f32.mrb[0].mxu0
          %v4905 = vpop.f32.mrb[0].mxu0
          %v4906 = vadd.f32 0.0, %v4905
          %v4907 = vpop.f32.mrb[0].mxu0
          %4908 = vdwg.mxu0
          %4909 = vst [vmem:[#allocation6] sm:$0xff] %v4879
          %4910 = vst [vmem:[#allocation6 + $0x8] sm:$0xff] %v4882
          %4911 = vst [vmem:[#allocation6 + $0x10] sm:$0xff] %v4887
          %4912 = vst [vmem:[#allocation6 + $0x18] sm:$0xff] %v4890
          %4913 = vst [vmem:[#allocation6 + $0x20] sm:$0xff] %v4895
          %4914 = vst [vmem:[#allocation6 + $0x28] sm:$0xff] %v4898
          %4915 = vst [vmem:[#allocation6 + $0x30] sm:$0xff] %v4903
          %4916 = vst [vmem:[#allocation6 + $0x38] sm:$0xff] %v4906
          %v4917 = vld [vmem:[#allocation16] sm:$0x1]
          %v4918 = vld [vmem:[#allocation17] sm:$0x1]
          %v4919 = vld [vmem:[#allocation5] sm:$0xff]
          %v4921 = vlaneseq
          %v4922 = vshrl.u32 %v4921, 7
          %v4923 = vsub.s32 0, %v4922
          %v4924 = vrot.slane %v4917, %v4923
          %v4926 = vmul.f32 %v4919, %v4924
          %v4928 = vlaneseq
          %v4929 = vshrl.u32 %v4928, 7
          %v4930 = vsub.s32 0, %v4929
          %v4931 = vrot.slane %v4918, %v4930
          %v4933 = vadd.f32 %v4926, %v4931
          %v4934 = vld [vmem:[#allocation6] sm:$0xff]
          %v4935 = vadd.f32 %v4933, %v4934
          %v4936 = vmax.f32 %v4935, 0.0
          %v4937 = vpack.c.bf16 %v4936, %v4936
          %4938 = vst [vmem:[%s470] sm:$0xf] %v4937
          %v4939 = vld [vmem:[#allocation5 + $0x10] sm:$0xff]
          %v4940 = vmul.f32 %v4939, %v4924
          %v4941 = vadd.f32 %v4940, %v4931
          %v4942 = vld [vmem:[#allocation6 + $0x8] sm:$0xff]
          %v4943 = vadd.f32 %v4941, %v4942
          %v4944 = vmax.f32 %v4943, 0.0
          %v4945 = vpack.c.bf16 %v4944, %v4944
          %4946 = vst [vmem:[%s470 + $0x4] sm:$0xf] %v4945
          %v4947 = vld [vmem:[#allocation5 + $0x20] sm:$0xff]
          %v4948 = vmul.f32 %v4947, %v4924
          %v4949 = vadd.f32 %v4948, %v4931
          %v4950 = vld [vmem:[#allocation6 + $0x10] sm:$0xff]
          %v4951 = vadd.f32 %v4949, %v4950
          %v4952 = vmax.f32 %v4951, 0.0
          %v4953 = vpack.c.bf16 %v4952, %v4952
          %4954 = vst [vmem:[%s470 + $0x8] sm:$0xf] %v4953
          %v4955 = vld [vmem:[#allocation5 + $0x30] sm:$0xff]
          %v4956 = vmul.f32 %v4955, %v4924
          %v4957 = vadd.f32 %v4956, %v4931
          %v4958 = vld [vmem:[#allocation6 + $0x18] sm:$0xff]
          %v4959 = vadd.f32 %v4957, %v4958
          %v4960 = vmax.f32 %v4959, 0.0
          %v4961 = vpack.c.bf16 %v4960, %v4960
          %4962 = vst [vmem:[%s470 + $0xc] sm:$0xf] %v4961
          %v4963 = vld [vmem:[#allocation5 + $0x40] sm:$0xff]
          %v4964 = vmul.f32 %v4963, %v4924
          %v4965 = vadd.f32 %v4964, %v4931
          %v4966 = vld [vmem:[#allocation6 + $0x20] sm:$0xff]
          %v4967 = vadd.f32 %v4965, %v4966
          %v4968 = vmax.f32 %v4967, 0.0
          %v4969 = vpack.c.bf16 %v4968, %v4968
          %4970 = vst [vmem:[%s470 + $0x10] sm:$0xf] %v4969
          %v4971 = vld [vmem:[#allocation5 + $0x50] sm:$0xff]
          %v4972 = vmul.f32 %v4971, %v4924
          %v4973 = vadd.f32 %v4972, %v4931
          %v4974 = vld [vmem:[#allocation6 + $0x28] sm:$0xff]
          %v4975 = vadd.f32 %v4973, %v4974
          %v4976 = vmax.f32 %v4975, 0.0
          %v4977 = vpack.c.bf16 %v4976, %v4976
          %4978 = vst [vmem:[%s470 + $0x14] sm:$0xf] %v4977
          %v4979 = vld [vmem:[#allocation5 + $0x60] sm:$0xff]
          %v4980 = vmul.f32 %v4979, %v4924
          %v4981 = vadd.f32 %v4980, %v4931
          %v4982 = vld [vmem:[#allocation6 + $0x30] sm:$0xff]
          %v4983 = vadd.f32 %v4981, %v4982
          %v4984 = vmax.f32 %v4983, 0.0
          %v4985 = vpack.c.bf16 %v4984, %v4984
          %4986 = vst [vmem:[%s470 + $0x18] sm:$0xf] %v4985
          %v4987 = vld [vmem:[#allocation5 + $0x70] sm:$0xff]
          %v4988 = vmul.f32 %v4987, %v4924
          %v4989 = vadd.f32 %v4988, %v4931
          %v4990 = vld [vmem:[#allocation6 + $0x38] sm:$0xff]
          %v4991 = vadd.f32 %v4989, %v4990
          %v4992 = vmax.f32 %v4991, 0.0
          %v4993 = vpack.c.bf16 %v4992, %v4992
          %4994 = vst [vmem:[%s470 + $0x1c] sm:$0xf] %v4993
        $region100: #{resnet_swin_forward.4} parent=51 // pred_fallthru
          _
        %s4995 = sand.u32 %s236, 1
        %s4996 = scalar_lea.sflag [#allocation9], %s4995
        %s4997 = sand.u32 %s236, 1
        %s4998 = smul.addr %s4997, 32
        %s4999 = scalar_lea.vmem [#allocation20], %s4998
        // Predicated region
        $region101: #{resnet_swin_forward.4} parent=51 // pred_check
          %p5000 = pneg %p246
        $region102: #{resnet_swin_forward.4} parent=51 // pred_check_branch
          %5002 = sbr.rel (%p5000) target = $region104
        $region103: #{resnet_swin_forward.4} parent=51 // pred_region
          %s5004 = ssub.s32 512, 512
          %5005 = vsyncadd %s4996, %s5004
          %s5006 = smul.addr %s32, 8
          %s5007 = smul.addr %s5006, 64
          %s5008 = scalar_lea.hbm %s8, %s5007
          %s5009 = sshll.u32 %s4999, 4
          %s5010 = int_to_ptr.vmem [resolvable:$true] %s5009
          %5015 = dma.vmem_to_hbm [thread:$0]  %s5010, 512, %s5008, %s4996, 64, 64, 4
        $region104: #{resnet_swin_forward.4} parent=51 // pred_fallthru
          _
      $region52: #{resnet_swin_forward.4} parent=5 // pred_fallthru
        _
      %p5016 = scmp.le.s32.totalorder 2, %s23
      // Predicated region
      $region105: #{resnet_swin_forward.4} parent=5 // pred_check
        %p5017 = pneg %p5016
      $region106: #{resnet_swin_forward.4} parent=5 // pred_check_branch
        %5019 = sbr.rel (%p5017) target = $region108
      $region107: #{resnet_swin_forward.4} parent=5 // pred_region
        %s5020 = ssub.s32 %s23, 2
        // Predicated region
        $region109: #{resnet_swin_forward.4} parent=107 // pred_check
          %p5021 = pneg %p252
        $region110: #{resnet_swin_forward.4} parent=107 // pred_check_branch
          %5023 = sbr.rel (%p5021) target = $region112
        $region111: #{resnet_swin_forward.4} parent=107 // pred_region
          %s5024 = sand.u32 %s237, 1
          %s5025 = scalar_lea.sflag [#allocation9], %s5024
          %s5026 = sand.u32 %s237, 1
          %s5027 = smul.addr %s5026, 32
          %s5028 = scalar_lea.vmem [#allocation20], %s5027
          %5029 = dma.done %s5025, 512
        $region112: #{resnet_swin_forward.4} parent=107 // pred_fallthru
          _
      $region108: #{resnet_swin_forward.4} parent=5 // pred_fallthru
        _
    $region6: #{resnet_swin_forward.4} parent=1 // loop_footer
      %s27 = sadd.s32 1, %s23
    $region7: #{resnet_swin_forward.4} parent=1 // loop_footer_branch
      %22 = sbr.rel target = $region3
    $region8: #{resnet_swin_forward.4} parent=1 // loop_exit
      _
    %5030 = vsyncpa [#allocation8], 1
    %s5031 = scalar_lea.sflag [#allocation8], 1
    %5032 = vsyncpa %s5031, 1
    %5033 = vsyncpa [#allocation11], 1
    %5034 = vsyncpa [#allocation14], 1
    %5035 = vsyncpa [#allocation19], 1
    %5036 = vsyncpa [#allocation9], 1
    %s5037 = scalar_lea.sflag [#allocation9], 1
    %5038 = vsyncpa %s5037, 1

</llo_original>
